<compile_context>
chip_gen: v7x
topology: tpu7x:2x2x1
jax: 0.10.0
libtpu: 0.0.40
codegen_flags: <defaults>
</compile_context>

<pallas_src>
import functools
import math

import jax
import jax.numpy as jnp
from jax.experimental import pallas as pl
from jax.experimental.pallas import tpu as pltpu

# ----------------------------- model config ------------------------------- #
N_SKILL = 16          # small synthetic vocabulary
MAX_SEQ = 16          # pos embeddings have MAX_SEQ - 1 rows
EMBED_DIM = 32        # d_model
NUM_HEADS = 4         # head_dim = 8
FF_DIM = 2048         # PyTorch Transformer*Layer default dim_feedforward
LN_EPS = 1e-5
OUT_LANES = 128       # lane-dense output slab width
NEG_BIG = -1e30       # future_mask(): True -> -inf

_VMEM = pl.BlockSpec(memory_space=pltpu.MemorySpace.VMEM)


# ------------------------------ fused kernel -------------------------------- #
def _sakt_fused_kernel(
    # activations + joint attention mask
    enc_in_ref, dec_in_ref, mask_ref,
    # encoder layer: self-attn, ln1, ffn, ln2
    e_wqkv_ref, e_bqkv_ref, e_wo_ref, e_bo_ref, e_ln1g_ref, e_ln1b_ref,
    e_w1_ref, e_b1_ref, e_w2_ref, e_b2_ref, e_ln2g_ref, e_ln2b_ref,
    # decoder layer: self-attn, ln1, cross-attn, ln2, ffn, ln3
    ds_wqkv_ref, ds_bqkv_ref, ds_wo_ref, ds_bo_ref, d_ln1g_ref, d_ln1b_ref,
    dc_wqkv_ref, dc_bqkv_ref, dc_wo_ref, dc_bo_ref, d_ln2g_ref, d_ln2b_ref,
    d_w1_ref, d_b1_ref, d_w2_ref, d_b2_ref, d_ln3g_ref, d_ln3b_ref,
    # prediction head: final LN, FFN(embed->embed), pred(embed->1)
    h_lng_ref, h_lnb_ref, h_w1_ref, h_b1_ref, h_w2_ref, h_b2_ref,
    h_wp_ref, h_bp_ref,
    # output
    out_ref,
    *, num_heads):
    n, d = enc_in_ref.shape
    dh = d // num_heads
    scale = 1.0 / math.sqrt(dh)
    mask = mask_ref[...]                               # (N, N) additive f32 mask

    def layer_norm(z, g_ref, b_ref):
        mu = jnp.mean(z, axis=-1, keepdims=True)
        zc = z - mu
        var = jnp.mean(zc * zc, axis=-1, keepdims=True)
        return zc * jax.lax.rsqrt(var + LN_EPS) * g_ref[...] + b_ref[...]

    def attention(xq, xkv, wqkv_ref, bqkv_ref, wo_ref, bo_ref, self_attn):
        wqkv = wqkv_ref[...]                           # (D, 3D) fused in-proj
        bqkv = bqkv_ref[...]                           # (1, 3D)
        if self_attn:                                  # one (N,D)@(D,3D) matmul
            qkv = jnp.dot(xq, wqkv, preferred_element_type=jnp.float32) + bqkv
            q, k, v = qkv[:, :d], qkv[:, d:2 * d], qkv[:, 2 * d:]
        else:                                          # cross-attn: q / kv split
            q = jnp.dot(xq, wqkv[:, :d],
                        preferred_element_type=jnp.float32) + bqkv[:, :d]
            kv = jnp.dot(xkv, wqkv[:, d:],
                         preferred_element_type=jnp.float32) + bqkv[:, d:]
            k, v = kv[:, :d], kv[:, d:]
        wo = wo_ref[...]                               # (D, D)
        # Accumulate each head's PV directly through its slice of the output
        # projection; avoids the lane-axis concatenate of 4x(N,8) head tiles.
        acc = jnp.zeros((n, d), jnp.float32)
        for h in range(num_heads):                     # static unroll, H=4
            sl = slice(h * dh, (h + 1) * dh)
            qh, kh, vh = q[:, sl], k[:, sl], v[:, sl]
            s = jax.lax.dot_general(qh, kh, (((1,), (1,)), ((), ())),
                                    preferred_element_type=jnp.float32)
            s = s * scale + mask
            s = s - jnp.max(s, axis=-1, keepdims=True)
            p = jnp.exp(s)
            p = p / jnp.sum(p, axis=-1, keepdims=True)
            pv = jnp.dot(p, vh, preferred_element_type=jnp.float32)
            acc = acc + jnp.dot(pv, wo[sl, :],
                                preferred_element_type=jnp.float32)
        return acc + bo_ref[...]

    def ffn_big(x, w1_ref, b1_ref, w2_ref, b2_ref):
        # dim_feedforward=2048 weights live in bf16 (MXU fast path), f32 accum;
        # elementwise math (bias add, relu) stays f32.
        hid = jnp.dot(x.astype(jnp.bfloat16), w1_ref[...],
                      preferred_element_type=jnp.float32) + b1_ref[...]
        hid = jnp.maximum(hid, 0.0)
        return jnp.dot(hid.astype(jnp.bfloat16), w2_ref[...],
                       preferred_element_type=jnp.float32) + b2_ref[...]

    # ---------------- encoder layer (post-norm) ----------------
    src = enc_in_ref[...]
    a = attention(src, src, e_wqkv_ref, e_bqkv_ref, e_wo_ref, e_bo_ref, True)
    src = layer_norm(src + a, e_ln1g_ref, e_ln1b_ref)
    f = ffn_big(src, e_w1_ref, e_b1_ref, e_w2_ref, e_b2_ref)
    memory = layer_norm(src + f, e_ln2g_ref, e_ln2b_ref)

    # ---------------- decoder layer (post-norm) ----------------
    tgt = dec_in_ref[...]
    a = attention(tgt, tgt, ds_wqkv_ref, ds_bqkv_ref, ds_wo_ref, ds_bo_ref, True)
    tgt = layer_norm(tgt + a, d_ln1g_ref, d_ln1b_ref)
    a = attention(tgt, memory, dc_wqkv_ref, dc_bqkv_ref, dc_wo_ref, dc_bo_ref,
                  False)
    tgt = layer_norm(tgt + a, d_ln2g_ref, d_ln2b_ref)
    f = ffn_big(tgt, d_w1_ref, d_b1_ref, d_w2_ref, d_b2_ref)
    att_dec = layer_norm(tgt + f, d_ln3g_ref, d_ln3b_ref)

    # -------- head: x = LN(att_dec); x = FFN(x) + att_dec; pred(x) ----------
    xl = layer_norm(att_dec, h_lng_ref, h_lnb_ref)
    hid = jnp.maximum(
        jnp.dot(xl, h_w1_ref[...], preferred_element_type=jnp.float32)
        + h_b1_ref[...], 0.0)
    y = (jnp.dot(hid, h_w2_ref[...], preferred_element_type=jnp.float32)
         + h_b2_ref[...] + att_dec)
    pred = (jnp.dot(y, h_wp_ref[...], preferred_element_type=jnp.float32)
            + h_bp_ref[...])                           # (N, 1)
    # Lane-dense writeback: broadcast the prediction column across all lanes so
    # the store is a full unmasked vst; the wrapper slices lane 0.
    out_ref[...] = jnp.broadcast_to(pred, (n, out_ref.shape[-1]))


# ------------------------------ pallas wrapper ------------------------------ #
def sakt_fused_call(enc_in, dec_in, attn_mask, flat_params, *, num_heads):
    # TODO(synk): at larger B, add a leading "parallel" batch grid axis (or a
    # core_map over the 2 TCs) so v7x's second TensorCore is used; at B=2/S=8
    # a single VMEM-resident invocation is the right shape.
    n, _ = enc_in.shape
    out = pl.pallas_call(
        functools.partial(_sakt_fused_kernel, num_heads=num_heads),
        out_shape=jax.ShapeDtypeStruct((n, OUT_LANES), jnp.float32),
        in_specs=[_VMEM] * (3 + len(flat_params)),
        out_specs=_VMEM,
    )(enc_in, dec_in, attn_mask, *flat_params)
    return out[:, 0]                                   # (N,) predictions


# ------------------------------ full forward -------------------------------- #
@jax.jit
def sakt_forward(params, x, question_ids, parts, elapsed_time,
                 duration_previous_content):
    B, S = x.shape
    assert S <= MAX_SEQ - 1, "pos embedding tables only have MAX_SEQ-1 rows"
    pos = jnp.arange(S)

    # encoder input: e_embedding(q) + pos_embedding_enc + part_embedding(parts)
    e = (jnp.take(params["e_emb"], question_ids, axis=0)
         + jnp.take(params["pos_enc"], pos, axis=0)[None, :, :]
         + jnp.take(params["part_emb"], parts, axis=0))
    # decoder input: embedding(x) + pos_embedding_dec + elapsed_time + duration
    xd = (jnp.take(params["embedding"], x, axis=0)
          + jnp.take(params["pos_dec"], pos, axis=0)[None, :, :]
          + jnp.take(params["el_emb"], elapsed_time, axis=0)
          + jnp.take(params["dur_emb"], duration_previous_content, axis=0))

    D = e.shape[-1]
    N = B * S
    # joint "same batch AND causal" additive mask on the flattened token axis
    tok = jnp.arange(N)
    same_batch = (tok[:, None] // S) == (tok[None, :] // S)
    causal = (tok[:, None] % S) >= (tok[None, :] % S)
    attn_mask = jnp.where(jnp.logical_and(same_batch, causal),
                          0.0, NEG_BIG).astype(jnp.float32)

    pred = sakt_fused_call(e.reshape(N, D), xd.reshape(N, D), attn_mask,
                           params["flat"], num_heads=NUM_HEADS)
    return pred.reshape(B, S)                          # .squeeze(-1)


# ------------------------------ parameter init ------------------------------ #
def init_params(key, n_skill, max_seq, d, ff_dim):
    keys = iter(jax.random.split(key, 64))

    def emb(n, dim):
        return 0.02 * jax.random.normal(next(keys), (n, dim), jnp.float32)

    def lin_t(out_d, in_d, wdtype=jnp.float32):
        bound = 1.0 / math.sqrt(in_d)
        w = jax.random.uniform(next(keys), (out_d, in_d), jnp.float32, -bound, bound)
        b = jax.random.uniform(next(keys), (out_d,), jnp.float32, -bound, bound)
        return w.T.astype(wdtype), b.reshape(1, out_d)   # y = x @ w_t + b

    def attn(dim):
        wqkv_t, bqkv = lin_t(3 * dim, dim)    # fused in-proj: (D, 3D), (1, 3D)
        wo_t, bo = lin_t(dim, dim)
        return (wqkv_t, bqkv, wo_t, bo)

    def ln(dim):
        return (jnp.ones((1, dim), jnp.float32), jnp.zeros((1, dim), jnp.float32))

    e_attn = attn(d)
    e_ln1 = ln(d)
    e_w1, e_b1 = lin_t(ff_dim, d, jnp.bfloat16)     # big FFN weights in bf16
    e_w2, e_b2 = lin_t(d, ff_dim, jnp.bfloat16)
    e_ln2 = ln(d)

    ds_attn = attn(d)
    d_ln1 = ln(d)
    dc_attn = attn(d)
    d_ln2 = ln(d)
    d_w1, d_b1 = lin_t(ff_dim, d, jnp.bfloat16)
    d_w2, d_b2 = lin_t(d, ff_dim, jnp.bfloat16)
    d_ln3 = ln(d)

    h_ln = ln(d)
    h_w1, h_b1 = lin_t(d, d)
    h_w2, h_b2 = lin_t(d, d)
    h_wp, h_bp = lin_t(1, d)

    flat = (*e_attn, *e_ln1, e_w1, e_b1, e_w2, e_b2, *e_ln2,
            *ds_attn, *d_ln1, *dc_attn, *d_ln2,
            d_w1, d_b1, d_w2, d_b2, *d_ln3,
            *h_ln, h_w1, h_b1, h_w2, h_b2, h_wp, h_bp)

    return {
        "embedding": emb(4 * n_skill + 1, d),
        "pos_enc": emb(max_seq - 1, d),
        "pos_dec": emb(max_seq - 1, d),
        "e_emb": emb(n_skill + 1, d),
        "part_emb": emb(8, d),
        "el_emb": emb(302, d),
        "dur_emb": emb(302, d),
        "flat": flat,
    }


# ---------------------------------- main ------------------------------------ #
if __name__ == "__main__":
    key = jax.random.PRNGKey(0)
    kp, kx, kq, kpt, ke, kd = jax.random.split(key, 6)
    params = init_params(kp, N_SKILL, MAX_SEQ, EMBED_DIM, FF_DIM)

    B, S = 2, 8
    x = jax.random.randint(kx, (B, S), 0, 4 * N_SKILL + 1, dtype=jnp.int32)
    question_ids = jax.random.randint(kq, (B, S), 0, N_SKILL + 1, dtype=jnp.int32)
    parts = jax.random.randint(kpt, (B, S), 0, 8, dtype=jnp.int32)
    elapsed_time = jax.random.randint(ke, (B, S), 0, 302, dtype=jnp.int32)
    duration_previous_content = jax.random.randint(kd, (B, S), 0, 302, dtype=jnp.int32)

    out = sakt_forward(params, x, question_ids, parts, elapsed_time,
                       duration_previous_content)
    jax.block_until_ready(out)
    assert out.shape == (B, S), out.shape
    assert bool(jnp.all(jnp.isfinite(out)))
    print("KERNEL_OK")
</pallas_src>

<mosaic_0001>
module attributes {stable_mosaic.version = 11 : i64} {
  func.func @_sakt_fused_kernel(%arg0: memref<16x32xf32, #tpu.memory_space<vmem>>, %arg1: memref<16x32xf32, #tpu.memory_space<vmem>>, %arg2: memref<16x16xf32, #tpu.memory_space<vmem>>, %arg3: memref<32x96xf32, #tpu.memory_space<vmem>>, %arg4: memref<1x96xf32, #tpu.memory_space<vmem>>, %arg5: memref<32x32xf32, #tpu.memory_space<vmem>>, %arg6: memref<1x32xf32, #tpu.memory_space<vmem>>, %arg7: memref<1x32xf32, #tpu.memory_space<vmem>>, %arg8: memref<1x32xf32, #tpu.memory_space<vmem>>, %arg9: memref<32x2048xbf16, #tpu.memory_space<vmem>>, %arg10: memref<1x2048xf32, #tpu.memory_space<vmem>>, %arg11: memref<2048x32xbf16, #tpu.memory_space<vmem>>, %arg12: memref<1x32xf32, #tpu.memory_space<vmem>>, %arg13: memref<1x32xf32, #tpu.memory_space<vmem>>, %arg14: memref<1x32xf32, #tpu.memory_space<vmem>>, %arg15: memref<32x96xf32, #tpu.memory_space<vmem>>, %arg16: memref<1x96xf32, #tpu.memory_space<vmem>>, %arg17: memref<32x32xf32, #tpu.memory_space<vmem>>, %arg18: memref<1x32xf32, #tpu.memory_space<vmem>>, %arg19: memref<1x32xf32, #tpu.memory_space<vmem>>, %arg20: memref<1x32xf32, #tpu.memory_space<vmem>>, %arg21: memref<32x96xf32, #tpu.memory_space<vmem>>, %arg22: memref<1x96xf32, #tpu.memory_space<vmem>>, %arg23: memref<32x32xf32, #tpu.memory_space<vmem>>, %arg24: memref<1x32xf32, #tpu.memory_space<vmem>>, %arg25: memref<1x32xf32, #tpu.memory_space<vmem>>, %arg26: memref<1x32xf32, #tpu.memory_space<vmem>>, %arg27: memref<32x2048xbf16, #tpu.memory_space<vmem>>, %arg28: memref<1x2048xf32, #tpu.memory_space<vmem>>, %arg29: memref<2048x32xbf16, #tpu.memory_space<vmem>>, %arg30: memref<1x32xf32, #tpu.memory_space<vmem>>, %arg31: memref<1x32xf32, #tpu.memory_space<vmem>>, %arg32: memref<1x32xf32, #tpu.memory_space<vmem>>, %arg33: memref<1x32xf32, #tpu.memory_space<vmem>>, %arg34: memref<1x32xf32, #tpu.memory_space<vmem>>, %arg35: memref<32x32xf32, #tpu.memory_space<vmem>>, %arg36: memref<1x32xf32, #tpu.memory_space<vmem>>, %arg37: memref<32x32xf32, #tpu.memory_space<vmem>>, %arg38: memref<1x32xf32, #tpu.memory_space<vmem>>, %arg39: memref<32x1xf32, #tpu.memory_space<vmem>>, %arg40: memref<1x1xf32, #tpu.memory_space<vmem>>, %arg41: memref<16x128xf32, #tpu.memory_space<vmem>>) attributes {dimension_semantics = [], scalar_prefetch = 0 : i64, scratch_operands = 0 : i64, tpu.core_type = #tpu.core_type<tc>} {
    %c0 = arith.constant 0 : index
    %c0_0 = arith.constant 0 : index
    %0 = vector.load %arg2[%c0, %c0_0] : memref<16x16xf32, #tpu.memory_space<vmem>>, vector<16x16xf32>
    %c0_1 = arith.constant 0 : index
    %c0_2 = arith.constant 0 : index
    %1 = vector.load %arg0[%c0_1, %c0_2] : memref<16x32xf32, #tpu.memory_space<vmem>>, vector<16x32xf32>
    %c0_3 = arith.constant 0 : index
    %c0_4 = arith.constant 0 : index
    %2 = vector.load %arg3[%c0_3, %c0_4] : memref<32x96xf32, #tpu.memory_space<vmem>>, vector<32x96xf32>
    %c0_5 = arith.constant 0 : index
    %c0_6 = arith.constant 0 : index
    %3 = vector.load %arg4[%c0_5, %c0_6] : memref<1x96xf32, #tpu.memory_space<vmem>>, vector<1x96xf32>
    %cst = arith.constant dense<0.000000e+00> : vector<16x96xf32>
    %4 = tpu.matmul %1, %2, %cst {dimension_numbers = #tpu.dot_dimension_numbers<[1], [0], [0], [1], [0, 0, 1, 1], [], []>} : vector<16x32xf32>, vector<32x96xf32>, vector<16x96xf32> -> vector<16x96xf32>
    %5 = vector.broadcast %3 : vector<1x96xf32> to vector<16x96xf32>
    %6 = arith.addf %4, %5 : vector<16x96xf32>
    %7 = vector.extract_strided_slice %6 {offsets = [0, 0], sizes = [16, 32], strides = [1, 1]} : vector<16x96xf32> to vector<16x32xf32>
    %8 = vector.extract_strided_slice %6 {offsets = [0, 32], sizes = [16, 32], strides = [1, 1]} : vector<16x96xf32> to vector<16x32xf32>
    %9 = vector.extract_strided_slice %6 {offsets = [0, 64], sizes = [16, 32], strides = [1, 1]} : vector<16x96xf32> to vector<16x32xf32>
    %c0_7 = arith.constant 0 : index
    %c0_8 = arith.constant 0 : index
    %10 = vector.load %arg5[%c0_7, %c0_8] : memref<32x32xf32, #tpu.memory_space<vmem>>, vector<32x32xf32>
    %cst_9 = arith.constant 0.000000e+00 : f32
    %11 = vector.broadcast %cst_9 : f32 to vector<16x32xf32>
    %12 = vector.extract_strided_slice %7 {offsets = [0, 0], sizes = [16, 8], strides = [1, 1]} : vector<16x32xf32> to vector<16x8xf32>
    %13 = vector.extract_strided_slice %8 {offsets = [0, 0], sizes = [16, 8], strides = [1, 1]} : vector<16x32xf32> to vector<16x8xf32>
    %14 = vector.extract_strided_slice %9 {offsets = [0, 0], sizes = [16, 8], strides = [1, 1]} : vector<16x32xf32> to vector<16x8xf32>
    %cst_10 = arith.constant dense<0.000000e+00> : vector<16x16xf32>
    %15 = tpu.matmul %12, %13, %cst_10 {dimension_numbers = #tpu.dot_dimension_numbers<[1], [1], [0], [0], [0, 0, 1, 0], [], []>} : vector<16x8xf32>, vector<16x8xf32>, vector<16x16xf32> -> vector<16x16xf32>
    %cst_11 = arith.constant 0.353553385 : f32
    %16 = vector.broadcast %cst_11 : f32 to vector<16x16xf32>
    %17 = arith.mulf %15, %16 : vector<16x16xf32>
    %18 = arith.addf %17, %0 : vector<16x16xf32>
    %cst_12 = arith.constant dense<0xFF800000> : vector<16xf32>
    %19 = vector.multi_reduction <maximumf>, %18, %cst_12 [1] : vector<16x16xf32> to vector<16xf32>
    %20 = vector.shape_cast %19 : vector<16xf32> to vector<16x1xf32>
    %21 = vector.broadcast %20 : vector<16x1xf32> to vector<16x16xf32>
    %22 = arith.subf %18, %21 : vector<16x16xf32>
    %23 = math.exp %22 : vector<16x16xf32>
    %cst_13 = arith.constant dense<0.000000e+00> : vector<16xf32>
    %24 = vector.multi_reduction <add>, %23, %cst_13 [1] : vector<16x16xf32> to vector<16xf32>
    %25 = vector.shape_cast %24 : vector<16xf32> to vector<16x1xf32>
    %26 = vector.broadcast %25 : vector<16x1xf32> to vector<16x16xf32>
    %27 = arith.divf %23, %26 : vector<16x16xf32>
    %cst_14 = arith.constant dense<0.000000e+00> : vector<16x8xf32>
    %28 = tpu.matmul %27, %14, %cst_14 {dimension_numbers = #tpu.dot_dimension_numbers<[1], [0], [0], [1], [0, 0, 1, 1], [], []>} : vector<16x16xf32>, vector<16x8xf32>, vector<16x8xf32> -> vector<16x8xf32>
    %29 = vector.extract_strided_slice %10 {offsets = [0, 0], sizes = [8, 32], strides = [1, 1]} : vector<32x32xf32> to vector<8x32xf32>
    %cst_15 = arith.constant dense<0.000000e+00> : vector<16x32xf32>
    %30 = tpu.matmul %28, %29, %cst_15 {dimension_numbers = #tpu.dot_dimension_numbers<[1], [0], [0], [1], [0, 0, 1, 1], [], []>} : vector<16x8xf32>, vector<8x32xf32>, vector<16x32xf32> -> vector<16x32xf32>
    %31 = arith.addf %11, %30 : vector<16x32xf32>
    %32 = vector.extract_strided_slice %7 {offsets = [0, 8], sizes = [16, 8], strides = [1, 1]} : vector<16x32xf32> to vector<16x8xf32>
    %33 = vector.extract_strided_slice %8 {offsets = [0, 8], sizes = [16, 8], strides = [1, 1]} : vector<16x32xf32> to vector<16x8xf32>
    %34 = vector.extract_strided_slice %9 {offsets = [0, 8], sizes = [16, 8], strides = [1, 1]} : vector<16x32xf32> to vector<16x8xf32>
    %cst_16 = arith.constant dense<0.000000e+00> : vector<16x16xf32>
    %35 = tpu.matmul %32, %33, %cst_16 {dimension_numbers = #tpu.dot_dimension_numbers<[1], [1], [0], [0], [0, 0, 1, 0], [], []>} : vector<16x8xf32>, vector<16x8xf32>, vector<16x16xf32> -> vector<16x16xf32>
    %cst_17 = arith.constant 0.353553385 : f32
    %36 = vector.broadcast %cst_17 : f32 to vector<16x16xf32>
    %37 = arith.mulf %35, %36 : vector<16x16xf32>
    %38 = arith.addf %37, %0 : vector<16x16xf32>
    %cst_18 = arith.constant dense<0xFF800000> : vector<16xf32>
    %39 = vector.multi_reduction <maximumf>, %38, %cst_18 [1] : vector<16x16xf32> to vector<16xf32>
    %40 = vector.shape_cast %39 : vector<16xf32> to vector<16x1xf32>
    %41 = vector.broadcast %40 : vector<16x1xf32> to vector<16x16xf32>
    %42 = arith.subf %38, %41 : vector<16x16xf32>
    %43 = math.exp %42 : vector<16x16xf32>
    %cst_19 = arith.constant dense<0.000000e+00> : vector<16xf32>
    %44 = vector.multi_reduction <add>, %43, %cst_19 [1] : vector<16x16xf32> to vector<16xf32>
    %45 = vector.shape_cast %44 : vector<16xf32> to vector<16x1xf32>
    %46 = vector.broadcast %45 : vector<16x1xf32> to vector<16x16xf32>
    %47 = arith.divf %43, %46 : vector<16x16xf32>
    %cst_20 = arith.constant dense<0.000000e+00> : vector<16x8xf32>
    %48 = tpu.matmul %47, %34, %cst_20 {dimension_numbers = #tpu.dot_dimension_numbers<[1], [0], [0], [1], [0, 0, 1, 1], [], []>} : vector<16x16xf32>, vector<16x8xf32>, vector<16x8xf32> -> vector<16x8xf32>
    %49 = vector.extract_strided_slice %10 {offsets = [8, 0], sizes = [8, 32], strides = [1, 1]} : vector<32x32xf32> to vector<8x32xf32>
    %cst_21 = arith.constant dense<0.000000e+00> : vector<16x32xf32>
    %50 = tpu.matmul %48, %49, %cst_21 {dimension_numbers = #tpu.dot_dimension_numbers<[1], [0], [0], [1], [0, 0, 1, 1], [], []>} : vector<16x8xf32>, vector<8x32xf32>, vector<16x32xf32> -> vector<16x32xf32>
    %51 = arith.addf %31, %50 : vector<16x32xf32>
    %52 = vector.extract_strided_slice %7 {offsets = [0, 16], sizes = [16, 8], strides = [1, 1]} : vector<16x32xf32> to vector<16x8xf32>
    %53 = vector.extract_strided_slice %8 {offsets = [0, 16], sizes = [16, 8], strides = [1, 1]} : vector<16x32xf32> to vector<16x8xf32>
    %54 = vector.extract_strided_slice %9 {offsets = [0, 16], sizes = [16, 8], strides = [1, 1]} : vector<16x32xf32> to vector<16x8xf32>
    %cst_22 = arith.constant dense<0.000000e+00> : vector<16x16xf32>
    %55 = tpu.matmul %52, %53, %cst_22 {dimension_numbers = #tpu.dot_dimension_numbers<[1], [1], [0], [0], [0, 0, 1, 0], [], []>} : vector<16x8xf32>, vector<16x8xf32>, vector<16x16xf32> -> vector<16x16xf32>
    %cst_23 = arith.constant 0.353553385 : f32
    %56 = vector.broadcast %cst_23 : f32 to vector<16x16xf32>
    %57 = arith.mulf %55, %56 : vector<16x16xf32>
    %58 = arith.addf %57, %0 : vector<16x16xf32>
    %cst_24 = arith.constant dense<0xFF800000> : vector<16xf32>
    %59 = vector.multi_reduction <maximumf>, %58, %cst_24 [1] : vector<16x16xf32> to vector<16xf32>
    %60 = vector.shape_cast %59 : vector<16xf32> to vector<16x1xf32>
    %61 = vector.broadcast %60 : vector<16x1xf32> to vector<16x16xf32>
    %62 = arith.subf %58, %61 : vector<16x16xf32>
    %63 = math.exp %62 : vector<16x16xf32>
    %cst_25 = arith.constant dense<0.000000e+00> : vector<16xf32>
    %64 = vector.multi_reduction <add>, %63, %cst_25 [1] : vector<16x16xf32> to vector<16xf32>
    %65 = vector.shape_cast %64 : vector<16xf32> to vector<16x1xf32>
    %66 = vector.broadcast %65 : vector<16x1xf32> to vector<16x16xf32>
    %67 = arith.divf %63, %66 : vector<16x16xf32>
    %cst_26 = arith.constant dense<0.000000e+00> : vector<16x8xf32>
    %68 = tpu.matmul %67, %54, %cst_26 {dimension_numbers = #tpu.dot_dimension_numbers<[1], [0], [0], [1], [0, 0, 1, 1], [], []>} : vector<16x16xf32>, vector<16x8xf32>, vector<16x8xf32> -> vector<16x8xf32>
    %69 = vector.extract_strided_slice %10 {offsets = [16, 0], sizes = [8, 32], strides = [1, 1]} : vector<32x32xf32> to vector<8x32xf32>
    %cst_27 = arith.constant dense<0.000000e+00> : vector<16x32xf32>
    %70 = tpu.matmul %68, %69, %cst_27 {dimension_numbers = #tpu.dot_dimension_numbers<[1], [0], [0], [1], [0, 0, 1, 1], [], []>} : vector<16x8xf32>, vector<8x32xf32>, vector<16x32xf32> -> vector<16x32xf32>
    %71 = arith.addf %51, %70 : vector<16x32xf32>
    %72 = vector.extract_strided_slice %7 {offsets = [0, 24], sizes = [16, 8], strides = [1, 1]} : vector<16x32xf32> to vector<16x8xf32>
    %73 = vector.extract_strided_slice %8 {offsets = [0, 24], sizes = [16, 8], strides = [1, 1]} : vector<16x32xf32> to vector<16x8xf32>
    %74 = vector.extract_strided_slice %9 {offsets = [0, 24], sizes = [16, 8], strides = [1, 1]} : vector<16x32xf32> to vector<16x8xf32>
    %cst_28 = arith.constant dense<0.000000e+00> : vector<16x16xf32>
    %75 = tpu.matmul %72, %73, %cst_28 {dimension_numbers = #tpu.dot_dimension_numbers<[1], [1], [0], [0], [0, 0, 1, 0], [], []>} : vector<16x8xf32>, vector<16x8xf32>, vector<16x16xf32> -> vector<16x16xf32>
    %cst_29 = arith.constant 0.353553385 : f32
    %76 = vector.broadcast %cst_29 : f32 to vector<16x16xf32>
    %77 = arith.mulf %75, %76 : vector<16x16xf32>
    %78 = arith.addf %77, %0 : vector<16x16xf32>
    %cst_30 = arith.constant dense<0xFF800000> : vector<16xf32>
    %79 = vector.multi_reduction <maximumf>, %78, %cst_30 [1] : vector<16x16xf32> to vector<16xf32>
    %80 = vector.shape_cast %79 : vector<16xf32> to vector<16x1xf32>
    %81 = vector.broadcast %80 : vector<16x1xf32> to vector<16x16xf32>
    %82 = arith.subf %78, %81 : vector<16x16xf32>
    %83 = math.exp %82 : vector<16x16xf32>
    %cst_31 = arith.constant dense<0.000000e+00> : vector<16xf32>
    %84 = vector.multi_reduction <add>, %83, %cst_31 [1] : vector<16x16xf32> to vector<16xf32>
    %85 = vector.shape_cast %84 : vector<16xf32> to vector<16x1xf32>
    %86 = vector.broadcast %85 : vector<16x1xf32> to vector<16x16xf32>
    %87 = arith.divf %83, %86 : vector<16x16xf32>
    %cst_32 = arith.constant dense<0.000000e+00> : vector<16x8xf32>
    %88 = tpu.matmul %87, %74, %cst_32 {dimension_numbers = #tpu.dot_dimension_numbers<[1], [0], [0], [1], [0, 0, 1, 1], [], []>} : vector<16x16xf32>, vector<16x8xf32>, vector<16x8xf32> -> vector<16x8xf32>
    %89 = vector.extract_strided_slice %10 {offsets = [24, 0], sizes = [8, 32], strides = [1, 1]} : vector<32x32xf32> to vector<8x32xf32>
    %cst_33 = arith.constant dense<0.000000e+00> : vector<16x32xf32>
    %90 = tpu.matmul %88, %89, %cst_33 {dimension_numbers = #tpu.dot_dimension_numbers<[1], [0], [0], [1], [0, 0, 1, 1], [], []>} : vector<16x8xf32>, vector<8x32xf32>, vector<16x32xf32> -> vector<16x32xf32>
    %91 = arith.addf %71, %90 : vector<16x32xf32>
    %c0_34 = arith.constant 0 : index
    %c0_35 = arith.constant 0 : index
    %92 = vector.load %arg6[%c0_34, %c0_35] : memref<1x32xf32, #tpu.memory_space<vmem>>, vector<1x32xf32>
    %93 = vector.broadcast %92 : vector<1x32xf32> to vector<16x32xf32>
    %94 = arith.addf %91, %93 : vector<16x32xf32>
    %95 = arith.addf %1, %94 : vector<16x32xf32>
    %cst_36 = arith.constant dense<0.000000e+00> : vector<16xf32>
    %96 = vector.multi_reduction <add>, %95, %cst_36 [1] : vector<16x32xf32> to vector<16xf32>
    %97 = vector.shape_cast %96 : vector<16xf32> to vector<16x1xf32>
    %cst_37 = arith.constant 3.200000e+01 : f32
    %98 = vector.broadcast %cst_37 : f32 to vector<16x1xf32>
    %99 = arith.divf %97, %98 : vector<16x1xf32>
    %100 = vector.broadcast %99 : vector<16x1xf32> to vector<16x32xf32>
    %101 = arith.subf %95, %100 : vector<16x32xf32>
    %102 = arith.mulf %101, %101 : vector<16x32xf32>
    %cst_38 = arith.constant dense<0.000000e+00> : vector<16xf32>
    %103 = vector.multi_reduction <add>, %102, %cst_38 [1] : vector<16x32xf32> to vector<16xf32>
    %104 = vector.shape_cast %103 : vector<16xf32> to vector<16x1xf32>
    %cst_39 = arith.constant 3.200000e+01 : f32
    %105 = vector.broadcast %cst_39 : f32 to vector<16x1xf32>
    %106 = arith.divf %104, %105 : vector<16x1xf32>
    %cst_40 = arith.constant 9.99999974E-6 : f32
    %107 = vector.broadcast %cst_40 : f32 to vector<16x1xf32>
    %108 = arith.addf %106, %107 : vector<16x1xf32>
    %109 = math.rsqrt %108 : vector<16x1xf32>
    %110 = vector.broadcast %109 : vector<16x1xf32> to vector<16x32xf32>
    %111 = arith.mulf %101, %110 : vector<16x32xf32>
    %c0_41 = arith.constant 0 : index
    %c0_42 = arith.constant 0 : index
    %112 = vector.load %arg7[%c0_41, %c0_42] : memref<1x32xf32, #tpu.memory_space<vmem>>, vector<1x32xf32>
    %113 = vector.broadcast %112 : vector<1x32xf32> to vector<16x32xf32>
    %114 = arith.mulf %111, %113 : vector<16x32xf32>
    %c0_43 = arith.constant 0 : index
    %c0_44 = arith.constant 0 : index
    %115 = vector.load %arg8[%c0_43, %c0_44] : memref<1x32xf32, #tpu.memory_space<vmem>>, vector<1x32xf32>
    %116 = vector.broadcast %115 : vector<1x32xf32> to vector<16x32xf32>
    %117 = arith.addf %114, %116 : vector<16x32xf32>
    %118 = arith.truncf %117 : vector<16x32xf32> to vector<16x32xbf16>
    %c0_45 = arith.constant 0 : index
    %c0_46 = arith.constant 0 : index
    %119 = vector.load %arg9[%c0_45, %c0_46] : memref<32x2048xbf16, #tpu.memory_space<vmem>>, vector<32x2048xbf16>
    %cst_47 = arith.constant dense<0.000000e+00> : vector<16x2048xf32>
    %120 = tpu.matmul %118, %119, %cst_47 {dimension_numbers = #tpu.dot_dimension_numbers<[1], [0], [0], [1], [0, 0, 1, 1], [], []>} : vector<16x32xbf16>, vector<32x2048xbf16>, vector<16x2048xf32> -> vector<16x2048xf32>
    %c0_48 = arith.constant 0 : index
    %c0_49 = arith.constant 0 : index
    %121 = vector.load %arg10[%c0_48, %c0_49] : memref<1x2048xf32, #tpu.memory_space<vmem>>, vector<1x2048xf32>
    %122 = vector.broadcast %121 : vector<1x2048xf32> to vector<16x2048xf32>
    %123 = arith.addf %120, %122 : vector<16x2048xf32>
    %cst_50 = arith.constant 0.000000e+00 : f32
    %124 = vector.broadcast %cst_50 : f32 to vector<16x2048xf32>
    %125 = arith.maximumf %123, %124 : vector<16x2048xf32>
    %126 = arith.truncf %125 : vector<16x2048xf32> to vector<16x2048xbf16>
    %c0_51 = arith.constant 0 : index
    %c0_52 = arith.constant 0 : index
    %127 = vector.load %arg11[%c0_51, %c0_52] : memref<2048x32xbf16, #tpu.memory_space<vmem>>, vector<2048x32xbf16>
    %cst_53 = arith.constant dense<0.000000e+00> : vector<16x32xf32>
    %128 = tpu.matmul %126, %127, %cst_53 {dimension_numbers = #tpu.dot_dimension_numbers<[1], [0], [0], [1], [0, 0, 1, 1], [], []>} : vector<16x2048xbf16>, vector<2048x32xbf16>, vector<16x32xf32> -> vector<16x32xf32>
    %c0_54 = arith.constant 0 : index
    %c0_55 = arith.constant 0 : index
    %129 = vector.load %arg12[%c0_54, %c0_55] : memref<1x32xf32, #tpu.memory_space<vmem>>, vector<1x32xf32>
    %130 = vector.broadcast %129 : vector<1x32xf32> to vector<16x32xf32>
    %131 = arith.addf %128, %130 : vector<16x32xf32>
    %132 = arith.addf %117, %131 : vector<16x32xf32>
    %cst_56 = arith.constant dense<0.000000e+00> : vector<16xf32>
    %133 = vector.multi_reduction <add>, %132, %cst_56 [1] : vector<16x32xf32> to vector<16xf32>
    %134 = vector.shape_cast %133 : vector<16xf32> to vector<16x1xf32>
    %cst_57 = arith.constant 3.200000e+01 : f32
    %135 = vector.broadcast %cst_57 : f32 to vector<16x1xf32>
    %136 = arith.divf %134, %135 : vector<16x1xf32>
    %137 = vector.broadcast %136 : vector<16x1xf32> to vector<16x32xf32>
    %138 = arith.subf %132, %137 : vector<16x32xf32>
    %139 = arith.mulf %138, %138 : vector<16x32xf32>
    %cst_58 = arith.constant dense<0.000000e+00> : vector<16xf32>
    %140 = vector.multi_reduction <add>, %139, %cst_58 [1] : vector<16x32xf32> to vector<16xf32>
    %141 = vector.shape_cast %140 : vector<16xf32> to vector<16x1xf32>
    %cst_59 = arith.constant 3.200000e+01 : f32
    %142 = vector.broadcast %cst_59 : f32 to vector<16x1xf32>
    %143 = arith.divf %141, %142 : vector<16x1xf32>
    %cst_60 = arith.constant 9.99999974E-6 : f32
    %144 = vector.broadcast %cst_60 : f32 to vector<16x1xf32>
    %145 = arith.addf %143, %144 : vector<16x1xf32>
    %146 = math.rsqrt %145 : vector<16x1xf32>
    %147 = vector.broadcast %146 : vector<16x1xf32> to vector<16x32xf32>
    %148 = arith.mulf %138, %147 : vector<16x32xf32>
    %c0_61 = arith.constant 0 : index
    %c0_62 = arith.constant 0 : index
    %149 = vector.load %arg13[%c0_61, %c0_62] : memref<1x32xf32, #tpu.memory_space<vmem>>, vector<1x32xf32>
    %150 = vector.broadcast %149 : vector<1x32xf32> to vector<16x32xf32>
    %151 = arith.mulf %148, %150 : vector<16x32xf32>
    %c0_63 = arith.constant 0 : index
    %c0_64 = arith.constant 0 : index
    %152 = vector.load %arg14[%c0_63, %c0_64] : memref<1x32xf32, #tpu.memory_space<vmem>>, vector<1x32xf32>
    %153 = vector.broadcast %152 : vector<1x32xf32> to vector<16x32xf32>
    %154 = arith.addf %151, %153 : vector<16x32xf32>
    %c0_65 = arith.constant 0 : index
    %c0_66 = arith.constant 0 : index
    %155 = vector.load %arg1[%c0_65, %c0_66] : memref<16x32xf32, #tpu.memory_space<vmem>>, vector<16x32xf32>
    %c0_67 = arith.constant 0 : index
    %c0_68 = arith.constant 0 : index
    %156 = vector.load %arg15[%c0_67, %c0_68] : memref<32x96xf32, #tpu.memory_space<vmem>>, vector<32x96xf32>
    %c0_69 = arith.constant 0 : index
    %c0_70 = arith.constant 0 : index
    %157 = vector.load %arg16[%c0_69, %c0_70] : memref<1x96xf32, #tpu.memory_space<vmem>>, vector<1x96xf32>
    %cst_71 = arith.constant dense<0.000000e+00> : vector<16x96xf32>
    %158 = tpu.matmul %155, %156, %cst_71 {dimension_numbers = #tpu.dot_dimension_numbers<[1], [0], [0], [1], [0, 0, 1, 1], [], []>} : vector<16x32xf32>, vector<32x96xf32>, vector<16x96xf32> -> vector<16x96xf32>
    %159 = vector.broadcast %157 : vector<1x96xf32> to vector<16x96xf32>
    %160 = arith.addf %158, %159 : vector<16x96xf32>
    %161 = vector.extract_strided_slice %160 {offsets = [0, 0], sizes = [16, 32], strides = [1, 1]} : vector<16x96xf32> to vector<16x32xf32>
    %162 = vector.extract_strided_slice %160 {offsets = [0, 32], sizes = [16, 32], strides = [1, 1]} : vector<16x96xf32> to vector<16x32xf32>
    %163 = vector.extract_strided_slice %160 {offsets = [0, 64], sizes = [16, 32], strides = [1, 1]} : vector<16x96xf32> to vector<16x32xf32>
    %c0_72 = arith.constant 0 : index
    %c0_73 = arith.constant 0 : index
    %164 = vector.load %arg17[%c0_72, %c0_73] : memref<32x32xf32, #tpu.memory_space<vmem>>, vector<32x32xf32>
    %cst_74 = arith.constant 0.000000e+00 : f32
    %165 = vector.broadcast %cst_74 : f32 to vector<16x32xf32>
    %166 = vector.extract_strided_slice %161 {offsets = [0, 0], sizes = [16, 8], strides = [1, 1]} : vector<16x32xf32> to vector<16x8xf32>
    %167 = vector.extract_strided_slice %162 {offsets = [0, 0], sizes = [16, 8], strides = [1, 1]} : vector<16x32xf32> to vector<16x8xf32>
    %168 = vector.extract_strided_slice %163 {offsets = [0, 0], sizes = [16, 8], strides = [1, 1]} : vector<16x32xf32> to vector<16x8xf32>
    %cst_75 = arith.constant dense<0.000000e+00> : vector<16x16xf32>
    %169 = tpu.matmul %166, %167, %cst_75 {dimension_numbers = #tpu.dot_dimension_numbers<[1], [1], [0], [0], [0, 0, 1, 0], [], []>} : vector<16x8xf32>, vector<16x8xf32>, vector<16x16xf32> -> vector<16x16xf32>
    %cst_76 = arith.constant 0.353553385 : f32
    %170 = vector.broadcast %cst_76 : f32 to vector<16x16xf32>
    %171 = arith.mulf %169, %170 : vector<16x16xf32>
    %172 = arith.addf %171, %0 : vector<16x16xf32>
    %cst_77 = arith.constant dense<0xFF800000> : vector<16xf32>
    %173 = vector.multi_reduction <maximumf>, %172, %cst_77 [1] : vector<16x16xf32> to vector<16xf32>
    %174 = vector.shape_cast %173 : vector<16xf32> to vector<16x1xf32>
    %175 = vector.broadcast %174 : vector<16x1xf32> to vector<16x16xf32>
    %176 = arith.subf %172, %175 : vector<16x16xf32>
    %177 = math.exp %176 : vector<16x16xf32>
    %cst_78 = arith.constant dense<0.000000e+00> : vector<16xf32>
    %178 = vector.multi_reduction <add>, %177, %cst_78 [1] : vector<16x16xf32> to vector<16xf32>
    %179 = vector.shape_cast %178 : vector<16xf32> to vector<16x1xf32>
    %180 = vector.broadcast %179 : vector<16x1xf32> to vector<16x16xf32>
    %181 = arith.divf %177, %180 : vector<16x16xf32>
    %cst_79 = arith.constant dense<0.000000e+00> : vector<16x8xf32>
    %182 = tpu.matmul %181, %168, %cst_79 {dimension_numbers = #tpu.dot_dimension_numbers<[1], [0], [0], [1], [0, 0, 1, 1], [], []>} : vector<16x16xf32>, vector<16x8xf32>, vector<16x8xf32> -> vector<16x8xf32>
    %183 = vector.extract_strided_slice %164 {offsets = [0, 0], sizes = [8, 32], strides = [1, 1]} : vector<32x32xf32> to vector<8x32xf32>
    %cst_80 = arith.constant dense<0.000000e+00> : vector<16x32xf32>
    %184 = tpu.matmul %182, %183, %cst_80 {dimension_numbers = #tpu.dot_dimension_numbers<[1], [0], [0], [1], [0, 0, 1, 1], [], []>} : vector<16x8xf32>, vector<8x32xf32>, vector<16x32xf32> -> vector<16x32xf32>
    %185 = arith.addf %165, %184 : vector<16x32xf32>
    %186 = vector.extract_strided_slice %161 {offsets = [0, 8], sizes = [16, 8], strides = [1, 1]} : vector<16x32xf32> to vector<16x8xf32>
    %187 = vector.extract_strided_slice %162 {offsets = [0, 8], sizes = [16, 8], strides = [1, 1]} : vector<16x32xf32> to vector<16x8xf32>
    %188 = vector.extract_strided_slice %163 {offsets = [0, 8], sizes = [16, 8], strides = [1, 1]} : vector<16x32xf32> to vector<16x8xf32>
    %cst_81 = arith.constant dense<0.000000e+00> : vector<16x16xf32>
    %189 = tpu.matmul %186, %187, %cst_81 {dimension_numbers = #tpu.dot_dimension_numbers<[1], [1], [0], [0], [0, 0, 1, 0], [], []>} : vector<16x8xf32>, vector<16x8xf32>, vector<16x16xf32> -> vector<16x16xf32>
    %cst_82 = arith.constant 0.353553385 : f32
    %190 = vector.broadcast %cst_82 : f32 to vector<16x16xf32>
    %191 = arith.mulf %189, %190 : vector<16x16xf32>
    %192 = arith.addf %191, %0 : vector<16x16xf32>
    %cst_83 = arith.constant dense<0xFF800000> : vector<16xf32>
    %193 = vector.multi_reduction <maximumf>, %192, %cst_83 [1] : vector<16x16xf32> to vector<16xf32>
    %194 = vector.shape_cast %193 : vector<16xf32> to vector<16x1xf32>
    %195 = vector.broadcast %194 : vector<16x1xf32> to vector<16x16xf32>
    %196 = arith.subf %192, %195 : vector<16x16xf32>
    %197 = math.exp %196 : vector<16x16xf32>
    %cst_84 = arith.constant dense<0.000000e+00> : vector<16xf32>
    %198 = vector.multi_reduction <add>, %197, %cst_84 [1] : vector<16x16xf32> to vector<16xf32>
    %199 = vector.shape_cast %198 : vector<16xf32> to vector<16x1xf32>
    %200 = vector.broadcast %199 : vector<16x1xf32> to vector<16x16xf32>
    %201 = arith.divf %197, %200 : vector<16x16xf32>
    %cst_85 = arith.constant dense<0.000000e+00> : vector<16x8xf32>
    %202 = tpu.matmul %201, %188, %cst_85 {dimension_numbers = #tpu.dot_dimension_numbers<[1], [0], [0], [1], [0, 0, 1, 1], [], []>} : vector<16x16xf32>, vector<16x8xf32>, vector<16x8xf32> -> vector<16x8xf32>
    %203 = vector.extract_strided_slice %164 {offsets = [8, 0], sizes = [8, 32], strides = [1, 1]} : vector<32x32xf32> to vector<8x32xf32>
    %cst_86 = arith.constant dense<0.000000e+00> : vector<16x32xf32>
    %204 = tpu.matmul %202, %203, %cst_86 {dimension_numbers = #tpu.dot_dimension_numbers<[1], [0], [0], [1], [0, 0, 1, 1], [], []>} : vector<16x8xf32>, vector<8x32xf32>, vector<16x32xf32> -> vector<16x32xf32>
    %205 = arith.addf %185, %204 : vector<16x32xf32>
    %206 = vector.extract_strided_slice %161 {offsets = [0, 16], sizes = [16, 8], strides = [1, 1]} : vector<16x32xf32> to vector<16x8xf32>
    %207 = vector.extract_strided_slice %162 {offsets = [0, 16], sizes = [16, 8], strides = [1, 1]} : vector<16x32xf32> to vector<16x8xf32>
    %208 = vector.extract_strided_slice %163 {offsets = [0, 16], sizes = [16, 8], strides = [1, 1]} : vector<16x32xf32> to vector<16x8xf32>
    %cst_87 = arith.constant dense<0.000000e+00> : vector<16x16xf32>
    %209 = tpu.matmul %206, %207, %cst_87 {dimension_numbers = #tpu.dot_dimension_numbers<[1], [1], [0], [0], [0, 0, 1, 0], [], []>} : vector<16x8xf32>, vector<16x8xf32>, vector<16x16xf32> -> vector<16x16xf32>
    %cst_88 = arith.constant 0.353553385 : f32
    %210 = vector.broadcast %cst_88 : f32 to vector<16x16xf32>
    %211 = arith.mulf %209, %210 : vector<16x16xf32>
    %212 = arith.addf %211, %0 : vector<16x16xf32>
    %cst_89 = arith.constant dense<0xFF800000> : vector<16xf32>
    %213 = vector.multi_reduction <maximumf>, %212, %cst_89 [1] : vector<16x16xf32> to vector<16xf32>
    %214 = vector.shape_cast %213 : vector<16xf32> to vector<16x1xf32>
    %215 = vector.broadcast %214 : vector<16x1xf32> to vector<16x16xf32>
    %216 = arith.subf %212, %215 : vector<16x16xf32>
    %217 = math.exp %216 : vector<16x16xf32>
    %cst_90 = arith.constant dense<0.000000e+00> : vector<16xf32>
    %218 = vector.multi_reduction <add>, %217, %cst_90 [1] : vector<16x16xf32> to vector<16xf32>
    %219 = vector.shape_cast %218 : vector<16xf32> to vector<16x1xf32>
    %220 = vector.broadcast %219 : vector<16x1xf32> to vector<16x16xf32>
    %221 = arith.divf %217, %220 : vector<16x16xf32>
    %cst_91 = arith.constant dense<0.000000e+00> : vector<16x8xf32>
    %222 = tpu.matmul %221, %208, %cst_91 {dimension_numbers = #tpu.dot_dimension_numbers<[1], [0], [0], [1], [0, 0, 1, 1], [], []>} : vector<16x16xf32>, vector<16x8xf32>, vector<16x8xf32> -> vector<16x8xf32>
    %223 = vector.extract_strided_slice %164 {offsets = [16, 0], sizes = [8, 32], strides = [1, 1]} : vector<32x32xf32> to vector<8x32xf32>
    %cst_92 = arith.constant dense<0.000000e+00> : vector<16x32xf32>
    %224 = tpu.matmul %222, %223, %cst_92 {dimension_numbers = #tpu.dot_dimension_numbers<[1], [0], [0], [1], [0, 0, 1, 1], [], []>} : vector<16x8xf32>, vector<8x32xf32>, vector<16x32xf32> -> vector<16x32xf32>
    %225 = arith.addf %205, %224 : vector<16x32xf32>
    %226 = vector.extract_strided_slice %161 {offsets = [0, 24], sizes = [16, 8], strides = [1, 1]} : vector<16x32xf32> to vector<16x8xf32>
    %227 = vector.extract_strided_slice %162 {offsets = [0, 24], sizes = [16, 8], strides = [1, 1]} : vector<16x32xf32> to vector<16x8xf32>
    %228 = vector.extract_strided_slice %163 {offsets = [0, 24], sizes = [16, 8], strides = [1, 1]} : vector<16x32xf32> to vector<16x8xf32>
    %cst_93 = arith.constant dense<0.000000e+00> : vector<16x16xf32>
    %229 = tpu.matmul %226, %227, %cst_93 {dimension_numbers = #tpu.dot_dimension_numbers<[1], [1], [0], [0], [0, 0, 1, 0], [], []>} : vector<16x8xf32>, vector<16x8xf32>, vector<16x16xf32> -> vector<16x16xf32>
    %cst_94 = arith.constant 0.353553385 : f32
    %230 = vector.broadcast %cst_94 : f32 to vector<16x16xf32>
    %231 = arith.mulf %229, %230 : vector<16x16xf32>
    %232 = arith.addf %231, %0 : vector<16x16xf32>
    %cst_95 = arith.constant dense<0xFF800000> : vector<16xf32>
    %233 = vector.multi_reduction <maximumf>, %232, %cst_95 [1] : vector<16x16xf32> to vector<16xf32>
    %234 = vector.shape_cast %233 : vector<16xf32> to vector<16x1xf32>
    %235 = vector.broadcast %234 : vector<16x1xf32> to vector<16x16xf32>
    %236 = arith.subf %232, %235 : vector<16x16xf32>
    %237 = math.exp %236 : vector<16x16xf32>
    %cst_96 = arith.constant dense<0.000000e+00> : vector<16xf32>
    %238 = vector.multi_reduction <add>, %237, %cst_96 [1] : vector<16x16xf32> to vector<16xf32>
    %239 = vector.shape_cast %238 : vector<16xf32> to vector<16x1xf32>
    %240 = vector.broadcast %239 : vector<16x1xf32> to vector<16x16xf32>
    %241 = arith.divf %237, %240 : vector<16x16xf32>
    %cst_97 = arith.constant dense<0.000000e+00> : vector<16x8xf32>
    %242 = tpu.matmul %241, %228, %cst_97 {dimension_numbers = #tpu.dot_dimension_numbers<[1], [0], [0], [1], [0, 0, 1, 1], [], []>} : vector<16x16xf32>, vector<16x8xf32>, vector<16x8xf32> -> vector<16x8xf32>
    %243 = vector.extract_strided_slice %164 {offsets = [24, 0], sizes = [8, 32], strides = [1, 1]} : vector<32x32xf32> to vector<8x32xf32>
    %cst_98 = arith.constant dense<0.000000e+00> : vector<16x32xf32>
    %244 = tpu.matmul %242, %243, %cst_98 {dimension_numbers = #tpu.dot_dimension_numbers<[1], [0], [0], [1], [0, 0, 1, 1], [], []>} : vector<16x8xf32>, vector<8x32xf32>, vector<16x32xf32> -> vector<16x32xf32>
    %245 = arith.addf %225, %244 : vector<16x32xf32>
    %c0_99 = arith.constant 0 : index
    %c0_100 = arith.constant 0 : index
    %246 = vector.load %arg18[%c0_99, %c0_100] : memref<1x32xf32, #tpu.memory_space<vmem>>, vector<1x32xf32>
    %247 = vector.broadcast %246 : vector<1x32xf32> to vector<16x32xf32>
    %248 = arith.addf %245, %247 : vector<16x32xf32>
    %249 = arith.addf %155, %248 : vector<16x32xf32>
    %cst_101 = arith.constant dense<0.000000e+00> : vector<16xf32>
    %250 = vector.multi_reduction <add>, %249, %cst_101 [1] : vector<16x32xf32> to vector<16xf32>
    %251 = vector.shape_cast %250 : vector<16xf32> to vector<16x1xf32>
    %cst_102 = arith.constant 3.200000e+01 : f32
    %252 = vector.broadcast %cst_102 : f32 to vector<16x1xf32>
    %253 = arith.divf %251, %252 : vector<16x1xf32>
    %254 = vector.broadcast %253 : vector<16x1xf32> to vector<16x32xf32>
    %255 = arith.subf %249, %254 : vector<16x32xf32>
    %256 = arith.mulf %255, %255 : vector<16x32xf32>
    %cst_103 = arith.constant dense<0.000000e+00> : vector<16xf32>
    %257 = vector.multi_reduction <add>, %256, %cst_103 [1] : vector<16x32xf32> to vector<16xf32>
    %258 = vector.shape_cast %257 : vector<16xf32> to vector<16x1xf32>
    %cst_104 = arith.constant 3.200000e+01 : f32
    %259 = vector.broadcast %cst_104 : f32 to vector<16x1xf32>
    %260 = arith.divf %258, %259 : vector<16x1xf32>
    %cst_105 = arith.constant 9.99999974E-6 : f32
    %261 = vector.broadcast %cst_105 : f32 to vector<16x1xf32>
    %262 = arith.addf %260, %261 : vector<16x1xf32>
    %263 = math.rsqrt %262 : vector<16x1xf32>
    %264 = vector.broadcast %263 : vector<16x1xf32> to vector<16x32xf32>
    %265 = arith.mulf %255, %264 : vector<16x32xf32>
    %c0_106 = arith.constant 0 : index
    %c0_107 = arith.constant 0 : index
    %266 = vector.load %arg19[%c0_106, %c0_107] : memref<1x32xf32, #tpu.memory_space<vmem>>, vector<1x32xf32>
    %267 = vector.broadcast %266 : vector<1x32xf32> to vector<16x32xf32>
    %268 = arith.mulf %265, %267 : vector<16x32xf32>
    %c0_108 = arith.constant 0 : index
    %c0_109 = arith.constant 0 : index
    %269 = vector.load %arg20[%c0_108, %c0_109] : memref<1x32xf32, #tpu.memory_space<vmem>>, vector<1x32xf32>
    %270 = vector.broadcast %269 : vector<1x32xf32> to vector<16x32xf32>
    %271 = arith.addf %268, %270 : vector<16x32xf32>
    %c0_110 = arith.constant 0 : index
    %c0_111 = arith.constant 0 : index
    %272 = vector.load %arg21[%c0_110, %c0_111] : memref<32x96xf32, #tpu.memory_space<vmem>>, vector<32x96xf32>
    %c0_112 = arith.constant 0 : index
    %c0_113 = arith.constant 0 : index
    %273 = vector.load %arg22[%c0_112, %c0_113] : memref<1x96xf32, #tpu.memory_space<vmem>>, vector<1x96xf32>
    %274 = vector.extract_strided_slice %272 {offsets = [0, 0], sizes = [32, 32], strides = [1, 1]} : vector<32x96xf32> to vector<32x32xf32>
    %cst_114 = arith.constant dense<0.000000e+00> : vector<16x32xf32>
    %275 = tpu.matmul %271, %274, %cst_114 {dimension_numbers = #tpu.dot_dimension_numbers<[1], [0], [0], [1], [0, 0, 1, 1], [], []>} : vector<16x32xf32>, vector<32x32xf32>, vector<16x32xf32> -> vector<16x32xf32>
    %276 = vector.extract_strided_slice %273 {offsets = [0, 0], sizes = [1, 32], strides = [1, 1]} : vector<1x96xf32> to vector<1x32xf32>
    %277 = vector.broadcast %276 : vector<1x32xf32> to vector<16x32xf32>
    %278 = arith.addf %275, %277 : vector<16x32xf32>
    %279 = vector.extract_strided_slice %272 {offsets = [0, 32], sizes = [32, 64], strides = [1, 1]} : vector<32x96xf32> to vector<32x64xf32>
    %cst_115 = arith.constant dense<0.000000e+00> : vector<16x64xf32>
    %280 = tpu.matmul %154, %279, %cst_115 {dimension_numbers = #tpu.dot_dimension_numbers<[1], [0], [0], [1], [0, 0, 1, 1], [], []>} : vector<16x32xf32>, vector<32x64xf32>, vector<16x64xf32> -> vector<16x64xf32>
    %281 = vector.extract_strided_slice %273 {offsets = [0, 32], sizes = [1, 64], strides = [1, 1]} : vector<1x96xf32> to vector<1x64xf32>
    %282 = vector.broadcast %281 : vector<1x64xf32> to vector<16x64xf32>
    %283 = arith.addf %280, %282 : vector<16x64xf32>
    %284 = vector.extract_strided_slice %283 {offsets = [0, 0], sizes = [16, 32], strides = [1, 1]} : vector<16x64xf32> to vector<16x32xf32>
    %285 = vector.extract_strided_slice %283 {offsets = [0, 32], sizes = [16, 32], strides = [1, 1]} : vector<16x64xf32> to vector<16x32xf32>
    %c0_116 = arith.constant 0 : index
    %c0_117 = arith.constant 0 : index
    %286 = vector.load %arg23[%c0_116, %c0_117] : memref<32x32xf32, #tpu.memory_space<vmem>>, vector<32x32xf32>
    %cst_118 = arith.constant 0.000000e+00 : f32
    %287 = vector.broadcast %cst_118 : f32 to vector<16x32xf32>
    %288 = vector.extract_strided_slice %278 {offsets = [0, 0], sizes = [16, 8], strides = [1, 1]} : vector<16x32xf32> to vector<16x8xf32>
    %289 = vector.extract_strided_slice %284 {offsets = [0, 0], sizes = [16, 8], strides = [1, 1]} : vector<16x32xf32> to vector<16x8xf32>
    %290 = vector.extract_strided_slice %285 {offsets = [0, 0], sizes = [16, 8], strides = [1, 1]} : vector<16x32xf32> to vector<16x8xf32>
    %cst_119 = arith.constant dense<0.000000e+00> : vector<16x16xf32>
    %291 = tpu.matmul %288, %289, %cst_119 {dimension_numbers = #tpu.dot_dimension_numbers<[1], [1], [0], [0], [0, 0, 1, 0], [], []>} : vector<16x8xf32>, vector<16x8xf32>, vector<16x16xf32> -> vector<16x16xf32>
    %cst_120 = arith.constant 0.353553385 : f32
    %292 = vector.broadcast %cst_120 : f32 to vector<16x16xf32>
    %293 = arith.mulf %291, %292 : vector<16x16xf32>
    %294 = arith.addf %293, %0 : vector<16x16xf32>
    %cst_121 = arith.constant dense<0xFF800000> : vector<16xf32>
    %295 = vector.multi_reduction <maximumf>, %294, %cst_121 [1] : vector<16x16xf32> to vector<16xf32>
    %296 = vector.shape_cast %295 : vector<16xf32> to vector<16x1xf32>
    %297 = vector.broadcast %296 : vector<16x1xf32> to vector<16x16xf32>
    %298 = arith.subf %294, %297 : vector<16x16xf32>
    %299 = math.exp %298 : vector<16x16xf32>
    %cst_122 = arith.constant dense<0.000000e+00> : vector<16xf32>
    %300 = vector.multi_reduction <add>, %299, %cst_122 [1] : vector<16x16xf32> to vector<16xf32>
    %301 = vector.shape_cast %300 : vector<16xf32> to vector<16x1xf32>
    %302 = vector.broadcast %301 : vector<16x1xf32> to vector<16x16xf32>
    %303 = arith.divf %299, %302 : vector<16x16xf32>
    %cst_123 = arith.constant dense<0.000000e+00> : vector<16x8xf32>
    %304 = tpu.matmul %303, %290, %cst_123 {dimension_numbers = #tpu.dot_dimension_numbers<[1], [0], [0], [1], [0, 0, 1, 1], [], []>} : vector<16x16xf32>, vector<16x8xf32>, vector<16x8xf32> -> vector<16x8xf32>
    %305 = vector.extract_strided_slice %286 {offsets = [0, 0], sizes = [8, 32], strides = [1, 1]} : vector<32x32xf32> to vector<8x32xf32>
    %cst_124 = arith.constant dense<0.000000e+00> : vector<16x32xf32>
    %306 = tpu.matmul %304, %305, %cst_124 {dimension_numbers = #tpu.dot_dimension_numbers<[1], [0], [0], [1], [0, 0, 1, 1], [], []>} : vector<16x8xf32>, vector<8x32xf32>, vector<16x32xf32> -> vector<16x32xf32>
    %307 = arith.addf %287, %306 : vector<16x32xf32>
    %308 = vector.extract_strided_slice %278 {offsets = [0, 8], sizes = [16, 8], strides = [1, 1]} : vector<16x32xf32> to vector<16x8xf32>
    %309 = vector.extract_strided_slice %284 {offsets = [0, 8], sizes = [16, 8], strides = [1, 1]} : vector<16x32xf32> to vector<16x8xf32>
    %310 = vector.extract_strided_slice %285 {offsets = [0, 8], sizes = [16, 8], strides = [1, 1]} : vector<16x32xf32> to vector<16x8xf32>
    %cst_125 = arith.constant dense<0.000000e+00> : vector<16x16xf32>
    %311 = tpu.matmul %308, %309, %cst_125 {dimension_numbers = #tpu.dot_dimension_numbers<[1], [1], [0], [0], [0, 0, 1, 0], [], []>} : vector<16x8xf32>, vector<16x8xf32>, vector<16x16xf32> -> vector<16x16xf32>
    %cst_126 = arith.constant 0.353553385 : f32
    %312 = vector.broadcast %cst_126 : f32 to vector<16x16xf32>
    %313 = arith.mulf %311, %312 : vector<16x16xf32>
    %314 = arith.addf %313, %0 : vector<16x16xf32>
    %cst_127 = arith.constant dense<0xFF800000> : vector<16xf32>
    %315 = vector.multi_reduction <maximumf>, %314, %cst_127 [1] : vector<16x16xf32> to vector<16xf32>
    %316 = vector.shape_cast %315 : vector<16xf32> to vector<16x1xf32>
    %317 = vector.broadcast %316 : vector<16x1xf32> to vector<16x16xf32>
    %318 = arith.subf %314, %317 : vector<16x16xf32>
    %319 = math.exp %318 : vector<16x16xf32>
    %cst_128 = arith.constant dense<0.000000e+00> : vector<16xf32>
    %320 = vector.multi_reduction <add>, %319, %cst_128 [1] : vector<16x16xf32> to vector<16xf32>
    %321 = vector.shape_cast %320 : vector<16xf32> to vector<16x1xf32>
    %322 = vector.broadcast %321 : vector<16x1xf32> to vector<16x16xf32>
    %323 = arith.divf %319, %322 : vector<16x16xf32>
    %cst_129 = arith.constant dense<0.000000e+00> : vector<16x8xf32>
    %324 = tpu.matmul %323, %310, %cst_129 {dimension_numbers = #tpu.dot_dimension_numbers<[1], [0], [0], [1], [0, 0, 1, 1], [], []>} : vector<16x16xf32>, vector<16x8xf32>, vector<16x8xf32> -> vector<16x8xf32>
    %325 = vector.extract_strided_slice %286 {offsets = [8, 0], sizes = [8, 32], strides = [1, 1]} : vector<32x32xf32> to vector<8x32xf32>
    %cst_130 = arith.constant dense<0.000000e+00> : vector<16x32xf32>
    %326 = tpu.matmul %324, %325, %cst_130 {dimension_numbers = #tpu.dot_dimension_numbers<[1], [0], [0], [1], [0, 0, 1, 1], [], []>} : vector<16x8xf32>, vector<8x32xf32>, vector<16x32xf32> -> vector<16x32xf32>
    %327 = arith.addf %307, %326 : vector<16x32xf32>
    %328 = vector.extract_strided_slice %278 {offsets = [0, 16], sizes = [16, 8], strides = [1, 1]} : vector<16x32xf32> to vector<16x8xf32>
    %329 = vector.extract_strided_slice %284 {offsets = [0, 16], sizes = [16, 8], strides = [1, 1]} : vector<16x32xf32> to vector<16x8xf32>
    %330 = vector.extract_strided_slice %285 {offsets = [0, 16], sizes = [16, 8], strides = [1, 1]} : vector<16x32xf32> to vector<16x8xf32>
    %cst_131 = arith.constant dense<0.000000e+00> : vector<16x16xf32>
    %331 = tpu.matmul %328, %329, %cst_131 {dimension_numbers = #tpu.dot_dimension_numbers<[1], [1], [0], [0], [0, 0, 1, 0], [], []>} : vector<16x8xf32>, vector<16x8xf32>, vector<16x16xf32> -> vector<16x16xf32>
    %cst_132 = arith.constant 0.353553385 : f32
    %332 = vector.broadcast %cst_132 : f32 to vector<16x16xf32>
    %333 = arith.mulf %331, %332 : vector<16x16xf32>
    %334 = arith.addf %333, %0 : vector<16x16xf32>
    %cst_133 = arith.constant dense<0xFF800000> : vector<16xf32>
    %335 = vector.multi_reduction <maximumf>, %334, %cst_133 [1] : vector<16x16xf32> to vector<16xf32>
    %336 = vector.shape_cast %335 : vector<16xf32> to vector<16x1xf32>
    %337 = vector.broadcast %336 : vector<16x1xf32> to vector<16x16xf32>
    %338 = arith.subf %334, %337 : vector<16x16xf32>
    %339 = math.exp %338 : vector<16x16xf32>
    %cst_134 = arith.constant dense<0.000000e+00> : vector<16xf32>
    %340 = vector.multi_reduction <add>, %339, %cst_134 [1] : vector<16x16xf32> to vector<16xf32>
    %341 = vector.shape_cast %340 : vector<16xf32> to vector<16x1xf32>
    %342 = vector.broadcast %341 : vector<16x1xf32> to vector<16x16xf32>
    %343 = arith.divf %339, %342 : vector<16x16xf32>
    %cst_135 = arith.constant dense<0.000000e+00> : vector<16x8xf32>
    %344 = tpu.matmul %343, %330, %cst_135 {dimension_numbers = #tpu.dot_dimension_numbers<[1], [0], [0], [1], [0, 0, 1, 1], [], []>} : vector<16x16xf32>, vector<16x8xf32>, vector<16x8xf32> -> vector<16x8xf32>
    %345 = vector.extract_strided_slice %286 {offsets = [16, 0], sizes = [8, 32], strides = [1, 1]} : vector<32x32xf32> to vector<8x32xf32>
    %cst_136 = arith.constant dense<0.000000e+00> : vector<16x32xf32>
    %346 = tpu.matmul %344, %345, %cst_136 {dimension_numbers = #tpu.dot_dimension_numbers<[1], [0], [0], [1], [0, 0, 1, 1], [], []>} : vector<16x8xf32>, vector<8x32xf32>, vector<16x32xf32> -> vector<16x32xf32>
    %347 = arith.addf %327, %346 : vector<16x32xf32>
    %348 = vector.extract_strided_slice %278 {offsets = [0, 24], sizes = [16, 8], strides = [1, 1]} : vector<16x32xf32> to vector<16x8xf32>
    %349 = vector.extract_strided_slice %284 {offsets = [0, 24], sizes = [16, 8], strides = [1, 1]} : vector<16x32xf32> to vector<16x8xf32>
    %350 = vector.extract_strided_slice %285 {offsets = [0, 24], sizes = [16, 8], strides = [1, 1]} : vector<16x32xf32> to vector<16x8xf32>
    %cst_137 = arith.constant dense<0.000000e+00> : vector<16x16xf32>
    %351 = tpu.matmul %348, %349, %cst_137 {dimension_numbers = #tpu.dot_dimension_numbers<[1], [1], [0], [0], [0, 0, 1, 0], [], []>} : vector<16x8xf32>, vector<16x8xf32>, vector<16x16xf32> -> vector<16x16xf32>
    %cst_138 = arith.constant 0.353553385 : f32
    %352 = vector.broadcast %cst_138 : f32 to vector<16x16xf32>
    %353 = arith.mulf %351, %352 : vector<16x16xf32>
    %354 = arith.addf %353, %0 : vector<16x16xf32>
    %cst_139 = arith.constant dense<0xFF800000> : vector<16xf32>
    %355 = vector.multi_reduction <maximumf>, %354, %cst_139 [1] : vector<16x16xf32> to vector<16xf32>
    %356 = vector.shape_cast %355 : vector<16xf32> to vector<16x1xf32>
    %357 = vector.broadcast %356 : vector<16x1xf32> to vector<16x16xf32>
    %358 = arith.subf %354, %357 : vector<16x16xf32>
    %359 = math.exp %358 : vector<16x16xf32>
    %cst_140 = arith.constant dense<0.000000e+00> : vector<16xf32>
    %360 = vector.multi_reduction <add>, %359, %cst_140 [1] : vector<16x16xf32> to vector<16xf32>
    %361 = vector.shape_cast %360 : vector<16xf32> to vector<16x1xf32>
    %362 = vector.broadcast %361 : vector<16x1xf32> to vector<16x16xf32>
    %363 = arith.divf %359, %362 : vector<16x16xf32>
    %cst_141 = arith.constant dense<0.000000e+00> : vector<16x8xf32>
    %364 = tpu.matmul %363, %350, %cst_141 {dimension_numbers = #tpu.dot_dimension_numbers<[1], [0], [0], [1], [0, 0, 1, 1], [], []>} : vector<16x16xf32>, vector<16x8xf32>, vector<16x8xf32> -> vector<16x8xf32>
    %365 = vector.extract_strided_slice %286 {offsets = [24, 0], sizes = [8, 32], strides = [1, 1]} : vector<32x32xf32> to vector<8x32xf32>
    %cst_142 = arith.constant dense<0.000000e+00> : vector<16x32xf32>
    %366 = tpu.matmul %364, %365, %cst_142 {dimension_numbers = #tpu.dot_dimension_numbers<[1], [0], [0], [1], [0, 0, 1, 1], [], []>} : vector<16x8xf32>, vector<8x32xf32>, vector<16x32xf32> -> vector<16x32xf32>
    %367 = arith.addf %347, %366 : vector<16x32xf32>
    %c0_143 = arith.constant 0 : index
    %c0_144 = arith.constant 0 : index
    %368 = vector.load %arg24[%c0_143, %c0_144] : memref<1x32xf32, #tpu.memory_space<vmem>>, vector<1x32xf32>
    %369 = vector.broadcast %368 : vector<1x32xf32> to vector<16x32xf32>
    %370 = arith.addf %367, %369 : vector<16x32xf32>
    %371 = arith.addf %271, %370 : vector<16x32xf32>
    %cst_145 = arith.constant dense<0.000000e+00> : vector<16xf32>
    %372 = vector.multi_reduction <add>, %371, %cst_145 [1] : vector<16x32xf32> to vector<16xf32>
    %373 = vector.shape_cast %372 : vector<16xf32> to vector<16x1xf32>
    %cst_146 = arith.constant 3.200000e+01 : f32
    %374 = vector.broadcast %cst_146 : f32 to vector<16x1xf32>
    %375 = arith.divf %373, %374 : vector<16x1xf32>
    %376 = vector.broadcast %375 : vector<16x1xf32> to vector<16x32xf32>
    %377 = arith.subf %371, %376 : vector<16x32xf32>
    %378 = arith.mulf %377, %377 : vector<16x32xf32>
    %cst_147 = arith.constant dense<0.000000e+00> : vector<16xf32>
    %379 = vector.multi_reduction <add>, %378, %cst_147 [1] : vector<16x32xf32> to vector<16xf32>
    %380 = vector.shape_cast %379 : vector<16xf32> to vector<16x1xf32>
    %cst_148 = arith.constant 3.200000e+01 : f32
    %381 = vector.broadcast %cst_148 : f32 to vector<16x1xf32>
    %382 = arith.divf %380, %381 : vector<16x1xf32>
    %cst_149 = arith.constant 9.99999974E-6 : f32
    %383 = vector.broadcast %cst_149 : f32 to vector<16x1xf32>
    %384 = arith.addf %382, %383 : vector<16x1xf32>
    %385 = math.rsqrt %384 : vector<16x1xf32>
    %386 = vector.broadcast %385 : vector<16x1xf32> to vector<16x32xf32>
    %387 = arith.mulf %377, %386 : vector<16x32xf32>
    %c0_150 = arith.constant 0 : index
    %c0_151 = arith.constant 0 : index
    %388 = vector.load %arg25[%c0_150, %c0_151] : memref<1x32xf32, #tpu.memory_space<vmem>>, vector<1x32xf32>
    %389 = vector.broadcast %388 : vector<1x32xf32> to vector<16x32xf32>
    %390 = arith.mulf %387, %389 : vector<16x32xf32>
    %c0_152 = arith.constant 0 : index
    %c0_153 = arith.constant 0 : index
    %391 = vector.load %arg26[%c0_152, %c0_153] : memref<1x32xf32, #tpu.memory_space<vmem>>, vector<1x32xf32>
    %392 = vector.broadcast %391 : vector<1x32xf32> to vector<16x32xf32>
    %393 = arith.addf %390, %392 : vector<16x32xf32>
    %394 = arith.truncf %393 : vector<16x32xf32> to vector<16x32xbf16>
    %c0_154 = arith.constant 0 : index
    %c0_155 = arith.constant 0 : index
    %395 = vector.load %arg27[%c0_154, %c0_155] : memref<32x2048xbf16, #tpu.memory_space<vmem>>, vector<32x2048xbf16>
    %cst_156 = arith.constant dense<0.000000e+00> : vector<16x2048xf32>
    %396 = tpu.matmul %394, %395, %cst_156 {dimension_numbers = #tpu.dot_dimension_numbers<[1], [0], [0], [1], [0, 0, 1, 1], [], []>} : vector<16x32xbf16>, vector<32x2048xbf16>, vector<16x2048xf32> -> vector<16x2048xf32>
    %c0_157 = arith.constant 0 : index
    %c0_158 = arith.constant 0 : index
    %397 = vector.load %arg28[%c0_157, %c0_158] : memref<1x2048xf32, #tpu.memory_space<vmem>>, vector<1x2048xf32>
    %398 = vector.broadcast %397 : vector<1x2048xf32> to vector<16x2048xf32>
    %399 = arith.addf %396, %398 : vector<16x2048xf32>
    %cst_159 = arith.constant 0.000000e+00 : f32
    %400 = vector.broadcast %cst_159 : f32 to vector<16x2048xf32>
    %401 = arith.maximumf %399, %400 : vector<16x2048xf32>
    %402 = arith.truncf %401 : vector<16x2048xf32> to vector<16x2048xbf16>
    %c0_160 = arith.constant 0 : index
    %c0_161 = arith.constant 0 : index
    %403 = vector.load %arg29[%c0_160, %c0_161] : memref<2048x32xbf16, #tpu.memory_space<vmem>>, vector<2048x32xbf16>
    %cst_162 = arith.constant dense<0.000000e+00> : vector<16x32xf32>
    %404 = tpu.matmul %402, %403, %cst_162 {dimension_numbers = #tpu.dot_dimension_numbers<[1], [0], [0], [1], [0, 0, 1, 1], [], []>} : vector<16x2048xbf16>, vector<2048x32xbf16>, vector<16x32xf32> -> vector<16x32xf32>
    %c0_163 = arith.constant 0 : index
    %c0_164 = arith.constant 0 : index
    %405 = vector.load %arg30[%c0_163, %c0_164] : memref<1x32xf32, #tpu.memory_space<vmem>>, vector<1x32xf32>
    %406 = vector.broadcast %405 : vector<1x32xf32> to vector<16x32xf32>
    %407 = arith.addf %404, %406 : vector<16x32xf32>
    %408 = arith.addf %393, %407 : vector<16x32xf32>
    %cst_165 = arith.constant dense<0.000000e+00> : vector<16xf32>
    %409 = vector.multi_reduction <add>, %408, %cst_165 [1] : vector<16x32xf32> to vector<16xf32>
    %410 = vector.shape_cast %409 : vector<16xf32> to vector<16x1xf32>
    %cst_166 = arith.constant 3.200000e+01 : f32
    %411 = vector.broadcast %cst_166 : f32 to vector<16x1xf32>
    %412 = arith.divf %410, %411 : vector<16x1xf32>
    %413 = vector.broadcast %412 : vector<16x1xf32> to vector<16x32xf32>
    %414 = arith.subf %408, %413 : vector<16x32xf32>
    %415 = arith.mulf %414, %414 : vector<16x32xf32>
    %cst_167 = arith.constant dense<0.000000e+00> : vector<16xf32>
    %416 = vector.multi_reduction <add>, %415, %cst_167 [1] : vector<16x32xf32> to vector<16xf32>
    %417 = vector.shape_cast %416 : vector<16xf32> to vector<16x1xf32>
    %cst_168 = arith.constant 3.200000e+01 : f32
    %418 = vector.broadcast %cst_168 : f32 to vector<16x1xf32>
    %419 = arith.divf %417, %418 : vector<16x1xf32>
    %cst_169 = arith.constant 9.99999974E-6 : f32
    %420 = vector.broadcast %cst_169 : f32 to vector<16x1xf32>
    %421 = arith.addf %419, %420 : vector<16x1xf32>
    %422 = math.rsqrt %421 : vector<16x1xf32>
    %423 = vector.broadcast %422 : vector<16x1xf32> to vector<16x32xf32>
    %424 = arith.mulf %414, %423 : vector<16x32xf32>
    %c0_170 = arith.constant 0 : index
    %c0_171 = arith.constant 0 : index
    %425 = vector.load %arg31[%c0_170, %c0_171] : memref<1x32xf32, #tpu.memory_space<vmem>>, vector<1x32xf32>
    %426 = vector.broadcast %425 : vector<1x32xf32> to vector<16x32xf32>
    %427 = arith.mulf %424, %426 : vector<16x32xf32>
    %c0_172 = arith.constant 0 : index
    %c0_173 = arith.constant 0 : index
    %428 = vector.load %arg32[%c0_172, %c0_173] : memref<1x32xf32, #tpu.memory_space<vmem>>, vector<1x32xf32>
    %429 = vector.broadcast %428 : vector<1x32xf32> to vector<16x32xf32>
    %430 = arith.addf %427, %429 : vector<16x32xf32>
    %cst_174 = arith.constant dense<0.000000e+00> : vector<16xf32>
    %431 = vector.multi_reduction <add>, %430, %cst_174 [1] : vector<16x32xf32> to vector<16xf32>
    %432 = vector.shape_cast %431 : vector<16xf32> to vector<16x1xf32>
    %cst_175 = arith.constant 3.200000e+01 : f32
    %433 = vector.broadcast %cst_175 : f32 to vector<16x1xf32>
    %434 = arith.divf %432, %433 : vector<16x1xf32>
    %435 = vector.broadcast %434 : vector<16x1xf32> to vector<16x32xf32>
    %436 = arith.subf %430, %435 : vector<16x32xf32>
    %437 = arith.mulf %436, %436 : vector<16x32xf32>
    %cst_176 = arith.constant dense<0.000000e+00> : vector<16xf32>
    %438 = vector.multi_reduction <add>, %437, %cst_176 [1] : vector<16x32xf32> to vector<16xf32>
    %439 = vector.shape_cast %438 : vector<16xf32> to vector<16x1xf32>
    %cst_177 = arith.constant 3.200000e+01 : f32
    %440 = vector.broadcast %cst_177 : f32 to vector<16x1xf32>
    %441 = arith.divf %439, %440 : vector<16x1xf32>
    %cst_178 = arith.constant 9.99999974E-6 : f32
    %442 = vector.broadcast %cst_178 : f32 to vector<16x1xf32>
    %443 = arith.addf %441, %442 : vector<16x1xf32>
    %444 = math.rsqrt %443 : vector<16x1xf32>
    %445 = vector.broadcast %444 : vector<16x1xf32> to vector<16x32xf32>
    %446 = arith.mulf %436, %445 : vector<16x32xf32>
    %c0_179 = arith.constant 0 : index
    %c0_180 = arith.constant 0 : index
    %447 = vector.load %arg33[%c0_179, %c0_180] : memref<1x32xf32, #tpu.memory_space<vmem>>, vector<1x32xf32>
    %448 = vector.broadcast %447 : vector<1x32xf32> to vector<16x32xf32>
    %449 = arith.mulf %446, %448 : vector<16x32xf32>
    %c0_181 = arith.constant 0 : index
    %c0_182 = arith.constant 0 : index
    %450 = vector.load %arg34[%c0_181, %c0_182] : memref<1x32xf32, #tpu.memory_space<vmem>>, vector<1x32xf32>
    %451 = vector.broadcast %450 : vector<1x32xf32> to vector<16x32xf32>
    %452 = arith.addf %449, %451 : vector<16x32xf32>
    %c0_183 = arith.constant 0 : index
    %c0_184 = arith.constant 0 : index
    %453 = vector.load %arg35[%c0_183, %c0_184] : memref<32x32xf32, #tpu.memory_space<vmem>>, vector<32x32xf32>
    %cst_185 = arith.constant dense<0.000000e+00> : vector<16x32xf32>
    %454 = tpu.matmul %452, %453, %cst_185 {dimension_numbers = #tpu.dot_dimension_numbers<[1], [0], [0], [1], [0, 0, 1, 1], [], []>} : vector<16x32xf32>, vector<32x32xf32>, vector<16x32xf32> -> vector<16x32xf32>
    %c0_186 = arith.constant 0 : index
    %c0_187 = arith.constant 0 : index
    %455 = vector.load %arg36[%c0_186, %c0_187] : memref<1x32xf32, #tpu.memory_space<vmem>>, vector<1x32xf32>
    %456 = vector.broadcast %455 : vector<1x32xf32> to vector<16x32xf32>
    %457 = arith.addf %454, %456 : vector<16x32xf32>
    %cst_188 = arith.constant 0.000000e+00 : f32
    %458 = vector.broadcast %cst_188 : f32 to vector<16x32xf32>
    %459 = arith.maximumf %457, %458 : vector<16x32xf32>
    %c0_189 = arith.constant 0 : index
    %c0_190 = arith.constant 0 : index
    %460 = vector.load %arg37[%c0_189, %c0_190] : memref<32x32xf32, #tpu.memory_space<vmem>>, vector<32x32xf32>
    %cst_191 = arith.constant dense<0.000000e+00> : vector<16x32xf32>
    %461 = tpu.matmul %459, %460, %cst_191 {dimension_numbers = #tpu.dot_dimension_numbers<[1], [0], [0], [1], [0, 0, 1, 1], [], []>} : vector<16x32xf32>, vector<32x32xf32>, vector<16x32xf32> -> vector<16x32xf32>
    %c0_192 = arith.constant 0 : index
    %c0_193 = arith.constant 0 : index
    %462 = vector.load %arg38[%c0_192, %c0_193] : memref<1x32xf32, #tpu.memory_space<vmem>>, vector<1x32xf32>
    %463 = vector.broadcast %462 : vector<1x32xf32> to vector<16x32xf32>
    %464 = arith.addf %461, %463 : vector<16x32xf32>
    %465 = arith.addf %464, %430 : vector<16x32xf32>
    %c0_194 = arith.constant 0 : index
    %c0_195 = arith.constant 0 : index
    %466 = vector.load %arg39[%c0_194, %c0_195] : memref<32x1xf32, #tpu.memory_space<vmem>>, vector<32x1xf32>
    %cst_196 = arith.constant dense<0.000000e+00> : vector<16x1xf32>
    %467 = tpu.matmul %465, %466, %cst_196 {dimension_numbers = #tpu.dot_dimension_numbers<[1], [0], [0], [1], [0, 0, 1, 1], [], []>} : vector<16x32xf32>, vector<32x1xf32>, vector<16x1xf32> -> vector<16x1xf32>
    %c0_197 = arith.constant 0 : index
    %c0_198 = arith.constant 0 : index
    %468 = vector.load %arg40[%c0_197, %c0_198] : memref<1x1xf32, #tpu.memory_space<vmem>>, vector<1x1xf32>
    %469 = vector.broadcast %468 : vector<1x1xf32> to vector<16x1xf32>
    %470 = arith.addf %467, %469 : vector<16x1xf32>
    %471 = vector.shape_cast %470 : vector<16x1xf32> to vector<16x1xf32>
    %472 = vector.broadcast %471 : vector<16x1xf32> to vector<16x128xf32>
    %c0_199 = arith.constant 0 : index
    %c0_200 = arith.constant 0 : index
    %473 = vector.load %arg41[%c0_199, %c0_200] : memref<16x128xf32, #tpu.memory_space<vmem>>, vector<16x128xf32>
    tpu.vector_store %arg41[%c0_199, %c0_200], %472 {strides = array<i32>} : memref<16x128xf32, #tpu.memory_space<vmem>>, vector<16x128xf32>,
    return
  }
}

</mosaic_0001>

<llo_original>
// kernel: squeeze.1
$region0: #{squeeze.1}
  %s0 = inlined_call_operand.vmem [shape: f32[16], index: 0, kind: input, shape index: {}]
  %s1 = inlined_call_operand.hbm [shape: f32[2,8], index: 1, kind: output, shape index: {}]
  $region1: #{squeeze.1} parent=0
    #allocation0 [shape = 'u8[1024]{0}', space=vmem, size = 0x400, scoped, tag = 'operand span for operand 1']
    #allocation1 [shape = 's32[1]{0}', space=sflag, size = 0x4, scoped, tag = 'scoped memory for squeeze.1']
    #allocation2 [shape = 'u8[4096]{0}', space=vmem, size = 0x1000, scoped, tag = 'scoped mem for output reshape']
    #allocation3 [shape = 'u8[4096]{0}', space=vmem, size = 0x1000, scoped, tag = 'scoped mem for input reshape']
    %2 = vsyncpa [#allocation1], 0
    %s4 = sshllo.u32 0, 1
    %v5 = vld [vmem:[%s0] sm:%s4]
    %6 = vst [vmem:[#allocation3] sm:%s4] %v5
    %v7 = vld [vmem:[#allocation3] sm:$0x1]
    %vm8 = vcmask 64512
    %9 = vst.msk [vmem:[#allocation2] sm:$0x1] %vm8, %v7
    %v10 = vld [vmem:[#allocation3] sm:$0x1]
    %11 = vrot.lane.b32.xlu0 %v10, 120
    %v12 = vpop.permute.xlu0 %11
    %vm13 = vcmask 64512
    %s14 = scalar_lea.vmem [#allocation2], 1
    %15 = vst.msk [vmem:[%s14] sm:$0x1] %vm13, %v12
    %s17 = sshllo.u32 0, 2
    %v19 = vld [vmem:[#allocation2] sm:%s17]
    %s20 = sshllo.u32 0, 2
    %21 = vst [vmem:[#allocation0] sm:%s20] %v19
    %s23 = ssub.s32 32, 32
    %24 = vsyncadd [#allocation1], %s23
    %s26 = sshll.u32 [#allocation0], 4
    %s27 = int_to_ptr.vmem [resolvable:$true] %s26
    %29 = dma.vmem_to_hbm [thread:$0]  %s27, 32, %s1, [#allocation1]
    %30 = dma.done [#allocation1], 32
    %31 = vsyncpa [#allocation1], 1

// kernel: sakt_forward.1
$region0: #{sakt_forward.1}
  #allocation0 [shape = 'u32[]', space=smem, size = 0x4, offset = 0x4, fixed_abs, tag = 'smem constant byte address 0x4 - core index']
  #allocation1 [shape = 'u32[144,128]{1,0:T(1,128)}', space=vmem, size = 0x12000, scoped, tag = 'internal scratch']
  #allocation2 [shape = 'f32[1,1]{1,0:T(1,128)S(1)}', space=vmem, size = 0x200, scoped, tag = 'scoped memory for sakt_forward.1']
  %s0 = inlined_call_operand.smem [shape: u32[42], index: -1, kind: input, shape index: {}]
  %s1 = sld [smem:[%s0]]
  %s2 = scalar_lea.smem %s0, 1
  %s3 = sld [smem:[%s2]]
  %s4 = scalar_lea.smem %s0, 2
  %s5 = sld [smem:[%s4]]
  %s6 = scalar_lea.smem %s0, 3
  %s7 = sld [smem:[%s6]]
  %s8 = scalar_lea.smem %s0, 4
  %s9 = sld [smem:[%s8]]
  %s10 = scalar_lea.smem %s0, 5
  %s11 = sld [smem:[%s10]]
  %s12 = scalar_lea.smem %s0, 6
  %s13 = sld [smem:[%s12]]
  %s14 = scalar_lea.smem %s0, 7
  %s15 = sld [smem:[%s14]]
  %s16 = scalar_lea.smem %s0, 8
  %s17 = sld [smem:[%s16]]
  %s18 = scalar_lea.smem %s0, 9
  %s19 = sld [smem:[%s18]]
  %s20 = scalar_lea.smem %s0, 10
  %s21 = sld [smem:[%s20]]
  %s22 = scalar_lea.smem %s0, 11
  %s23 = sld [smem:[%s22]]
  %s24 = scalar_lea.smem %s0, 12
  %s25 = sld [smem:[%s24]]
  %s26 = scalar_lea.smem %s0, 13
  %s27 = sld [smem:[%s26]]
  %s28 = scalar_lea.smem %s0, 14
  %s29 = sld [smem:[%s28]]
  %s30 = scalar_lea.smem %s0, 15
  %s31 = sld [smem:[%s30]]
  %s32 = scalar_lea.smem %s0, 16
  %s33 = sld [smem:[%s32]]
  %s34 = scalar_lea.smem %s0, 17
  %s35 = sld [smem:[%s34]]
  %s36 = scalar_lea.smem %s0, 18
  %s37 = sld [smem:[%s36]]
  %s38 = scalar_lea.smem %s0, 19
  %s39 = sld [smem:[%s38]]
  %s40 = scalar_lea.smem %s0, 20
  %s41 = sld [smem:[%s40]]
  %s42 = scalar_lea.smem %s0, 21
  %s43 = sld [smem:[%s42]]
  %s44 = scalar_lea.smem %s0, 22
  %s45 = sld [smem:[%s44]]
  %s46 = scalar_lea.smem %s0, 23
  %s47 = sld [smem:[%s46]]
  %s48 = scalar_lea.smem %s0, 24
  %s49 = sld [smem:[%s48]]
  %s50 = scalar_lea.smem %s0, 25
  %s51 = sld [smem:[%s50]]
  %s52 = scalar_lea.smem %s0, 26
  %s53 = sld [smem:[%s52]]
  %s54 = scalar_lea.smem %s0, 27
  %s55 = sld [smem:[%s54]]
  %s56 = scalar_lea.smem %s0, 28
  %s57 = sld [smem:[%s56]]
  %s58 = scalar_lea.smem %s0, 29
  %s59 = sld [smem:[%s58]]
  %s60 = scalar_lea.smem %s0, 30
  %s61 = sld [smem:[%s60]]
  %s62 = scalar_lea.smem %s0, 31
  %s63 = sld [smem:[%s62]]
  %s64 = scalar_lea.smem %s0, 32
  %s65 = sld [smem:[%s64]]
  %s66 = scalar_lea.smem %s0, 33
  %s67 = sld [smem:[%s66]]
  %s68 = scalar_lea.smem %s0, 34
  %s69 = sld [smem:[%s68]]
  %s70 = scalar_lea.smem %s0, 35
  %s71 = sld [smem:[%s70]]
  %s72 = scalar_lea.smem %s0, 36
  %s73 = sld [smem:[%s72]]
  %s74 = scalar_lea.smem %s0, 37
  %s75 = sld [smem:[%s74]]
  %s76 = scalar_lea.smem %s0, 38
  %s77 = sld [smem:[%s76]]
  %s78 = scalar_lea.smem %s0, 39
  %s79 = sld [smem:[%s78]]
  %s80 = scalar_lea.smem %s0, 40
  %s81 = sld [smem:[%s80]]
  %s82 = scalar_lea.smem %s0, 41
  %s83 = sld [smem:[%s82]]
  %s84 = sld [smem:[#allocation0]]
  $region174: #{sakt_forward.1} parent=0
    _
  %s86 = ssub.s32 1, %s84
  %s87 = scalar_select 0, %s86, %s84
  %v88 = vstv %s81
  %89 = vst [vmem:[#allocation2] sm:$0x1] %v88
  // Predicated region
  $region2: #{sakt_forward.1} parent=0 // pred_check
    _
  $region3: #{sakt_forward.1} parent=0 // pred_check_branch
    %91 = sbr.rel (0) target = $region5
  $region4: #{sakt_forward.1} parent=0 // pred_region
    _
  $region5: #{sakt_forward.1} parent=0 // pred_fallthru
    _
  // Predicated region
  $region6: #{sakt_forward.1} parent=0 // pred_check
    _
  $region7: #{sakt_forward.1} parent=0 // pred_check_branch
    %93 = sbr.rel (0) target = $region9
  $region8: #{sakt_forward.1} parent=0 // pred_region
    _
  $region9: #{sakt_forward.1} parent=0 // pred_fallthru
    _
  // Predicated region
  $region10: #{sakt_forward.1} parent=0 // pred_check
    _
  $region11: #{sakt_forward.1} parent=0 // pred_check_branch
    %95 = sbr.rel (0) target = $region13
  $region12: #{sakt_forward.1} parent=0 // pred_region
    _
  $region13: #{sakt_forward.1} parent=0 // pred_fallthru
    _
  // Predicated region
  $region14: #{sakt_forward.1} parent=0 // pred_check
    _
  $region15: #{sakt_forward.1} parent=0 // pred_check_branch
    %97 = sbr.rel (0) target = $region17
  $region16: #{sakt_forward.1} parent=0 // pred_region
    _
  $region17: #{sakt_forward.1} parent=0 // pred_fallthru
    _
  // Predicated region
  $region18: #{sakt_forward.1} parent=0 // pred_check
    _
  $region19: #{sakt_forward.1} parent=0 // pred_check_branch
    %99 = sbr.rel (0) target = $region21
  $region20: #{sakt_forward.1} parent=0 // pred_region
    _
  $region21: #{sakt_forward.1} parent=0 // pred_fallthru
    _
  // Predicated region
  $region22: #{sakt_forward.1} parent=0 // pred_check
    _
  $region23: #{sakt_forward.1} parent=0 // pred_check_branch
    %101 = sbr.rel (0) target = $region25
  $region24: #{sakt_forward.1} parent=0 // pred_region
    _
  $region25: #{sakt_forward.1} parent=0 // pred_fallthru
    _
  // Predicated region
  $region26: #{sakt_forward.1} parent=0 // pred_check
    _
  $region27: #{sakt_forward.1} parent=0 // pred_check_branch
    %103 = sbr.rel (0) target = $region29
  $region28: #{sakt_forward.1} parent=0 // pred_region
    _
  $region29: #{sakt_forward.1} parent=0 // pred_fallthru
    _
  // Predicated region
  $region30: #{sakt_forward.1} parent=0 // pred_check
    _
  $region31: #{sakt_forward.1} parent=0 // pred_check_branch
    %105 = sbr.rel (0) target = $region33
  $region32: #{sakt_forward.1} parent=0 // pred_region
    _
  $region33: #{sakt_forward.1} parent=0 // pred_fallthru
    _
  // Predicated region
  $region34: #{sakt_forward.1} parent=0 // pred_check
    _
  $region35: #{sakt_forward.1} parent=0 // pred_check_branch
    %107 = sbr.rel (0) target = $region37
  $region36: #{sakt_forward.1} parent=0 // pred_region
    _
  $region37: #{sakt_forward.1} parent=0 // pred_fallthru
    _
  // Predicated region
  $region38: #{sakt_forward.1} parent=0 // pred_check
    _
  $region39: #{sakt_forward.1} parent=0 // pred_check_branch
    %109 = sbr.rel (0) target = $region41
  $region40: #{sakt_forward.1} parent=0 // pred_region
    _
  $region41: #{sakt_forward.1} parent=0 // pred_fallthru
    _
  // Predicated region
  $region42: #{sakt_forward.1} parent=0 // pred_check
    _
  $region43: #{sakt_forward.1} parent=0 // pred_check_branch
    %111 = sbr.rel (0) target = $region45
  $region44: #{sakt_forward.1} parent=0 // pred_region
    _
  $region45: #{sakt_forward.1} parent=0 // pred_fallthru
    _
  // Predicated region
  $region46: #{sakt_forward.1} parent=0 // pred_check
    _
  $region47: #{sakt_forward.1} parent=0 // pred_check_branch
    %113 = sbr.rel (0) target = $region49
  $region48: #{sakt_forward.1} parent=0 // pred_region
    _
  $region49: #{sakt_forward.1} parent=0 // pred_fallthru
    _
  // Predicated region
  $region50: #{sakt_forward.1} parent=0 // pred_check
    _
  $region51: #{sakt_forward.1} parent=0 // pred_check_branch
    %115 = sbr.rel (0) target = $region53
  $region52: #{sakt_forward.1} parent=0 // pred_region
    _
  $region53: #{sakt_forward.1} parent=0 // pred_fallthru
    _
  // Predicated region
  $region54: #{sakt_forward.1} parent=0 // pred_check
    _
  $region55: #{sakt_forward.1} parent=0 // pred_check_branch
    %117 = sbr.rel (0) target = $region57
  $region56: #{sakt_forward.1} parent=0 // pred_region
    _
  $region57: #{sakt_forward.1} parent=0 // pred_fallthru
    _
  // Predicated region
  $region58: #{sakt_forward.1} parent=0 // pred_check
    _
  $region59: #{sakt_forward.1} parent=0 // pred_check_branch
    %119 = sbr.rel (0) target = $region61
  $region60: #{sakt_forward.1} parent=0 // pred_region
    _
  $region61: #{sakt_forward.1} parent=0 // pred_fallthru
    _
  // Predicated region
  $region62: #{sakt_forward.1} parent=0 // pred_check
    _
  $region63: #{sakt_forward.1} parent=0 // pred_check_branch
    %121 = sbr.rel (0) target = $region65
  $region64: #{sakt_forward.1} parent=0 // pred_region
    _
  $region65: #{sakt_forward.1} parent=0 // pred_fallthru
    _
  // Predicated region
  $region66: #{sakt_forward.1} parent=0 // pred_check
    _
  $region67: #{sakt_forward.1} parent=0 // pred_check_branch
    %123 = sbr.rel (0) target = $region69
  $region68: #{sakt_forward.1} parent=0 // pred_region
    _
  $region69: #{sakt_forward.1} parent=0 // pred_fallthru
    _
  // Predicated region
  $region70: #{sakt_forward.1} parent=0 // pred_check
    _
  $region71: #{sakt_forward.1} parent=0 // pred_check_branch
    %125 = sbr.rel (0) target = $region73
  $region72: #{sakt_forward.1} parent=0 // pred_region
    _
  $region73: #{sakt_forward.1} parent=0 // pred_fallthru
    _
  // Predicated region
  $region74: #{sakt_forward.1} parent=0 // pred_check
    _
  $region75: #{sakt_forward.1} parent=0 // pred_check_branch
    %127 = sbr.rel (0) target = $region77
  $region76: #{sakt_forward.1} parent=0 // pred_region
    _
  $region77: #{sakt_forward.1} parent=0 // pred_fallthru
    _
  // Predicated region
  $region78: #{sakt_forward.1} parent=0 // pred_check
    _
  $region79: #{sakt_forward.1} parent=0 // pred_check_branch
    %129 = sbr.rel (0) target = $region81
  $region80: #{sakt_forward.1} parent=0 // pred_region
    _
  $region81: #{sakt_forward.1} parent=0 // pred_fallthru
    _
  // Predicated region
  $region82: #{sakt_forward.1} parent=0 // pred_check
    _
  $region83: #{sakt_forward.1} parent=0 // pred_check_branch
    %131 = sbr.rel (0) target = $region85
  $region84: #{sakt_forward.1} parent=0 // pred_region
    _
  $region85: #{sakt_forward.1} parent=0 // pred_fallthru
    _
  // Predicated region
  $region86: #{sakt_forward.1} parent=0 // pred_check
    _
  $region87: #{sakt_forward.1} parent=0 // pred_check_branch
    %133 = sbr.rel (0) target = $region89
  $region88: #{sakt_forward.1} parent=0 // pred_region
    _
  $region89: #{sakt_forward.1} parent=0 // pred_fallthru
    _
  // Predicated region
  $region90: #{sakt_forward.1} parent=0 // pred_check
    _
  $region91: #{sakt_forward.1} parent=0 // pred_check_branch
    %135 = sbr.rel (0) target = $region93
  $region92: #{sakt_forward.1} parent=0 // pred_region
    _
  $region93: #{sakt_forward.1} parent=0 // pred_fallthru
    _
  // Predicated region
  $region94: #{sakt_forward.1} parent=0 // pred_check
    _
  $region95: #{sakt_forward.1} parent=0 // pred_check_branch
    %137 = sbr.rel (0) target = $region97
  $region96: #{sakt_forward.1} parent=0 // pred_region
    _
  $region97: #{sakt_forward.1} parent=0 // pred_fallthru
    _
  // Predicated region
  $region98: #{sakt_forward.1} parent=0 // pred_check
    _
  $region99: #{sakt_forward.1} parent=0 // pred_check_branch
    %139 = sbr.rel (0) target = $region101
  $region100: #{sakt_forward.1} parent=0 // pred_region
    _
  $region101: #{sakt_forward.1} parent=0 // pred_fallthru
    _
  // Predicated region
  $region102: #{sakt_forward.1} parent=0 // pred_check
    _
  $region103: #{sakt_forward.1} parent=0 // pred_check_branch
    %141 = sbr.rel (0) target = $region105
  $region104: #{sakt_forward.1} parent=0 // pred_region
    _
  $region105: #{sakt_forward.1} parent=0 // pred_fallthru
    _
  // Predicated region
  $region106: #{sakt_forward.1} parent=0 // pred_check
    _
  $region107: #{sakt_forward.1} parent=0 // pred_check_branch
    %143 = sbr.rel (0) target = $region109
  $region108: #{sakt_forward.1} parent=0 // pred_region
    _
  $region109: #{sakt_forward.1} parent=0 // pred_fallthru
    _
  // Predicated region
  $region110: #{sakt_forward.1} parent=0 // pred_check
    _
  $region111: #{sakt_forward.1} parent=0 // pred_check_branch
    %145 = sbr.rel (0) target = $region113
  $region112: #{sakt_forward.1} parent=0 // pred_region
    _
  $region113: #{sakt_forward.1} parent=0 // pred_fallthru
    _
  // Predicated region
  $region114: #{sakt_forward.1} parent=0 // pred_check
    _
  $region115: #{sakt_forward.1} parent=0 // pred_check_branch
    %147 = sbr.rel (0) target = $region117
  $region116: #{sakt_forward.1} parent=0 // pred_region
    _
  $region117: #{sakt_forward.1} parent=0 // pred_fallthru
    _
  // Predicated region
  $region118: #{sakt_forward.1} parent=0 // pred_check
    _
  $region119: #{sakt_forward.1} parent=0 // pred_check_branch
    %149 = sbr.rel (0) target = $region121
  $region120: #{sakt_forward.1} parent=0 // pred_region
    _
  $region121: #{sakt_forward.1} parent=0 // pred_fallthru
    _
  // Predicated region
  $region122: #{sakt_forward.1} parent=0 // pred_check
    _
  $region123: #{sakt_forward.1} parent=0 // pred_check_branch
    %151 = sbr.rel (0) target = $region125
  $region124: #{sakt_forward.1} parent=0 // pred_region
    _
  $region125: #{sakt_forward.1} parent=0 // pred_fallthru
    _
  // Predicated region
  $region126: #{sakt_forward.1} parent=0 // pred_check
    _
  $region127: #{sakt_forward.1} parent=0 // pred_check_branch
    %153 = sbr.rel (0) target = $region129
  $region128: #{sakt_forward.1} parent=0 // pred_region
    _
  $region129: #{sakt_forward.1} parent=0 // pred_fallthru
    _
  // Predicated region
  $region130: #{sakt_forward.1} parent=0 // pred_check
    _
  $region131: #{sakt_forward.1} parent=0 // pred_check_branch
    %155 = sbr.rel (0) target = $region133
  $region132: #{sakt_forward.1} parent=0 // pred_region
    _
  $region133: #{sakt_forward.1} parent=0 // pred_fallthru
    _
  // Predicated region
  $region134: #{sakt_forward.1} parent=0 // pred_check
    _
  $region135: #{sakt_forward.1} parent=0 // pred_check_branch
    %157 = sbr.rel (0) target = $region137
  $region136: #{sakt_forward.1} parent=0 // pred_region
    _
  $region137: #{sakt_forward.1} parent=0 // pred_fallthru
    _
  // Predicated region
  $region138: #{sakt_forward.1} parent=0 // pred_check
    _
  $region139: #{sakt_forward.1} parent=0 // pred_check_branch
    %159 = sbr.rel (0) target = $region141
  $region140: #{sakt_forward.1} parent=0 // pred_region
    _
  $region141: #{sakt_forward.1} parent=0 // pred_fallthru
    _
  // Predicated region
  $region142: #{sakt_forward.1} parent=0 // pred_check
    _
  $region143: #{sakt_forward.1} parent=0 // pred_check_branch
    %161 = sbr.rel (0) target = $region145
  $region144: #{sakt_forward.1} parent=0 // pred_region
    _
  $region145: #{sakt_forward.1} parent=0 // pred_fallthru
    _
  // Predicated region
  $region146: #{sakt_forward.1} parent=0 // pred_check
    _
  $region147: #{sakt_forward.1} parent=0 // pred_check_branch
    %163 = sbr.rel (0) target = $region149
  $region148: #{sakt_forward.1} parent=0 // pred_region
    _
  $region149: #{sakt_forward.1} parent=0 // pred_fallthru
    _
  // Predicated region
  $region150: #{sakt_forward.1} parent=0 // pred_check
    _
  $region151: #{sakt_forward.1} parent=0 // pred_check_branch
    %165 = sbr.rel (0) target = $region153
  $region152: #{sakt_forward.1} parent=0 // pred_region
    _
  $region153: #{sakt_forward.1} parent=0 // pred_fallthru
    _
  // Predicated region
  $region154: #{sakt_forward.1} parent=0 // pred_check
    _
  $region155: #{sakt_forward.1} parent=0 // pred_check_branch
    %167 = sbr.rel (0) target = $region157
  $region156: #{sakt_forward.1} parent=0 // pred_region
    _
  $region157: #{sakt_forward.1} parent=0 // pred_fallthru
    _
  // Predicated region
  $region158: #{sakt_forward.1} parent=0 // pred_check
    _
  $region159: #{sakt_forward.1} parent=0 // pred_check_branch
    %169 = sbr.rel (0) target = $region161
  $region160: #{sakt_forward.1} parent=0 // pred_region
    _
  $region161: #{sakt_forward.1} parent=0 // pred_fallthru
    _
  // Predicated region
  $region162: #{sakt_forward.1} parent=0 // pred_check
    _
  $region163: #{sakt_forward.1} parent=0 // pred_check_branch
    %171 = sbr.rel (0) target = $region165
  $region164: #{sakt_forward.1} parent=0 // pred_region
    _
  $region165: #{sakt_forward.1} parent=0 // pred_fallthru
    _
  %v173 = vld [vmem:[%s5] sm:$0xff]
  %v174 = vld [vmem:[%s5 + $0x8] sm:$0xff]
  %v175 = vld [vmem:[%s1] sm:$0xff]
  %v176 = vld [vmem:[%s1 + $0x8] sm:$0xff]
  %v177 = vld [vmem:[%s7] sm:$0xff]
  %v178 = vld [vmem:[%s7 + $0x8] sm:$0xff]
  %v179 = vld [vmem:[%s7 + $0x10] sm:$0xff]
  %v180 = vld [vmem:[%s7 + $0x18] sm:$0xff]
  %v181 = vld [vmem:[%s9] sm:$0x1]
  %v183 = vlaneseq
  %v184 = vshrl.u32 %v183, 7
  %v185 = vsub.s32 0, %v184
  %v186 = vrot.slane %v181, %v185
  %vm188 = vcmask 261120
  %v190 = vsel %vm188, %v175, 0
  %v193 = vsel %vm188, %v176, 0
  %195 = vmatprep.subr.mxu0 0.0
  %196 = vmatpush1.msra.mxu0 %v177
  %197 = vmatprep.subr.mxu0 0.0
  %198 = vmatpush1.msra.mxu0 %v178
  %199 = vmatprep.subr.mxu0 0.0
  %200 = vmatpush1.msra.mxu0 %v179
  %201 = vmatprep.subr.mxu0 0.0
  %202 = vmatpush1.msra.mxu0 %v180
  %203 = vmatprep.subr.mxu0 0.0
  %204 = vmatpush1.msra.mxu0 0.0
  %205 = vmatprep.subr.mxu0 0.0
  %206 = vmatpush1.msra.mxu0 0.0
  %207 = vmatprep.subr.mxu0 0.0
  %208 = vmatpush1.msra.mxu0 0.0
  %209 = vmatprep.subr.mxu0 0.0
  %210 = vmatpush1.msra.mxu0 0.0
  %211 = vmatprep.subr.mxu0 0.0
  %212 = vmatpush1.msra.mxu0 0.0
  %213 = vmatprep.subr.mxu0 0.0
  %214 = vmatpush1.msra.mxu0 0.0
  %215 = vmatprep.subr.mxu0 0.0
  %216 = vmatpush1.msra.mxu0 0.0
  %217 = vmatprep.subr.mxu0 0.0
  %218 = vmatpush1.msra.mxu0 0.0
  %219 = vmatprep.subr.mxu0 0.0
  %220 = vmatpush1.msra.mxu0 0.0
  %221 = vmatprep.subr.mxu0 0.0
  %222 = vmatpush1.msra.mxu0 0.0
  %223 = vmatprep.subr.mxu0 0.0
  %224 = vmatpush1.msra.mxu0 0.0
  %225 = vmatprep.subr.mxu0 0.0
  %226 = vmatpush1.msra.mxu0 0.0
  %227 = vmatprep.subr.mxu0 0.0
  %228 = vmatpush1.msra.mxu0 0.0
  %229 = vmatprep.subr.mxu0 0.0
  %230 = vmatpush1.msra.mxu0 0.0
  %231 = vmatprep.subr.mxu0 0.0
  %232 = vmatpush1.msra.mxu0 0.0
  %233 = vmatprep.subr.mxu0 0.0
  %234 = vmatpush1.msra.mxu0 0.0
  %235 = vmatprep.subr.mxu0 0.0
  %236 = vmatpush1.msra.mxu0 0.0
  %237 = vmatprep.subr.mxu0 0.0
  %238 = vmatpush1.msra.mxu0 0.0
  %239 = vmatprep.subr.mxu0 0.0
  %240 = vmatpush1.msra.mxu0 0.0
  %241 = vmatprep.subr.mxu0 0.0
  %242 = vmatpush1.msra.mxu0 0.0
  %243 = vmatprep.subr.mxu0 0.0
  %244 = vmatpush1.msra.mxu0 0.0
  %245 = vmatprep.subr.mxu0 0.0
  %246 = vmatpush1.msra.mxu0 0.0
  %247 = vmatprep.subr.mxu0 0.0
  %248 = vmatpush1.msra.mxu0 0.0
  %249 = vmatprep.subr.mxu0 0.0
  %250 = vmatpush1.msra.mxu0 0.0
  %251 = vmatprep.subr.mxu0 0.0
  %252 = vmatpush1.msra.mxu0 0.0
  %253 = vmatprep.subr.mxu0 0.0
  %254 = vmatpush1.msra.mxu0 0.0
  %255 = vmatprep.subr.mxu0 0.0
  %256 = vmatpush1.msra.mxu0 0.0
  %257 = vmatprep.subr.mxu0 0.0
  %258 = vmatpush1.msra.mxu0 0.0
  %259 = vmatprep.mubr.f32.mxu0 0.0
  %260 = vmatmul.mubr.f32.gmra.mrb[0].mxu0 %v190
  %v261 = vpop.f32.mrb[0].mxu0
  %v262 = vadd.f32 %v186, %v261
  %v263 = vpop.f32.mrb[0].mxu0
  %264 = vmatprep.mubr.f32.mxu0 0.0
  %265 = vmatmul.mubr.f32.gmra.mrb[0].mxu0 %v193
  %v266 = vpop.f32.mrb[0].mxu0
  %v267 = vadd.f32 %v186, %v266
  %v268 = vpop.f32.mrb[0].mxu0
  %269 = vdwg.mxu0
  %v270 = vld [vmem:[%s11] sm:$0xff]
  %v271 = vld [vmem:[%s11 + $0x8] sm:$0xff]
  %v272 = vld [vmem:[%s11 + $0x10] sm:$0xff]
  %v273 = vld [vmem:[%s11 + $0x18] sm:$0xff]
  %276 = vrot.lane.b32.xlu0 %v262, 96
  %v277 = vpop.permute.xlu0 %276
  %278 = vrot.lane.b32.xlu0 %v267, 96
  %v279 = vpop.permute.xlu0 %278
  %vm280 = vcmask 64512
  %v281 = vsel %vm280, %v262, 0
  %v283 = vsel %vm280, %v267, 0
  %v285 = vsel %vm280, %v277, 0
  %v287 = vsel %vm280, %v279, 0
  %289 = vmatprep.subr.mxu0 0.0
  %290 = vmatpush1.xpose.msra.mxu0 %v285
  %291 = vmatprep.subr.mxu0 0.0
  %292 = vmatpush1.xpose.msra.mxu0 %v287
  %293 = vmatprep.subr.mxu0 0.0
  %294 = vmatpush1.xpose.msra.mxu0 0.0
  %295 = vmatprep.subr.mxu0 0.0
  %296 = vmatpush1.xpose.msra.mxu0 0.0
  %297 = vmatprep.subr.mxu0 0.0
  %298 = vmatpush1.xpose.msra.mxu0 0.0
  %299 = vmatprep.subr.mxu0 0.0
  %300 = vmatpush1.xpose.msra.mxu0 0.0
  %301 = vmatprep.subr.mxu0 0.0
  %302 = vmatpush1.xpose.msra.mxu0 0.0
  %303 = vmatprep.subr.mxu0 0.0
  %304 = vmatpush1.xpose.msra.mxu0 0.0
  %305 = vmatprep.subr.mxu0 0.0
  %306 = vmatpush1.xpose.msra.mxu0 0.0
  %307 = vmatprep.subr.mxu0 0.0
  %308 = vmatpush1.xpose.msra.mxu0 0.0
  %309 = vmatprep.subr.mxu0 0.0
  %310 = vmatpush1.xpose.msra.mxu0 0.0
  %311 = vmatprep.subr.mxu0 0.0
  %312 = vmatpush1.xpose.msra.mxu0 0.0
  %313 = vmatprep.subr.mxu0 0.0
  %314 = vmatpush1.xpose.msra.mxu0 0.0
  %315 = vmatprep.subr.mxu0 0.0
  %316 = vmatpush1.xpose.msra.mxu0 0.0
  %317 = vmatprep.subr.mxu0 0.0
  %318 = vmatpush1.xpose.msra.mxu0 0.0
  %319 = vmatprep.subr.mxu0 0.0
  %320 = vmatpush1.xpose.msra.mxu0 0.0
  %321 = vmatprep.subr.mxu0 0.0
  %322 = vmatpush1.xpose.msra.mxu0 0.0
  %323 = vmatprep.subr.mxu0 0.0
  %324 = vmatpush1.xpose.msra.mxu0 0.0
  %325 = vmatprep.subr.mxu0 0.0
  %326 = vmatpush1.xpose.msra.mxu0 0.0
  %327 = vmatprep.subr.mxu0 0.0
  %328 = vmatpush1.xpose.msra.mxu0 0.0
  %329 = vmatprep.subr.mxu0 0.0
  %330 = vmatpush1.xpose.msra.mxu0 0.0
  %331 = vmatprep.subr.mxu0 0.0
  %332 = vmatpush1.xpose.msra.mxu0 0.0
  %333 = vmatprep.subr.mxu0 0.0
  %334 = vmatpush1.xpose.msra.mxu0 0.0
  %335 = vmatprep.subr.mxu0 0.0
  %336 = vmatpush1.xpose.msra.mxu0 0.0
  %337 = vmatprep.subr.mxu0 0.0
  %338 = vmatpush1.xpose.msra.mxu0 0.0
  %339 = vmatprep.subr.mxu0 0.0
  %340 = vmatpush1.xpose.msra.mxu0 0.0
  %341 = vmatprep.subr.mxu0 0.0
  %342 = vmatpush1.xpose.msra.mxu0 0.0
  %343 = vmatprep.subr.mxu0 0.0
  %344 = vmatpush1.xpose.msra.mxu0 0.0
  %345 = vmatprep.subr.mxu0 0.0
  %346 = vmatpush1.xpose.msra.mxu0 0.0
  %347 = vmatprep.subr.mxu0 0.0
  %348 = vmatpush1.xpose.msra.mxu0 0.0
  %349 = vmatprep.subr.mxu0 0.0
  %350 = vmatpush1.xpose.msra.mxu0 0.0
  %351 = vmatprep.subr.mxu0 0.0
  %352 = vmatpush1.xpose.msra.mxu0 0.0
  %353 = vmatprep.mubr.f32.mxu0 0.0
  %354 = vmatmul.mubr.f32.gmra.mrb[0].mxu0 %v281
  %v355 = vpop.f32.mrb[0].mxu0
  %v356 = vadd.f32 0.0, %v355
  %v357 = vpop.f32.mrb[0].mxu0
  %358 = vmatprep.mubr.f32.mxu0 0.0
  %359 = vmatmul.mubr.f32.gmra.mrb[0].mxu0 %v283
  %v360 = vpop.f32.mrb[0].mxu0
  %v361 = vadd.f32 0.0, %v360
  %v362 = vpop.f32.mrb[0].mxu0
  %363 = vdwg.mxu0
  %v364 = vmul.f32 %v356, 0.35355338
  %v365 = vmul.f32 %v361, 0.35355338
  %v366 = vadd.f32 %v364, %v173
  %v367 = vadd.f32 %v365, %v174
  %vm368 = vcmask 130048
  %v369 = vsel %vm368, %v366, -inf
  %370 = vmax.xlane.f32.xlu0 %v369
  %v371 = vpop.xlane.xlu0 %370
  %v372 = vsel %vm368, %v367, -inf
  %373 = vmax.xlane.f32.xlu0 %v372
  %v374 = vpop.xlane.xlu0 %373
  %v375 = vsub.f32 %v366, %v371
  %v376 = vsub.f32 %v367, %v374
  %v377 = vmul.f32 %v375, 1.442695
  %v378 = vpow.pop %v377
  %v379 = vmul.f32 %v376, 1.442695
  %v380 = vpow.pop %v379
  %v381 = vsel %vm368, %v378, 0.0
  %382 = vadd.xlane.f32.xlu0 %v381
  %v383 = vpop.xlane.xlu0 %382
  %v384 = vsel %vm368, %v380, 0.0
  %385 = vadd.xlane.f32.xlu0 %v384
  %v386 = vpop.xlane.xlu0 %385
  %v387 = vrcp.pop %v383
  %v388 = vmul.f32 %v378, %v387
  %v389 = vrcp.pop %v386
  %v390 = vmul.f32 %v380, %v389
  %391 = vrot.lane.b32.xlu0 %v262, 64
  %v392 = vpop.permute.xlu0 %391
  %393 = vrot.lane.b32.xlu0 %v267, 64
  %v394 = vpop.permute.xlu0 %393
  %v398 = vsel %vm368, %v388, 0
  %v401 = vsel %vm368, %v390, 0
  %403 = vmatprep.subr.mxu0 0.0
  %404 = vmatpush1.msra.mxu0 %v392
  %405 = vmatprep.subr.mxu0 0.0
  %406 = vmatpush1.msra.mxu0 %v394
  %407 = vmatprep.subr.mxu0 0.0
  %408 = vmatpush1.msra.mxu0 0.0
  %409 = vmatprep.subr.mxu0 0.0
  %410 = vmatpush1.msra.mxu0 0.0
  %411 = vmatprep.subr.mxu0 0.0
  %412 = vmatpush1.msra.mxu0 0.0
  %413 = vmatprep.subr.mxu0 0.0
  %414 = vmatpush1.msra.mxu0 0.0
  %415 = vmatprep.subr.mxu0 0.0
  %416 = vmatpush1.msra.mxu0 0.0
  %417 = vmatprep.subr.mxu0 0.0
  %418 = vmatpush1.msra.mxu0 0.0
  %419 = vmatprep.subr.mxu0 0.0
  %420 = vmatpush1.msra.mxu0 0.0
  %421 = vmatprep.subr.mxu0 0.0
  %422 = vmatpush1.msra.mxu0 0.0
  %423 = vmatprep.subr.mxu0 0.0
  %424 = vmatpush1.msra.mxu0 0.0
  %425 = vmatprep.subr.mxu0 0.0
  %426 = vmatpush1.msra.mxu0 0.0
  %427 = vmatprep.subr.mxu0 0.0
  %428 = vmatpush1.msra.mxu0 0.0
  %429 = vmatprep.subr.mxu0 0.0
  %430 = vmatpush1.msra.mxu0 0.0
  %431 = vmatprep.subr.mxu0 0.0
  %432 = vmatpush1.msra.mxu0 0.0
  %433 = vmatprep.subr.mxu0 0.0
  %434 = vmatpush1.msra.mxu0 0.0
  %435 = vmatprep.subr.mxu0 0.0
  %436 = vmatpush1.msra.mxu0 0.0
  %437 = vmatprep.subr.mxu0 0.0
  %438 = vmatpush1.msra.mxu0 0.0
  %439 = vmatprep.subr.mxu0 0.0
  %440 = vmatpush1.msra.mxu0 0.0
  %441 = vmatprep.subr.mxu0 0.0
  %442 = vmatpush1.msra.mxu0 0.0
  %443 = vmatprep.subr.mxu0 0.0
  %444 = vmatpush1.msra.mxu0 0.0
  %445 = vmatprep.subr.mxu0 0.0
  %446 = vmatpush1.msra.mxu0 0.0
  %447 = vmatprep.subr.mxu0 0.0
  %448 = vmatpush1.msra.mxu0 0.0
  %449 = vmatprep.subr.mxu0 0.0
  %450 = vmatpush1.msra.mxu0 0.0
  %451 = vmatprep.subr.mxu0 0.0
  %452 = vmatpush1.msra.mxu0 0.0
  %453 = vmatprep.subr.mxu0 0.0
  %454 = vmatpush1.msra.mxu0 0.0
  %455 = vmatprep.subr.mxu0 0.0
  %456 = vmatpush1.msra.mxu0 0.0
  %457 = vmatprep.subr.mxu0 0.0
  %458 = vmatpush1.msra.mxu0 0.0
  %459 = vmatprep.subr.mxu0 0.0
  %460 = vmatpush1.msra.mxu0 0.0
  %461 = vmatprep.subr.mxu0 0.0
  %462 = vmatpush1.msra.mxu0 0.0
  %463 = vmatprep.subr.mxu0 0.0
  %464 = vmatpush1.msra.mxu0 0.0
  %465 = vmatprep.subr.mxu0 0.0
  %466 = vmatpush1.msra.mxu0 0.0
  %467 = vmatprep.mubr.f32.mxu0 0.0
  %468 = vmatmul.mubr.f32.gmra.mrb[0].mxu0 %v398
  %v469 = vpop.f32.mrb[0].mxu0
  %v470 = vadd.f32 0.0, %v469
  %v471 = vpop.f32.mrb[0].mxu0
  %472 = vmatprep.mubr.f32.mxu0 0.0
  %473 = vmatmul.mubr.f32.gmra.mrb[0].mxu0 %v401
  %v474 = vpop.f32.mrb[0].mxu0
  %v475 = vadd.f32 0.0, %v474
  %v476 = vpop.f32.mrb[0].mxu0
  %477 = vdwg.mxu0
  %478 = vrot.lane.b32.xlu0 %v262, 120
  %v479 = vpop.permute.xlu0 %478
  %480 = vrot.lane.b32.xlu0 %v267, 120
  %v481 = vpop.permute.xlu0 %480
  %482 = vrot.lane.b32.xlu0 %v262, 88
  %v483 = vpop.permute.xlu0 %482
  %484 = vrot.lane.b32.xlu0 %v267, 88
  %v485 = vpop.permute.xlu0 %484
  %v486 = vsel %vm280, %v479, 0
  %v488 = vsel %vm280, %v481, 0
  %v490 = vsel %vm280, %v483, 0
  %v492 = vsel %vm280, %v485, 0
  %494 = vmatprep.subr.mxu0 0.0
  %495 = vmatpush1.xpose.msra.mxu0 %v490
  %496 = vmatprep.subr.mxu0 0.0
  %497 = vmatpush1.xpose.msra.mxu0 %v492
  %498 = vmatprep.subr.mxu0 0.0
  %499 = vmatpush1.xpose.msra.mxu0 0.0
  %500 = vmatprep.subr.mxu0 0.0
  %501 = vmatpush1.xpose.msra.mxu0 0.0
  %502 = vmatprep.subr.mxu0 0.0
  %503 = vmatpush1.xpose.msra.mxu0 0.0
  %504 = vmatprep.subr.mxu0 0.0
  %505 = vmatpush1.xpose.msra.mxu0 0.0
  %506 = vmatprep.subr.mxu0 0.0
  %507 = vmatpush1.xpose.msra.mxu0 0.0
  %508 = vmatprep.subr.mxu0 0.0
  %509 = vmatpush1.xpose.msra.mxu0 0.0
  %510 = vmatprep.subr.mxu0 0.0
  %511 = vmatpush1.xpose.msra.mxu0 0.0
  %512 = vmatprep.subr.mxu0 0.0
  %513 = vmatpush1.xpose.msra.mxu0 0.0
  %514 = vmatprep.subr.mxu0 0.0
  %515 = vmatpush1.xpose.msra.mxu0 0.0
  %516 = vmatprep.subr.mxu0 0.0
  %517 = vmatpush1.xpose.msra.mxu0 0.0
  %518 = vmatprep.subr.mxu0 0.0
  %519 = vmatpush1.xpose.msra.mxu0 0.0
  %520 = vmatprep.subr.mxu0 0.0
  %521 = vmatpush1.xpose.msra.mxu0 0.0
  %522 = vmatprep.subr.mxu0 0.0
  %523 = vmatpush1.xpose.msra.mxu0 0.0
  %524 = vmatprep.subr.mxu0 0.0
  %525 = vmatpush1.xpose.msra.mxu0 0.0
  %526 = vmatprep.subr.mxu0 0.0
  %527 = vmatpush1.xpose.msra.mxu0 0.0
  %528 = vmatprep.subr.mxu0 0.0
  %529 = vmatpush1.xpose.msra.mxu0 0.0
  %530 = vmatprep.subr.mxu0 0.0
  %531 = vmatpush1.xpose.msra.mxu0 0.0
  %532 = vmatprep.subr.mxu0 0.0
  %533 = vmatpush1.xpose.msra.mxu0 0.0
  %534 = vmatprep.subr.mxu0 0.0
  %535 = vmatpush1.xpose.msra.mxu0 0.0
  %536 = vmatprep.subr.mxu0 0.0
  %537 = vmatpush1.xpose.msra.mxu0 0.0
  %538 = vmatprep.subr.mxu0 0.0
  %539 = vmatpush1.xpose.msra.mxu0 0.0
  %540 = vmatprep.subr.mxu0 0.0
  %541 = vmatpush1.xpose.msra.mxu0 0.0
  %542 = vmatprep.subr.mxu0 0.0
  %543 = vmatpush1.xpose.msra.mxu0 0.0
  %544 = vmatprep.subr.mxu0 0.0
  %545 = vmatpush1.xpose.msra.mxu0 0.0
  %546 = vmatprep.subr.mxu0 0.0
  %547 = vmatpush1.xpose.msra.mxu0 0.0
  %548 = vmatprep.subr.mxu0 0.0
  %549 = vmatpush1.xpose.msra.mxu0 0.0
  %550 = vmatprep.subr.mxu0 0.0
  %551 = vmatpush1.xpose.msra.mxu0 0.0
  %552 = vmatprep.subr.mxu0 0.0
  %553 = vmatpush1.xpose.msra.mxu0 0.0
  %554 = vmatprep.subr.mxu0 0.0
  %555 = vmatpush1.xpose.msra.mxu0 0.0
  %556 = vmatprep.subr.mxu0 0.0
  %557 = vmatpush1.xpose.msra.mxu0 0.0
  %558 = vmatprep.mubr.f32.mxu0 0.0
  %559 = vmatmul.mubr.f32.gmra.mrb[0].mxu0 %v486
  %v560 = vpop.f32.mrb[0].mxu0
  %v561 = vadd.f32 0.0, %v560
  %v562 = vpop.f32.mrb[0].mxu0
  %563 = vmatprep.mubr.f32.mxu0 0.0
  %564 = vmatmul.mubr.f32.gmra.mrb[0].mxu0 %v488
  %v565 = vpop.f32.mrb[0].mxu0
  %v566 = vadd.f32 0.0, %v565
  %v567 = vpop.f32.mrb[0].mxu0
  %568 = vdwg.mxu0
  %v569 = vmul.f32 %v561, 0.35355338
  %v570 = vmul.f32 %v566, 0.35355338
  %v571 = vadd.f32 %v569, %v173
  %v572 = vadd.f32 %v570, %v174
  %v573 = vsel %vm368, %v571, -inf
  %574 = vmax.xlane.f32.xlu0 %v573
  %v575 = vpop.xlane.xlu0 %574
  %v576 = vsel %vm368, %v572, -inf
  %577 = vmax.xlane.f32.xlu0 %v576
  %v578 = vpop.xlane.xlu0 %577
  %v579 = vsub.f32 %v571, %v575
  %v580 = vsub.f32 %v572, %v578
  %v581 = vmul.f32 %v579, 1.442695
  %v582 = vpow.pop %v581
  %v583 = vmul.f32 %v580, 1.442695
  %v584 = vpow.pop %v583
  %v585 = vsel %vm368, %v582, 0.0
  %586 = vadd.xlane.f32.xlu0 %v585
  %v587 = vpop.xlane.xlu0 %586
  %v588 = vsel %vm368, %v584, 0.0
  %589 = vadd.xlane.f32.xlu0 %v588
  %v590 = vpop.xlane.xlu0 %589
  %v591 = vrcp.pop %v587
  %v592 = vmul.f32 %v582, %v591
  %v593 = vrcp.pop %v590
  %v594 = vmul.f32 %v584, %v593
  %595 = vrot.lane.b32.xlu0 %v262, 56
  %v596 = vpop.permute.xlu0 %595
  %597 = vrot.lane.b32.xlu0 %v267, 56
  %v598 = vpop.permute.xlu0 %597
  %v602 = vsel %vm368, %v592, 0
  %v605 = vsel %vm368, %v594, 0
  %607 = vmatprep.subr.mxu0 0.0
  %608 = vmatpush1.msra.mxu0 %v596
  %609 = vmatprep.subr.mxu0 0.0
  %610 = vmatpush1.msra.mxu0 %v598
  %611 = vmatprep.subr.mxu0 0.0
  %612 = vmatpush1.msra.mxu0 0.0
  %613 = vmatprep.subr.mxu0 0.0
  %614 = vmatpush1.msra.mxu0 0.0
  %615 = vmatprep.subr.mxu0 0.0
  %616 = vmatpush1.msra.mxu0 0.0
  %617 = vmatprep.subr.mxu0 0.0
  %618 = vmatpush1.msra.mxu0 0.0
  %619 = vmatprep.subr.mxu0 0.0
  %620 = vmatpush1.msra.mxu0 0.0
  %621 = vmatprep.subr.mxu0 0.0
  %622 = vmatpush1.msra.mxu0 0.0
  %623 = vmatprep.subr.mxu0 0.0
  %624 = vmatpush1.msra.mxu0 0.0
  %625 = vmatprep.subr.mxu0 0.0
  %626 = vmatpush1.msra.mxu0 0.0
  %627 = vmatprep.subr.mxu0 0.0
  %628 = vmatpush1.msra.mxu0 0.0
  %629 = vmatprep.subr.mxu0 0.0
  %630 = vmatpush1.msra.mxu0 0.0
  %631 = vmatprep.subr.mxu0 0.0
  %632 = vmatpush1.msra.mxu0 0.0
  %633 = vmatprep.subr.mxu0 0.0
  %634 = vmatpush1.msra.mxu0 0.0
  %635 = vmatprep.subr.mxu0 0.0
  %636 = vmatpush1.msra.mxu0 0.0
  %637 = vmatprep.subr.mxu0 0.0
  %638 = vmatpush1.msra.mxu0 0.0
  %639 = vmatprep.subr.mxu0 0.0
  %640 = vmatpush1.msra.mxu0 0.0
  %641 = vmatprep.subr.mxu0 0.0
  %642 = vmatpush1.msra.mxu0 0.0
  %643 = vmatprep.subr.mxu0 0.0
  %644 = vmatpush1.msra.mxu0 0.0
  %645 = vmatprep.subr.mxu0 0.0
  %646 = vmatpush1.msra.mxu0 0.0
  %647 = vmatprep.subr.mxu0 0.0
  %648 = vmatpush1.msra.mxu0 0.0
  %649 = vmatprep.subr.mxu0 0.0
  %650 = vmatpush1.msra.mxu0 0.0
  %651 = vmatprep.subr.mxu0 0.0
  %652 = vmatpush1.msra.mxu0 0.0
  %653 = vmatprep.subr.mxu0 0.0
  %654 = vmatpush1.msra.mxu0 0.0
  %655 = vmatprep.subr.mxu0 0.0
  %656 = vmatpush1.msra.mxu0 0.0
  %657 = vmatprep.subr.mxu0 0.0
  %658 = vmatpush1.msra.mxu0 0.0
  %659 = vmatprep.subr.mxu0 0.0
  %660 = vmatpush1.msra.mxu0 0.0
  %661 = vmatprep.subr.mxu0 0.0
  %662 = vmatpush1.msra.mxu0 0.0
  %663 = vmatprep.subr.mxu0 0.0
  %664 = vmatpush1.msra.mxu0 0.0
  %665 = vmatprep.subr.mxu0 0.0
  %666 = vmatpush1.msra.mxu0 0.0
  %667 = vmatprep.subr.mxu0 0.0
  %668 = vmatpush1.msra.mxu0 0.0
  %669 = vmatprep.subr.mxu0 0.0
  %670 = vmatpush1.msra.mxu0 0.0
  %671 = vmatprep.mubr.f32.mxu0 0.0
  %672 = vmatmul.mubr.f32.gmra.mrb[0].mxu0 %v602
  %v673 = vpop.f32.mrb[0].mxu0
  %v674 = vadd.f32 0.0, %v673
  %v675 = vpop.f32.mrb[0].mxu0
  %676 = vmatprep.mubr.f32.mxu0 0.0
  %677 = vmatmul.mubr.f32.gmra.mrb[0].mxu0 %v605
  %v678 = vpop.f32.mrb[0].mxu0
  %v679 = vadd.f32 0.0, %v678
  %v680 = vpop.f32.mrb[0].mxu0
  %681 = vdwg.mxu0
  %v683 = vsel %vm280, %v674, 0
  %v686 = vsel %vm280, %v679, 0
  %688 = vmatprep.subr.mxu0 0.0
  %689 = vmatpush1.msra.mxu0 %v271
  %690 = vmatprep.subr.mxu0 0.0
  %691 = vmatpush1.msra.mxu0 0.0
  %692 = vmatprep.subr.mxu0 0.0
  %693 = vmatpush1.msra.mxu0 0.0
  %694 = vmatprep.subr.mxu0 0.0
  %695 = vmatpush1.msra.mxu0 0.0
  %696 = vmatprep.subr.mxu0 0.0
  %697 = vmatpush1.msra.mxu0 0.0
  %698 = vmatprep.subr.mxu0 0.0
  %699 = vmatpush1.msra.mxu0 0.0
  %700 = vmatprep.subr.mxu0 0.0
  %701 = vmatpush1.msra.mxu0 0.0
  %702 = vmatprep.subr.mxu0 0.0
  %703 = vmatpush1.msra.mxu0 0.0
  %704 = vmatprep.subr.mxu0 0.0
  %705 = vmatpush1.msra.mxu0 0.0
  %706 = vmatprep.subr.mxu0 0.0
  %707 = vmatpush1.msra.mxu0 0.0
  %708 = vmatprep.subr.mxu0 0.0
  %709 = vmatpush1.msra.mxu0 0.0
  %710 = vmatprep.subr.mxu0 0.0
  %711 = vmatpush1.msra.mxu0 0.0
  %712 = vmatprep.subr.mxu0 0.0
  %713 = vmatpush1.msra.mxu0 0.0
  %714 = vmatprep.subr.mxu0 0.0
  %715 = vmatpush1.msra.mxu0 0.0
  %716 = vmatprep.subr.mxu0 0.0
  %717 = vmatpush1.msra.mxu0 0.0
  %718 = vmatprep.subr.mxu0 0.0
  %719 = vmatpush1.msra.mxu0 0.0
  %720 = vmatprep.subr.mxu0 0.0
  %721 = vmatpush1.msra.mxu0 0.0
  %722 = vmatprep.subr.mxu0 0.0
  %723 = vmatpush1.msra.mxu0 0.0
  %724 = vmatprep.subr.mxu0 0.0
  %725 = vmatpush1.msra.mxu0 0.0
  %726 = vmatprep.subr.mxu0 0.0
  %727 = vmatpush1.msra.mxu0 0.0
  %728 = vmatprep.subr.mxu0 0.0
  %729 = vmatpush1.msra.mxu0 0.0
  %730 = vmatprep.subr.mxu0 0.0
  %731 = vmatpush1.msra.mxu0 0.0
  %732 = vmatprep.subr.mxu0 0.0
  %733 = vmatpush1.msra.mxu0 0.0
  %734 = vmatprep.subr.mxu0 0.0
  %735 = vmatpush1.msra.mxu0 0.0
  %736 = vmatprep.subr.mxu0 0.0
  %737 = vmatpush1.msra.mxu0 0.0
  %738 = vmatprep.subr.mxu0 0.0
  %739 = vmatpush1.msra.mxu0 0.0
  %740 = vmatprep.subr.mxu0 0.0
  %741 = vmatpush1.msra.mxu0 0.0
  %742 = vmatprep.subr.mxu0 0.0
  %743 = vmatpush1.msra.mxu0 0.0
  %744 = vmatprep.subr.mxu0 0.0
  %745 = vmatpush1.msra.mxu0 0.0
  %746 = vmatprep.subr.mxu0 0.0
  %747 = vmatpush1.msra.mxu0 0.0
  %748 = vmatprep.subr.mxu0 0.0
  %749 = vmatpush1.msra.mxu0 0.0
  %750 = vmatprep.subr.mxu0 0.0
  %751 = vmatpush1.msra.mxu0 0.0
  %752 = vmatprep.mubr.f32.mxu0 0.0
  %753 = vmatmul.mubr.f32.gmra.mrb[0].mxu0 %v683
  %v754 = vpop.f32.mrb[0].mxu0
  %v755 = vadd.f32 0.0, %v754
  %v756 = vpop.f32.mrb[0].mxu0
  %757 = vmatprep.mubr.f32.mxu0 0.0
  %758 = vmatmul.mubr.f32.gmra.mrb[0].mxu0 %v686
  %v759 = vpop.f32.mrb[0].mxu0
  %v760 = vadd.f32 0.0, %v759
  %v761 = vpop.f32.mrb[0].mxu0
  %762 = vdwg.mxu0
  %v764 = vsel %vm280, %v470, 0
  %v767 = vsel %vm280, %v475, 0
  %769 = vmatprep.subr.mxu0 0.0
  %770 = vmatpush1.msra.mxu0 %v270
  %771 = vmatprep.subr.mxu0 0.0
  %772 = vmatpush1.msra.mxu0 0.0
  %773 = vmatprep.subr.mxu0 0.0
  %774 = vmatpush1.msra.mxu0 0.0
  %775 = vmatprep.subr.mxu0 0.0
  %776 = vmatpush1.msra.mxu0 0.0
  %777 = vmatprep.subr.mxu0 0.0
  %778 = vmatpush1.msra.mxu0 0.0
  %779 = vmatprep.subr.mxu0 0.0
  %780 = vmatpush1.msra.mxu0 0.0
  %781 = vmatprep.subr.mxu0 0.0
  %782 = vmatpush1.msra.mxu0 0.0
  %783 = vmatprep.subr.mxu0 0.0
  %784 = vmatpush1.msra.mxu0 0.0
  %785 = vmatprep.subr.mxu0 0.0
  %786 = vmatpush1.msra.mxu0 0.0
  %787 = vmatprep.subr.mxu0 0.0
  %788 = vmatpush1.msra.mxu0 0.0
  %789 = vmatprep.subr.mxu0 0.0
  %790 = vmatpush1.msra.mxu0 0.0
  %791 = vmatprep.subr.mxu0 0.0
  %792 = vmatpush1.msra.mxu0 0.0
  %793 = vmatprep.subr.mxu0 0.0
  %794 = vmatpush1.msra.mxu0 0.0
  %795 = vmatprep.subr.mxu0 0.0
  %796 = vmatpush1.msra.mxu0 0.0
  %797 = vmatprep.subr.mxu0 0.0
  %798 = vmatpush1.msra.mxu0 0.0
  %799 = vmatprep.subr.mxu0 0.0
  %800 = vmatpush1.msra.mxu0 0.0
  %801 = vmatprep.subr.mxu0 0.0
  %802 = vmatpush1.msra.mxu0 0.0
  %803 = vmatprep.subr.mxu0 0.0
  %804 = vmatpush1.msra.mxu0 0.0
  %805 = vmatprep.subr.mxu0 0.0
  %806 = vmatpush1.msra.mxu0 0.0
  %807 = vmatprep.subr.mxu0 0.0
  %808 = vmatpush1.msra.mxu0 0.0
  %809 = vmatprep.subr.mxu0 0.0
  %810 = vmatpush1.msra.mxu0 0.0
  %811 = vmatprep.subr.mxu0 0.0
  %812 = vmatpush1.msra.mxu0 0.0
  %813 = vmatprep.subr.mxu0 0.0
  %814 = vmatpush1.msra.mxu0 0.0
  %815 = vmatprep.subr.mxu0 0.0
  %816 = vmatpush1.msra.mxu0 0.0
  %817 = vmatprep.subr.mxu0 0.0
  %818 = vmatpush1.msra.mxu0 0.0
  %819 = vmatprep.subr.mxu0 0.0
  %820 = vmatpush1.msra.mxu0 0.0
  %821 = vmatprep.subr.mxu0 0.0
  %822 = vmatpush1.msra.mxu0 0.0
  %823 = vmatprep.subr.mxu0 0.0
  %824 = vmatpush1.msra.mxu0 0.0
  %825 = vmatprep.subr.mxu0 0.0
  %826 = vmatpush1.msra.mxu0 0.0
  %827 = vmatprep.subr.mxu0 0.0
  %828 = vmatpush1.msra.mxu0 0.0
  %829 = vmatprep.subr.mxu0 0.0
  %830 = vmatpush1.msra.mxu0 0.0
  %831 = vmatprep.subr.mxu0 0.0
  %832 = vmatpush1.msra.mxu0 0.0
  %833 = vmatprep.mubr.f32.mxu0 0.0
  %834 = vmatmul.mubr.f32.gmra.mrb[0].mxu0 %v764
  %v835 = vpop.f32.mrb[0].mxu0
  %v836 = vadd.f32 %v755, %v835
  %v837 = vpop.f32.mrb[0].mxu0
  %838 = vmatprep.mubr.f32.mxu0 0.0
  %839 = vmatmul.mubr.f32.gmra.mrb[0].mxu0 %v767
  %v840 = vpop.f32.mrb[0].mxu0
  %v841 = vadd.f32 %v760, %v840
  %v842 = vpop.f32.mrb[0].mxu0
  %843 = vdwg.mxu0
  %844 = vrot.lane.b32.xlu0 %v262, 112
  %v845 = vpop.permute.xlu0 %844
  %846 = vrot.lane.b32.xlu0 %v267, 112
  %v847 = vpop.permute.xlu0 %846
  %848 = vrot.lane.b32.xlu0 %v262, 80
  %v849 = vpop.permute.xlu0 %848
  %850 = vrot.lane.b32.xlu0 %v267, 80
  %v851 = vpop.permute.xlu0 %850
  %v852 = vsel %vm280, %v845, 0
  %v854 = vsel %vm280, %v847, 0
  %v856 = vsel %vm280, %v849, 0
  %v858 = vsel %vm280, %v851, 0
  %860 = vmatprep.subr.mxu0 0.0
  %861 = vmatpush1.xpose.msra.mxu0 %v856
  %862 = vmatprep.subr.mxu0 0.0
  %863 = vmatpush1.xpose.msra.mxu0 %v858
  %864 = vmatprep.subr.mxu0 0.0
  %865 = vmatpush1.xpose.msra.mxu0 0.0
  %866 = vmatprep.subr.mxu0 0.0
  %867 = vmatpush1.xpose.msra.mxu0 0.0
  %868 = vmatprep.subr.mxu0 0.0
  %869 = vmatpush1.xpose.msra.mxu0 0.0
  %870 = vmatprep.subr.mxu0 0.0
  %871 = vmatpush1.xpose.msra.mxu0 0.0
  %872 = vmatprep.subr.mxu0 0.0
  %873 = vmatpush1.xpose.msra.mxu0 0.0
  %874 = vmatprep.subr.mxu0 0.0
  %875 = vmatpush1.xpose.msra.mxu0 0.0
  %876 = vmatprep.subr.mxu0 0.0
  %877 = vmatpush1.xpose.msra.mxu0 0.0
  %878 = vmatprep.subr.mxu0 0.0
  %879 = vmatpush1.xpose.msra.mxu0 0.0
  %880 = vmatprep.subr.mxu0 0.0
  %881 = vmatpush1.xpose.msra.mxu0 0.0
  %882 = vmatprep.subr.mxu0 0.0
  %883 = vmatpush1.xpose.msra.mxu0 0.0
  %884 = vmatprep.subr.mxu0 0.0
  %885 = vmatpush1.xpose.msra.mxu0 0.0
  %886 = vmatprep.subr.mxu0 0.0
  %887 = vmatpush1.xpose.msra.mxu0 0.0
  %888 = vmatprep.subr.mxu0 0.0
  %889 = vmatpush1.xpose.msra.mxu0 0.0
  %890 = vmatprep.subr.mxu0 0.0
  %891 = vmatpush1.xpose.msra.mxu0 0.0
  %892 = vmatprep.subr.mxu0 0.0
  %893 = vmatpush1.xpose.msra.mxu0 0.0
  %894 = vmatprep.subr.mxu0 0.0
  %895 = vmatpush1.xpose.msra.mxu0 0.0
  %896 = vmatprep.subr.mxu0 0.0
  %897 = vmatpush1.xpose.msra.mxu0 0.0
  %898 = vmatprep.subr.mxu0 0.0
  %899 = vmatpush1.xpose.msra.mxu0 0.0
  %900 = vmatprep.subr.mxu0 0.0
  %901 = vmatpush1.xpose.msra.mxu0 0.0
  %902 = vmatprep.subr.mxu0 0.0
  %903 = vmatpush1.xpose.msra.mxu0 0.0
  %904 = vmatprep.subr.mxu0 0.0
  %905 = vmatpush1.xpose.msra.mxu0 0.0
  %906 = vmatprep.subr.mxu0 0.0
  %907 = vmatpush1.xpose.msra.mxu0 0.0
  %908 = vmatprep.subr.mxu0 0.0
  %909 = vmatpush1.xpose.msra.mxu0 0.0
  %910 = vmatprep.subr.mxu0 0.0
  %911 = vmatpush1.xpose.msra.mxu0 0.0
  %912 = vmatprep.subr.mxu0 0.0
  %913 = vmatpush1.xpose.msra.mxu0 0.0
  %914 = vmatprep.subr.mxu0 0.0
  %915 = vmatpush1.xpose.msra.mxu0 0.0
  %916 = vmatprep.subr.mxu0 0.0
  %917 = vmatpush1.xpose.msra.mxu0 0.0
  %918 = vmatprep.subr.mxu0 0.0
  %919 = vmatpush1.xpose.msra.mxu0 0.0
  %920 = vmatprep.subr.mxu0 0.0
  %921 = vmatpush1.xpose.msra.mxu0 0.0
  %922 = vmatprep.subr.mxu0 0.0
  %923 = vmatpush1.xpose.msra.mxu0 0.0
  %924 = vmatprep.mubr.f32.mxu0 0.0
  %925 = vmatmul.mubr.f32.gmra.mrb[0].mxu0 %v852
  %v926 = vpop.f32.mrb[0].mxu0
  %v927 = vadd.f32 0.0, %v926
  %v928 = vpop.f32.mrb[0].mxu0
  %929 = vmatprep.mubr.f32.mxu0 0.0
  %930 = vmatmul.mubr.f32.gmra.mrb[0].mxu0 %v854
  %v931 = vpop.f32.mrb[0].mxu0
  %v932 = vadd.f32 0.0, %v931
  %v933 = vpop.f32.mrb[0].mxu0
  %934 = vdwg.mxu0
  %v935 = vmul.f32 %v927, 0.35355338
  %v936 = vmul.f32 %v932, 0.35355338
  %v937 = vadd.f32 %v935, %v173
  %v938 = vadd.f32 %v936, %v174
  %v939 = vsel %vm368, %v937, -inf
  %940 = vmax.xlane.f32.xlu0 %v939
  %v941 = vpop.xlane.xlu0 %940
  %v942 = vsel %vm368, %v938, -inf
  %943 = vmax.xlane.f32.xlu0 %v942
  %v944 = vpop.xlane.xlu0 %943
  %v945 = vsub.f32 %v937, %v941
  %v946 = vsub.f32 %v938, %v944
  %v947 = vmul.f32 %v945, 1.442695
  %v948 = vpow.pop %v947
  %v949 = vmul.f32 %v946, 1.442695
  %v950 = vpow.pop %v949
  %v951 = vsel %vm368, %v948, 0.0
  %952 = vadd.xlane.f32.xlu0 %v951
  %v953 = vpop.xlane.xlu0 %952
  %v954 = vsel %vm368, %v950, 0.0
  %955 = vadd.xlane.f32.xlu0 %v954
  %v956 = vpop.xlane.xlu0 %955
  %v957 = vrcp.pop %v953
  %v958 = vmul.f32 %v948, %v957
  %v959 = vrcp.pop %v956
  %v960 = vmul.f32 %v950, %v959
  %961 = vrot.lane.b32.xlu0 %v262, 48
  %v962 = vpop.permute.xlu0 %961
  %963 = vrot.lane.b32.xlu0 %v267, 48
  %v964 = vpop.permute.xlu0 %963
  %v968 = vsel %vm368, %v958, 0
  %v971 = vsel %vm368, %v960, 0
  %973 = vmatprep.subr.mxu0 0.0
  %974 = vmatpush1.msra.mxu0 %v962
  %975 = vmatprep.subr.mxu0 0.0
  %976 = vmatpush1.msra.mxu0 %v964
  %977 = vmatprep.subr.mxu0 0.0
  %978 = vmatpush1.msra.mxu0 0.0
  %979 = vmatprep.subr.mxu0 0.0
  %980 = vmatpush1.msra.mxu0 0.0
  %981 = vmatprep.subr.mxu0 0.0
  %982 = vmatpush1.msra.mxu0 0.0
  %983 = vmatprep.subr.mxu0 0.0
  %984 = vmatpush1.msra.mxu0 0.0
  %985 = vmatprep.subr.mxu0 0.0
  %986 = vmatpush1.msra.mxu0 0.0
  %987 = vmatprep.subr.mxu0 0.0
  %988 = vmatpush1.msra.mxu0 0.0
  %989 = vmatprep.subr.mxu0 0.0
  %990 = vmatpush1.msra.mxu0 0.0
  %991 = vmatprep.subr.mxu0 0.0
  %992 = vmatpush1.msra.mxu0 0.0
  %993 = vmatprep.subr.mxu0 0.0
  %994 = vmatpush1.msra.mxu0 0.0
  %995 = vmatprep.subr.mxu0 0.0
  %996 = vmatpush1.msra.mxu0 0.0
  %997 = vmatprep.subr.mxu0 0.0
  %998 = vmatpush1.msra.mxu0 0.0
  %999 = vmatprep.subr.mxu0 0.0
  %1000 = vmatpush1.msra.mxu0 0.0
  %1001 = vmatprep.subr.mxu0 0.0
  %1002 = vmatpush1.msra.mxu0 0.0
  %1003 = vmatprep.subr.mxu0 0.0
  %1004 = vmatpush1.msra.mxu0 0.0
  %1005 = vmatprep.subr.mxu0 0.0
  %1006 = vmatpush1.msra.mxu0 0.0
  %1007 = vmatprep.subr.mxu0 0.0
  %1008 = vmatpush1.msra.mxu0 0.0
  %1009 = vmatprep.subr.mxu0 0.0
  %1010 = vmatpush1.msra.mxu0 0.0
  %1011 = vmatprep.subr.mxu0 0.0
  %1012 = vmatpush1.msra.mxu0 0.0
  %1013 = vmatprep.subr.mxu0 0.0
  %1014 = vmatpush1.msra.mxu0 0.0
  %1015 = vmatprep.subr.mxu0 0.0
  %1016 = vmatpush1.msra.mxu0 0.0
  %1017 = vmatprep.subr.mxu0 0.0
  %1018 = vmatpush1.msra.mxu0 0.0
  %1019 = vmatprep.subr.mxu0 0.0
  %1020 = vmatpush1.msra.mxu0 0.0
  %1021 = vmatprep.subr.mxu0 0.0
  %1022 = vmatpush1.msra.mxu0 0.0
  %1023 = vmatprep.subr.mxu0 0.0
  %1024 = vmatpush1.msra.mxu0 0.0
  %1025 = vmatprep.subr.mxu0 0.0
  %1026 = vmatpush1.msra.mxu0 0.0
  %1027 = vmatprep.subr.mxu0 0.0
  %1028 = vmatpush1.msra.mxu0 0.0
  %1029 = vmatprep.subr.mxu0 0.0
  %1030 = vmatpush1.msra.mxu0 0.0
  %1031 = vmatprep.subr.mxu0 0.0
  %1032 = vmatpush1.msra.mxu0 0.0
  %1033 = vmatprep.subr.mxu0 0.0
  %1034 = vmatpush1.msra.mxu0 0.0
  %1035 = vmatprep.subr.mxu0 0.0
  %1036 = vmatpush1.msra.mxu0 0.0
  %1037 = vmatprep.mubr.f32.mxu0 0.0
  %1038 = vmatmul.mubr.f32.gmra.mrb[0].mxu0 %v968
  %v1039 = vpop.f32.mrb[0].mxu0
  %v1040 = vadd.f32 0.0, %v1039
  %v1041 = vpop.f32.mrb[0].mxu0
  %1042 = vmatprep.mubr.f32.mxu0 0.0
  %1043 = vmatmul.mubr.f32.gmra.mrb[0].mxu0 %v971
  %v1044 = vpop.f32.mrb[0].mxu0
  %v1045 = vadd.f32 0.0, %v1044
  %v1046 = vpop.f32.mrb[0].mxu0
  %1047 = vdwg.mxu0
  %v1049 = vsel %vm280, %v1040, 0
  %v1052 = vsel %vm280, %v1045, 0
  %1054 = vmatprep.subr.mxu0 0.0
  %1055 = vmatpush1.msra.mxu0 %v272
  %1056 = vmatprep.subr.mxu0 0.0
  %1057 = vmatpush1.msra.mxu0 0.0
  %1058 = vmatprep.subr.mxu0 0.0
  %1059 = vmatpush1.msra.mxu0 0.0
  %1060 = vmatprep.subr.mxu0 0.0
  %1061 = vmatpush1.msra.mxu0 0.0
  %1062 = vmatprep.subr.mxu0 0.0
  %1063 = vmatpush1.msra.mxu0 0.0
  %1064 = vmatprep.subr.mxu0 0.0
  %1065 = vmatpush1.msra.mxu0 0.0
  %1066 = vmatprep.subr.mxu0 0.0
  %1067 = vmatpush1.msra.mxu0 0.0
  %1068 = vmatprep.subr.mxu0 0.0
  %1069 = vmatpush1.msra.mxu0 0.0
  %1070 = vmatprep.subr.mxu0 0.0
  %1071 = vmatpush1.msra.mxu0 0.0
  %1072 = vmatprep.subr.mxu0 0.0
  %1073 = vmatpush1.msra.mxu0 0.0
  %1074 = vmatprep.subr.mxu0 0.0
  %1075 = vmatpush1.msra.mxu0 0.0
  %1076 = vmatprep.subr.mxu0 0.0
  %1077 = vmatpush1.msra.mxu0 0.0
  %1078 = vmatprep.subr.mxu0 0.0
  %1079 = vmatpush1.msra.mxu0 0.0
  %1080 = vmatprep.subr.mxu0 0.0
  %1081 = vmatpush1.msra.mxu0 0.0
  %1082 = vmatprep.subr.mxu0 0.0
  %1083 = vmatpush1.msra.mxu0 0.0
  %1084 = vmatprep.subr.mxu0 0.0
  %1085 = vmatpush1.msra.mxu0 0.0
  %1086 = vmatprep.subr.mxu0 0.0
  %1087 = vmatpush1.msra.mxu0 0.0
  %1088 = vmatprep.subr.mxu0 0.0
  %1089 = vmatpush1.msra.mxu0 0.0
  %1090 = vmatprep.subr.mxu0 0.0
  %1091 = vmatpush1.msra.mxu0 0.0
  %1092 = vmatprep.subr.mxu0 0.0
  %1093 = vmatpush1.msra.mxu0 0.0
  %1094 = vmatprep.subr.mxu0 0.0
  %1095 = vmatpush1.msra.mxu0 0.0
  %1096 = vmatprep.subr.mxu0 0.0
  %1097 = vmatpush1.msra.mxu0 0.0
  %1098 = vmatprep.subr.mxu0 0.0
  %1099 = vmatpush1.msra.mxu0 0.0
  %1100 = vmatprep.subr.mxu0 0.0
  %1101 = vmatpush1.msra.mxu0 0.0
  %1102 = vmatprep.subr.mxu0 0.0
  %1103 = vmatpush1.msra.mxu0 0.0
  %1104 = vmatprep.subr.mxu0 0.0
  %1105 = vmatpush1.msra.mxu0 0.0
  %1106 = vmatprep.subr.mxu0 0.0
  %1107 = vmatpush1.msra.mxu0 0.0
  %1108 = vmatprep.subr.mxu0 0.0
  %1109 = vmatpush1.msra.mxu0 0.0
  %1110 = vmatprep.subr.mxu0 0.0
  %1111 = vmatpush1.msra.mxu0 0.0
  %1112 = vmatprep.subr.mxu0 0.0
  %1113 = vmatpush1.msra.mxu0 0.0
  %1114 = vmatprep.subr.mxu0 0.0
  %1115 = vmatpush1.msra.mxu0 0.0
  %1116 = vmatprep.subr.mxu0 0.0
  %1117 = vmatpush1.msra.mxu0 0.0
  %1118 = vmatprep.mubr.f32.mxu0 0.0
  %1119 = vmatmul.mubr.f32.gmra.mrb[0].mxu0 %v1049
  %v1120 = vpop.f32.mrb[0].mxu0
  %v1121 = vadd.f32 0.0, %v1120
  %v1122 = vpop.f32.mrb[0].mxu0
  %1123 = vmatprep.mubr.f32.mxu0 0.0
  %1124 = vmatmul.mubr.f32.gmra.mrb[0].mxu0 %v1052
  %v1125 = vpop.f32.mrb[0].mxu0
  %v1126 = vadd.f32 0.0, %v1125
  %v1127 = vpop.f32.mrb[0].mxu0
  %1128 = vdwg.mxu0
  %v1129 = vadd.f32 %v836, %v1121
  %v1130 = vadd.f32 %v841, %v1126
  %1131 = vrot.lane.b32.xlu0 %v262, 104
  %v1132 = vpop.permute.xlu0 %1131
  %1133 = vrot.lane.b32.xlu0 %v267, 104
  %v1134 = vpop.permute.xlu0 %1133
  %1135 = vrot.lane.b32.xlu0 %v262, 72
  %v1136 = vpop.permute.xlu0 %1135
  %1137 = vrot.lane.b32.xlu0 %v267, 72
  %v1138 = vpop.permute.xlu0 %1137
  %v1139 = vsel %vm280, %v1132, 0
  %v1141 = vsel %vm280, %v1134, 0
  %v1143 = vsel %vm280, %v1136, 0
  %v1145 = vsel %vm280, %v1138, 0
  %1147 = vmatprep.subr.mxu0 0.0
  %1148 = vmatpush1.xpose.msra.mxu0 %v1143
  %1149 = vmatprep.subr.mxu0 0.0
  %1150 = vmatpush1.xpose.msra.mxu0 %v1145
  %1151 = vmatprep.subr.mxu0 0.0
  %1152 = vmatpush1.xpose.msra.mxu0 0.0
  %1153 = vmatprep.subr.mxu0 0.0
  %1154 = vmatpush1.xpose.msra.mxu0 0.0
  %1155 = vmatprep.subr.mxu0 0.0
  %1156 = vmatpush1.xpose.msra.mxu0 0.0
  %1157 = vmatprep.subr.mxu0 0.0
  %1158 = vmatpush1.xpose.msra.mxu0 0.0
  %1159 = vmatprep.subr.mxu0 0.0
  %1160 = vmatpush1.xpose.msra.mxu0 0.0
  %1161 = vmatprep.subr.mxu0 0.0
  %1162 = vmatpush1.xpose.msra.mxu0 0.0
  %1163 = vmatprep.subr.mxu0 0.0
  %1164 = vmatpush1.xpose.msra.mxu0 0.0
  %1165 = vmatprep.subr.mxu0 0.0
  %1166 = vmatpush1.xpose.msra.mxu0 0.0
  %1167 = vmatprep.subr.mxu0 0.0
  %1168 = vmatpush1.xpose.msra.mxu0 0.0
  %1169 = vmatprep.subr.mxu0 0.0
  %1170 = vmatpush1.xpose.msra.mxu0 0.0
  %1171 = vmatprep.subr.mxu0 0.0
  %1172 = vmatpush1.xpose.msra.mxu0 0.0
  %1173 = vmatprep.subr.mxu0 0.0
  %1174 = vmatpush1.xpose.msra.mxu0 0.0
  %1175 = vmatprep.subr.mxu0 0.0
  %1176 = vmatpush1.xpose.msra.mxu0 0.0
  %1177 = vmatprep.subr.mxu0 0.0
  %1178 = vmatpush1.xpose.msra.mxu0 0.0
  %1179 = vmatprep.subr.mxu0 0.0
  %1180 = vmatpush1.xpose.msra.mxu0 0.0
  %1181 = vmatprep.subr.mxu0 0.0
  %1182 = vmatpush1.xpose.msra.mxu0 0.0
  %1183 = vmatprep.subr.mxu0 0.0
  %1184 = vmatpush1.xpose.msra.mxu0 0.0
  %1185 = vmatprep.subr.mxu0 0.0
  %1186 = vmatpush1.xpose.msra.mxu0 0.0
  %1187 = vmatprep.subr.mxu0 0.0
  %1188 = vmatpush1.xpose.msra.mxu0 0.0
  %1189 = vmatprep.subr.mxu0 0.0
  %1190 = vmatpush1.xpose.msra.mxu0 0.0
  %1191 = vmatprep.subr.mxu0 0.0
  %1192 = vmatpush1.xpose.msra.mxu0 0.0
  %1193 = vmatprep.subr.mxu0 0.0
  %1194 = vmatpush1.xpose.msra.mxu0 0.0
  %1195 = vmatprep.subr.mxu0 0.0
  %1196 = vmatpush1.xpose.msra.mxu0 0.0
  %1197 = vmatprep.subr.mxu0 0.0
  %1198 = vmatpush1.xpose.msra.mxu0 0.0
  %1199 = vmatprep.subr.mxu0 0.0
  %1200 = vmatpush1.xpose.msra.mxu0 0.0
  %1201 = vmatprep.subr.mxu0 0.0
  %1202 = vmatpush1.xpose.msra.mxu0 0.0
  %1203 = vmatprep.subr.mxu0 0.0
  %1204 = vmatpush1.xpose.msra.mxu0 0.0
  %1205 = vmatprep.subr.mxu0 0.0
  %1206 = vmatpush1.xpose.msra.mxu0 0.0
  %1207 = vmatprep.subr.mxu0 0.0
  %1208 = vmatpush1.xpose.msra.mxu0 0.0
  %1209 = vmatprep.subr.mxu0 0.0
  %1210 = vmatpush1.xpose.msra.mxu0 0.0
  %1211 = vmatprep.mubr.f32.mxu0 0.0
  %1212 = vmatmul.mubr.f32.gmra.mrb[0].mxu0 %v1139
  %v1213 = vpop.f32.mrb[0].mxu0
  %v1214 = vadd.f32 0.0, %v1213
  %v1215 = vpop.f32.mrb[0].mxu0
  %1216 = vmatprep.mubr.f32.mxu0 0.0
  %1217 = vmatmul.mubr.f32.gmra.mrb[0].mxu0 %v1141
  %v1218 = vpop.f32.mrb[0].mxu0
  %v1219 = vadd.f32 0.0, %v1218
  %v1220 = vpop.f32.mrb[0].mxu0
  %1221 = vdwg.mxu0
  %v1222 = vmul.f32 %v1214, 0.35355338
  %v1223 = vmul.f32 %v1219, 0.35355338
  %v1224 = vadd.f32 %v1222, %v173
  %v1225 = vadd.f32 %v1223, %v174
  %v1226 = vsel %vm368, %v1224, -inf
  %1227 = vmax.xlane.f32.xlu0 %v1226
  %v1228 = vpop.xlane.xlu0 %1227
  %v1229 = vsel %vm368, %v1225, -inf
  %1230 = vmax.xlane.f32.xlu0 %v1229
  %v1231 = vpop.xlane.xlu0 %1230
  %v1232 = vsub.f32 %v1224, %v1228
  %v1233 = vsub.f32 %v1225, %v1231
  %v1234 = vmul.f32 %v1232, 1.442695
  %v1235 = vpow.pop %v1234
  %v1236 = vmul.f32 %v1233, 1.442695
  %v1237 = vpow.pop %v1236
  %v1238 = vsel %vm368, %v1235, 0.0
  %1239 = vadd.xlane.f32.xlu0 %v1238
  %v1240 = vpop.xlane.xlu0 %1239
  %v1241 = vsel %vm368, %v1237, 0.0
  %1242 = vadd.xlane.f32.xlu0 %v1241
  %v1243 = vpop.xlane.xlu0 %1242
  %v1244 = vrcp.pop %v1240
  %v1245 = vmul.f32 %v1235, %v1244
  %v1246 = vrcp.pop %v1243
  %v1247 = vmul.f32 %v1237, %v1246
  %1248 = vrot.lane.b32.xlu0 %v262, 40
  %v1249 = vpop.permute.xlu0 %1248
  %1250 = vrot.lane.b32.xlu0 %v267, 40
  %v1251 = vpop.permute.xlu0 %1250
  %v1255 = vsel %vm368, %v1245, 0
  %v1258 = vsel %vm368, %v1247, 0
  %1260 = vmatprep.subr.mxu0 0.0
  %1261 = vmatpush1.msra.mxu0 %v1249
  %1262 = vmatprep.subr.mxu0 0.0
  %1263 = vmatpush1.msra.mxu0 %v1251
  %1264 = vmatprep.subr.mxu0 0.0
  %1265 = vmatpush1.msra.mxu0 0.0
  %1266 = vmatprep.subr.mxu0 0.0
  %1267 = vmatpush1.msra.mxu0 0.0
  %1268 = vmatprep.subr.mxu0 0.0
  %1269 = vmatpush1.msra.mxu0 0.0
  %1270 = vmatprep.subr.mxu0 0.0
  %1271 = vmatpush1.msra.mxu0 0.0
  %1272 = vmatprep.subr.mxu0 0.0
  %1273 = vmatpush1.msra.mxu0 0.0
  %1274 = vmatprep.subr.mxu0 0.0
  %1275 = vmatpush1.msra.mxu0 0.0
  %1276 = vmatprep.subr.mxu0 0.0
  %1277 = vmatpush1.msra.mxu0 0.0
  %1278 = vmatprep.subr.mxu0 0.0
  %1279 = vmatpush1.msra.mxu0 0.0
  %1280 = vmatprep.subr.mxu0 0.0
  %1281 = vmatpush1.msra.mxu0 0.0
  %1282 = vmatprep.subr.mxu0 0.0
  %1283 = vmatpush1.msra.mxu0 0.0
  %1284 = vmatprep.subr.mxu0 0.0
  %1285 = vmatpush1.msra.mxu0 0.0
  %1286 = vmatprep.subr.mxu0 0.0
  %1287 = vmatpush1.msra.mxu0 0.0
  %1288 = vmatprep.subr.mxu0 0.0
  %1289 = vmatpush1.msra.mxu0 0.0
  %1290 = vmatprep.subr.mxu0 0.0
  %1291 = vmatpush1.msra.mxu0 0.0
  %1292 = vmatprep.subr.mxu0 0.0
  %1293 = vmatpush1.msra.mxu0 0.0
  %1294 = vmatprep.subr.mxu0 0.0
  %1295 = vmatpush1.msra.mxu0 0.0
  %1296 = vmatprep.subr.mxu0 0.0
  %1297 = vmatpush1.msra.mxu0 0.0
  %1298 = vmatprep.subr.mxu0 0.0
  %1299 = vmatpush1.msra.mxu0 0.0
  %1300 = vmatprep.subr.mxu0 0.0
  %1301 = vmatpush1.msra.mxu0 0.0
  %1302 = vmatprep.subr.mxu0 0.0
  %1303 = vmatpush1.msra.mxu0 0.0
  %1304 = vmatprep.subr.mxu0 0.0
  %1305 = vmatpush1.msra.mxu0 0.0
  %1306 = vmatprep.subr.mxu0 0.0
  %1307 = vmatpush1.msra.mxu0 0.0
  %1308 = vmatprep.subr.mxu0 0.0
  %1309 = vmatpush1.msra.mxu0 0.0
  %1310 = vmatprep.subr.mxu0 0.0
  %1311 = vmatpush1.msra.mxu0 0.0
  %1312 = vmatprep.subr.mxu0 0.0
  %1313 = vmatpush1.msra.mxu0 0.0
  %1314 = vmatprep.subr.mxu0 0.0
  %1315 = vmatpush1.msra.mxu0 0.0
  %1316 = vmatprep.subr.mxu0 0.0
  %1317 = vmatpush1.msra.mxu0 0.0
  %1318 = vmatprep.subr.mxu0 0.0
  %1319 = vmatpush1.msra.mxu0 0.0
  %1320 = vmatprep.subr.mxu0 0.0
  %1321 = vmatpush1.msra.mxu0 0.0
  %1322 = vmatprep.subr.mxu0 0.0
  %1323 = vmatpush1.msra.mxu0 0.0
  %1324 = vmatprep.mubr.f32.mxu0 0.0
  %1325 = vmatmul.mubr.f32.gmra.mrb[0].mxu0 %v1255
  %v1326 = vpop.f32.mrb[0].mxu0
  %v1327 = vadd.f32 0.0, %v1326
  %v1328 = vpop.f32.mrb[0].mxu0
  %1329 = vmatprep.mubr.f32.mxu0 0.0
  %1330 = vmatmul.mubr.f32.gmra.mrb[0].mxu0 %v1258
  %v1331 = vpop.f32.mrb[0].mxu0
  %v1332 = vadd.f32 0.0, %v1331
  %v1333 = vpop.f32.mrb[0].mxu0
  %1334 = vdwg.mxu0
  %v1336 = vsel %vm280, %v1327, 0
  %v1339 = vsel %vm280, %v1332, 0
  %1341 = vmatprep.subr.mxu0 0.0
  %1342 = vmatpush1.msra.mxu0 %v273
  %1343 = vmatprep.subr.mxu0 0.0
  %1344 = vmatpush1.msra.mxu0 0.0
  %1345 = vmatprep.subr.mxu0 0.0
  %1346 = vmatpush1.msra.mxu0 0.0
  %1347 = vmatprep.subr.mxu0 0.0
  %1348 = vmatpush1.msra.mxu0 0.0
  %1349 = vmatprep.subr.mxu0 0.0
  %1350 = vmatpush1.msra.mxu0 0.0
  %1351 = vmatprep.subr.mxu0 0.0
  %1352 = vmatpush1.msra.mxu0 0.0
  %1353 = vmatprep.subr.mxu0 0.0
  %1354 = vmatpush1.msra.mxu0 0.0
  %1355 = vmatprep.subr.mxu0 0.0
  %1356 = vmatpush1.msra.mxu0 0.0
  %1357 = vmatprep.subr.mxu0 0.0
  %1358 = vmatpush1.msra.mxu0 0.0
  %1359 = vmatprep.subr.mxu0 0.0
  %1360 = vmatpush1.msra.mxu0 0.0
  %1361 = vmatprep.subr.mxu0 0.0
  %1362 = vmatpush1.msra.mxu0 0.0
  %1363 = vmatprep.subr.mxu0 0.0
  %1364 = vmatpush1.msra.mxu0 0.0
  %1365 = vmatprep.subr.mxu0 0.0
  %1366 = vmatpush1.msra.mxu0 0.0
  %1367 = vmatprep.subr.mxu0 0.0
  %1368 = vmatpush1.msra.mxu0 0.0
  %1369 = vmatprep.subr.mxu0 0.0
  %1370 = vmatpush1.msra.mxu0 0.0
  %1371 = vmatprep.subr.mxu0 0.0
  %1372 = vmatpush1.msra.mxu0 0.0
  %1373 = vmatprep.subr.mxu0 0.0
  %1374 = vmatpush1.msra.mxu0 0.0
  %1375 = vmatprep.subr.mxu0 0.0
  %1376 = vmatpush1.msra.mxu0 0.0
  %1377 = vmatprep.subr.mxu0 0.0
  %1378 = vmatpush1.msra.mxu0 0.0
  %1379 = vmatprep.subr.mxu0 0.0
  %1380 = vmatpush1.msra.mxu0 0.0
  %1381 = vmatprep.subr.mxu0 0.0
  %1382 = vmatpush1.msra.mxu0 0.0
  %1383 = vmatprep.subr.mxu0 0.0
  %1384 = vmatpush1.msra.mxu0 0.0
  %1385 = vmatprep.subr.mxu0 0.0
  %1386 = vmatpush1.msra.mxu0 0.0
  %1387 = vmatprep.subr.mxu0 0.0
  %1388 = vmatpush1.msra.mxu0 0.0
  %1389 = vmatprep.subr.mxu0 0.0
  %1390 = vmatpush1.msra.mxu0 0.0
  %1391 = vmatprep.subr.mxu0 0.0
  %1392 = vmatpush1.msra.mxu0 0.0
  %1393 = vmatprep.subr.mxu0 0.0
  %1394 = vmatpush1.msra.mxu0 0.0
  %1395 = vmatprep.subr.mxu0 0.0
  %1396 = vmatpush1.msra.mxu0 0.0
  %1397 = vmatprep.subr.mxu0 0.0
  %1398 = vmatpush1.msra.mxu0 0.0
  %1399 = vmatprep.subr.mxu0 0.0
  %1400 = vmatpush1.msra.mxu0 0.0
  %1401 = vmatprep.subr.mxu0 0.0
  %1402 = vmatpush1.msra.mxu0 0.0
  %1403 = vmatprep.subr.mxu0 0.0
  %1404 = vmatpush1.msra.mxu0 0.0
  %1405 = vmatprep.mubr.f32.mxu0 0.0
  %1406 = vmatmul.mubr.f32.gmra.mrb[0].mxu0 %v1336
  %v1407 = vpop.f32.mrb[0].mxu0
  %v1408 = vadd.f32 0.0, %v1407
  %v1409 = vpop.f32.mrb[0].mxu0
  %1410 = vmatprep.mubr.f32.mxu0 0.0
  %1411 = vmatmul.mubr.f32.gmra.mrb[0].mxu0 %v1339
  %v1412 = vpop.f32.mrb[0].mxu0
  %v1413 = vadd.f32 0.0, %v1412
  %v1414 = vpop.f32.mrb[0].mxu0
  %1415 = vdwg.mxu0
  %v1416 = vadd.f32 %v1129, %v1408
  %v1417 = vadd.f32 %v1130, %v1413
  %v1418 = vld [vmem:[%s13] sm:$0x1]
  %v1420 = vlaneseq
  %v1421 = vshrl.u32 %v1420, 7
  %v1422 = vsub.s32 0, %v1421
  %v1423 = vrot.slane %v1418, %v1422
  %v1425 = vadd.f32 %v1416, %v1423
  %v1426 = vadd.f32 %v1417, %v1423
  %v1427 = vadd.f32 %v175, %v1425
  %v1428 = vadd.f32 %v176, %v1426
  %v1429 = vsel %vm188, %v1427, 0.0
  %1430 = vadd.xlane.f32.xlu0 %v1429
  %v1431 = vpop.xlane.xlu0 %1430
  %v1432 = vsel %vm188, %v1428, 0.0
  %1433 = vadd.xlane.f32.xlu0 %v1432
  %v1434 = vpop.xlane.xlu0 %1433
  %v1435 = vrcp.pop 32.0
  %v1436 = vmul.f32 %v1431, %v1435
  %v1437 = vmul.f32 %v1434, %v1435
  %v1438 = vsub.f32 %v1427, %v1436
  %v1439 = vsub.f32 %v1428, %v1437
  %v1440 = vmul.f32 %v1438, %v1438
  %v1441 = vmul.f32 %v1439, %v1439
  %v1442 = vsel %vm188, %v1440, 0.0
  %1443 = vadd.xlane.f32.xlu0 %v1442
  %v1444 = vpop.xlane.xlu0 %1443
  %v1445 = vsel %vm188, %v1441, 0.0
  %1446 = vadd.xlane.f32.xlu0 %v1445
  %v1447 = vpop.xlane.xlu0 %1446
  %v1448 = vmul.f32 %v1444, %v1435
  %v1449 = vmul.f32 %v1447, %v1435
  %v1450 = vadd.f32 %v1448, 1e-05
  %v1451 = vadd.f32 %v1449, 1e-05
  %v1452 = vrsqrt.pop %v1450
  %v1453 = vrsqrt.pop %v1451
  %v1454 = vmul.f32 %v1438, %v1452
  %v1455 = vmul.f32 %v1439, %v1453
  %v1456 = vld [vmem:[%s15] sm:$0x1]
  %v1458 = vlaneseq
  %v1459 = vshrl.u32 %v1458, 7
  %v1460 = vsub.s32 0, %v1459
  %v1461 = vrot.slane %v1456, %v1460
  %v1463 = vmul.f32 %v1454, %v1461
  %v1464 = vmul.f32 %v1455, %v1461
  %v1465 = vld [vmem:[%s17] sm:$0x1]
  %v1467 = vlaneseq
  %v1468 = vshrl.u32 %v1467, 7
  %v1469 = vsub.s32 0, %v1468
  %v1470 = vrot.slane %v1465, %v1469
  %v1472 = vadd.f32 %v1463, %v1470
  %v1473 = vadd.f32 %v1464, %v1470
  %v1474 = vpack.c.bf16 %v1473, %v1472
  %v1475 = vld [vmem:[%s19] sm:$0xff]
  %v1476 = vld [vmem:[%s19 + $0x8] sm:$0xff]
  %v1477 = vld [vmem:[%s19 + $0x10] sm:$0xff]
  %v1478 = vld [vmem:[%s19 + $0x18] sm:$0xff]
  %v1479 = vld [vmem:[%s19 + $0x20] sm:$0xff]
  %v1480 = vld [vmem:[%s19 + $0x28] sm:$0xff]
  %v1481 = vld [vmem:[%s19 + $0x30] sm:$0xff]
  %v1482 = vld [vmem:[%s19 + $0x38] sm:$0xff]
  %v1483 = vld [vmem:[%s19 + $0x40] sm:$0xff]
  %v1484 = vld [vmem:[%s19 + $0x48] sm:$0xff]
  %v1485 = vld [vmem:[%s19 + $0x50] sm:$0xff]
  %v1486 = vld [vmem:[%s19 + $0x58] sm:$0xff]
  %v1487 = vld [vmem:[%s19 + $0x60] sm:$0xff]
  %v1488 = vld [vmem:[%s19 + $0x68] sm:$0xff]
  %v1489 = vld [vmem:[%s19 + $0x70] sm:$0xff]
  %v1490 = vld [vmem:[%s19 + $0x78] sm:$0xff]
  %v1491 = vld [vmem:[%s19 + $0x80] sm:$0xff]
  %v1492 = vld [vmem:[%s19 + $0x88] sm:$0xff]
  %v1493 = vld [vmem:[%s19 + $0x90] sm:$0xff]
  %v1494 = vld [vmem:[%s19 + $0x98] sm:$0xff]
  %v1495 = vld [vmem:[%s19 + $0xa0] sm:$0xff]
  %v1496 = vld [vmem:[%s19 + $0xa8] sm:$0xff]
  %v1497 = vld [vmem:[%s19 + $0xb0] sm:$0xff]
  %v1498 = vld [vmem:[%s19 + $0xb8] sm:$0xff]
  %v1499 = vld [vmem:[%s19 + $0xc0] sm:$0xff]
  %v1500 = vld [vmem:[%s19 + $0xc8] sm:$0xff]
  %v1501 = vld [vmem:[%s19 + $0xd0] sm:$0xff]
  %v1502 = vld [vmem:[%s19 + $0xd8] sm:$0xff]
  %v1503 = vld [vmem:[%s19 + $0xe0] sm:$0xff]
  %v1504 = vld [vmem:[%s19 + $0xe8] sm:$0xff]
  %v1505 = vld [vmem:[%s19 + $0xf0] sm:$0xff]
  %v1506 = vld [vmem:[%s19 + $0xf8] sm:$0xff]
  %v1507 = vld [vmem:[%s21] sm:$0xff]
  %v1508 = vld [vmem:[%s21 + $0x8] sm:$0xff]
  %v1511 = vlaneseq
  %v1512 = vshrl.u32 %v1511, 7
  %v1513 = vsub.s32 0, %v1512
  %v1514 = vrot.slane %v1507, %v1513
  %v1515 = vlaneseq
  %v1516 = vshrl.u32 %v1515, 7
  %v1517 = vsub.s32 1, %v1516
  %v1518 = vrot.slane %v1507, %v1517
  %v1519 = vlaneseq
  %v1520 = vshrl.u32 %v1519, 7
  %v1521 = vsub.s32 2, %v1520
  %v1522 = vrot.slane %v1507, %v1521
  %v1523 = vlaneseq
  %v1524 = vshrl.u32 %v1523, 7
  %v1525 = vsub.s32 3, %v1524
  %v1526 = vrot.slane %v1507, %v1525
  %v1527 = vlaneseq
  %v1528 = vshrl.u32 %v1527, 7
  %v1529 = vsub.s32 4, %v1528
  %v1530 = vrot.slane %v1507, %v1529
  %v1531 = vlaneseq
  %v1532 = vshrl.u32 %v1531, 7
  %v1533 = vsub.s32 5, %v1532
  %v1534 = vrot.slane %v1507, %v1533
  %v1535 = vlaneseq
  %v1536 = vshrl.u32 %v1535, 7
  %v1537 = vsub.s32 6, %v1536
  %v1538 = vrot.slane %v1507, %v1537
  %v1539 = vlaneseq
  %v1540 = vshrl.u32 %v1539, 7
  %v1541 = vsub.s32 7, %v1540
  %v1542 = vrot.slane %v1507, %v1541
  %v1543 = vlaneseq
  %v1544 = vshrl.u32 %v1543, 7
  %v1545 = vsub.s32 0, %v1544
  %v1546 = vrot.slane %v1508, %v1545
  %v1547 = vlaneseq
  %v1548 = vshrl.u32 %v1547, 7
  %v1549 = vsub.s32 1, %v1548
  %v1550 = vrot.slane %v1508, %v1549
  %v1551 = vlaneseq
  %v1552 = vshrl.u32 %v1551, 7
  %v1553 = vsub.s32 2, %v1552
  %v1554 = vrot.slane %v1508, %v1553
  %v1555 = vlaneseq
  %v1556 = vshrl.u32 %v1555, 7
  %v1557 = vsub.s32 3, %v1556
  %v1558 = vrot.slane %v1508, %v1557
  %v1559 = vlaneseq
  %v1560 = vshrl.u32 %v1559, 7
  %v1561 = vsub.s32 4, %v1560
  %v1562 = vrot.slane %v1508, %v1561
  %v1563 = vlaneseq
  %v1564 = vshrl.u32 %v1563, 7
  %v1565 = vsub.s32 5, %v1564
  %v1566 = vrot.slane %v1508, %v1565
  %v1567 = vlaneseq
  %v1568 = vshrl.u32 %v1567, 7
  %v1569 = vsub.s32 6, %v1568
  %v1570 = vrot.slane %v1508, %v1569
  %v1571 = vlaneseq
  %v1572 = vshrl.u32 %v1571, 7
  %v1573 = vsub.s32 7, %v1572
  %v1574 = vrot.slane %v1508, %v1573
  %v1623 = vunpack.c.l.b16 %v1475
  %v1624 = vunpack.c.h.b16 %v1475
  %v1625 = vunpack.c.l.b16 %v1476
  %v1626 = vunpack.c.h.b16 %v1476
  %v1627 = vunpack.c.l.b16 %v1477
  %v1628 = vunpack.c.h.b16 %v1477
  %v1629 = vunpack.c.l.b16 %v1478
  %v1630 = vunpack.c.h.b16 %v1478
  %v1631 = vunpack.c.l.b16 %v1479
  %v1632 = vunpack.c.h.b16 %v1479
  %v1633 = vunpack.c.l.b16 %v1480
  %v1634 = vunpack.c.h.b16 %v1480
  %v1635 = vunpack.c.l.b16 %v1481
  %v1636 = vunpack.c.h.b16 %v1481
  %v1637 = vunpack.c.l.b16 %v1482
  %v1638 = vunpack.c.h.b16 %v1482
  %v1639 = vunpack.c.l.b16 %v1483
  %v1640 = vunpack.c.h.b16 %v1483
  %v1641 = vunpack.c.l.b16 %v1484
  %v1642 = vunpack.c.h.b16 %v1484
  %v1643 = vunpack.c.l.b16 %v1485
  %v1644 = vunpack.c.h.b16 %v1485
  %v1645 = vunpack.c.l.b16 %v1486
  %v1646 = vunpack.c.h.b16 %v1486
  %v1647 = vunpack.c.l.b16 %v1487
  %v1648 = vunpack.c.h.b16 %v1487
  %v1649 = vunpack.c.l.b16 %v1488
  %v1650 = vunpack.c.h.b16 %v1488
  %v1651 = vunpack.c.l.b16 %v1489
  %v1652 = vunpack.c.h.b16 %v1489
  %v1653 = vunpack.c.l.b16 %v1490
  %v1654 = vunpack.c.h.b16 %v1490
  %v1655 = vunpack.c.l.b16 %v1491
  %v1656 = vunpack.c.h.b16 %v1491
  %v1657 = vunpack.c.l.b16 %v1492
  %v1658 = vunpack.c.h.b16 %v1492
  %v1659 = vunpack.c.l.b16 %v1493
  %v1660 = vunpack.c.h.b16 %v1493
  %v1661 = vunpack.c.l.b16 %v1494
  %v1662 = vunpack.c.h.b16 %v1494
  %v1663 = vunpack.c.l.b16 %v1495
  %v1664 = vunpack.c.h.b16 %v1495
  %v1665 = vunpack.c.l.b16 %v1496
  %v1666 = vunpack.c.h.b16 %v1496
  %v1667 = vunpack.c.l.b16 %v1497
  %v1668 = vunpack.c.h.b16 %v1497
  %v1669 = vunpack.c.l.b16 %v1498
  %v1670 = vunpack.c.h.b16 %v1498
  %v1671 = vunpack.c.l.b16 %v1499
  %v1672 = vunpack.c.h.b16 %v1499
  %v1673 = vunpack.c.l.b16 %v1500
  %v1674 = vunpack.c.h.b16 %v1500
  %v1675 = vunpack.c.l.b16 %v1501
  %v1676 = vunpack.c.h.b16 %v1501
  %v1677 = vunpack.c.l.b16 %v1502
  %v1678 = vunpack.c.h.b16 %v1502
  %v1679 = vunpack.c.l.b16 %v1503
  %v1680 = vunpack.c.h.b16 %v1503
  %v1681 = vunpack.c.l.b16 %v1504
  %v1682 = vunpack.c.h.b16 %v1504
  %v1683 = vunpack.c.l.b16 %v1505
  %v1684 = vunpack.c.h.b16 %v1505
  %v1685 = vunpack.c.l.b16 %v1506
  %v1686 = vunpack.c.h.b16 %v1506
  %v1687 = vpack.c.b16 %v1639, %v1623
  %v1688 = vpack.c.b16 %v1640, %v1624
  %v1689 = vpack.c.b16 %v1641, %v1625
  %v1690 = vpack.c.b16 %v1642, %v1626
  %v1691 = vpack.c.b16 %v1643, %v1627
  %v1692 = vpack.c.b16 %v1644, %v1628
  %v1693 = vpack.c.b16 %v1645, %v1629
  %v1694 = vpack.c.b16 %v1646, %v1630
  %v1695 = vpack.c.b16 %v1647, %v1631
  %v1696 = vpack.c.b16 %v1648, %v1632
  %v1697 = vpack.c.b16 %v1649, %v1633
  %v1698 = vpack.c.b16 %v1650, %v1634
  %v1699 = vpack.c.b16 %v1651, %v1635
  %v1700 = vpack.c.b16 %v1652, %v1636
  %v1701 = vpack.c.b16 %v1653, %v1637
  %v1702 = vpack.c.b16 %v1654, %v1638
  %v1703 = vpack.c.b16 %v1671, %v1655
  %v1704 = vpack.c.b16 %v1672, %v1656
  %v1705 = vpack.c.b16 %v1673, %v1657
  %v1706 = vpack.c.b16 %v1674, %v1658
  %v1707 = vpack.c.b16 %v1675, %v1659
  %v1708 = vpack.c.b16 %v1676, %v1660
  %v1709 = vpack.c.b16 %v1677, %v1661
  %v1710 = vpack.c.b16 %v1678, %v1662
  %v1711 = vpack.c.b16 %v1679, %v1663
  %v1712 = vpack.c.b16 %v1680, %v1664
  %v1713 = vpack.c.b16 %v1681, %v1665
  %v1714 = vpack.c.b16 %v1682, %v1666
  %v1715 = vpack.c.b16 %v1683, %v1667
  %v1716 = vpack.c.b16 %v1684, %v1668
  %v1717 = vpack.c.b16 %v1685, %v1669
  %v1718 = vpack.c.b16 %v1686, %v1670
  %v1752 = vsel %vm188, %v1474, 0
  %1754 = vmatprep.subr.bf16.mxu0 %v1688
  %1755 = vmatpush1.bf16.msra.mxu0 %v1687
  %1756 = vmatprep.subr.bf16.mxu0 %v1704
  %1757 = vmatpush1.bf16.msra.mxu0 %v1703
  %1758 = vmatprep.subr.bf16.mxu0 0
  %1759 = vmatpush1.bf16.msra.mxu0 0
  %1760 = vmatprep.subr.bf16.mxu0 0
  %1761 = vmatpush1.bf16.msra.mxu0 0
  %1762 = vmatprep.subr.bf16.mxu0 0
  %1763 = vmatpush1.bf16.msra.mxu0 0
  %1764 = vmatprep.subr.bf16.mxu0 0
  %1765 = vmatpush1.bf16.msra.mxu0 0
  %1766 = vmatprep.subr.bf16.mxu0 0
  %1767 = vmatpush1.bf16.msra.mxu0 0
  %1768 = vmatprep.subr.bf16.mxu0 0
  %1769 = vmatpush1.bf16.msra.mxu0 0
  %1770 = vmatprep.subr.bf16.mxu0 0
  %1771 = vmatpush1.bf16.msra.mxu0 0
  %1772 = vmatprep.subr.bf16.mxu0 0
  %1773 = vmatpush1.bf16.msra.mxu0 0
  %1774 = vmatprep.subr.bf16.mxu0 0
  %1775 = vmatpush1.bf16.msra.mxu0 0
  %1776 = vmatprep.subr.bf16.mxu0 0
  %1777 = vmatpush1.bf16.msra.mxu0 0
  %1778 = vmatprep.subr.bf16.mxu0 0
  %1779 = vmatpush1.bf16.msra.mxu0 0
  %1780 = vmatprep.subr.bf16.mxu0 0
  %1781 = vmatpush1.bf16.msra.mxu0 0
  %1782 = vmatprep.subr.bf16.mxu0 0
  %1783 = vmatpush1.bf16.msra.mxu0 0
  %1784 = vmatprep.subr.bf16.mxu0 0
  %1785 = vmatpush1.bf16.msra.mxu0 0
  %1786 = vmatprep.mubr.bf16.mxu0 0
  %1787 = vmatmul.mubr.bf16.gmra.mrb[0].mxu0 %v1752
  %v1788 = vpop.f32.mrb[0].mxu0
  %v1789 = vadd.f32 %v1514, %v1788
  %v1790 = vpop.f32.mrb[0].mxu0
  %v1791 = vadd.f32 %v1518, %v1790
  %v1792 = vpop.f32.mrb[0].mxu0
  %v1793 = vadd.f32 %v1514, %v1792
  %v1794 = vpop.f32.mrb[0].mxu0
  %v1795 = vadd.f32 %v1518, %v1794
  %1796 = vdwg.mxu0
  %1797 = vmatprep.subr.bf16.mxu0 %v1690
  %1798 = vmatpush1.bf16.msra.mxu0 %v1689
  %1799 = vmatprep.subr.bf16.mxu0 %v1706
  %1800 = vmatpush1.bf16.msra.mxu0 %v1705
  %1801 = vmatprep.subr.bf16.mxu0 0
  %1802 = vmatpush1.bf16.msra.mxu0 0
  %1803 = vmatprep.subr.bf16.mxu0 0
  %1804 = vmatpush1.bf16.msra.mxu0 0
  %1805 = vmatprep.subr.bf16.mxu0 0
  %1806 = vmatpush1.bf16.msra.mxu0 0
  %1807 = vmatprep.subr.bf16.mxu0 0
  %1808 = vmatpush1.bf16.msra.mxu0 0
  %1809 = vmatprep.subr.bf16.mxu0 0
  %1810 = vmatpush1.bf16.msra.mxu0 0
  %1811 = vmatprep.subr.bf16.mxu0 0
  %1812 = vmatpush1.bf16.msra.mxu0 0
  %1813 = vmatprep.subr.bf16.mxu0 0
  %1814 = vmatpush1.bf16.msra.mxu0 0
  %1815 = vmatprep.subr.bf16.mxu0 0
  %1816 = vmatpush1.bf16.msra.mxu0 0
  %1817 = vmatprep.subr.bf16.mxu0 0
  %1818 = vmatpush1.bf16.msra.mxu0 0
  %1819 = vmatprep.subr.bf16.mxu0 0
  %1820 = vmatpush1.bf16.msra.mxu0 0
  %1821 = vmatprep.subr.bf16.mxu0 0
  %1822 = vmatpush1.bf16.msra.mxu0 0
  %1823 = vmatprep.subr.bf16.mxu0 0
  %1824 = vmatpush1.bf16.msra.mxu0 0
  %1825 = vmatprep.subr.bf16.mxu0 0
  %1826 = vmatpush1.bf16.msra.mxu0 0
  %1827 = vmatprep.subr.bf16.mxu0 0
  %1828 = vmatpush1.bf16.msra.mxu0 0
  %1829 = vmatprep.mubr.bf16.mxu0 0
  %1830 = vmatmul.mubr.bf16.gmra.mrb[0].mxu0 %v1752
  %v1831 = vpop.f32.mrb[0].mxu0
  %v1832 = vadd.f32 %v1522, %v1831
  %v1833 = vpop.f32.mrb[0].mxu0
  %v1834 = vadd.f32 %v1526, %v1833
  %v1835 = vpop.f32.mrb[0].mxu0
  %v1836 = vadd.f32 %v1522, %v1835
  %v1837 = vpop.f32.mrb[0].mxu0
  %v1838 = vadd.f32 %v1526, %v1837
  %1839 = vdwg.mxu0
  %1840 = vmatprep.subr.bf16.mxu0 %v1692
  %1841 = vmatpush1.bf16.msra.mxu0 %v1691
  %1842 = vmatprep.subr.bf16.mxu0 %v1708
  %1843 = vmatpush1.bf16.msra.mxu0 %v1707
  %1844 = vmatprep.subr.bf16.mxu0 0
  %1845 = vmatpush1.bf16.msra.mxu0 0
  %1846 = vmatprep.subr.bf16.mxu0 0
  %1847 = vmatpush1.bf16.msra.mxu0 0
  %1848 = vmatprep.subr.bf16.mxu0 0
  %1849 = vmatpush1.bf16.msra.mxu0 0
  %1850 = vmatprep.subr.bf16.mxu0 0
  %1851 = vmatpush1.bf16.msra.mxu0 0
  %1852 = vmatprep.subr.bf16.mxu0 0
  %1853 = vmatpush1.bf16.msra.mxu0 0
  %1854 = vmatprep.subr.bf16.mxu0 0
  %1855 = vmatpush1.bf16.msra.mxu0 0
  %1856 = vmatprep.subr.bf16.mxu0 0
  %1857 = vmatpush1.bf16.msra.mxu0 0
  %1858 = vmatprep.subr.bf16.mxu0 0
  %1859 = vmatpush1.bf16.msra.mxu0 0
  %1860 = vmatprep.subr.bf16.mxu0 0
  %1861 = vmatpush1.bf16.msra.mxu0 0
  %1862 = vmatprep.subr.bf16.mxu0 0
  %1863 = vmatpush1.bf16.msra.mxu0 0
  %1864 = vmatprep.subr.bf16.mxu0 0
  %1865 = vmatpush1.bf16.msra.mxu0 0
  %1866 = vmatprep.subr.bf16.mxu0 0
  %1867 = vmatpush1.bf16.msra.mxu0 0
  %1868 = vmatprep.subr.bf16.mxu0 0
  %1869 = vmatpush1.bf16.msra.mxu0 0
  %1870 = vmatprep.subr.bf16.mxu0 0
  %1871 = vmatpush1.bf16.msra.mxu0 0
  %1872 = vmatprep.mubr.bf16.mxu0 0
  %1873 = vmatmul.mubr.bf16.gmra.mrb[0].mxu0 %v1752
  %v1874 = vpop.f32.mrb[0].mxu0
  %v1875 = vadd.f32 %v1530, %v1874
  %v1876 = vpop.f32.mrb[0].mxu0
  %v1877 = vadd.f32 %v1534, %v1876
  %v1878 = vpop.f32.mrb[0].mxu0
  %v1879 = vadd.f32 %v1530, %v1878
  %v1880 = vpop.f32.mrb[0].mxu0
  %v1881 = vadd.f32 %v1534, %v1880
  %1882 = vdwg.mxu0
  %1883 = vmatprep.subr.bf16.mxu0 %v1694
  %1884 = vmatpush1.bf16.msra.mxu0 %v1693
  %1885 = vmatprep.subr.bf16.mxu0 %v1710
  %1886 = vmatpush1.bf16.msra.mxu0 %v1709
  %1887 = vmatprep.subr.bf16.mxu0 0
  %1888 = vmatpush1.bf16.msra.mxu0 0
  %1889 = vmatprep.subr.bf16.mxu0 0
  %1890 = vmatpush1.bf16.msra.mxu0 0
  %1891 = vmatprep.subr.bf16.mxu0 0
  %1892 = vmatpush1.bf16.msra.mxu0 0
  %1893 = vmatprep.subr.bf16.mxu0 0
  %1894 = vmatpush1.bf16.msra.mxu0 0
  %1895 = vmatprep.subr.bf16.mxu0 0
  %1896 = vmatpush1.bf16.msra.mxu0 0
  %1897 = vmatprep.subr.bf16.mxu0 0
  %1898 = vmatpush1.bf16.msra.mxu0 0
  %1899 = vmatprep.subr.bf16.mxu0 0
  %1900 = vmatpush1.bf16.msra.mxu0 0
  %1901 = vmatprep.subr.bf16.mxu0 0
  %1902 = vmatpush1.bf16.msra.mxu0 0
  %1903 = vmatprep.subr.bf16.mxu0 0
  %1904 = vmatpush1.bf16.msra.mxu0 0
  %1905 = vmatprep.subr.bf16.mxu0 0
  %1906 = vmatpush1.bf16.msra.mxu0 0
  %1907 = vmatprep.subr.bf16.mxu0 0
  %1908 = vmatpush1.bf16.msra.mxu0 0
  %1909 = vmatprep.subr.bf16.mxu0 0
  %1910 = vmatpush1.bf16.msra.mxu0 0
  %1911 = vmatprep.subr.bf16.mxu0 0
  %1912 = vmatpush1.bf16.msra.mxu0 0
  %1913 = vmatprep.subr.bf16.mxu0 0
  %1914 = vmatpush1.bf16.msra.mxu0 0
  %1915 = vmatprep.mubr.bf16.mxu0 0
  %1916 = vmatmul.mubr.bf16.gmra.mrb[0].mxu0 %v1752
  %v1917 = vpop.f32.mrb[0].mxu0
  %v1918 = vadd.f32 %v1538, %v1917
  %v1919 = vpop.f32.mrb[0].mxu0
  %v1920 = vadd.f32 %v1542, %v1919
  %v1921 = vpop.f32.mrb[0].mxu0
  %v1922 = vadd.f32 %v1538, %v1921
  %v1923 = vpop.f32.mrb[0].mxu0
  %v1924 = vadd.f32 %v1542, %v1923
  %1925 = vdwg.mxu0
  %1926 = vmatprep.subr.bf16.mxu0 %v1696
  %1927 = vmatpush1.bf16.msra.mxu0 %v1695
  %1928 = vmatprep.subr.bf16.mxu0 %v1712
  %1929 = vmatpush1.bf16.msra.mxu0 %v1711
  %1930 = vmatprep.subr.bf16.mxu0 0
  %1931 = vmatpush1.bf16.msra.mxu0 0
  %1932 = vmatprep.subr.bf16.mxu0 0
  %1933 = vmatpush1.bf16.msra.mxu0 0
  %1934 = vmatprep.subr.bf16.mxu0 0
  %1935 = vmatpush1.bf16.msra.mxu0 0
  %1936 = vmatprep.subr.bf16.mxu0 0
  %1937 = vmatpush1.bf16.msra.mxu0 0
  %1938 = vmatprep.subr.bf16.mxu0 0
  %1939 = vmatpush1.bf16.msra.mxu0 0
  %1940 = vmatprep.subr.bf16.mxu0 0
  %1941 = vmatpush1.bf16.msra.mxu0 0
  %1942 = vmatprep.subr.bf16.mxu0 0
  %1943 = vmatpush1.bf16.msra.mxu0 0
  %1944 = vmatprep.subr.bf16.mxu0 0
  %1945 = vmatpush1.bf16.msra.mxu0 0
  %1946 = vmatprep.subr.bf16.mxu0 0
  %1947 = vmatpush1.bf16.msra.mxu0 0
  %1948 = vmatprep.subr.bf16.mxu0 0
  %1949 = vmatpush1.bf16.msra.mxu0 0
  %1950 = vmatprep.subr.bf16.mxu0 0
  %1951 = vmatpush1.bf16.msra.mxu0 0
  %1952 = vmatprep.subr.bf16.mxu0 0
  %1953 = vmatpush1.bf16.msra.mxu0 0
  %1954 = vmatprep.subr.bf16.mxu0 0
  %1955 = vmatpush1.bf16.msra.mxu0 0
  %1956 = vmatprep.subr.bf16.mxu0 0
  %1957 = vmatpush1.bf16.msra.mxu0 0
  %1958 = vmatprep.mubr.bf16.mxu0 0
  %1959 = vmatmul.mubr.bf16.gmra.mrb[0].mxu0 %v1752
  %v1960 = vpop.f32.mrb[0].mxu0
  %v1961 = vadd.f32 %v1546, %v1960
  %v1962 = vpop.f32.mrb[0].mxu0
  %v1963 = vadd.f32 %v1550, %v1962
  %v1964 = vpop.f32.mrb[0].mxu0
  %v1965 = vadd.f32 %v1546, %v1964
  %v1966 = vpop.f32.mrb[0].mxu0
  %v1967 = vadd.f32 %v1550, %v1966
  %1968 = vdwg.mxu0
  %1969 = vmatprep.subr.bf16.mxu0 %v1698
  %1970 = vmatpush1.bf16.msra.mxu0 %v1697
  %1971 = vmatprep.subr.bf16.mxu0 %v1714
  %1972 = vmatpush1.bf16.msra.mxu0 %v1713
  %1973 = vmatprep.subr.bf16.mxu0 0
  %1974 = vmatpush1.bf16.msra.mxu0 0
  %1975 = vmatprep.subr.bf16.mxu0 0
  %1976 = vmatpush1.bf16.msra.mxu0 0
  %1977 = vmatprep.subr.bf16.mxu0 0
  %1978 = vmatpush1.bf16.msra.mxu0 0
  %1979 = vmatprep.subr.bf16.mxu0 0
  %1980 = vmatpush1.bf16.msra.mxu0 0
  %1981 = vmatprep.subr.bf16.mxu0 0
  %1982 = vmatpush1.bf16.msra.mxu0 0
  %1983 = vmatprep.subr.bf16.mxu0 0
  %1984 = vmatpush1.bf16.msra.mxu0 0
  %1985 = vmatprep.subr.bf16.mxu0 0
  %1986 = vmatpush1.bf16.msra.mxu0 0
  %1987 = vmatprep.subr.bf16.mxu0 0
  %1988 = vmatpush1.bf16.msra.mxu0 0
  %1989 = vmatprep.subr.bf16.mxu0 0
  %1990 = vmatpush1.bf16.msra.mxu0 0
  %1991 = vmatprep.subr.bf16.mxu0 0
  %1992 = vmatpush1.bf16.msra.mxu0 0
  %1993 = vmatprep.subr.bf16.mxu0 0
  %1994 = vmatpush1.bf16.msra.mxu0 0
  %1995 = vmatprep.subr.bf16.mxu0 0
  %1996 = vmatpush1.bf16.msra.mxu0 0
  %1997 = vmatprep.subr.bf16.mxu0 0
  %1998 = vmatpush1.bf16.msra.mxu0 0
  %1999 = vmatprep.subr.bf16.mxu0 0
  %2000 = vmatpush1.bf16.msra.mxu0 0
  %2001 = vmatprep.mubr.bf16.mxu0 0
  %2002 = vmatmul.mubr.bf16.gmra.mrb[0].mxu0 %v1752
  %v2003 = vpop.f32.mrb[0].mxu0
  %v2004 = vadd.f32 %v1554, %v2003
  %v2005 = vpop.f32.mrb[0].mxu0
  %v2006 = vadd.f32 %v1558, %v2005
  %v2007 = vpop.f32.mrb[0].mxu0
  %v2008 = vadd.f32 %v1554, %v2007
  %v2009 = vpop.f32.mrb[0].mxu0
  %v2010 = vadd.f32 %v1558, %v2009
  %2011 = vdwg.mxu0
  %2012 = vmatprep.subr.bf16.mxu0 %v1700
  %2013 = vmatpush1.bf16.msra.mxu0 %v1699
  %2014 = vmatprep.subr.bf16.mxu0 %v1716
  %2015 = vmatpush1.bf16.msra.mxu0 %v1715
  %2016 = vmatprep.subr.bf16.mxu0 0
  %2017 = vmatpush1.bf16.msra.mxu0 0
  %2018 = vmatprep.subr.bf16.mxu0 0
  %2019 = vmatpush1.bf16.msra.mxu0 0
  %2020 = vmatprep.subr.bf16.mxu0 0
  %2021 = vmatpush1.bf16.msra.mxu0 0
  %2022 = vmatprep.subr.bf16.mxu0 0
  %2023 = vmatpush1.bf16.msra.mxu0 0
  %2024 = vmatprep.subr.bf16.mxu0 0
  %2025 = vmatpush1.bf16.msra.mxu0 0
  %2026 = vmatprep.subr.bf16.mxu0 0
  %2027 = vmatpush1.bf16.msra.mxu0 0
  %2028 = vmatprep.subr.bf16.mxu0 0
  %2029 = vmatpush1.bf16.msra.mxu0 0
  %2030 = vmatprep.subr.bf16.mxu0 0
  %2031 = vmatpush1.bf16.msra.mxu0 0
  %2032 = vmatprep.subr.bf16.mxu0 0
  %2033 = vmatpush1.bf16.msra.mxu0 0
  %2034 = vmatprep.subr.bf16.mxu0 0
  %2035 = vmatpush1.bf16.msra.mxu0 0
  %2036 = vmatprep.subr.bf16.mxu0 0
  %2037 = vmatpush1.bf16.msra.mxu0 0
  %2038 = vmatprep.subr.bf16.mxu0 0
  %2039 = vmatpush1.bf16.msra.mxu0 0
  %2040 = vmatprep.subr.bf16.mxu0 0
  %2041 = vmatpush1.bf16.msra.mxu0 0
  %2042 = vmatprep.subr.bf16.mxu0 0
  %2043 = vmatpush1.bf16.msra.mxu0 0
  %2044 = vmatprep.mubr.bf16.mxu0 0
  %2045 = vmatmul.mubr.bf16.gmra.mrb[0].mxu0 %v1752
  %v2046 = vpop.f32.mrb[0].mxu0
  %v2047 = vadd.f32 %v1562, %v2046
  %v2048 = vpop.f32.mrb[0].mxu0
  %v2049 = vadd.f32 %v1566, %v2048
  %v2050 = vpop.f32.mrb[0].mxu0
  %v2051 = vadd.f32 %v1562, %v2050
  %v2052 = vpop.f32.mrb[0].mxu0
  %v2053 = vadd.f32 %v1566, %v2052
  %2054 = vdwg.mxu0
  %2055 = vmatprep.subr.bf16.mxu0 %v1702
  %2056 = vmatpush1.bf16.msra.mxu0 %v1701
  %2057 = vmatprep.subr.bf16.mxu0 %v1718
  %2058 = vmatpush1.bf16.msra.mxu0 %v1717
  %2059 = vmatprep.subr.bf16.mxu0 0
  %2060 = vmatpush1.bf16.msra.mxu0 0
  %2061 = vmatprep.subr.bf16.mxu0 0
  %2062 = vmatpush1.bf16.msra.mxu0 0
  %2063 = vmatprep.subr.bf16.mxu0 0
  %2064 = vmatpush1.bf16.msra.mxu0 0
  %2065 = vmatprep.subr.bf16.mxu0 0
  %2066 = vmatpush1.bf16.msra.mxu0 0
  %2067 = vmatprep.subr.bf16.mxu0 0
  %2068 = vmatpush1.bf16.msra.mxu0 0
  %2069 = vmatprep.subr.bf16.mxu0 0
  %2070 = vmatpush1.bf16.msra.mxu0 0
  %2071 = vmatprep.subr.bf16.mxu0 0
  %2072 = vmatpush1.bf16.msra.mxu0 0
  %2073 = vmatprep.subr.bf16.mxu0 0
  %2074 = vmatpush1.bf16.msra.mxu0 0
  %2075 = vmatprep.subr.bf16.mxu0 0
  %2076 = vmatpush1.bf16.msra.mxu0 0
  %2077 = vmatprep.subr.bf16.mxu0 0
  %2078 = vmatpush1.bf16.msra.mxu0 0
  %2079 = vmatprep.subr.bf16.mxu0 0
  %2080 = vmatpush1.bf16.msra.mxu0 0
  %2081 = vmatprep.subr.bf16.mxu0 0
  %2082 = vmatpush1.bf16.msra.mxu0 0
  %2083 = vmatprep.subr.bf16.mxu0 0
  %2084 = vmatpush1.bf16.msra.mxu0 0
  %2085 = vmatprep.subr.bf16.mxu0 0
  %2086 = vmatpush1.bf16.msra.mxu0 0
  %2087 = vmatprep.mubr.bf16.mxu0 0
  %2088 = vmatmul.mubr.bf16.gmra.mrb[0].mxu0 %v1752
  %v2089 = vpop.f32.mrb[0].mxu0
  %v2090 = vadd.f32 %v1570, %v2089
  %v2091 = vpop.f32.mrb[0].mxu0
  %v2092 = vadd.f32 %v1574, %v2091
  %v2093 = vpop.f32.mrb[0].mxu0
  %v2094 = vadd.f32 %v1570, %v2093
  %v2095 = vpop.f32.mrb[0].mxu0
  %v2096 = vadd.f32 %v1574, %v2095
  %2097 = vdwg.mxu0
  %v2098 = vmax.f32 %v1789, 0.0
  %v2099 = vmax.f32 %v1791, 0.0
  %v2100 = vmax.f32 %v1832, 0.0
  %v2101 = vmax.f32 %v1834, 0.0
  %v2102 = vmax.f32 %v1875, 0.0
  %v2103 = vmax.f32 %v1877, 0.0
  %v2104 = vmax.f32 %v1918, 0.0
  %v2105 = vmax.f32 %v1920, 0.0
  %v2106 = vmax.f32 %v1961, 0.0
  %v2107 = vmax.f32 %v1963, 0.0
  %v2108 = vmax.f32 %v2004, 0.0
  %v2109 = vmax.f32 %v2006, 0.0
  %v2110 = vmax.f32 %v2047, 0.0
  %v2111 = vmax.f32 %v2049, 0.0
  %v2112 = vmax.f32 %v2090, 0.0
  %v2113 = vmax.f32 %v2092, 0.0
  %v2114 = vmax.f32 %v1793, 0.0
  %v2115 = vmax.f32 %v1795, 0.0
  %v2116 = vmax.f32 %v1836, 0.0
  %v2117 = vmax.f32 %v1838, 0.0
  %v2118 = vmax.f32 %v1879, 0.0
  %v2119 = vmax.f32 %v1881, 0.0
  %v2120 = vmax.f32 %v1922, 0.0
  %v2121 = vmax.f32 %v1924, 0.0
  %v2122 = vmax.f32 %v1965, 0.0
  %v2123 = vmax.f32 %v1967, 0.0
  %v2124 = vmax.f32 %v2008, 0.0
  %v2125 = vmax.f32 %v2010, 0.0
  %v2126 = vmax.f32 %v2051, 0.0
  %v2127 = vmax.f32 %v2053, 0.0
  %v2128 = vmax.f32 %v2094, 0.0
  %v2129 = vmax.f32 %v2096, 0.0
  %v2130 = vpack.c.bf16 %v2114, %v2098
  %v2131 = vpack.c.bf16 %v2115, %v2099
  %v2132 = vpack.c.bf16 %v2116, %v2100
  %v2133 = vpack.c.bf16 %v2117, %v2101
  %v2134 = vpack.c.bf16 %v2118, %v2102
  %v2135 = vpack.c.bf16 %v2119, %v2103
  %v2136 = vpack.c.bf16 %v2120, %v2104
  %v2137 = vpack.c.bf16 %v2121, %v2105
  %v2138 = vpack.c.bf16 %v2122, %v2106
  %v2139 = vpack.c.bf16 %v2123, %v2107
  %v2140 = vpack.c.bf16 %v2124, %v2108
  %v2141 = vpack.c.bf16 %v2125, %v2109
  %v2142 = vpack.c.bf16 %v2126, %v2110
  %v2143 = vpack.c.bf16 %v2127, %v2111
  %v2144 = vpack.c.bf16 %v2128, %v2112
  %v2145 = vpack.c.bf16 %v2129, %v2113
  %v2146 = vld [vmem:[%s23] sm:$0xf]
  %v2147 = vld [vmem:[%s23 + $0x4] sm:$0xf]
  %v2148 = vld [vmem:[%s23 + $0x8] sm:$0xf]
  %v2149 = vld [vmem:[%s23 + $0xc] sm:$0xf]
  %v2150 = vld [vmem:[%s23 + $0x10] sm:$0xf]
  %v2151 = vld [vmem:[%s23 + $0x14] sm:$0xf]
  %v2152 = vld [vmem:[%s23 + $0x18] sm:$0xf]
  %v2153 = vld [vmem:[%s23 + $0x1c] sm:$0xf]
  %v2154 = vld [vmem:[%s23 + $0x20] sm:$0xf]
  %v2155 = vld [vmem:[%s23 + $0x24] sm:$0xf]
  %v2156 = vld [vmem:[%s23 + $0x28] sm:$0xf]
  %v2157 = vld [vmem:[%s23 + $0x2c] sm:$0xf]
  %v2158 = vld [vmem:[%s23 + $0x30] sm:$0xf]
  %v2159 = vld [vmem:[%s23 + $0x34] sm:$0xf]
  %v2160 = vld [vmem:[%s23 + $0x38] sm:$0xf]
  %v2161 = vld [vmem:[%s23 + $0x3c] sm:$0xf]
  %v2162 = vld [vmem:[%s23 + $0x40] sm:$0xf]
  %v2163 = vld [vmem:[%s23 + $0x44] sm:$0xf]
  %v2164 = vld [vmem:[%s23 + $0x48] sm:$0xf]
  %v2165 = vld [vmem:[%s23 + $0x4c] sm:$0xf]
  %v2166 = vld [vmem:[%s23 + $0x50] sm:$0xf]
  %v2167 = vld [vmem:[%s23 + $0x54] sm:$0xf]
  %v2168 = vld [vmem:[%s23 + $0x58] sm:$0xf]
  %v2169 = vld [vmem:[%s23 + $0x5c] sm:$0xf]
  %v2170 = vld [vmem:[%s23 + $0x60] sm:$0xf]
  %v2171 = vld [vmem:[%s23 + $0x64] sm:$0xf]
  %v2172 = vld [vmem:[%s23 + $0x68] sm:$0xf]
  %v2173 = vld [vmem:[%s23 + $0x6c] sm:$0xf]
  %v2174 = vld [vmem:[%s23 + $0x70] sm:$0xf]
  %v2175 = vld [vmem:[%s23 + $0x74] sm:$0xf]
  %v2176 = vld [vmem:[%s23 + $0x78] sm:$0xf]
  %v2177 = vld [vmem:[%s23 + $0x7c] sm:$0xf]
  %v2178 = vld [vmem:[%s23 + $0x80] sm:$0xf]
  %v2179 = vld [vmem:[%s23 + $0x84] sm:$0xf]
  %v2180 = vld [vmem:[%s23 + $0x88] sm:$0xf]
  %v2181 = vld [vmem:[%s23 + $0x8c] sm:$0xf]
  %v2182 = vld [vmem:[%s23 + $0x90] sm:$0xf]
  %v2183 = vld [vmem:[%s23 + $0x94] sm:$0xf]
  %v2184 = vld [vmem:[%s23 + $0x98] sm:$0xf]
  %v2185 = vld [vmem:[%s23 + $0x9c] sm:$0xf]
  %v2186 = vld [vmem:[%s23 + $0xa0] sm:$0xf]
  %v2187 = vld [vmem:[%s23 + $0xa4] sm:$0xf]
  %v2188 = vld [vmem:[%s23 + $0xa8] sm:$0xf]
  %v2189 = vld [vmem:[%s23 + $0xac] sm:$0xf]
  %v2190 = vld [vmem:[%s23 + $0xb0] sm:$0xf]
  %v2191 = vld [vmem:[%s23 + $0xb4] sm:$0xf]
  %v2192 = vld [vmem:[%s23 + $0xb8] sm:$0xf]
  %v2193 = vld [vmem:[%s23 + $0xbc] sm:$0xf]
  %v2194 = vld [vmem:[%s23 + $0xc0] sm:$0xf]
  %v2195 = vld [vmem:[%s23 + $0xc4] sm:$0xf]
  %v2196 = vld [vmem:[%s23 + $0xc8] sm:$0xf]
  %v2197 = vld [vmem:[%s23 + $0xcc] sm:$0xf]
  %v2198 = vld [vmem:[%s23 + $0xd0] sm:$0xf]
  %v2199 = vld [vmem:[%s23 + $0xd4] sm:$0xf]
  %v2200 = vld [vmem:[%s23 + $0xd8] sm:$0xf]
  %v2201 = vld [vmem:[%s23 + $0xdc] sm:$0xf]
  %v2202 = vld [vmem:[%s23 + $0xe0] sm:$0xf]
  %v2203 = vld [vmem:[%s23 + $0xe4] sm:$0xf]
  %v2204 = vld [vmem:[%s23 + $0xe8] sm:$0xf]
  %v2205 = vld [vmem:[%s23 + $0xec] sm:$0xf]
  %v2206 = vld [vmem:[%s23 + $0xf0] sm:$0xf]
  %v2207 = vld [vmem:[%s23 + $0xf4] sm:$0xf]
  %v2208 = vld [vmem:[%s23 + $0xf8] sm:$0xf]
  %v2209 = vld [vmem:[%s23 + $0xfc] sm:$0xf]
  %v2210 = vld [vmem:[%s23 + $0x100] sm:$0xf]
  %v2211 = vld [vmem:[%s23 + $0x104] sm:$0xf]
  %v2212 = vld [vmem:[%s23 + $0x108] sm:$0xf]
  %v2213 = vld [vmem:[%s23 + $0x10c] sm:$0xf]
  %v2214 = vld [vmem:[%s23 + $0x110] sm:$0xf]
  %v2215 = vld [vmem:[%s23 + $0x114] sm:$0xf]
  %v2216 = vld [vmem:[%s23 + $0x118] sm:$0xf]
  %v2217 = vld [vmem:[%s23 + $0x11c] sm:$0xf]
  %v2218 = vld [vmem:[%s23 + $0x120] sm:$0xf]
  %v2219 = vld [vmem:[%s23 + $0x124] sm:$0xf]
  %v2220 = vld [vmem:[%s23 + $0x128] sm:$0xf]
  %v2221 = vld [vmem:[%s23 + $0x12c] sm:$0xf]
  %v2222 = vld [vmem:[%s23 + $0x130] sm:$0xf]
  %v2223 = vld [vmem:[%s23 + $0x134] sm:$0xf]
  %v2224 = vld [vmem:[%s23 + $0x138] sm:$0xf]
  %v2225 = vld [vmem:[%s23 + $0x13c] sm:$0xf]
  %v2226 = vld [vmem:[%s23 + $0x140] sm:$0xf]
  %v2227 = vld [vmem:[%s23 + $0x144] sm:$0xf]
  %v2228 = vld [vmem:[%s23 + $0x148] sm:$0xf]
  %v2229 = vld [vmem:[%s23 + $0x14c] sm:$0xf]
  %v2230 = vld [vmem:[%s23 + $0x150] sm:$0xf]
  %v2231 = vld [vmem:[%s23 + $0x154] sm:$0xf]
  %v2232 = vld [vmem:[%s23 + $0x158] sm:$0xf]
  %v2233 = vld [vmem:[%s23 + $0x15c] sm:$0xf]
  %v2234 = vld [vmem:[%s23 + $0x160] sm:$0xf]
  %v2235 = vld [vmem:[%s23 + $0x164] sm:$0xf]
  %v2236 = vld [vmem:[%s23 + $0x168] sm:$0xf]
  %v2237 = vld [vmem:[%s23 + $0x16c] sm:$0xf]
  %v2238 = vld [vmem:[%s23 + $0x170] sm:$0xf]
  %v2239 = vld [vmem:[%s23 + $0x174] sm:$0xf]
  %v2240 = vld [vmem:[%s23 + $0x178] sm:$0xf]
  %v2241 = vld [vmem:[%s23 + $0x17c] sm:$0xf]
  %v2242 = vld [vmem:[%s23 + $0x180] sm:$0xf]
  %v2243 = vld [vmem:[%s23 + $0x184] sm:$0xf]
  %v2244 = vld [vmem:[%s23 + $0x188] sm:$0xf]
  %v2245 = vld [vmem:[%s23 + $0x18c] sm:$0xf]
  %v2246 = vld [vmem:[%s23 + $0x190] sm:$0xf]
  %v2247 = vld [vmem:[%s23 + $0x194] sm:$0xf]
  %v2248 = vld [vmem:[%s23 + $0x198] sm:$0xf]
  %v2249 = vld [vmem:[%s23 + $0x19c] sm:$0xf]
  %v2250 = vld [vmem:[%s23 + $0x1a0] sm:$0xf]
  %v2251 = vld [vmem:[%s23 + $0x1a4] sm:$0xf]
  %v2252 = vld [vmem:[%s23 + $0x1a8] sm:$0xf]
  %v2253 = vld [vmem:[%s23 + $0x1ac] sm:$0xf]
  %v2254 = vld [vmem:[%s23 + $0x1b0] sm:$0xf]
  %v2255 = vld [vmem:[%s23 + $0x1b4] sm:$0xf]
  %v2256 = vld [vmem:[%s23 + $0x1b8] sm:$0xf]
  %v2257 = vld [vmem:[%s23 + $0x1bc] sm:$0xf]
  %v2258 = vld [vmem:[%s23 + $0x1c0] sm:$0xf]
  %v2259 = vld [vmem:[%s23 + $0x1c4] sm:$0xf]
  %v2260 = vld [vmem:[%s23 + $0x1c8] sm:$0xf]
  %v2261 = vld [vmem:[%s23 + $0x1cc] sm:$0xf]
  %v2262 = vld [vmem:[%s23 + $0x1d0] sm:$0xf]
  %v2263 = vld [vmem:[%s23 + $0x1d4] sm:$0xf]
  %v2264 = vld [vmem:[%s23 + $0x1d8] sm:$0xf]
  %v2265 = vld [vmem:[%s23 + $0x1dc] sm:$0xf]
  %v2266 = vld [vmem:[%s23 + $0x1e0] sm:$0xf]
  %v2267 = vld [vmem:[%s23 + $0x1e4] sm:$0xf]
  %v2268 = vld [vmem:[%s23 + $0x1e8] sm:$0xf]
  %v2269 = vld [vmem:[%s23 + $0x1ec] sm:$0xf]
  %v2270 = vld [vmem:[%s23 + $0x1f0] sm:$0xf]
  %v2271 = vld [vmem:[%s23 + $0x1f4] sm:$0xf]
  %v2272 = vld [vmem:[%s23 + $0x1f8] sm:$0xf]
  %v2273 = vld [vmem:[%s23 + $0x1fc] sm:$0xf]
  %v2274 = vld [vmem:[%s23 + $0x200] sm:$0xf]
  %v2275 = vld [vmem:[%s23 + $0x204] sm:$0xf]
  %v2276 = vld [vmem:[%s23 + $0x208] sm:$0xf]
  %v2277 = vld [vmem:[%s23 + $0x20c] sm:$0xf]
  %v2278 = vld [vmem:[%s23 + $0x210] sm:$0xf]
  %v2279 = vld [vmem:[%s23 + $0x214] sm:$0xf]
  %v2280 = vld [vmem:[%s23 + $0x218] sm:$0xf]
  %v2281 = vld [vmem:[%s23 + $0x21c] sm:$0xf]
  %v2282 = vld [vmem:[%s23 + $0x220] sm:$0xf]
  %v2283 = vld [vmem:[%s23 + $0x224] sm:$0xf]
  %v2284 = vld [vmem:[%s23 + $0x228] sm:$0xf]
  %v2285 = vld [vmem:[%s23 + $0x22c] sm:$0xf]
  %v2286 = vld [vmem:[%s23 + $0x230] sm:$0xf]
  %v2287 = vld [vmem:[%s23 + $0x234] sm:$0xf]
  %v2288 = vld [vmem:[%s23 + $0x238] sm:$0xf]
  %v2289 = vld [vmem:[%s23 + $0x23c] sm:$0xf]
  %v2290 = vld [vmem:[%s23 + $0x240] sm:$0xf]
  %v2291 = vld [vmem:[%s23 + $0x244] sm:$0xf]
  %v2292 = vld [vmem:[%s23 + $0x248] sm:$0xf]
  %v2293 = vld [vmem:[%s23 + $0x24c] sm:$0xf]
  %v2294 = vld [vmem:[%s23 + $0x250] sm:$0xf]
  %v2295 = vld [vmem:[%s23 + $0x254] sm:$0xf]
  %v2296 = vld [vmem:[%s23 + $0x258] sm:$0xf]
  %v2297 = vld [vmem:[%s23 + $0x25c] sm:$0xf]
  %v2298 = vld [vmem:[%s23 + $0x260] sm:$0xf]
  %v2299 = vld [vmem:[%s23 + $0x264] sm:$0xf]
  %v2300 = vld [vmem:[%s23 + $0x268] sm:$0xf]
  %v2301 = vld [vmem:[%s23 + $0x26c] sm:$0xf]
  %v2302 = vld [vmem:[%s23 + $0x270] sm:$0xf]
  %v2303 = vld [vmem:[%s23 + $0x274] sm:$0xf]
  %v2304 = vld [vmem:[%s23 + $0x278] sm:$0xf]
  %v2305 = vld [vmem:[%s23 + $0x27c] sm:$0xf]
  %v2306 = vld [vmem:[%s23 + $0x280] sm:$0xf]
  %v2307 = vld [vmem:[%s23 + $0x284] sm:$0xf]
  %v2308 = vld [vmem:[%s23 + $0x288] sm:$0xf]
  %v2309 = vld [vmem:[%s23 + $0x28c] sm:$0xf]
  %v2310 = vld [vmem:[%s23 + $0x290] sm:$0xf]
  %v2311 = vld [vmem:[%s23 + $0x294] sm:$0xf]
  %v2312 = vld [vmem:[%s23 + $0x298] sm:$0xf]
  %v2313 = vld [vmem:[%s23 + $0x29c] sm:$0xf]
  %v2314 = vld [vmem:[%s23 + $0x2a0] sm:$0xf]
  %v2315 = vld [vmem:[%s23 + $0x2a4] sm:$0xf]
  %v2316 = vld [vmem:[%s23 + $0x2a8] sm:$0xf]
  %v2317 = vld [vmem:[%s23 + $0x2ac] sm:$0xf]
  %v2318 = vld [vmem:[%s23 + $0x2b0] sm:$0xf]
  %v2319 = vld [vmem:[%s23 + $0x2b4] sm:$0xf]
  %v2320 = vld [vmem:[%s23 + $0x2b8] sm:$0xf]
  %v2321 = vld [vmem:[%s23 + $0x2bc] sm:$0xf]
  %v2322 = vld [vmem:[%s23 + $0x2c0] sm:$0xf]
  %v2323 = vld [vmem:[%s23 + $0x2c4] sm:$0xf]
  %v2324 = vld [vmem:[%s23 + $0x2c8] sm:$0xf]
  %v2325 = vld [vmem:[%s23 + $0x2cc] sm:$0xf]
  %v2326 = vld [vmem:[%s23 + $0x2d0] sm:$0xf]
  %v2327 = vld [vmem:[%s23 + $0x2d4] sm:$0xf]
  %v2328 = vld [vmem:[%s23 + $0x2d8] sm:$0xf]
  %v2329 = vld [vmem:[%s23 + $0x2dc] sm:$0xf]
  %v2330 = vld [vmem:[%s23 + $0x2e0] sm:$0xf]
  %v2331 = vld [vmem:[%s23 + $0x2e4] sm:$0xf]
  %v2332 = vld [vmem:[%s23 + $0x2e8] sm:$0xf]
  %v2333 = vld [vmem:[%s23 + $0x2ec] sm:$0xf]
  %v2334 = vld [vmem:[%s23 + $0x2f0] sm:$0xf]
  %v2335 = vld [vmem:[%s23 + $0x2f4] sm:$0xf]
  %v2336 = vld [vmem:[%s23 + $0x2f8] sm:$0xf]
  %v2337 = vld [vmem:[%s23 + $0x2fc] sm:$0xf]
  %v2338 = vld [vmem:[%s23 + $0x300] sm:$0xf]
  %v2339 = vld [vmem:[%s23 + $0x304] sm:$0xf]
  %v2340 = vld [vmem:[%s23 + $0x308] sm:$0xf]
  %v2341 = vld [vmem:[%s23 + $0x30c] sm:$0xf]
  %v2342 = vld [vmem:[%s23 + $0x310] sm:$0xf]
  %v2343 = vld [vmem:[%s23 + $0x314] sm:$0xf]
  %v2344 = vld [vmem:[%s23 + $0x318] sm:$0xf]
  %v2345 = vld [vmem:[%s23 + $0x31c] sm:$0xf]
  %v2346 = vld [vmem:[%s23 + $0x320] sm:$0xf]
  %v2347 = vld [vmem:[%s23 + $0x324] sm:$0xf]
  %v2348 = vld [vmem:[%s23 + $0x328] sm:$0xf]
  %v2349 = vld [vmem:[%s23 + $0x32c] sm:$0xf]
  %v2350 = vld [vmem:[%s23 + $0x330] sm:$0xf]
  %v2351 = vld [vmem:[%s23 + $0x334] sm:$0xf]
  %v2352 = vld [vmem:[%s23 + $0x338] sm:$0xf]
  %v2353 = vld [vmem:[%s23 + $0x33c] sm:$0xf]
  %v2354 = vld [vmem:[%s23 + $0x340] sm:$0xf]
  %v2355 = vld [vmem:[%s23 + $0x344] sm:$0xf]
  %v2356 = vld [vmem:[%s23 + $0x348] sm:$0xf]
  %v2357 = vld [vmem:[%s23 + $0x34c] sm:$0xf]
  %v2358 = vld [vmem:[%s23 + $0x350] sm:$0xf]
  %v2359 = vld [vmem:[%s23 + $0x354] sm:$0xf]
  %v2360 = vld [vmem:[%s23 + $0x358] sm:$0xf]
  %v2361 = vld [vmem:[%s23 + $0x35c] sm:$0xf]
  %v2362 = vld [vmem:[%s23 + $0x360] sm:$0xf]
  %v2363 = vld [vmem:[%s23 + $0x364] sm:$0xf]
  %v2364 = vld [vmem:[%s23 + $0x368] sm:$0xf]
  %v2365 = vld [vmem:[%s23 + $0x36c] sm:$0xf]
  %v2366 = vld [vmem:[%s23 + $0x370] sm:$0xf]
  %v2367 = vld [vmem:[%s23 + $0x374] sm:$0xf]
  %v2368 = vld [vmem:[%s23 + $0x378] sm:$0xf]
  %v2369 = vld [vmem:[%s23 + $0x37c] sm:$0xf]
  %v2370 = vld [vmem:[%s23 + $0x380] sm:$0xf]
  %v2371 = vld [vmem:[%s23 + $0x384] sm:$0xf]
  %v2372 = vld [vmem:[%s23 + $0x388] sm:$0xf]
  %v2373 = vld [vmem:[%s23 + $0x38c] sm:$0xf]
  %v2374 = vld [vmem:[%s23 + $0x390] sm:$0xf]
  %v2375 = vld [vmem:[%s23 + $0x394] sm:$0xf]
  %v2376 = vld [vmem:[%s23 + $0x398] sm:$0xf]
  %v2377 = vld [vmem:[%s23 + $0x39c] sm:$0xf]
  %v2378 = vld [vmem:[%s23 + $0x3a0] sm:$0xf]
  %v2379 = vld [vmem:[%s23 + $0x3a4] sm:$0xf]
  %v2380 = vld [vmem:[%s23 + $0x3a8] sm:$0xf]
  %v2381 = vld [vmem:[%s23 + $0x3ac] sm:$0xf]
  %v2382 = vld [vmem:[%s23 + $0x3b0] sm:$0xf]
  %v2383 = vld [vmem:[%s23 + $0x3b4] sm:$0xf]
  %v2384 = vld [vmem:[%s23 + $0x3b8] sm:$0xf]
  %v2385 = vld [vmem:[%s23 + $0x3bc] sm:$0xf]
  %v2386 = vld [vmem:[%s23 + $0x3c0] sm:$0xf]
  %v2387 = vld [vmem:[%s23 + $0x3c4] sm:$0xf]
  %v2388 = vld [vmem:[%s23 + $0x3c8] sm:$0xf]
  %v2389 = vld [vmem:[%s23 + $0x3cc] sm:$0xf]
  %v2390 = vld [vmem:[%s23 + $0x3d0] sm:$0xf]
  %v2391 = vld [vmem:[%s23 + $0x3d4] sm:$0xf]
  %v2392 = vld [vmem:[%s23 + $0x3d8] sm:$0xf]
  %v2393 = vld [vmem:[%s23 + $0x3dc] sm:$0xf]
  %v2394 = vld [vmem:[%s23 + $0x3e0] sm:$0xf]
  %v2395 = vld [vmem:[%s23 + $0x3e4] sm:$0xf]
  %v2396 = vld [vmem:[%s23 + $0x3e8] sm:$0xf]
  %v2397 = vld [vmem:[%s23 + $0x3ec] sm:$0xf]
  %v2398 = vld [vmem:[%s23 + $0x3f0] sm:$0xf]
  %v2399 = vld [vmem:[%s23 + $0x3f4] sm:$0xf]
  %v2400 = vld [vmem:[%s23 + $0x3f8] sm:$0xf]
  %v2401 = vld [vmem:[%s23 + $0x3fc] sm:$0xf]
  %v2402 = vld [vmem:[%s25] sm:$0x1]
  %v2404 = vlaneseq
  %v2405 = vshrl.u32 %v2404, 7
  %v2406 = vsub.s32 0, %v2405
  %v2407 = vrot.slane %v2402, %v2406
  %v2665 = vunpack.c.l.b16 %v2146
  %v2666 = vunpack.c.l.b16 %v2147
  %v2667 = vunpack.c.l.b16 %v2148
  %v2668 = vunpack.c.l.b16 %v2149
  %v2669 = vunpack.c.l.b16 %v2150
  %v2670 = vunpack.c.l.b16 %v2151
  %v2671 = vunpack.c.l.b16 %v2152
  %v2672 = vunpack.c.l.b16 %v2153
  %v2673 = vunpack.c.l.b16 %v2154
  %v2674 = vunpack.c.l.b16 %v2155
  %v2675 = vunpack.c.l.b16 %v2156
  %v2676 = vunpack.c.l.b16 %v2157
  %v2677 = vunpack.c.l.b16 %v2158
  %v2678 = vunpack.c.l.b16 %v2159
  %v2679 = vunpack.c.l.b16 %v2160
  %v2680 = vunpack.c.l.b16 %v2161
  %v2681 = vunpack.c.l.b16 %v2162
  %v2682 = vunpack.c.l.b16 %v2163
  %v2683 = vunpack.c.l.b16 %v2164
  %v2684 = vunpack.c.l.b16 %v2165
  %v2685 = vunpack.c.l.b16 %v2166
  %v2686 = vunpack.c.l.b16 %v2167
  %v2687 = vunpack.c.l.b16 %v2168
  %v2688 = vunpack.c.l.b16 %v2169
  %v2689 = vunpack.c.l.b16 %v2170
  %v2690 = vunpack.c.l.b16 %v2171
  %v2691 = vunpack.c.l.b16 %v2172
  %v2692 = vunpack.c.l.b16 %v2173
  %v2693 = vunpack.c.l.b16 %v2174
  %v2694 = vunpack.c.l.b16 %v2175
  %v2695 = vunpack.c.l.b16 %v2176
  %v2696 = vunpack.c.l.b16 %v2177
  %v2697 = vunpack.c.l.b16 %v2178
  %v2698 = vunpack.c.l.b16 %v2179
  %v2699 = vunpack.c.l.b16 %v2180
  %v2700 = vunpack.c.l.b16 %v2181
  %v2701 = vunpack.c.l.b16 %v2182
  %v2702 = vunpack.c.l.b16 %v2183
  %v2703 = vunpack.c.l.b16 %v2184
  %v2704 = vunpack.c.l.b16 %v2185
  %v2705 = vunpack.c.l.b16 %v2186
  %v2706 = vunpack.c.l.b16 %v2187
  %v2707 = vunpack.c.l.b16 %v2188
  %v2708 = vunpack.c.l.b16 %v2189
  %v2709 = vunpack.c.l.b16 %v2190
  %v2710 = vunpack.c.l.b16 %v2191
  %v2711 = vunpack.c.l.b16 %v2192
  %v2712 = vunpack.c.l.b16 %v2193
  %v2713 = vunpack.c.l.b16 %v2194
  %v2714 = vunpack.c.l.b16 %v2195
  %v2715 = vunpack.c.l.b16 %v2196
  %v2716 = vunpack.c.l.b16 %v2197
  %v2717 = vunpack.c.l.b16 %v2198
  %v2718 = vunpack.c.l.b16 %v2199
  %v2719 = vunpack.c.l.b16 %v2200
  %v2720 = vunpack.c.l.b16 %v2201
  %v2721 = vunpack.c.l.b16 %v2202
  %v2722 = vunpack.c.l.b16 %v2203
  %v2723 = vunpack.c.l.b16 %v2204
  %v2724 = vunpack.c.l.b16 %v2205
  %v2725 = vunpack.c.l.b16 %v2206
  %v2726 = vunpack.c.l.b16 %v2207
  %v2727 = vunpack.c.l.b16 %v2208
  %v2728 = vunpack.c.l.b16 %v2209
  %v2729 = vunpack.c.l.b16 %v2210
  %v2730 = vunpack.c.l.b16 %v2211
  %v2731 = vunpack.c.l.b16 %v2212
  %v2732 = vunpack.c.l.b16 %v2213
  %v2733 = vunpack.c.l.b16 %v2214
  %v2734 = vunpack.c.l.b16 %v2215
  %v2735 = vunpack.c.l.b16 %v2216
  %v2736 = vunpack.c.l.b16 %v2217
  %v2737 = vunpack.c.l.b16 %v2218
  %v2738 = vunpack.c.l.b16 %v2219
  %v2739 = vunpack.c.l.b16 %v2220
  %v2740 = vunpack.c.l.b16 %v2221
  %v2741 = vunpack.c.l.b16 %v2222
  %v2742 = vunpack.c.l.b16 %v2223
  %v2743 = vunpack.c.l.b16 %v2224
  %v2744 = vunpack.c.l.b16 %v2225
  %v2745 = vunpack.c.l.b16 %v2226
  %v2746 = vunpack.c.l.b16 %v2227
  %v2747 = vunpack.c.l.b16 %v2228
  %v2748 = vunpack.c.l.b16 %v2229
  %v2749 = vunpack.c.l.b16 %v2230
  %v2750 = vunpack.c.l.b16 %v2231
  %v2751 = vunpack.c.l.b16 %v2232
  %v2752 = vunpack.c.l.b16 %v2233
  %v2753 = vunpack.c.l.b16 %v2234
  %v2754 = vunpack.c.l.b16 %v2235
  %v2755 = vunpack.c.l.b16 %v2236
  %v2756 = vunpack.c.l.b16 %v2237
  %v2757 = vunpack.c.l.b16 %v2238
  %v2758 = vunpack.c.l.b16 %v2239
  %v2759 = vunpack.c.l.b16 %v2240
  %v2760 = vunpack.c.l.b16 %v2241
  %v2761 = vunpack.c.l.b16 %v2242
  %v2762 = vunpack.c.l.b16 %v2243
  %v2763 = vunpack.c.l.b16 %v2244
  %v2764 = vunpack.c.l.b16 %v2245
  %v2765 = vunpack.c.l.b16 %v2246
  %v2766 = vunpack.c.l.b16 %v2247
  %v2767 = vunpack.c.l.b16 %v2248
  %v2768 = vunpack.c.l.b16 %v2249
  %v2769 = vunpack.c.l.b16 %v2250
  %v2770 = vunpack.c.l.b16 %v2251
  %v2771 = vunpack.c.l.b16 %v2252
  %v2772 = vunpack.c.l.b16 %v2253
  %v2773 = vunpack.c.l.b16 %v2254
  %v2774 = vunpack.c.l.b16 %v2255
  %v2775 = vunpack.c.l.b16 %v2256
  %v2776 = vunpack.c.l.b16 %v2257
  %v2777 = vunpack.c.l.b16 %v2258
  %v2778 = vunpack.c.l.b16 %v2259
  %v2779 = vunpack.c.l.b16 %v2260
  %v2780 = vunpack.c.l.b16 %v2261
  %v2781 = vunpack.c.l.b16 %v2262
  %v2782 = vunpack.c.l.b16 %v2263
  %v2783 = vunpack.c.l.b16 %v2264
  %v2784 = vunpack.c.l.b16 %v2265
  %v2785 = vunpack.c.l.b16 %v2266
  %v2786 = vunpack.c.l.b16 %v2267
  %v2787 = vunpack.c.l.b16 %v2268
  %v2788 = vunpack.c.l.b16 %v2269
  %v2789 = vunpack.c.l.b16 %v2270
  %v2790 = vunpack.c.l.b16 %v2271
  %v2791 = vunpack.c.l.b16 %v2272
  %v2792 = vunpack.c.l.b16 %v2273
  %v2793 = vunpack.c.l.b16 %v2274
  %v2794 = vunpack.c.l.b16 %v2275
  %v2795 = vunpack.c.l.b16 %v2276
  %v2796 = vunpack.c.l.b16 %v2277
  %v2797 = vunpack.c.l.b16 %v2278
  %v2798 = vunpack.c.l.b16 %v2279
  %v2799 = vunpack.c.l.b16 %v2280
  %v2800 = vunpack.c.l.b16 %v2281
  %v2801 = vunpack.c.l.b16 %v2282
  %v2802 = vunpack.c.l.b16 %v2283
  %v2803 = vunpack.c.l.b16 %v2284
  %v2804 = vunpack.c.l.b16 %v2285
  %v2805 = vunpack.c.l.b16 %v2286
  %v2806 = vunpack.c.l.b16 %v2287
  %v2807 = vunpack.c.l.b16 %v2288
  %v2808 = vunpack.c.l.b16 %v2289
  %v2809 = vunpack.c.l.b16 %v2290
  %v2810 = vunpack.c.l.b16 %v2291
  %v2811 = vunpack.c.l.b16 %v2292
  %v2812 = vunpack.c.l.b16 %v2293
  %v2813 = vunpack.c.l.b16 %v2294
  %v2814 = vunpack.c.l.b16 %v2295
  %v2815 = vunpack.c.l.b16 %v2296
  %v2816 = vunpack.c.l.b16 %v2297
  %v2817 = vunpack.c.l.b16 %v2298
  %v2818 = vunpack.c.l.b16 %v2299
  %v2819 = vunpack.c.l.b16 %v2300
  %v2820 = vunpack.c.l.b16 %v2301
  %v2821 = vunpack.c.l.b16 %v2302
  %v2822 = vunpack.c.l.b16 %v2303
  %v2823 = vunpack.c.l.b16 %v2304
  %v2824 = vunpack.c.l.b16 %v2305
  %v2825 = vunpack.c.l.b16 %v2306
  %v2826 = vunpack.c.l.b16 %v2307
  %v2827 = vunpack.c.l.b16 %v2308
  %v2828 = vunpack.c.l.b16 %v2309
  %v2829 = vunpack.c.l.b16 %v2310
  %v2830 = vunpack.c.l.b16 %v2311
  %v2831 = vunpack.c.l.b16 %v2312
  %v2832 = vunpack.c.l.b16 %v2313
  %v2833 = vunpack.c.l.b16 %v2314
  %v2834 = vunpack.c.l.b16 %v2315
  %v2835 = vunpack.c.l.b16 %v2316
  %v2836 = vunpack.c.l.b16 %v2317
  %v2837 = vunpack.c.l.b16 %v2318
  %v2838 = vunpack.c.l.b16 %v2319
  %v2839 = vunpack.c.l.b16 %v2320
  %v2840 = vunpack.c.l.b16 %v2321
  %v2841 = vunpack.c.l.b16 %v2322
  %v2842 = vunpack.c.l.b16 %v2323
  %v2843 = vunpack.c.l.b16 %v2324
  %v2844 = vunpack.c.l.b16 %v2325
  %v2845 = vunpack.c.l.b16 %v2326
  %v2846 = vunpack.c.l.b16 %v2327
  %v2847 = vunpack.c.l.b16 %v2328
  %v2848 = vunpack.c.l.b16 %v2329
  %v2849 = vunpack.c.l.b16 %v2330
  %v2850 = vunpack.c.l.b16 %v2331
  %v2851 = vunpack.c.l.b16 %v2332
  %v2852 = vunpack.c.l.b16 %v2333
  %v2853 = vunpack.c.l.b16 %v2334
  %v2854 = vunpack.c.l.b16 %v2335
  %v2855 = vunpack.c.l.b16 %v2336
  %v2856 = vunpack.c.l.b16 %v2337
  %v2857 = vunpack.c.l.b16 %v2338
  %v2858 = vunpack.c.l.b16 %v2339
  %v2859 = vunpack.c.l.b16 %v2340
  %v2860 = vunpack.c.l.b16 %v2341
  %v2861 = vunpack.c.l.b16 %v2342
  %v2862 = vunpack.c.l.b16 %v2343
  %v2863 = vunpack.c.l.b16 %v2344
  %v2864 = vunpack.c.l.b16 %v2345
  %v2865 = vunpack.c.l.b16 %v2346
  %v2866 = vunpack.c.l.b16 %v2347
  %v2867 = vunpack.c.l.b16 %v2348
  %v2868 = vunpack.c.l.b16 %v2349
  %v2869 = vunpack.c.l.b16 %v2350
  %v2870 = vunpack.c.l.b16 %v2351
  %v2871 = vunpack.c.l.b16 %v2352
  %v2872 = vunpack.c.l.b16 %v2353
  %v2873 = vunpack.c.l.b16 %v2354
  %v2874 = vunpack.c.l.b16 %v2355
  %v2875 = vunpack.c.l.b16 %v2356
  %v2876 = vunpack.c.l.b16 %v2357
  %v2877 = vunpack.c.l.b16 %v2358
  %v2878 = vunpack.c.l.b16 %v2359
  %v2879 = vunpack.c.l.b16 %v2360
  %v2880 = vunpack.c.l.b16 %v2361
  %v2881 = vunpack.c.l.b16 %v2362
  %v2882 = vunpack.c.l.b16 %v2363
  %v2883 = vunpack.c.l.b16 %v2364
  %v2884 = vunpack.c.l.b16 %v2365
  %v2885 = vunpack.c.l.b16 %v2366
  %v2886 = vunpack.c.l.b16 %v2367
  %v2887 = vunpack.c.l.b16 %v2368
  %v2888 = vunpack.c.l.b16 %v2369
  %v2889 = vunpack.c.l.b16 %v2370
  %v2890 = vunpack.c.l.b16 %v2371
  %v2891 = vunpack.c.l.b16 %v2372
  %v2892 = vunpack.c.l.b16 %v2373
  %v2893 = vunpack.c.l.b16 %v2374
  %v2894 = vunpack.c.l.b16 %v2375
  %v2895 = vunpack.c.l.b16 %v2376
  %v2896 = vunpack.c.l.b16 %v2377
  %v2897 = vunpack.c.l.b16 %v2378
  %v2898 = vunpack.c.l.b16 %v2379
  %v2899 = vunpack.c.l.b16 %v2380
  %v2900 = vunpack.c.l.b16 %v2381
  %v2901 = vunpack.c.l.b16 %v2382
  %v2902 = vunpack.c.l.b16 %v2383
  %v2903 = vunpack.c.l.b16 %v2384
  %v2904 = vunpack.c.l.b16 %v2385
  %v2905 = vunpack.c.l.b16 %v2386
  %v2906 = vunpack.c.l.b16 %v2387
  %v2907 = vunpack.c.l.b16 %v2388
  %v2908 = vunpack.c.l.b16 %v2389
  %v2909 = vunpack.c.l.b16 %v2390
  %v2910 = vunpack.c.l.b16 %v2391
  %v2911 = vunpack.c.l.b16 %v2392
  %v2912 = vunpack.c.l.b16 %v2393
  %v2913 = vunpack.c.l.b16 %v2394
  %v2914 = vunpack.c.l.b16 %v2395
  %v2915 = vunpack.c.l.b16 %v2396
  %v2916 = vunpack.c.l.b16 %v2397
  %v2917 = vunpack.c.l.b16 %v2398
  %v2918 = vunpack.c.l.b16 %v2399
  %v2919 = vunpack.c.l.b16 %v2400
  %v2920 = vunpack.c.l.b16 %v2401
  %v2921 = vpack.c.b16 %v2666, %v2665
  %v2922 = vpack.c.b16 %v2668, %v2667
  %v2923 = vpack.c.b16 %v2670, %v2669
  %v2924 = vpack.c.b16 %v2672, %v2671
  %v2925 = vpack.c.b16 %v2674, %v2673
  %v2926 = vpack.c.b16 %v2676, %v2675
  %v2927 = vpack.c.b16 %v2678, %v2677
  %v2928 = vpack.c.b16 %v2680, %v2679
  %v2929 = vpack.c.b16 %v2682, %v2681
  %v2930 = vpack.c.b16 %v2684, %v2683
  %v2931 = vpack.c.b16 %v2686, %v2685
  %v2932 = vpack.c.b16 %v2688, %v2687
  %v2933 = vpack.c.b16 %v2690, %v2689
  %v2934 = vpack.c.b16 %v2692, %v2691
  %v2935 = vpack.c.b16 %v2694, %v2693
  %v2936 = vpack.c.b16 %v2696, %v2695
  %v2937 = vpack.c.b16 %v2698, %v2697
  %v2938 = vpack.c.b16 %v2700, %v2699
  %v2939 = vpack.c.b16 %v2702, %v2701
  %v2940 = vpack.c.b16 %v2704, %v2703
  %v2941 = vpack.c.b16 %v2706, %v2705
  %v2942 = vpack.c.b16 %v2708, %v2707
  %v2943 = vpack.c.b16 %v2710, %v2709
  %v2944 = vpack.c.b16 %v2712, %v2711
  %v2945 = vpack.c.b16 %v2714, %v2713
  %v2946 = vpack.c.b16 %v2716, %v2715
  %v2947 = vpack.c.b16 %v2718, %v2717
  %v2948 = vpack.c.b16 %v2720, %v2719
  %v2949 = vpack.c.b16 %v2722, %v2721
  %v2950 = vpack.c.b16 %v2724, %v2723
  %v2951 = vpack.c.b16 %v2726, %v2725
  %v2952 = vpack.c.b16 %v2728, %v2727
  %v2953 = vpack.c.b16 %v2730, %v2729
  %v2954 = vpack.c.b16 %v2732, %v2731
  %v2955 = vpack.c.b16 %v2734, %v2733
  %v2956 = vpack.c.b16 %v2736, %v2735
  %v2957 = vpack.c.b16 %v2738, %v2737
  %v2958 = vpack.c.b16 %v2740, %v2739
  %v2959 = vpack.c.b16 %v2742, %v2741
  %v2960 = vpack.c.b16 %v2744, %v2743
  %v2961 = vpack.c.b16 %v2746, %v2745
  %v2962 = vpack.c.b16 %v2748, %v2747
  %v2963 = vpack.c.b16 %v2750, %v2749
  %v2964 = vpack.c.b16 %v2752, %v2751
  %v2965 = vpack.c.b16 %v2754, %v2753
  %v2966 = vpack.c.b16 %v2756, %v2755
  %v2967 = vpack.c.b16 %v2758, %v2757
  %v2968 = vpack.c.b16 %v2760, %v2759
  %v2969 = vpack.c.b16 %v2762, %v2761
  %v2970 = vpack.c.b16 %v2764, %v2763
  %v2971 = vpack.c.b16 %v2766, %v2765
  %v2972 = vpack.c.b16 %v2768, %v2767
  %v2973 = vpack.c.b16 %v2770, %v2769
  %v2974 = vpack.c.b16 %v2772, %v2771
  %v2975 = vpack.c.b16 %v2774, %v2773
  %v2976 = vpack.c.b16 %v2776, %v2775
  %v2977 = vpack.c.b16 %v2778, %v2777
  %v2978 = vpack.c.b16 %v2780, %v2779
  %v2979 = vpack.c.b16 %v2782, %v2781
  %v2980 = vpack.c.b16 %v2784, %v2783
  %v2981 = vpack.c.b16 %v2786, %v2785
  %v2982 = vpack.c.b16 %v2788, %v2787
  %v2983 = vpack.c.b16 %v2790, %v2789
  %v2984 = vpack.c.b16 %v2792, %v2791
  %v2985 = vpack.c.b16 %v2794, %v2793
  %v2986 = vpack.c.b16 %v2796, %v2795
  %v2987 = vpack.c.b16 %v2798, %v2797
  %v2988 = vpack.c.b16 %v2800, %v2799
  %v2989 = vpack.c.b16 %v2802, %v2801
  %v2990 = vpack.c.b16 %v2804, %v2803
  %v2991 = vpack.c.b16 %v2806, %v2805
  %v2992 = vpack.c.b16 %v2808, %v2807
  %v2993 = vpack.c.b16 %v2810, %v2809
  %v2994 = vpack.c.b16 %v2812, %v2811
  %v2995 = vpack.c.b16 %v2814, %v2813
  %v2996 = vpack.c.b16 %v2816, %v2815
  %v2997 = vpack.c.b16 %v2818, %v2817
  %v2998 = vpack.c.b16 %v2820, %v2819
  %v2999 = vpack.c.b16 %v2822, %v2821
  %v3000 = vpack.c.b16 %v2824, %v2823
  %v3001 = vpack.c.b16 %v2826, %v2825
  %v3002 = vpack.c.b16 %v2828, %v2827
  %v3003 = vpack.c.b16 %v2830, %v2829
  %v3004 = vpack.c.b16 %v2832, %v2831
  %v3005 = vpack.c.b16 %v2834, %v2833
  %v3006 = vpack.c.b16 %v2836, %v2835
  %v3007 = vpack.c.b16 %v2838, %v2837
  %v3008 = vpack.c.b16 %v2840, %v2839
  %v3009 = vpack.c.b16 %v2842, %v2841
  %v3010 = vpack.c.b16 %v2844, %v2843
  %v3011 = vpack.c.b16 %v2846, %v2845
  %v3012 = vpack.c.b16 %v2848, %v2847
  %v3013 = vpack.c.b16 %v2850, %v2849
  %v3014 = vpack.c.b16 %v2852, %v2851
  %v3015 = vpack.c.b16 %v2854, %v2853
  %v3016 = vpack.c.b16 %v2856, %v2855
  %v3017 = vpack.c.b16 %v2858, %v2857
  %v3018 = vpack.c.b16 %v2860, %v2859
  %v3019 = vpack.c.b16 %v2862, %v2861
  %v3020 = vpack.c.b16 %v2864, %v2863
  %v3021 = vpack.c.b16 %v2866, %v2865
  %v3022 = vpack.c.b16 %v2868, %v2867
  %v3023 = vpack.c.b16 %v2870, %v2869
  %v3024 = vpack.c.b16 %v2872, %v2871
  %v3025 = vpack.c.b16 %v2874, %v2873
  %v3026 = vpack.c.b16 %v2876, %v2875
  %v3027 = vpack.c.b16 %v2878, %v2877
  %v3028 = vpack.c.b16 %v2880, %v2879
  %v3029 = vpack.c.b16 %v2882, %v2881
  %v3030 = vpack.c.b16 %v2884, %v2883
  %v3031 = vpack.c.b16 %v2886, %v2885
  %v3032 = vpack.c.b16 %v2888, %v2887
  %v3033 = vpack.c.b16 %v2890, %v2889
  %v3034 = vpack.c.b16 %v2892, %v2891
  %v3035 = vpack.c.b16 %v2894, %v2893
  %v3036 = vpack.c.b16 %v2896, %v2895
  %v3037 = vpack.c.b16 %v2898, %v2897
  %v3038 = vpack.c.b16 %v2900, %v2899
  %v3039 = vpack.c.b16 %v2902, %v2901
  %v3040 = vpack.c.b16 %v2904, %v2903
  %v3041 = vpack.c.b16 %v2906, %v2905
  %v3042 = vpack.c.b16 %v2908, %v2907
  %v3043 = vpack.c.b16 %v2910, %v2909
  %v3044 = vpack.c.b16 %v2912, %v2911
  %v3045 = vpack.c.b16 %v2914, %v2913
  %v3046 = vpack.c.b16 %v2916, %v2915
  %v3047 = vpack.c.b16 %v2918, %v2917
  %v3048 = vpack.c.b16 %v2920, %v2919
  %3177 = vmatprep.subr.bf16.mxu0 0
  %3178 = vmatpush1.bf16.msra.mxu0 %v2921
  %3179 = vmatprep.subr.bf16.mxu0 0
  %3180 = vmatpush1.bf16.msra.mxu0 %v2922
  %3181 = vmatprep.subr.bf16.mxu0 0
  %3182 = vmatpush1.bf16.msra.mxu0 %v2923
  %3183 = vmatprep.subr.bf16.mxu0 0
  %3184 = vmatpush1.bf16.msra.mxu0 %v2924
  %3185 = vmatprep.subr.bf16.mxu0 0
  %3186 = vmatpush1.bf16.msra.mxu0 %v2925
  %3187 = vmatprep.subr.bf16.mxu0 0
  %3188 = vmatpush1.bf16.msra.mxu0 %v2926
  %3189 = vmatprep.subr.bf16.mxu0 0
  %3190 = vmatpush1.bf16.msra.mxu0 %v2927
  %3191 = vmatprep.subr.bf16.mxu0 0
  %3192 = vmatpush1.bf16.msra.mxu0 %v2928
  %3193 = vmatprep.subr.bf16.mxu0 0
  %3194 = vmatpush1.bf16.msra.mxu0 %v2929
  %3195 = vmatprep.subr.bf16.mxu0 0
  %3196 = vmatpush1.bf16.msra.mxu0 %v2930
  %3197 = vmatprep.subr.bf16.mxu0 0
  %3198 = vmatpush1.bf16.msra.mxu0 %v2931
  %3199 = vmatprep.subr.bf16.mxu0 0
  %3200 = vmatpush1.bf16.msra.mxu0 %v2932
  %3201 = vmatprep.subr.bf16.mxu0 0
  %3202 = vmatpush1.bf16.msra.mxu0 %v2933
  %3203 = vmatprep.subr.bf16.mxu0 0
  %3204 = vmatpush1.bf16.msra.mxu0 %v2934
  %3205 = vmatprep.subr.bf16.mxu0 0
  %3206 = vmatpush1.bf16.msra.mxu0 %v2935
  %3207 = vmatprep.subr.bf16.mxu0 0
  %3208 = vmatpush1.bf16.msra.mxu0 %v2936
  %3209 = vmatprep.mubr.bf16.mxu0 %v2131
  %3210 = vmatmul.mubr.bf16.gmra.mrb[0].mxu0 %v2130
  %v3211 = vpop.f32.mrb[0].mxu0
  %v3212 = vadd.f32 %v2407, %v3211
  %v3213 = vpop.f32.mrb[0].mxu0
  %v3214 = vpop.f32.mrb[0].mxu0
  %v3215 = vadd.f32 %v2407, %v3214
  %v3216 = vpop.f32.mrb[0].mxu0
  %3217 = vdwg.mxu0
  %3218 = vmatprep.subr.bf16.mxu0 0
  %3219 = vmatpush1.bf16.msra.mxu0 %v2937
  %3220 = vmatprep.subr.bf16.mxu0 0
  %3221 = vmatpush1.bf16.msra.mxu0 %v2938
  %3222 = vmatprep.subr.bf16.mxu0 0
  %3223 = vmatpush1.bf16.msra.mxu0 %v2939
  %3224 = vmatprep.subr.bf16.mxu0 0
  %3225 = vmatpush1.bf16.msra.mxu0 %v2940
  %3226 = vmatprep.subr.bf16.mxu0 0
  %3227 = vmatpush1.bf16.msra.mxu0 %v2941
  %3228 = vmatprep.subr.bf16.mxu0 0
  %3229 = vmatpush1.bf16.msra.mxu0 %v2942
  %3230 = vmatprep.subr.bf16.mxu0 0
  %3231 = vmatpush1.bf16.msra.mxu0 %v2943
  %3232 = vmatprep.subr.bf16.mxu0 0
  %3233 = vmatpush1.bf16.msra.mxu0 %v2944
  %3234 = vmatprep.subr.bf16.mxu0 0
  %3235 = vmatpush1.bf16.msra.mxu0 %v2945
  %3236 = vmatprep.subr.bf16.mxu0 0
  %3237 = vmatpush1.bf16.msra.mxu0 %v2946
  %3238 = vmatprep.subr.bf16.mxu0 0
  %3239 = vmatpush1.bf16.msra.mxu0 %v2947
  %3240 = vmatprep.subr.bf16.mxu0 0
  %3241 = vmatpush1.bf16.msra.mxu0 %v2948
  %3242 = vmatprep.subr.bf16.mxu0 0
  %3243 = vmatpush1.bf16.msra.mxu0 %v2949
  %3244 = vmatprep.subr.bf16.mxu0 0
  %3245 = vmatpush1.bf16.msra.mxu0 %v2950
  %3246 = vmatprep.subr.bf16.mxu0 0
  %3247 = vmatpush1.bf16.msra.mxu0 %v2951
  %3248 = vmatprep.subr.bf16.mxu0 0
  %3249 = vmatpush1.bf16.msra.mxu0 %v2952
  %3250 = vmatprep.mubr.bf16.mxu0 %v2133
  %3251 = vmatmul.mubr.bf16.gmra.mrb[0].mxu0 %v2132
  %v3252 = vpop.f32.mrb[0].mxu0
  %v3253 = vadd.f32 %v3212, %v3252
  %v3254 = vpop.f32.mrb[0].mxu0
  %v3255 = vpop.f32.mrb[0].mxu0
  %v3256 = vadd.f32 %v3215, %v3255
  %v3257 = vpop.f32.mrb[0].mxu0
  %3258 = vdwg.mxu0
  %3259 = vmatprep.subr.bf16.mxu0 0
  %3260 = vmatpush1.bf16.msra.mxu0 %v2953
  %3261 = vmatprep.subr.bf16.mxu0 0
  %3262 = vmatpush1.bf16.msra.mxu0 %v2954
  %3263 = vmatprep.subr.bf16.mxu0 0
  %3264 = vmatpush1.bf16.msra.mxu0 %v2955
  %3265 = vmatprep.subr.bf16.mxu0 0
  %3266 = vmatpush1.bf16.msra.mxu0 %v2956
  %3267 = vmatprep.subr.bf16.mxu0 0
  %3268 = vmatpush1.bf16.msra.mxu0 %v2957
  %3269 = vmatprep.subr.bf16.mxu0 0
  %3270 = vmatpush1.bf16.msra.mxu0 %v2958
  %3271 = vmatprep.subr.bf16.mxu0 0
  %3272 = vmatpush1.bf16.msra.mxu0 %v2959
  %3273 = vmatprep.subr.bf16.mxu0 0
  %3274 = vmatpush1.bf16.msra.mxu0 %v2960
  %3275 = vmatprep.subr.bf16.mxu0 0
  %3276 = vmatpush1.bf16.msra.mxu0 %v2961
  %3277 = vmatprep.subr.bf16.mxu0 0
  %3278 = vmatpush1.bf16.msra.mxu0 %v2962
  %3279 = vmatprep.subr.bf16.mxu0 0
  %3280 = vmatpush1.bf16.msra.mxu0 %v2963
  %3281 = vmatprep.subr.bf16.mxu0 0
  %3282 = vmatpush1.bf16.msra.mxu0 %v2964
  %3283 = vmatprep.subr.bf16.mxu0 0
  %3284 = vmatpush1.bf16.msra.mxu0 %v2965
  %3285 = vmatprep.subr.bf16.mxu0 0
  %3286 = vmatpush1.bf16.msra.mxu0 %v2966
  %3287 = vmatprep.subr.bf16.mxu0 0
  %3288 = vmatpush1.bf16.msra.mxu0 %v2967
  %3289 = vmatprep.subr.bf16.mxu0 0
  %3290 = vmatpush1.bf16.msra.mxu0 %v2968
  %3291 = vmatprep.mubr.bf16.mxu0 %v2135
  %3292 = vmatmul.mubr.bf16.gmra.mrb[0].mxu0 %v2134
  %v3293 = vpop.f32.mrb[0].mxu0
  %v3294 = vadd.f32 %v3253, %v3293
  %v3295 = vpop.f32.mrb[0].mxu0
  %v3296 = vpop.f32.mrb[0].mxu0
  %v3297 = vadd.f32 %v3256, %v3296
  %v3298 = vpop.f32.mrb[0].mxu0
  %3299 = vdwg.mxu0
  %3300 = vmatprep.subr.bf16.mxu0 0
  %3301 = vmatpush1.bf16.msra.mxu0 %v2969
  %3302 = vmatprep.subr.bf16.mxu0 0
  %3303 = vmatpush1.bf16.msra.mxu0 %v2970
  %3304 = vmatprep.subr.bf16.mxu0 0
  %3305 = vmatpush1.bf16.msra.mxu0 %v2971
  %3306 = vmatprep.subr.bf16.mxu0 0
  %3307 = vmatpush1.bf16.msra.mxu0 %v2972
  %3308 = vmatprep.subr.bf16.mxu0 0
  %3309 = vmatpush1.bf16.msra.mxu0 %v2973
  %3310 = vmatprep.subr.bf16.mxu0 0
  %3311 = vmatpush1.bf16.msra.mxu0 %v2974
  %3312 = vmatprep.subr.bf16.mxu0 0
  %3313 = vmatpush1.bf16.msra.mxu0 %v2975
  %3314 = vmatprep.subr.bf16.mxu0 0
  %3315 = vmatpush1.bf16.msra.mxu0 %v2976
  %3316 = vmatprep.subr.bf16.mxu0 0
  %3317 = vmatpush1.bf16.msra.mxu0 %v2977
  %3318 = vmatprep.subr.bf16.mxu0 0
  %3319 = vmatpush1.bf16.msra.mxu0 %v2978
  %3320 = vmatprep.subr.bf16.mxu0 0
  %3321 = vmatpush1.bf16.msra.mxu0 %v2979
  %3322 = vmatprep.subr.bf16.mxu0 0
  %3323 = vmatpush1.bf16.msra.mxu0 %v2980
  %3324 = vmatprep.subr.bf16.mxu0 0
  %3325 = vmatpush1.bf16.msra.mxu0 %v2981
  %3326 = vmatprep.subr.bf16.mxu0 0
  %3327 = vmatpush1.bf16.msra.mxu0 %v2982
  %3328 = vmatprep.subr.bf16.mxu0 0
  %3329 = vmatpush1.bf16.msra.mxu0 %v2983
  %3330 = vmatprep.subr.bf16.mxu0 0
  %3331 = vmatpush1.bf16.msra.mxu0 %v2984
  %3332 = vmatprep.mubr.bf16.mxu0 %v2137
  %3333 = vmatmul.mubr.bf16.gmra.mrb[0].mxu0 %v2136
  %v3334 = vpop.f32.mrb[0].mxu0
  %v3335 = vadd.f32 %v3294, %v3334
  %v3336 = vpop.f32.mrb[0].mxu0
  %v3337 = vpop.f32.mrb[0].mxu0
  %v3338 = vadd.f32 %v3297, %v3337
  %v3339 = vpop.f32.mrb[0].mxu0
  %3340 = vdwg.mxu0
  %3341 = vmatprep.subr.bf16.mxu0 0
  %3342 = vmatpush1.bf16.msra.mxu0 %v2985
  %3343 = vmatprep.subr.bf16.mxu0 0
  %3344 = vmatpush1.bf16.msra.mxu0 %v2986
  %3345 = vmatprep.subr.bf16.mxu0 0
  %3346 = vmatpush1.bf16.msra.mxu0 %v2987
  %3347 = vmatprep.subr.bf16.mxu0 0
  %3348 = vmatpush1.bf16.msra.mxu0 %v2988
  %3349 = vmatprep.subr.bf16.mxu0 0
  %3350 = vmatpush1.bf16.msra.mxu0 %v2989
  %3351 = vmatprep.subr.bf16.mxu0 0
  %3352 = vmatpush1.bf16.msra.mxu0 %v2990
  %3353 = vmatprep.subr.bf16.mxu0 0
  %3354 = vmatpush1.bf16.msra.mxu0 %v2991
  %3355 = vmatprep.subr.bf16.mxu0 0
  %3356 = vmatpush1.bf16.msra.mxu0 %v2992
  %3357 = vmatprep.subr.bf16.mxu0 0
  %3358 = vmatpush1.bf16.msra.mxu0 %v2993
  %3359 = vmatprep.subr.bf16.mxu0 0
  %3360 = vmatpush1.bf16.msra.mxu0 %v2994
  %3361 = vmatprep.subr.bf16.mxu0 0
  %3362 = vmatpush1.bf16.msra.mxu0 %v2995
  %3363 = vmatprep.subr.bf16.mxu0 0
  %3364 = vmatpush1.bf16.msra.mxu0 %v2996
  %3365 = vmatprep.subr.bf16.mxu0 0
  %3366 = vmatpush1.bf16.msra.mxu0 %v2997
  %3367 = vmatprep.subr.bf16.mxu0 0
  %3368 = vmatpush1.bf16.msra.mxu0 %v2998
  %3369 = vmatprep.subr.bf16.mxu0 0
  %3370 = vmatpush1.bf16.msra.mxu0 %v2999
  %3371 = vmatprep.subr.bf16.mxu0 0
  %3372 = vmatpush1.bf16.msra.mxu0 %v3000
  %3373 = vmatprep.mubr.bf16.mxu0 %v2139
  %3374 = vmatmul.mubr.bf16.gmra.mrb[0].mxu0 %v2138
  %v3375 = vpop.f32.mrb[0].mxu0
  %v3376 = vadd.f32 %v3335, %v3375
  %v3377 = vpop.f32.mrb[0].mxu0
  %v3378 = vpop.f32.mrb[0].mxu0
  %v3379 = vadd.f32 %v3338, %v3378
  %v3380 = vpop.f32.mrb[0].mxu0
  %3381 = vdwg.mxu0
  %3382 = vmatprep.subr.bf16.mxu0 0
  %3383 = vmatpush1.bf16.msra.mxu0 %v3001
  %3384 = vmatprep.subr.bf16.mxu0 0
  %3385 = vmatpush1.bf16.msra.mxu0 %v3002
  %3386 = vmatprep.subr.bf16.mxu0 0
  %3387 = vmatpush1.bf16.msra.mxu0 %v3003
  %3388 = vmatprep.subr.bf16.mxu0 0
  %3389 = vmatpush1.bf16.msra.mxu0 %v3004
  %3390 = vmatprep.subr.bf16.mxu0 0
  %3391 = vmatpush1.bf16.msra.mxu0 %v3005
  %3392 = vmatprep.subr.bf16.mxu0 0
  %3393 = vmatpush1.bf16.msra.mxu0 %v3006
  %3394 = vmatprep.subr.bf16.mxu0 0
  %3395 = vmatpush1.bf16.msra.mxu0 %v3007
  %3396 = vmatprep.subr.bf16.mxu0 0
  %3397 = vmatpush1.bf16.msra.mxu0 %v3008
  %3398 = vmatprep.subr.bf16.mxu0 0
  %3399 = vmatpush1.bf16.msra.mxu0 %v3009
  %3400 = vmatprep.subr.bf16.mxu0 0
  %3401 = vmatpush1.bf16.msra.mxu0 %v3010
  %3402 = vmatprep.subr.bf16.mxu0 0
  %3403 = vmatpush1.bf16.msra.mxu0 %v3011
  %3404 = vmatprep.subr.bf16.mxu0 0
  %3405 = vmatpush1.bf16.msra.mxu0 %v3012
  %3406 = vmatprep.subr.bf16.mxu0 0
  %3407 = vmatpush1.bf16.msra.mxu0 %v3013
  %3408 = vmatprep.subr.bf16.mxu0 0
  %3409 = vmatpush1.bf16.msra.mxu0 %v3014
  %3410 = vmatprep.subr.bf16.mxu0 0
  %3411 = vmatpush1.bf16.msra.mxu0 %v3015
  %3412 = vmatprep.subr.bf16.mxu0 0
  %3413 = vmatpush1.bf16.msra.mxu0 %v3016
  %3414 = vmatprep.mubr.bf16.mxu0 %v2141
  %3415 = vmatmul.mubr.bf16.gmra.mrb[0].mxu0 %v2140
  %v3416 = vpop.f32.mrb[0].mxu0
  %v3417 = vadd.f32 %v3376, %v3416
  %v3418 = vpop.f32.mrb[0].mxu0
  %v3419 = vpop.f32.mrb[0].mxu0
  %v3420 = vadd.f32 %v3379, %v3419
  %v3421 = vpop.f32.mrb[0].mxu0
  %3422 = vdwg.mxu0
  %3423 = vmatprep.subr.bf16.mxu0 0
  %3424 = vmatpush1.bf16.msra.mxu0 %v3017
  %3425 = vmatprep.subr.bf16.mxu0 0
  %3426 = vmatpush1.bf16.msra.mxu0 %v3018
  %3427 = vmatprep.subr.bf16.mxu0 0
  %3428 = vmatpush1.bf16.msra.mxu0 %v3019
  %3429 = vmatprep.subr.bf16.mxu0 0
  %3430 = vmatpush1.bf16.msra.mxu0 %v3020
  %3431 = vmatprep.subr.bf16.mxu0 0
  %3432 = vmatpush1.bf16.msra.mxu0 %v3021
  %3433 = vmatprep.subr.bf16.mxu0 0
  %3434 = vmatpush1.bf16.msra.mxu0 %v3022
  %3435 = vmatprep.subr.bf16.mxu0 0
  %3436 = vmatpush1.bf16.msra.mxu0 %v3023
  %3437 = vmatprep.subr.bf16.mxu0 0
  %3438 = vmatpush1.bf16.msra.mxu0 %v3024
  %3439 = vmatprep.subr.bf16.mxu0 0
  %3440 = vmatpush1.bf16.msra.mxu0 %v3025
  %3441 = vmatprep.subr.bf16.mxu0 0
  %3442 = vmatpush1.bf16.msra.mxu0 %v3026
  %3443 = vmatprep.subr.bf16.mxu0 0
  %3444 = vmatpush1.bf16.msra.mxu0 %v3027
  %3445 = vmatprep.subr.bf16.mxu0 0
  %3446 = vmatpush1.bf16.msra.mxu0 %v3028
  %3447 = vmatprep.subr.bf16.mxu0 0
  %3448 = vmatpush1.bf16.msra.mxu0 %v3029
  %3449 = vmatprep.subr.bf16.mxu0 0
  %3450 = vmatpush1.bf16.msra.mxu0 %v3030
  %3451 = vmatprep.subr.bf16.mxu0 0
  %3452 = vmatpush1.bf16.msra.mxu0 %v3031
  %3453 = vmatprep.subr.bf16.mxu0 0
  %3454 = vmatpush1.bf16.msra.mxu0 %v3032
  %3455 = vmatprep.mubr.bf16.mxu0 %v2143
  %3456 = vmatmul.mubr.bf16.gmra.mrb[0].mxu0 %v2142
  %v3457 = vpop.f32.mrb[0].mxu0
  %v3458 = vadd.f32 %v3417, %v3457
  %v3459 = vpop.f32.mrb[0].mxu0
  %v3460 = vpop.f32.mrb[0].mxu0
  %v3461 = vadd.f32 %v3420, %v3460
  %v3462 = vpop.f32.mrb[0].mxu0
  %3463 = vdwg.mxu0
  %3464 = vmatprep.subr.bf16.mxu0 0
  %3465 = vmatpush1.bf16.msra.mxu0 %v3033
  %3466 = vmatprep.subr.bf16.mxu0 0
  %3467 = vmatpush1.bf16.msra.mxu0 %v3034
  %3468 = vmatprep.subr.bf16.mxu0 0
  %3469 = vmatpush1.bf16.msra.mxu0 %v3035
  %3470 = vmatprep.subr.bf16.mxu0 0
  %3471 = vmatpush1.bf16.msra.mxu0 %v3036
  %3472 = vmatprep.subr.bf16.mxu0 0
  %3473 = vmatpush1.bf16.msra.mxu0 %v3037
  %3474 = vmatprep.subr.bf16.mxu0 0
  %3475 = vmatpush1.bf16.msra.mxu0 %v3038
  %3476 = vmatprep.subr.bf16.mxu0 0
  %3477 = vmatpush1.bf16.msra.mxu0 %v3039
  %3478 = vmatprep.subr.bf16.mxu0 0
  %3479 = vmatpush1.bf16.msra.mxu0 %v3040
  %3480 = vmatprep.subr.bf16.mxu0 0
  %3481 = vmatpush1.bf16.msra.mxu0 %v3041
  %3482 = vmatprep.subr.bf16.mxu0 0
  %3483 = vmatpush1.bf16.msra.mxu0 %v3042
  %3484 = vmatprep.subr.bf16.mxu0 0
  %3485 = vmatpush1.bf16.msra.mxu0 %v3043
  %3486 = vmatprep.subr.bf16.mxu0 0
  %3487 = vmatpush1.bf16.msra.mxu0 %v3044
  %3488 = vmatprep.subr.bf16.mxu0 0
  %3489 = vmatpush1.bf16.msra.mxu0 %v3045
  %3490 = vmatprep.subr.bf16.mxu0 0
  %3491 = vmatpush1.bf16.msra.mxu0 %v3046
  %3492 = vmatprep.subr.bf16.mxu0 0
  %3493 = vmatpush1.bf16.msra.mxu0 %v3047
  %3494 = vmatprep.subr.bf16.mxu0 0
  %3495 = vmatpush1.bf16.msra.mxu0 %v3048
  %3496 = vmatprep.mubr.bf16.mxu0 %v2145
  %3497 = vmatmul.mubr.bf16.gmra.mrb[0].mxu0 %v2144
  %v3498 = vpop.f32.mrb[0].mxu0
  %v3499 = vadd.f32 %v3458, %v3498
  %v3500 = vpop.f32.mrb[0].mxu0
  %v3501 = vpop.f32.mrb[0].mxu0
  %v3502 = vadd.f32 %v3461, %v3501
  %v3503 = vpop.f32.mrb[0].mxu0
  %3504 = vdwg.mxu0
  %v3505 = vadd.f32 %v1472, %v3499
  %v3506 = vadd.f32 %v1473, %v3502
  %v3507 = vsel %vm188, %v3505, 0.0
  %3508 = vadd.xlane.f32.xlu0 %v3507
  %v3509 = vpop.xlane.xlu0 %3508
  %v3510 = vsel %vm188, %v3506, 0.0
  %3511 = vadd.xlane.f32.xlu0 %v3510
  %v3512 = vpop.xlane.xlu0 %3511
  %v3513 = vmul.f32 %v3509, %v1435
  %v3514 = vmul.f32 %v3512, %v1435
  %v3515 = vsub.f32 %v3505, %v3513
  %v3516 = vsub.f32 %v3506, %v3514
  %v3517 = vmul.f32 %v3515, %v3515
  %v3518 = vmul.f32 %v3516, %v3516
  %v3519 = vsel %vm188, %v3517, 0.0
  %3520 = vadd.xlane.f32.xlu0 %v3519
  %v3521 = vpop.xlane.xlu0 %3520
  %v3522 = vsel %vm188, %v3518, 0.0
  %3523 = vadd.xlane.f32.xlu0 %v3522
  %v3524 = vpop.xlane.xlu0 %3523
  %v3525 = vmul.f32 %v3521, %v1435
  %v3526 = vmul.f32 %v3524, %v1435
  %v3527 = vadd.f32 %v3525, 1e-05
  %v3528 = vadd.f32 %v3526, 1e-05
  %v3529 = vrsqrt.pop %v3527
  %v3530 = vrsqrt.pop %v3528
  %v3531 = vmul.f32 %v3515, %v3529
  %v3532 = vmul.f32 %v3516, %v3530
  %v3533 = vld [vmem:[%s27] sm:$0x1]
  %v3535 = vlaneseq
  %v3536 = vshrl.u32 %v3535, 7
  %v3537 = vsub.s32 0, %v3536
  %v3538 = vrot.slane %v3533, %v3537
  %v3540 = vmul.f32 %v3531, %v3538
  %v3541 = vmul.f32 %v3532, %v3538
  %v3542 = vld [vmem:[%s29] sm:$0x1]
  %v3544 = vlaneseq
  %v3545 = vshrl.u32 %v3544, 7
  %v3546 = vsub.s32 0, %v3545
  %v3547 = vrot.slane %v3542, %v3546
  %v3549 = vadd.f32 %v3540, %v3547
  %v3550 = vadd.f32 %v3541, %v3547
  %v3551 = vld [vmem:[%s3] sm:$0xff]
  %v3552 = vld [vmem:[%s3 + $0x8] sm:$0xff]
  %v3553 = vld [vmem:[%s31] sm:$0xff]
  %v3554 = vld [vmem:[%s31 + $0x8] sm:$0xff]
  %v3555 = vld [vmem:[%s31 + $0x10] sm:$0xff]
  %v3556 = vld [vmem:[%s31 + $0x18] sm:$0xff]
  %v3557 = vld [vmem:[%s33] sm:$0x1]
  %v3559 = vlaneseq
  %v3560 = vshrl.u32 %v3559, 7
  %v3561 = vsub.s32 0, %v3560
  %v3562 = vrot.slane %v3557, %v3561
  %v3565 = vsel %vm188, %v3551, 0
  %v3568 = vsel %vm188, %v3552, 0
  %3570 = vmatprep.subr.mxu0 0.0
  %3571 = vmatpush1.msra.mxu0 %v3553
  %3572 = vmatprep.subr.mxu0 0.0
  %3573 = vmatpush1.msra.mxu0 %v3554
  %3574 = vmatprep.subr.mxu0 0.0
  %3575 = vmatpush1.msra.mxu0 %v3555
  %3576 = vmatprep.subr.mxu0 0.0
  %3577 = vmatpush1.msra.mxu0 %v3556
  %3578 = vmatprep.subr.mxu0 0.0
  %3579 = vmatpush1.msra.mxu0 0.0
  %3580 = vmatprep.subr.mxu0 0.0
  %3581 = vmatpush1.msra.mxu0 0.0
  %3582 = vmatprep.subr.mxu0 0.0
  %3583 = vmatpush1.msra.mxu0 0.0
  %3584 = vmatprep.subr.mxu0 0.0
  %3585 = vmatpush1.msra.mxu0 0.0
  %3586 = vmatprep.subr.mxu0 0.0
  %3587 = vmatpush1.msra.mxu0 0.0
  %3588 = vmatprep.subr.mxu0 0.0
  %3589 = vmatpush1.msra.mxu0 0.0
  %3590 = vmatprep.subr.mxu0 0.0
  %3591 = vmatpush1.msra.mxu0 0.0
  %3592 = vmatprep.subr.mxu0 0.0
  %3593 = vmatpush1.msra.mxu0 0.0
  %3594 = vmatprep.subr.mxu0 0.0
  %3595 = vmatpush1.msra.mxu0 0.0
  %3596 = vmatprep.subr.mxu0 0.0
  %3597 = vmatpush1.msra.mxu0 0.0
  %3598 = vmatprep.subr.mxu0 0.0
  %3599 = vmatpush1.msra.mxu0 0.0
  %3600 = vmatprep.subr.mxu0 0.0
  %3601 = vmatpush1.msra.mxu0 0.0
  %3602 = vmatprep.subr.mxu0 0.0
  %3603 = vmatpush1.msra.mxu0 0.0
  %3604 = vmatprep.subr.mxu0 0.0
  %3605 = vmatpush1.msra.mxu0 0.0
  %3606 = vmatprep.subr.mxu0 0.0
  %3607 = vmatpush1.msra.mxu0 0.0
  %3608 = vmatprep.subr.mxu0 0.0
  %3609 = vmatpush1.msra.mxu0 0.0
  %3610 = vmatprep.subr.mxu0 0.0
  %3611 = vmatpush1.msra.mxu0 0.0
  %3612 = vmatprep.subr.mxu0 0.0
  %3613 = vmatpush1.msra.mxu0 0.0
  %3614 = vmatprep.subr.mxu0 0.0
  %3615 = vmatpush1.msra.mxu0 0.0
  %3616 = vmatprep.subr.mxu0 0.0
  %3617 = vmatpush1.msra.mxu0 0.0
  %3618 = vmatprep.subr.mxu0 0.0
  %3619 = vmatpush1.msra.mxu0 0.0
  %3620 = vmatprep.subr.mxu0 0.0
  %3621 = vmatpush1.msra.mxu0 0.0
  %3622 = vmatprep.subr.mxu0 0.0
  %3623 = vmatpush1.msra.mxu0 0.0
  %3624 = vmatprep.subr.mxu0 0.0
  %3625 = vmatpush1.msra.mxu0 0.0
  %3626 = vmatprep.subr.mxu0 0.0
  %3627 = vmatpush1.msra.mxu0 0.0
  %3628 = vmatprep.subr.mxu0 0.0
  %3629 = vmatpush1.msra.mxu0 0.0
  %3630 = vmatprep.subr.mxu0 0.0
  %3631 = vmatpush1.msra.mxu0 0.0
  %3632 = vmatprep.subr.mxu0 0.0
  %3633 = vmatpush1.msra.mxu0 0.0
  %3634 = vmatprep.mubr.f32.mxu0 0.0
  %3635 = vmatmul.mubr.f32.gmra.mrb[0].mxu0 %v3565
  %v3636 = vpop.f32.mrb[0].mxu0
  %v3637 = vadd.f32 %v3562, %v3636
  %v3638 = vpop.f32.mrb[0].mxu0
  %3639 = vmatprep.mubr.f32.mxu0 0.0
  %3640 = vmatmul.mubr.f32.gmra.mrb[0].mxu0 %v3568
  %v3641 = vpop.f32.mrb[0].mxu0
  %v3642 = vadd.f32 %v3562, %v3641
  %v3643 = vpop.f32.mrb[0].mxu0
  %3644 = vdwg.mxu0
  %v3645 = vld [vmem:[%s35] sm:$0xff]
  %v3646 = vld [vmem:[%s35 + $0x8] sm:$0xff]
  %v3647 = vld [vmem:[%s35 + $0x10] sm:$0xff]
  %v3648 = vld [vmem:[%s35 + $0x18] sm:$0xff]
  %3651 = vrot.lane.b32.xlu0 %v3637, 96
  %v3652 = vpop.permute.xlu0 %3651
  %3653 = vrot.lane.b32.xlu0 %v3642, 96
  %v3654 = vpop.permute.xlu0 %3653
  %v3655 = vsel %vm280, %v3637, 0
  %v3657 = vsel %vm280, %v3642, 0
  %v3659 = vsel %vm280, %v3652, 0
  %v3661 = vsel %vm280, %v3654, 0
  %3663 = vmatprep.subr.mxu0 0.0
  %3664 = vmatpush1.xpose.msra.mxu0 %v3659
  %3665 = vmatprep.subr.mxu0 0.0
  %3666 = vmatpush1.xpose.msra.mxu0 %v3661
  %3667 = vmatprep.subr.mxu0 0.0
  %3668 = vmatpush1.xpose.msra.mxu0 0.0
  %3669 = vmatprep.subr.mxu0 0.0
  %3670 = vmatpush1.xpose.msra.mxu0 0.0
  %3671 = vmatprep.subr.mxu0 0.0
  %3672 = vmatpush1.xpose.msra.mxu0 0.0
  %3673 = vmatprep.subr.mxu0 0.0
  %3674 = vmatpush1.xpose.msra.mxu0 0.0
  %3675 = vmatprep.subr.mxu0 0.0
  %3676 = vmatpush1.xpose.msra.mxu0 0.0
  %3677 = vmatprep.subr.mxu0 0.0
  %3678 = vmatpush1.xpose.msra.mxu0 0.0
  %3679 = vmatprep.subr.mxu0 0.0
  %3680 = vmatpush1.xpose.msra.mxu0 0.0
  %3681 = vmatprep.subr.mxu0 0.0
  %3682 = vmatpush1.xpose.msra.mxu0 0.0
  %3683 = vmatprep.subr.mxu0 0.0
  %3684 = vmatpush1.xpose.msra.mxu0 0.0
  %3685 = vmatprep.subr.mxu0 0.0
  %3686 = vmatpush1.xpose.msra.mxu0 0.0
  %3687 = vmatprep.subr.mxu0 0.0
  %3688 = vmatpush1.xpose.msra.mxu0 0.0
  %3689 = vmatprep.subr.mxu0 0.0
  %3690 = vmatpush1.xpose.msra.mxu0 0.0
  %3691 = vmatprep.subr.mxu0 0.0
  %3692 = vmatpush1.xpose.msra.mxu0 0.0
  %3693 = vmatprep.subr.mxu0 0.0
  %3694 = vmatpush1.xpose.msra.mxu0 0.0
  %3695 = vmatprep.subr.mxu0 0.0
  %3696 = vmatpush1.xpose.msra.mxu0 0.0
  %3697 = vmatprep.subr.mxu0 0.0
  %3698 = vmatpush1.xpose.msra.mxu0 0.0
  %3699 = vmatprep.subr.mxu0 0.0
  %3700 = vmatpush1.xpose.msra.mxu0 0.0
  %3701 = vmatprep.subr.mxu0 0.0
  %3702 = vmatpush1.xpose.msra.mxu0 0.0
  %3703 = vmatprep.subr.mxu0 0.0
  %3704 = vmatpush1.xpose.msra.mxu0 0.0
  %3705 = vmatprep.subr.mxu0 0.0
  %3706 = vmatpush1.xpose.msra.mxu0 0.0
  %3707 = vmatprep.subr.mxu0 0.0
  %3708 = vmatpush1.xpose.msra.mxu0 0.0
  %3709 = vmatprep.subr.mxu0 0.0
  %3710 = vmatpush1.xpose.msra.mxu0 0.0
  %3711 = vmatprep.subr.mxu0 0.0
  %3712 = vmatpush1.xpose.msra.mxu0 0.0
  %3713 = vmatprep.subr.mxu0 0.0
  %3714 = vmatpush1.xpose.msra.mxu0 0.0
  %3715 = vmatprep.subr.mxu0 0.0
  %3716 = vmatpush1.xpose.msra.mxu0 0.0
  %3717 = vmatprep.subr.mxu0 0.0
  %3718 = vmatpush1.xpose.msra.mxu0 0.0
  %3719 = vmatprep.subr.mxu0 0.0
  %3720 = vmatpush1.xpose.msra.mxu0 0.0
  %3721 = vmatprep.subr.mxu0 0.0
  %3722 = vmatpush1.xpose.msra.mxu0 0.0
  %3723 = vmatprep.subr.mxu0 0.0
  %3724 = vmatpush1.xpose.msra.mxu0 0.0
  %3725 = vmatprep.subr.mxu0 0.0
  %3726 = vmatpush1.xpose.msra.mxu0 0.0
  %3727 = vmatprep.mubr.f32.mxu0 0.0
  %3728 = vmatmul.mubr.f32.gmra.mrb[0].mxu0 %v3655
  %v3729 = vpop.f32.mrb[0].mxu0
  %v3730 = vadd.f32 0.0, %v3729
  %v3731 = vpop.f32.mrb[0].mxu0
  %3732 = vmatprep.mubr.f32.mxu0 0.0
  %3733 = vmatmul.mubr.f32.gmra.mrb[0].mxu0 %v3657
  %v3734 = vpop.f32.mrb[0].mxu0
  %v3735 = vadd.f32 0.0, %v3734
  %v3736 = vpop.f32.mrb[0].mxu0
  %3737 = vdwg.mxu0
  %v3738 = vmul.f32 %v3730, 0.35355338
  %v3739 = vmul.f32 %v3735, 0.35355338
  %v3740 = vadd.f32 %v3738, %v173
  %v3741 = vadd.f32 %v3739, %v174
  %v3742 = vsel %vm368, %v3740, -inf
  %3743 = vmax.xlane.f32.xlu0 %v3742
  %v3744 = vpop.xlane.xlu0 %3743
  %v3745 = vsel %vm368, %v3741, -inf
  %3746 = vmax.xlane.f32.xlu0 %v3745
  %v3747 = vpop.xlane.xlu0 %3746
  %v3748 = vsub.f32 %v3740, %v3744
  %v3749 = vsub.f32 %v3741, %v3747
  %v3750 = vmul.f32 %v3748, 1.442695
  %v3751 = vpow.pop %v3750
  %v3752 = vmul.f32 %v3749, 1.442695
  %v3753 = vpow.pop %v3752
  %v3754 = vsel %vm368, %v3751, 0.0
  %3755 = vadd.xlane.f32.xlu0 %v3754
  %v3756 = vpop.xlane.xlu0 %3755
  %v3757 = vsel %vm368, %v3753, 0.0
  %3758 = vadd.xlane.f32.xlu0 %v3757
  %v3759 = vpop.xlane.xlu0 %3758
  %v3760 = vrcp.pop %v3756
  %v3761 = vmul.f32 %v3751, %v3760
  %v3762 = vrcp.pop %v3759
  %v3763 = vmul.f32 %v3753, %v3762
  %3764 = vrot.lane.b32.xlu0 %v3637, 64
  %v3765 = vpop.permute.xlu0 %3764
  %3766 = vrot.lane.b32.xlu0 %v3642, 64
  %v3767 = vpop.permute.xlu0 %3766
  %v3771 = vsel %vm368, %v3761, 0
  %v3774 = vsel %vm368, %v3763, 0
  %3776 = vmatprep.subr.mxu0 0.0
  %3777 = vmatpush1.msra.mxu0 %v3765
  %3778 = vmatprep.subr.mxu0 0.0
  %3779 = vmatpush1.msra.mxu0 %v3767
  %3780 = vmatprep.subr.mxu0 0.0
  %3781 = vmatpush1.msra.mxu0 0.0
  %3782 = vmatprep.subr.mxu0 0.0
  %3783 = vmatpush1.msra.mxu0 0.0
  %3784 = vmatprep.subr.mxu0 0.0
  %3785 = vmatpush1.msra.mxu0 0.0
  %3786 = vmatprep.subr.mxu0 0.0
  %3787 = vmatpush1.msra.mxu0 0.0
  %3788 = vmatprep.subr.mxu0 0.0
  %3789 = vmatpush1.msra.mxu0 0.0
  %3790 = vmatprep.subr.mxu0 0.0
  %3791 = vmatpush1.msra.mxu0 0.0
  %3792 = vmatprep.subr.mxu0 0.0
  %3793 = vmatpush1.msra.mxu0 0.0
  %3794 = vmatprep.subr.mxu0 0.0
  %3795 = vmatpush1.msra.mxu0 0.0
  %3796 = vmatprep.subr.mxu0 0.0
  %3797 = vmatpush1.msra.mxu0 0.0
  %3798 = vmatprep.subr.mxu0 0.0
  %3799 = vmatpush1.msra.mxu0 0.0
  %3800 = vmatprep.subr.mxu0 0.0
  %3801 = vmatpush1.msra.mxu0 0.0
  %3802 = vmatprep.subr.mxu0 0.0
  %3803 = vmatpush1.msra.mxu0 0.0
  %3804 = vmatprep.subr.mxu0 0.0
  %3805 = vmatpush1.msra.mxu0 0.0
  %3806 = vmatprep.subr.mxu0 0.0
  %3807 = vmatpush1.msra.mxu0 0.0
  %3808 = vmatprep.subr.mxu0 0.0
  %3809 = vmatpush1.msra.mxu0 0.0
  %3810 = vmatprep.subr.mxu0 0.0
  %3811 = vmatpush1.msra.mxu0 0.0
  %3812 = vmatprep.subr.mxu0 0.0
  %3813 = vmatpush1.msra.mxu0 0.0
  %3814 = vmatprep.subr.mxu0 0.0
  %3815 = vmatpush1.msra.mxu0 0.0
  %3816 = vmatprep.subr.mxu0 0.0
  %3817 = vmatpush1.msra.mxu0 0.0
  %3818 = vmatprep.subr.mxu0 0.0
  %3819 = vmatpush1.msra.mxu0 0.0
  %3820 = vmatprep.subr.mxu0 0.0
  %3821 = vmatpush1.msra.mxu0 0.0
  %3822 = vmatprep.subr.mxu0 0.0
  %3823 = vmatpush1.msra.mxu0 0.0
  %3824 = vmatprep.subr.mxu0 0.0
  %3825 = vmatpush1.msra.mxu0 0.0
  %3826 = vmatprep.subr.mxu0 0.0
  %3827 = vmatpush1.msra.mxu0 0.0
  %3828 = vmatprep.subr.mxu0 0.0
  %3829 = vmatpush1.msra.mxu0 0.0
  %3830 = vmatprep.subr.mxu0 0.0
  %3831 = vmatpush1.msra.mxu0 0.0
  %3832 = vmatprep.subr.mxu0 0.0
  %3833 = vmatpush1.msra.mxu0 0.0
  %3834 = vmatprep.subr.mxu0 0.0
  %3835 = vmatpush1.msra.mxu0 0.0
  %3836 = vmatprep.subr.mxu0 0.0
  %3837 = vmatpush1.msra.mxu0 0.0
  %3838 = vmatprep.subr.mxu0 0.0
  %3839 = vmatpush1.msra.mxu0 0.0
  %3840 = vmatprep.mubr.f32.mxu0 0.0
  %3841 = vmatmul.mubr.f32.gmra.mrb[0].mxu0 %v3771
  %v3842 = vpop.f32.mrb[0].mxu0
  %v3843 = vadd.f32 0.0, %v3842
  %v3844 = vpop.f32.mrb[0].mxu0
  %3845 = vmatprep.mubr.f32.mxu0 0.0
  %3846 = vmatmul.mubr.f32.gmra.mrb[0].mxu0 %v3774
  %v3847 = vpop.f32.mrb[0].mxu0
  %v3848 = vadd.f32 0.0, %v3847
  %v3849 = vpop.f32.mrb[0].mxu0
  %3850 = vdwg.mxu0
  %3851 = vrot.lane.b32.xlu0 %v3637, 120
  %v3852 = vpop.permute.xlu0 %3851
  %3853 = vrot.lane.b32.xlu0 %v3642, 120
  %v3854 = vpop.permute.xlu0 %3853
  %3855 = vrot.lane.b32.xlu0 %v3637, 88
  %v3856 = vpop.permute.xlu0 %3855
  %3857 = vrot.lane.b32.xlu0 %v3642, 88
  %v3858 = vpop.permute.xlu0 %3857
  %v3859 = vsel %vm280, %v3852, 0
  %v3861 = vsel %vm280, %v3854, 0
  %v3863 = vsel %vm280, %v3856, 0
  %v3865 = vsel %vm280, %v3858, 0
  %3867 = vmatprep.subr.mxu0 0.0
  %3868 = vmatpush1.xpose.msra.mxu0 %v3863
  %3869 = vmatprep.subr.mxu0 0.0
  %3870 = vmatpush1.xpose.msra.mxu0 %v3865
  %3871 = vmatprep.subr.mxu0 0.0
  %3872 = vmatpush1.xpose.msra.mxu0 0.0
  %3873 = vmatprep.subr.mxu0 0.0
  %3874 = vmatpush1.xpose.msra.mxu0 0.0
  %3875 = vmatprep.subr.mxu0 0.0
  %3876 = vmatpush1.xpose.msra.mxu0 0.0
  %3877 = vmatprep.subr.mxu0 0.0
  %3878 = vmatpush1.xpose.msra.mxu0 0.0
  %3879 = vmatprep.subr.mxu0 0.0
  %3880 = vmatpush1.xpose.msra.mxu0 0.0
  %3881 = vmatprep.subr.mxu0 0.0
  %3882 = vmatpush1.xpose.msra.mxu0 0.0
  %3883 = vmatprep.subr.mxu0 0.0
  %3884 = vmatpush1.xpose.msra.mxu0 0.0
  %3885 = vmatprep.subr.mxu0 0.0
  %3886 = vmatpush1.xpose.msra.mxu0 0.0
  %3887 = vmatprep.subr.mxu0 0.0
  %3888 = vmatpush1.xpose.msra.mxu0 0.0
  %3889 = vmatprep.subr.mxu0 0.0
  %3890 = vmatpush1.xpose.msra.mxu0 0.0
  %3891 = vmatprep.subr.mxu0 0.0
  %3892 = vmatpush1.xpose.msra.mxu0 0.0
  %3893 = vmatprep.subr.mxu0 0.0
  %3894 = vmatpush1.xpose.msra.mxu0 0.0
  %3895 = vmatprep.subr.mxu0 0.0
  %3896 = vmatpush1.xpose.msra.mxu0 0.0
  %3897 = vmatprep.subr.mxu0 0.0
  %3898 = vmatpush1.xpose.msra.mxu0 0.0
  %3899 = vmatprep.subr.mxu0 0.0
  %3900 = vmatpush1.xpose.msra.mxu0 0.0
  %3901 = vmatprep.subr.mxu0 0.0
  %3902 = vmatpush1.xpose.msra.mxu0 0.0
  %3903 = vmatprep.subr.mxu0 0.0
  %3904 = vmatpush1.xpose.msra.mxu0 0.0
  %3905 = vmatprep.subr.mxu0 0.0
  %3906 = vmatpush1.xpose.msra.mxu0 0.0
  %3907 = vmatprep.subr.mxu0 0.0
  %3908 = vmatpush1.xpose.msra.mxu0 0.0
  %3909 = vmatprep.subr.mxu0 0.0
  %3910 = vmatpush1.xpose.msra.mxu0 0.0
  %3911 = vmatprep.subr.mxu0 0.0
  %3912 = vmatpush1.xpose.msra.mxu0 0.0
  %3913 = vmatprep.subr.mxu0 0.0
  %3914 = vmatpush1.xpose.msra.mxu0 0.0
  %3915 = vmatprep.subr.mxu0 0.0
  %3916 = vmatpush1.xpose.msra.mxu0 0.0
  %3917 = vmatprep.subr.mxu0 0.0
  %3918 = vmatpush1.xpose.msra.mxu0 0.0
  %3919 = vmatprep.subr.mxu0 0.0
  %3920 = vmatpush1.xpose.msra.mxu0 0.0
  %3921 = vmatprep.subr.mxu0 0.0
  %3922 = vmatpush1.xpose.msra.mxu0 0.0
  %3923 = vmatprep.subr.mxu0 0.0
  %3924 = vmatpush1.xpose.msra.mxu0 0.0
  %3925 = vmatprep.subr.mxu0 0.0
  %3926 = vmatpush1.xpose.msra.mxu0 0.0
  %3927 = vmatprep.subr.mxu0 0.0
  %3928 = vmatpush1.xpose.msra.mxu0 0.0
  %3929 = vmatprep.subr.mxu0 0.0
  %3930 = vmatpush1.xpose.msra.mxu0 0.0
  %3931 = vmatprep.mubr.f32.mxu0 0.0
  %3932 = vmatmul.mubr.f32.gmra.mrb[0].mxu0 %v3859
  %v3933 = vpop.f32.mrb[0].mxu0
  %v3934 = vadd.f32 0.0, %v3933
  %v3935 = vpop.f32.mrb[0].mxu0
  %3936 = vmatprep.mubr.f32.mxu0 0.0
  %3937 = vmatmul.mubr.f32.gmra.mrb[0].mxu0 %v3861
  %v3938 = vpop.f32.mrb[0].mxu0
  %v3939 = vadd.f32 0.0, %v3938
  %v3940 = vpop.f32.mrb[0].mxu0
  %3941 = vdwg.mxu0
  %v3942 = vmul.f32 %v3934, 0.35355338
  %v3943 = vmul.f32 %v3939, 0.35355338
  %v3944 = vadd.f32 %v3942, %v173
  %v3945 = vadd.f32 %v3943, %v174
  %v3946 = vsel %vm368, %v3944, -inf
  %3947 = vmax.xlane.f32.xlu0 %v3946
  %v3948 = vpop.xlane.xlu0 %3947
  %v3949 = vsel %vm368, %v3945, -inf
  %3950 = vmax.xlane.f32.xlu0 %v3949
  %v3951 = vpop.xlane.xlu0 %3950
  %v3952 = vsub.f32 %v3944, %v3948
  %v3953 = vsub.f32 %v3945, %v3951
  %v3954 = vmul.f32 %v3952, 1.442695
  %v3955 = vpow.pop %v3954
  %v3956 = vmul.f32 %v3953, 1.442695
  %v3957 = vpow.pop %v3956
  %v3958 = vsel %vm368, %v3955, 0.0
  %3959 = vadd.xlane.f32.xlu0 %v3958
  %v3960 = vpop.xlane.xlu0 %3959
  %v3961 = vsel %vm368, %v3957, 0.0
  %3962 = vadd.xlane.f32.xlu0 %v3961
  %v3963 = vpop.xlane.xlu0 %3962
  %v3964 = vrcp.pop %v3960
  %v3965 = vmul.f32 %v3955, %v3964
  %v3966 = vrcp.pop %v3963
  %v3967 = vmul.f32 %v3957, %v3966
  %3968 = vrot.lane.b32.xlu0 %v3637, 56
  %v3969 = vpop.permute.xlu0 %3968
  %3970 = vrot.lane.b32.xlu0 %v3642, 56
  %v3971 = vpop.permute.xlu0 %3970
  %v3975 = vsel %vm368, %v3965, 0
  %v3978 = vsel %vm368, %v3967, 0
  %3980 = vmatprep.subr.mxu0 0.0
  %3981 = vmatpush1.msra.mxu0 %v3969
  %3982 = vmatprep.subr.mxu0 0.0
  %3983 = vmatpush1.msra.mxu0 %v3971
  %3984 = vmatprep.subr.mxu0 0.0
  %3985 = vmatpush1.msra.mxu0 0.0
  %3986 = vmatprep.subr.mxu0 0.0
  %3987 = vmatpush1.msra.mxu0 0.0
  %3988 = vmatprep.subr.mxu0 0.0
  %3989 = vmatpush1.msra.mxu0 0.0
  %3990 = vmatprep.subr.mxu0 0.0
  %3991 = vmatpush1.msra.mxu0 0.0
  %3992 = vmatprep.subr.mxu0 0.0
  %3993 = vmatpush1.msra.mxu0 0.0
  %3994 = vmatprep.subr.mxu0 0.0
  %3995 = vmatpush1.msra.mxu0 0.0
  %3996 = vmatprep.subr.mxu0 0.0
  %3997 = vmatpush1.msra.mxu0 0.0
  %3998 = vmatprep.subr.mxu0 0.0
  %3999 = vmatpush1.msra.mxu0 0.0
  %4000 = vmatprep.subr.mxu0 0.0
  %4001 = vmatpush1.msra.mxu0 0.0
  %4002 = vmatprep.subr.mxu0 0.0
  %4003 = vmatpush1.msra.mxu0 0.0
  %4004 = vmatprep.subr.mxu0 0.0
  %4005 = vmatpush1.msra.mxu0 0.0
  %4006 = vmatprep.subr.mxu0 0.0
  %4007 = vmatpush1.msra.mxu0 0.0
  %4008 = vmatprep.subr.mxu0 0.0
  %4009 = vmatpush1.msra.mxu0 0.0
  %4010 = vmatprep.subr.mxu0 0.0
  %4011 = vmatpush1.msra.mxu0 0.0
  %4012 = vmatprep.subr.mxu0 0.0
  %4013 = vmatpush1.msra.mxu0 0.0
  %4014 = vmatprep.subr.mxu0 0.0
  %4015 = vmatpush1.msra.mxu0 0.0
  %4016 = vmatprep.subr.mxu0 0.0
  %4017 = vmatpush1.msra.mxu0 0.0
  %4018 = vmatprep.subr.mxu0 0.0
  %4019 = vmatpush1.msra.mxu0 0.0
  %4020 = vmatprep.subr.mxu0 0.0
  %4021 = vmatpush1.msra.mxu0 0.0
  %4022 = vmatprep.subr.mxu0 0.0
  %4023 = vmatpush1.msra.mxu0 0.0
  %4024 = vmatprep.subr.mxu0 0.0
  %4025 = vmatpush1.msra.mxu0 0.0
  %4026 = vmatprep.subr.mxu0 0.0
  %4027 = vmatpush1.msra.mxu0 0.0
  %4028 = vmatprep.subr.mxu0 0.0
  %4029 = vmatpush1.msra.mxu0 0.0
  %4030 = vmatprep.subr.mxu0 0.0
  %4031 = vmatpush1.msra.mxu0 0.0
  %4032 = vmatprep.subr.mxu0 0.0
  %4033 = vmatpush1.msra.mxu0 0.0
  %4034 = vmatprep.subr.mxu0 0.0
  %4035 = vmatpush1.msra.mxu0 0.0
  %4036 = vmatprep.subr.mxu0 0.0
  %4037 = vmatpush1.msra.mxu0 0.0
  %4038 = vmatprep.subr.mxu0 0.0
  %4039 = vmatpush1.msra.mxu0 0.0
  %4040 = vmatprep.subr.mxu0 0.0
  %4041 = vmatpush1.msra.mxu0 0.0
  %4042 = vmatprep.subr.mxu0 0.0
  %4043 = vmatpush1.msra.mxu0 0.0
  %4044 = vmatprep.mubr.f32.mxu0 0.0
  %4045 = vmatmul.mubr.f32.gmra.mrb[0].mxu0 %v3975
  %v4046 = vpop.f32.mrb[0].mxu0
  %v4047 = vadd.f32 0.0, %v4046
  %v4048 = vpop.f32.mrb[0].mxu0
  %4049 = vmatprep.mubr.f32.mxu0 0.0
  %4050 = vmatmul.mubr.f32.gmra.mrb[0].mxu0 %v3978
  %v4051 = vpop.f32.mrb[0].mxu0
  %v4052 = vadd.f32 0.0, %v4051
  %v4053 = vpop.f32.mrb[0].mxu0
  %4054 = vdwg.mxu0
  %v4056 = vsel %vm280, %v4047, 0
  %v4059 = vsel %vm280, %v4052, 0
  %4061 = vmatprep.subr.mxu0 0.0
  %4062 = vmatpush1.msra.mxu0 %v3646
  %4063 = vmatprep.subr.mxu0 0.0
  %4064 = vmatpush1.msra.mxu0 0.0
  %4065 = vmatprep.subr.mxu0 0.0
  %4066 = vmatpush1.msra.mxu0 0.0
  %4067 = vmatprep.subr.mxu0 0.0
  %4068 = vmatpush1.msra.mxu0 0.0
  %4069 = vmatprep.subr.mxu0 0.0
  %4070 = vmatpush1.msra.mxu0 0.0
  %4071 = vmatprep.subr.mxu0 0.0
  %4072 = vmatpush1.msra.mxu0 0.0
  %4073 = vmatprep.subr.mxu0 0.0
  %4074 = vmatpush1.msra.mxu0 0.0
  %4075 = vmatprep.subr.mxu0 0.0
  %4076 = vmatpush1.msra.mxu0 0.0
  %4077 = vmatprep.subr.mxu0 0.0
  %4078 = vmatpush1.msra.mxu0 0.0
  %4079 = vmatprep.subr.mxu0 0.0
  %4080 = vmatpush1.msra.mxu0 0.0
  %4081 = vmatprep.subr.mxu0 0.0
  %4082 = vmatpush1.msra.mxu0 0.0
  %4083 = vmatprep.subr.mxu0 0.0
  %4084 = vmatpush1.msra.mxu0 0.0
  %4085 = vmatprep.subr.mxu0 0.0
  %4086 = vmatpush1.msra.mxu0 0.0
  %4087 = vmatprep.subr.mxu0 0.0
  %4088 = vmatpush1.msra.mxu0 0.0
  %4089 = vmatprep.subr.mxu0 0.0
  %4090 = vmatpush1.msra.mxu0 0.0
  %4091 = vmatprep.subr.mxu0 0.0
  %4092 = vmatpush1.msra.mxu0 0.0
  %4093 = vmatprep.subr.mxu0 0.0
  %4094 = vmatpush1.msra.mxu0 0.0
  %4095 = vmatprep.subr.mxu0 0.0
  %4096 = vmatpush1.msra.mxu0 0.0
  %4097 = vmatprep.subr.mxu0 0.0
  %4098 = vmatpush1.msra.mxu0 0.0
  %4099 = vmatprep.subr.mxu0 0.0
  %4100 = vmatpush1.msra.mxu0 0.0
  %4101 = vmatprep.subr.mxu0 0.0
  %4102 = vmatpush1.msra.mxu0 0.0
  %4103 = vmatprep.subr.mxu0 0.0
  %4104 = vmatpush1.msra.mxu0 0.0
  %4105 = vmatprep.subr.mxu0 0.0
  %4106 = vmatpush1.msra.mxu0 0.0
  %4107 = vmatprep.subr.mxu0 0.0
  %4108 = vmatpush1.msra.mxu0 0.0
  %4109 = vmatprep.subr.mxu0 0.0
  %4110 = vmatpush1.msra.mxu0 0.0
  %4111 = vmatprep.subr.mxu0 0.0
  %4112 = vmatpush1.msra.mxu0 0.0
  %4113 = vmatprep.subr.mxu0 0.0
  %4114 = vmatpush1.msra.mxu0 0.0
  %4115 = vmatprep.subr.mxu0 0.0
  %4116 = vmatpush1.msra.mxu0 0.0
  %4117 = vmatprep.subr.mxu0 0.0
  %4118 = vmatpush1.msra.mxu0 0.0
  %4119 = vmatprep.subr.mxu0 0.0
  %4120 = vmatpush1.msra.mxu0 0.0
  %4121 = vmatprep.subr.mxu0 0.0
  %4122 = vmatpush1.msra.mxu0 0.0
  %4123 = vmatprep.subr.mxu0 0.0
  %4124 = vmatpush1.msra.mxu0 0.0
  %4125 = vmatprep.mubr.f32.mxu0 0.0
  %4126 = vmatmul.mubr.f32.gmra.mrb[0].mxu0 %v4056
  %v4127 = vpop.f32.mrb[0].mxu0
  %v4128 = vadd.f32 0.0, %v4127
  %v4129 = vpop.f32.mrb[0].mxu0
  %4130 = vmatprep.mubr.f32.mxu0 0.0
  %4131 = vmatmul.mubr.f32.gmra.mrb[0].mxu0 %v4059
  %v4132 = vpop.f32.mrb[0].mxu0
  %v4133 = vadd.f32 0.0, %v4132
  %v4134 = vpop.f32.mrb[0].mxu0
  %4135 = vdwg.mxu0
  %v4137 = vsel %vm280, %v3843, 0
  %v4140 = vsel %vm280, %v3848, 0
  %4142 = vmatprep.subr.mxu0 0.0
  %4143 = vmatpush1.msra.mxu0 %v3645
  %4144 = vmatprep.subr.mxu0 0.0
  %4145 = vmatpush1.msra.mxu0 0.0
  %4146 = vmatprep.subr.mxu0 0.0
  %4147 = vmatpush1.msra.mxu0 0.0
  %4148 = vmatprep.subr.mxu0 0.0
  %4149 = vmatpush1.msra.mxu0 0.0
  %4150 = vmatprep.subr.mxu0 0.0
  %4151 = vmatpush1.msra.mxu0 0.0
  %4152 = vmatprep.subr.mxu0 0.0
  %4153 = vmatpush1.msra.mxu0 0.0
  %4154 = vmatprep.subr.mxu0 0.0
  %4155 = vmatpush1.msra.mxu0 0.0
  %4156 = vmatprep.subr.mxu0 0.0
  %4157 = vmatpush1.msra.mxu0 0.0
  %4158 = vmatprep.subr.mxu0 0.0
  %4159 = vmatpush1.msra.mxu0 0.0
  %4160 = vmatprep.subr.mxu0 0.0
  %4161 = vmatpush1.msra.mxu0 0.0
  %4162 = vmatprep.subr.mxu0 0.0
  %4163 = vmatpush1.msra.mxu0 0.0
  %4164 = vmatprep.subr.mxu0 0.0
  %4165 = vmatpush1.msra.mxu0 0.0
  %4166 = vmatprep.subr.mxu0 0.0
  %4167 = vmatpush1.msra.mxu0 0.0
  %4168 = vmatprep.subr.mxu0 0.0
  %4169 = vmatpush1.msra.mxu0 0.0
  %4170 = vmatprep.subr.mxu0 0.0
  %4171 = vmatpush1.msra.mxu0 0.0
  %4172 = vmatprep.subr.mxu0 0.0
  %4173 = vmatpush1.msra.mxu0 0.0
  %4174 = vmatprep.subr.mxu0 0.0
  %4175 = vmatpush1.msra.mxu0 0.0
  %4176 = vmatprep.subr.mxu0 0.0
  %4177 = vmatpush1.msra.mxu0 0.0
  %4178 = vmatprep.subr.mxu0 0.0
  %4179 = vmatpush1.msra.mxu0 0.0
  %4180 = vmatprep.subr.mxu0 0.0
  %4181 = vmatpush1.msra.mxu0 0.0
  %4182 = vmatprep.subr.mxu0 0.0
  %4183 = vmatpush1.msra.mxu0 0.0
  %4184 = vmatprep.subr.mxu0 0.0
  %4185 = vmatpush1.msra.mxu0 0.0
  %4186 = vmatprep.subr.mxu0 0.0
  %4187 = vmatpush1.msra.mxu0 0.0
  %4188 = vmatprep.subr.mxu0 0.0
  %4189 = vmatpush1.msra.mxu0 0.0
  %4190 = vmatprep.subr.mxu0 0.0
  %4191 = vmatpush1.msra.mxu0 0.0
  %4192 = vmatprep.subr.mxu0 0.0
  %4193 = vmatpush1.msra.mxu0 0.0
  %4194 = vmatprep.subr.mxu0 0.0
  %4195 = vmatpush1.msra.mxu0 0.0
  %4196 = vmatprep.subr.mxu0 0.0
  %4197 = vmatpush1.msra.mxu0 0.0
  %4198 = vmatprep.subr.mxu0 0.0
  %4199 = vmatpush1.msra.mxu0 0.0
  %4200 = vmatprep.subr.mxu0 0.0
  %4201 = vmatpush1.msra.mxu0 0.0
  %4202 = vmatprep.subr.mxu0 0.0
  %4203 = vmatpush1.msra.mxu0 0.0
  %4204 = vmatprep.subr.mxu0 0.0
  %4205 = vmatpush1.msra.mxu0 0.0
  %4206 = vmatprep.mubr.f32.mxu0 0.0
  %4207 = vmatmul.mubr.f32.gmra.mrb[0].mxu0 %v4137
  %v4208 = vpop.f32.mrb[0].mxu0
  %v4209 = vadd.f32 %v4128, %v4208
  %v4210 = vpop.f32.mrb[0].mxu0
  %4211 = vmatprep.mubr.f32.mxu0 0.0
  %4212 = vmatmul.mubr.f32.gmra.mrb[0].mxu0 %v4140
  %v4213 = vpop.f32.mrb[0].mxu0
  %v4214 = vadd.f32 %v4133, %v4213
  %v4215 = vpop.f32.mrb[0].mxu0
  %4216 = vdwg.mxu0
  %4217 = vrot.lane.b32.xlu0 %v3637, 112
  %v4218 = vpop.permute.xlu0 %4217
  %4219 = vrot.lane.b32.xlu0 %v3642, 112
  %v4220 = vpop.permute.xlu0 %4219
  %4221 = vrot.lane.b32.xlu0 %v3637, 80
  %v4222 = vpop.permute.xlu0 %4221
  %4223 = vrot.lane.b32.xlu0 %v3642, 80
  %v4224 = vpop.permute.xlu0 %4223
  %v4225 = vsel %vm280, %v4218, 0
  %v4227 = vsel %vm280, %v4220, 0
  %v4229 = vsel %vm280, %v4222, 0
  %v4231 = vsel %vm280, %v4224, 0
  %4233 = vmatprep.subr.mxu0 0.0
  %4234 = vmatpush1.xpose.msra.mxu0 %v4229
  %4235 = vmatprep.subr.mxu0 0.0
  %4236 = vmatpush1.xpose.msra.mxu0 %v4231
  %4237 = vmatprep.subr.mxu0 0.0
  %4238 = vmatpush1.xpose.msra.mxu0 0.0
  %4239 = vmatprep.subr.mxu0 0.0
  %4240 = vmatpush1.xpose.msra.mxu0 0.0
  %4241 = vmatprep.subr.mxu0 0.0
  %4242 = vmatpush1.xpose.msra.mxu0 0.0
  %4243 = vmatprep.subr.mxu0 0.0
  %4244 = vmatpush1.xpose.msra.mxu0 0.0
  %4245 = vmatprep.subr.mxu0 0.0
  %4246 = vmatpush1.xpose.msra.mxu0 0.0
  %4247 = vmatprep.subr.mxu0 0.0
  %4248 = vmatpush1.xpose.msra.mxu0 0.0
  %4249 = vmatprep.subr.mxu0 0.0
  %4250 = vmatpush1.xpose.msra.mxu0 0.0
  %4251 = vmatprep.subr.mxu0 0.0
  %4252 = vmatpush1.xpose.msra.mxu0 0.0
  %4253 = vmatprep.subr.mxu0 0.0
  %4254 = vmatpush1.xpose.msra.mxu0 0.0
  %4255 = vmatprep.subr.mxu0 0.0
  %4256 = vmatpush1.xpose.msra.mxu0 0.0
  %4257 = vmatprep.subr.mxu0 0.0
  %4258 = vmatpush1.xpose.msra.mxu0 0.0
  %4259 = vmatprep.subr.mxu0 0.0
  %4260 = vmatpush1.xpose.msra.mxu0 0.0
  %4261 = vmatprep.subr.mxu0 0.0
  %4262 = vmatpush1.xpose.msra.mxu0 0.0
  %4263 = vmatprep.subr.mxu0 0.0
  %4264 = vmatpush1.xpose.msra.mxu0 0.0
  %4265 = vmatprep.subr.mxu0 0.0
  %4266 = vmatpush1.xpose.msra.mxu0 0.0
  %4267 = vmatprep.subr.mxu0 0.0
  %4268 = vmatpush1.xpose.msra.mxu0 0.0
  %4269 = vmatprep.subr.mxu0 0.0
  %4270 = vmatpush1.xpose.msra.mxu0 0.0
  %4271 = vmatprep.subr.mxu0 0.0
  %4272 = vmatpush1.xpose.msra.mxu0 0.0
  %4273 = vmatprep.subr.mxu0 0.0
  %4274 = vmatpush1.xpose.msra.mxu0 0.0
  %4275 = vmatprep.subr.mxu0 0.0
  %4276 = vmatpush1.xpose.msra.mxu0 0.0
  %4277 = vmatprep.subr.mxu0 0.0
  %4278 = vmatpush1.xpose.msra.mxu0 0.0
  %4279 = vmatprep.subr.mxu0 0.0
  %4280 = vmatpush1.xpose.msra.mxu0 0.0
  %4281 = vmatprep.subr.mxu0 0.0
  %4282 = vmatpush1.xpose.msra.mxu0 0.0
  %4283 = vmatprep.subr.mxu0 0.0
  %4284 = vmatpush1.xpose.msra.mxu0 0.0
  %4285 = vmatprep.subr.mxu0 0.0
  %4286 = vmatpush1.xpose.msra.mxu0 0.0
  %4287 = vmatprep.subr.mxu0 0.0
  %4288 = vmatpush1.xpose.msra.mxu0 0.0
  %4289 = vmatprep.subr.mxu0 0.0
  %4290 = vmatpush1.xpose.msra.mxu0 0.0
  %4291 = vmatprep.subr.mxu0 0.0
  %4292 = vmatpush1.xpose.msra.mxu0 0.0
  %4293 = vmatprep.subr.mxu0 0.0
  %4294 = vmatpush1.xpose.msra.mxu0 0.0
  %4295 = vmatprep.subr.mxu0 0.0
  %4296 = vmatpush1.xpose.msra.mxu0 0.0
  %4297 = vmatprep.mubr.f32.mxu0 0.0
  %4298 = vmatmul.mubr.f32.gmra.mrb[0].mxu0 %v4225
  %v4299 = vpop.f32.mrb[0].mxu0
  %v4300 = vadd.f32 0.0, %v4299
  %v4301 = vpop.f32.mrb[0].mxu0
  %4302 = vmatprep.mubr.f32.mxu0 0.0
  %4303 = vmatmul.mubr.f32.gmra.mrb[0].mxu0 %v4227
  %v4304 = vpop.f32.mrb[0].mxu0
  %v4305 = vadd.f32 0.0, %v4304
  %v4306 = vpop.f32.mrb[0].mxu0
  %4307 = vdwg.mxu0
  %v4308 = vmul.f32 %v4300, 0.35355338
  %v4309 = vmul.f32 %v4305, 0.35355338
  %v4310 = vadd.f32 %v4308, %v173
  %v4311 = vadd.f32 %v4309, %v174
  %v4312 = vsel %vm368, %v4310, -inf
  %4313 = vmax.xlane.f32.xlu0 %v4312
  %v4314 = vpop.xlane.xlu0 %4313
  %v4315 = vsel %vm368, %v4311, -inf
  %4316 = vmax.xlane.f32.xlu0 %v4315
  %v4317 = vpop.xlane.xlu0 %4316
  %v4318 = vsub.f32 %v4310, %v4314
  %v4319 = vsub.f32 %v4311, %v4317
  %v4320 = vmul.f32 %v4318, 1.442695
  %v4321 = vpow.pop %v4320
  %v4322 = vmul.f32 %v4319, 1.442695
  %v4323 = vpow.pop %v4322
  %v4324 = vsel %vm368, %v4321, 0.0
  %4325 = vadd.xlane.f32.xlu0 %v4324
  %v4326 = vpop.xlane.xlu0 %4325
  %v4327 = vsel %vm368, %v4323, 0.0
  %4328 = vadd.xlane.f32.xlu0 %v4327
  %v4329 = vpop.xlane.xlu0 %4328
  %v4330 = vrcp.pop %v4326
  %v4331 = vmul.f32 %v4321, %v4330
  %v4332 = vrcp.pop %v4329
  %v4333 = vmul.f32 %v4323, %v4332
  %4334 = vrot.lane.b32.xlu0 %v3637, 48
  %v4335 = vpop.permute.xlu0 %4334
  %4336 = vrot.lane.b32.xlu0 %v3642, 48
  %v4337 = vpop.permute.xlu0 %4336
  %v4341 = vsel %vm368, %v4331, 0
  %v4344 = vsel %vm368, %v4333, 0
  %4346 = vmatprep.subr.mxu0 0.0
  %4347 = vmatpush1.msra.mxu0 %v4335
  %4348 = vmatprep.subr.mxu0 0.0
  %4349 = vmatpush1.msra.mxu0 %v4337
  %4350 = vmatprep.subr.mxu0 0.0
  %4351 = vmatpush1.msra.mxu0 0.0
  %4352 = vmatprep.subr.mxu0 0.0
  %4353 = vmatpush1.msra.mxu0 0.0
  %4354 = vmatprep.subr.mxu0 0.0
  %4355 = vmatpush1.msra.mxu0 0.0
  %4356 = vmatprep.subr.mxu0 0.0
  %4357 = vmatpush1.msra.mxu0 0.0
  %4358 = vmatprep.subr.mxu0 0.0
  %4359 = vmatpush1.msra.mxu0 0.0
  %4360 = vmatprep.subr.mxu0 0.0
  %4361 = vmatpush1.msra.mxu0 0.0
  %4362 = vmatprep.subr.mxu0 0.0
  %4363 = vmatpush1.msra.mxu0 0.0
  %4364 = vmatprep.subr.mxu0 0.0
  %4365 = vmatpush1.msra.mxu0 0.0
  %4366 = vmatprep.subr.mxu0 0.0
  %4367 = vmatpush1.msra.mxu0 0.0
  %4368 = vmatprep.subr.mxu0 0.0
  %4369 = vmatpush1.msra.mxu0 0.0
  %4370 = vmatprep.subr.mxu0 0.0
  %4371 = vmatpush1.msra.mxu0 0.0
  %4372 = vmatprep.subr.mxu0 0.0
  %4373 = vmatpush1.msra.mxu0 0.0
  %4374 = vmatprep.subr.mxu0 0.0
  %4375 = vmatpush1.msra.mxu0 0.0
  %4376 = vmatprep.subr.mxu0 0.0
  %4377 = vmatpush1.msra.mxu0 0.0
  %4378 = vmatprep.subr.mxu0 0.0
  %4379 = vmatpush1.msra.mxu0 0.0
  %4380 = vmatprep.subr.mxu0 0.0
  %4381 = vmatpush1.msra.mxu0 0.0
  %4382 = vmatprep.subr.mxu0 0.0
  %4383 = vmatpush1.msra.mxu0 0.0
  %4384 = vmatprep.subr.mxu0 0.0
  %4385 = vmatpush1.msra.mxu0 0.0
  %4386 = vmatprep.subr.mxu0 0.0
  %4387 = vmatpush1.msra.mxu0 0.0
  %4388 = vmatprep.subr.mxu0 0.0
  %4389 = vmatpush1.msra.mxu0 0.0
  %4390 = vmatprep.subr.mxu0 0.0
  %4391 = vmatpush1.msra.mxu0 0.0
  %4392 = vmatprep.subr.mxu0 0.0
  %4393 = vmatpush1.msra.mxu0 0.0
  %4394 = vmatprep.subr.mxu0 0.0
  %4395 = vmatpush1.msra.mxu0 0.0
  %4396 = vmatprep.subr.mxu0 0.0
  %4397 = vmatpush1.msra.mxu0 0.0
  %4398 = vmatprep.subr.mxu0 0.0
  %4399 = vmatpush1.msra.mxu0 0.0
  %4400 = vmatprep.subr.mxu0 0.0
  %4401 = vmatpush1.msra.mxu0 0.0
  %4402 = vmatprep.subr.mxu0 0.0
  %4403 = vmatpush1.msra.mxu0 0.0
  %4404 = vmatprep.subr.mxu0 0.0
  %4405 = vmatpush1.msra.mxu0 0.0
  %4406 = vmatprep.subr.mxu0 0.0
  %4407 = vmatpush1.msra.mxu0 0.0
  %4408 = vmatprep.subr.mxu0 0.0
  %4409 = vmatpush1.msra.mxu0 0.0
  %4410 = vmatprep.mubr.f32.mxu0 0.0
  %4411 = vmatmul.mubr.f32.gmra.mrb[0].mxu0 %v4341
  %v4412 = vpop.f32.mrb[0].mxu0
  %v4413 = vadd.f32 0.0, %v4412
  %v4414 = vpop.f32.mrb[0].mxu0
  %4415 = vmatprep.mubr.f32.mxu0 0.0
  %4416 = vmatmul.mubr.f32.gmra.mrb[0].mxu0 %v4344
  %v4417 = vpop.f32.mrb[0].mxu0
  %v4418 = vadd.f32 0.0, %v4417
  %v4419 = vpop.f32.mrb[0].mxu0
  %4420 = vdwg.mxu0
  %v4422 = vsel %vm280, %v4413, 0
  %v4425 = vsel %vm280, %v4418, 0
  %4427 = vmatprep.subr.mxu0 0.0
  %4428 = vmatpush1.msra.mxu0 %v3647
  %4429 = vmatprep.subr.mxu0 0.0
  %4430 = vmatpush1.msra.mxu0 0.0
  %4431 = vmatprep.subr.mxu0 0.0
  %4432 = vmatpush1.msra.mxu0 0.0
  %4433 = vmatprep.subr.mxu0 0.0
  %4434 = vmatpush1.msra.mxu0 0.0
  %4435 = vmatprep.subr.mxu0 0.0
  %4436 = vmatpush1.msra.mxu0 0.0
  %4437 = vmatprep.subr.mxu0 0.0
  %4438 = vmatpush1.msra.mxu0 0.0
  %4439 = vmatprep.subr.mxu0 0.0
  %4440 = vmatpush1.msra.mxu0 0.0
  %4441 = vmatprep.subr.mxu0 0.0
  %4442 = vmatpush1.msra.mxu0 0.0
  %4443 = vmatprep.subr.mxu0 0.0
  %4444 = vmatpush1.msra.mxu0 0.0
  %4445 = vmatprep.subr.mxu0 0.0
  %4446 = vmatpush1.msra.mxu0 0.0
  %4447 = vmatprep.subr.mxu0 0.0
  %4448 = vmatpush1.msra.mxu0 0.0
  %4449 = vmatprep.subr.mxu0 0.0
  %4450 = vmatpush1.msra.mxu0 0.0
  %4451 = vmatprep.subr.mxu0 0.0
  %4452 = vmatpush1.msra.mxu0 0.0
  %4453 = vmatprep.subr.mxu0 0.0
  %4454 = vmatpush1.msra.mxu0 0.0
  %4455 = vmatprep.subr.mxu0 0.0
  %4456 = vmatpush1.msra.mxu0 0.0
  %4457 = vmatprep.subr.mxu0 0.0
  %4458 = vmatpush1.msra.mxu0 0.0
  %4459 = vmatprep.subr.mxu0 0.0
  %4460 = vmatpush1.msra.mxu0 0.0
  %4461 = vmatprep.subr.mxu0 0.0
  %4462 = vmatpush1.msra.mxu0 0.0
  %4463 = vmatprep.subr.mxu0 0.0
  %4464 = vmatpush1.msra.mxu0 0.0
  %4465 = vmatprep.subr.mxu0 0.0
  %4466 = vmatpush1.msra.mxu0 0.0
  %4467 = vmatprep.subr.mxu0 0.0
  %4468 = vmatpush1.msra.mxu0 0.0
  %4469 = vmatprep.subr.mxu0 0.0
  %4470 = vmatpush1.msra.mxu0 0.0
  %4471 = vmatprep.subr.mxu0 0.0
  %4472 = vmatpush1.msra.mxu0 0.0
  %4473 = vmatprep.subr.mxu0 0.0
  %4474 = vmatpush1.msra.mxu0 0.0
  %4475 = vmatprep.subr.mxu0 0.0
  %4476 = vmatpush1.msra.mxu0 0.0
  %4477 = vmatprep.subr.mxu0 0.0
  %4478 = vmatpush1.msra.mxu0 0.0
  %4479 = vmatprep.subr.mxu0 0.0
  %4480 = vmatpush1.msra.mxu0 0.0
  %4481 = vmatprep.subr.mxu0 0.0
  %4482 = vmatpush1.msra.mxu0 0.0
  %4483 = vmatprep.subr.mxu0 0.0
  %4484 = vmatpush1.msra.mxu0 0.0
  %4485 = vmatprep.subr.mxu0 0.0
  %4486 = vmatpush1.msra.mxu0 0.0
  %4487 = vmatprep.subr.mxu0 0.0
  %4488 = vmatpush1.msra.mxu0 0.0
  %4489 = vmatprep.subr.mxu0 0.0
  %4490 = vmatpush1.msra.mxu0 0.0
  %4491 = vmatprep.mubr.f32.mxu0 0.0
  %4492 = vmatmul.mubr.f32.gmra.mrb[0].mxu0 %v4422
  %v4493 = vpop.f32.mrb[0].mxu0
  %v4494 = vadd.f32 0.0, %v4493
  %v4495 = vpop.f32.mrb[0].mxu0
  %4496 = vmatprep.mubr.f32.mxu0 0.0
  %4497 = vmatmul.mubr.f32.gmra.mrb[0].mxu0 %v4425
  %v4498 = vpop.f32.mrb[0].mxu0
  %v4499 = vadd.f32 0.0, %v4498
  %v4500 = vpop.f32.mrb[0].mxu0
  %4501 = vdwg.mxu0
  %v4502 = vadd.f32 %v4209, %v4494
  %v4503 = vadd.f32 %v4214, %v4499
  %4504 = vrot.lane.b32.xlu0 %v3637, 104
  %v4505 = vpop.permute.xlu0 %4504
  %4506 = vrot.lane.b32.xlu0 %v3642, 104
  %v4507 = vpop.permute.xlu0 %4506
  %4508 = vrot.lane.b32.xlu0 %v3637, 72
  %v4509 = vpop.permute.xlu0 %4508
  %4510 = vrot.lane.b32.xlu0 %v3642, 72
  %v4511 = vpop.permute.xlu0 %4510
  %v4512 = vsel %vm280, %v4505, 0
  %v4514 = vsel %vm280, %v4507, 0
  %v4516 = vsel %vm280, %v4509, 0
  %v4518 = vsel %vm280, %v4511, 0
  %4520 = vmatprep.subr.mxu0 0.0
  %4521 = vmatpush1.xpose.msra.mxu0 %v4516
  %4522 = vmatprep.subr.mxu0 0.0
  %4523 = vmatpush1.xpose.msra.mxu0 %v4518
  %4524 = vmatprep.subr.mxu0 0.0
  %4525 = vmatpush1.xpose.msra.mxu0 0.0
  %4526 = vmatprep.subr.mxu0 0.0
  %4527 = vmatpush1.xpose.msra.mxu0 0.0
  %4528 = vmatprep.subr.mxu0 0.0
  %4529 = vmatpush1.xpose.msra.mxu0 0.0
  %4530 = vmatprep.subr.mxu0 0.0
  %4531 = vmatpush1.xpose.msra.mxu0 0.0
  %4532 = vmatprep.subr.mxu0 0.0
  %4533 = vmatpush1.xpose.msra.mxu0 0.0
  %4534 = vmatprep.subr.mxu0 0.0
  %4535 = vmatpush1.xpose.msra.mxu0 0.0
  %4536 = vmatprep.subr.mxu0 0.0
  %4537 = vmatpush1.xpose.msra.mxu0 0.0
  %4538 = vmatprep.subr.mxu0 0.0
  %4539 = vmatpush1.xpose.msra.mxu0 0.0
  %4540 = vmatprep.subr.mxu0 0.0
  %4541 = vmatpush1.xpose.msra.mxu0 0.0
  %4542 = vmatprep.subr.mxu0 0.0
  %4543 = vmatpush1.xpose.msra.mxu0 0.0
  %4544 = vmatprep.subr.mxu0 0.0
  %4545 = vmatpush1.xpose.msra.mxu0 0.0
  %4546 = vmatprep.subr.mxu0 0.0
  %4547 = vmatpush1.xpose.msra.mxu0 0.0
  %4548 = vmatprep.subr.mxu0 0.0
  %4549 = vmatpush1.xpose.msra.mxu0 0.0
  %4550 = vmatprep.subr.mxu0 0.0
  %4551 = vmatpush1.xpose.msra.mxu0 0.0
  %4552 = vmatprep.subr.mxu0 0.0
  %4553 = vmatpush1.xpose.msra.mxu0 0.0
  %4554 = vmatprep.subr.mxu0 0.0
  %4555 = vmatpush1.xpose.msra.mxu0 0.0
  %4556 = vmatprep.subr.mxu0 0.0
  %4557 = vmatpush1.xpose.msra.mxu0 0.0
  %4558 = vmatprep.subr.mxu0 0.0
  %4559 = vmatpush1.xpose.msra.mxu0 0.0
  %4560 = vmatprep.subr.mxu0 0.0
  %4561 = vmatpush1.xpose.msra.mxu0 0.0
  %4562 = vmatprep.subr.mxu0 0.0
  %4563 = vmatpush1.xpose.msra.mxu0 0.0
  %4564 = vmatprep.subr.mxu0 0.0
  %4565 = vmatpush1.xpose.msra.mxu0 0.0
  %4566 = vmatprep.subr.mxu0 0.0
  %4567 = vmatpush1.xpose.msra.mxu0 0.0
  %4568 = vmatprep.subr.mxu0 0.0
  %4569 = vmatpush1.xpose.msra.mxu0 0.0
  %4570 = vmatprep.subr.mxu0 0.0
  %4571 = vmatpush1.xpose.msra.mxu0 0.0
  %4572 = vmatprep.subr.mxu0 0.0
  %4573 = vmatpush1.xpose.msra.mxu0 0.0
  %4574 = vmatprep.subr.mxu0 0.0
  %4575 = vmatpush1.xpose.msra.mxu0 0.0
  %4576 = vmatprep.subr.mxu0 0.0
  %4577 = vmatpush1.xpose.msra.mxu0 0.0
  %4578 = vmatprep.subr.mxu0 0.0
  %4579 = vmatpush1.xpose.msra.mxu0 0.0
  %4580 = vmatprep.subr.mxu0 0.0
  %4581 = vmatpush1.xpose.msra.mxu0 0.0
  %4582 = vmatprep.subr.mxu0 0.0
  %4583 = vmatpush1.xpose.msra.mxu0 0.0
  %4584 = vmatprep.mubr.f32.mxu0 0.0
  %4585 = vmatmul.mubr.f32.gmra.mrb[0].mxu0 %v4512
  %v4586 = vpop.f32.mrb[0].mxu0
  %v4587 = vadd.f32 0.0, %v4586
  %v4588 = vpop.f32.mrb[0].mxu0
  %4589 = vmatprep.mubr.f32.mxu0 0.0
  %4590 = vmatmul.mubr.f32.gmra.mrb[0].mxu0 %v4514
  %v4591 = vpop.f32.mrb[0].mxu0
  %v4592 = vadd.f32 0.0, %v4591
  %v4593 = vpop.f32.mrb[0].mxu0
  %4594 = vdwg.mxu0
  %v4595 = vmul.f32 %v4587, 0.35355338
  %v4596 = vmul.f32 %v4592, 0.35355338
  %v4597 = vadd.f32 %v4595, %v173
  %v4598 = vadd.f32 %v4596, %v174
  %v4599 = vsel %vm368, %v4597, -inf
  %4600 = vmax.xlane.f32.xlu0 %v4599
  %v4601 = vpop.xlane.xlu0 %4600
  %v4602 = vsel %vm368, %v4598, -inf
  %4603 = vmax.xlane.f32.xlu0 %v4602
  %v4604 = vpop.xlane.xlu0 %4603
  %v4605 = vsub.f32 %v4597, %v4601
  %v4606 = vsub.f32 %v4598, %v4604
  %v4607 = vmul.f32 %v4605, 1.442695
  %v4608 = vpow.pop %v4607
  %v4609 = vmul.f32 %v4606, 1.442695
  %v4610 = vpow.pop %v4609
  %v4611 = vsel %vm368, %v4608, 0.0
  %4612 = vadd.xlane.f32.xlu0 %v4611
  %v4613 = vpop.xlane.xlu0 %4612
  %v4614 = vsel %vm368, %v4610, 0.0
  %4615 = vadd.xlane.f32.xlu0 %v4614
  %v4616 = vpop.xlane.xlu0 %4615
  %v4617 = vrcp.pop %v4613
  %v4618 = vmul.f32 %v4608, %v4617
  %v4619 = vrcp.pop %v4616
  %v4620 = vmul.f32 %v4610, %v4619
  %4621 = vrot.lane.b32.xlu0 %v3637, 40
  %v4622 = vpop.permute.xlu0 %4621
  %4623 = vrot.lane.b32.xlu0 %v3642, 40
  %v4624 = vpop.permute.xlu0 %4623
  %v4628 = vsel %vm368, %v4618, 0
  %v4631 = vsel %vm368, %v4620, 0
  %4633 = vmatprep.subr.mxu0 0.0
  %4634 = vmatpush1.msra.mxu0 %v4622
  %4635 = vmatprep.subr.mxu0 0.0
  %4636 = vmatpush1.msra.mxu0 %v4624
  %4637 = vmatprep.subr.mxu0 0.0
  %4638 = vmatpush1.msra.mxu0 0.0
  %4639 = vmatprep.subr.mxu0 0.0
  %4640 = vmatpush1.msra.mxu0 0.0
  %4641 = vmatprep.subr.mxu0 0.0
  %4642 = vmatpush1.msra.mxu0 0.0
  %4643 = vmatprep.subr.mxu0 0.0
  %4644 = vmatpush1.msra.mxu0 0.0
  %4645 = vmatprep.subr.mxu0 0.0
  %4646 = vmatpush1.msra.mxu0 0.0
  %4647 = vmatprep.subr.mxu0 0.0
  %4648 = vmatpush1.msra.mxu0 0.0
  %4649 = vmatprep.subr.mxu0 0.0
  %4650 = vmatpush1.msra.mxu0 0.0
  %4651 = vmatprep.subr.mxu0 0.0
  %4652 = vmatpush1.msra.mxu0 0.0
  %4653 = vmatprep.subr.mxu0 0.0
  %4654 = vmatpush1.msra.mxu0 0.0
  %4655 = vmatprep.subr.mxu0 0.0
  %4656 = vmatpush1.msra.mxu0 0.0
  %4657 = vmatprep.subr.mxu0 0.0
  %4658 = vmatpush1.msra.mxu0 0.0
  %4659 = vmatprep.subr.mxu0 0.0
  %4660 = vmatpush1.msra.mxu0 0.0
  %4661 = vmatprep.subr.mxu0 0.0
  %4662 = vmatpush1.msra.mxu0 0.0
  %4663 = vmatprep.subr.mxu0 0.0
  %4664 = vmatpush1.msra.mxu0 0.0
  %4665 = vmatprep.subr.mxu0 0.0
  %4666 = vmatpush1.msra.mxu0 0.0
  %4667 = vmatprep.subr.mxu0 0.0
  %4668 = vmatpush1.msra.mxu0 0.0
  %4669 = vmatprep.subr.mxu0 0.0
  %4670 = vmatpush1.msra.mxu0 0.0
  %4671 = vmatprep.subr.mxu0 0.0
  %4672 = vmatpush1.msra.mxu0 0.0
  %4673 = vmatprep.subr.mxu0 0.0
  %4674 = vmatpush1.msra.mxu0 0.0
  %4675 = vmatprep.subr.mxu0 0.0
  %4676 = vmatpush1.msra.mxu0 0.0
  %4677 = vmatprep.subr.mxu0 0.0
  %4678 = vmatpush1.msra.mxu0 0.0
  %4679 = vmatprep.subr.mxu0 0.0
  %4680 = vmatpush1.msra.mxu0 0.0
  %4681 = vmatprep.subr.mxu0 0.0
  %4682 = vmatpush1.msra.mxu0 0.0
  %4683 = vmatprep.subr.mxu0 0.0
  %4684 = vmatpush1.msra.mxu0 0.0
  %4685 = vmatprep.subr.mxu0 0.0
  %4686 = vmatpush1.msra.mxu0 0.0
  %4687 = vmatprep.subr.mxu0 0.0
  %4688 = vmatpush1.msra.mxu0 0.0
  %4689 = vmatprep.subr.mxu0 0.0
  %4690 = vmatpush1.msra.mxu0 0.0
  %4691 = vmatprep.subr.mxu0 0.0
  %4692 = vmatpush1.msra.mxu0 0.0
  %4693 = vmatprep.subr.mxu0 0.0
  %4694 = vmatpush1.msra.mxu0 0.0
  %4695 = vmatprep.subr.mxu0 0.0
  %4696 = vmatpush1.msra.mxu0 0.0
  %4697 = vmatprep.mubr.f32.mxu0 0.0
  %4698 = vmatmul.mubr.f32.gmra.mrb[0].mxu0 %v4628
  %v4699 = vpop.f32.mrb[0].mxu0
  %v4700 = vadd.f32 0.0, %v4699
  %v4701 = vpop.f32.mrb[0].mxu0
  %4702 = vmatprep.mubr.f32.mxu0 0.0
  %4703 = vmatmul.mubr.f32.gmra.mrb[0].mxu0 %v4631
  %v4704 = vpop.f32.mrb[0].mxu0
  %v4705 = vadd.f32 0.0, %v4704
  %v4706 = vpop.f32.mrb[0].mxu0
  %4707 = vdwg.mxu0
  %v4709 = vsel %vm280, %v4700, 0
  %v4712 = vsel %vm280, %v4705, 0
  %4714 = vmatprep.subr.mxu0 0.0
  %4715 = vmatpush1.msra.mxu0 %v3648
  %4716 = vmatprep.subr.mxu0 0.0
  %4717 = vmatpush1.msra.mxu0 0.0
  %4718 = vmatprep.subr.mxu0 0.0
  %4719 = vmatpush1.msra.mxu0 0.0
  %4720 = vmatprep.subr.mxu0 0.0
  %4721 = vmatpush1.msra.mxu0 0.0
  %4722 = vmatprep.subr.mxu0 0.0
  %4723 = vmatpush1.msra.mxu0 0.0
  %4724 = vmatprep.subr.mxu0 0.0
  %4725 = vmatpush1.msra.mxu0 0.0
  %4726 = vmatprep.subr.mxu0 0.0
  %4727 = vmatpush1.msra.mxu0 0.0
  %4728 = vmatprep.subr.mxu0 0.0
  %4729 = vmatpush1.msra.mxu0 0.0
  %4730 = vmatprep.subr.mxu0 0.0
  %4731 = vmatpush1.msra.mxu0 0.0
  %4732 = vmatprep.subr.mxu0 0.0
  %4733 = vmatpush1.msra.mxu0 0.0
  %4734 = vmatprep.subr.mxu0 0.0
  %4735 = vmatpush1.msra.mxu0 0.0
  %4736 = vmatprep.subr.mxu0 0.0
  %4737 = vmatpush1.msra.mxu0 0.0
  %4738 = vmatprep.subr.mxu0 0.0
  %4739 = vmatpush1.msra.mxu0 0.0
  %4740 = vmatprep.subr.mxu0 0.0
  %4741 = vmatpush1.msra.mxu0 0.0
  %4742 = vmatprep.subr.mxu0 0.0
  %4743 = vmatpush1.msra.mxu0 0.0
  %4744 = vmatprep.subr.mxu0 0.0
  %4745 = vmatpush1.msra.mxu0 0.0
  %4746 = vmatprep.subr.mxu0 0.0
  %4747 = vmatpush1.msra.mxu0 0.0
  %4748 = vmatprep.subr.mxu0 0.0
  %4749 = vmatpush1.msra.mxu0 0.0
  %4750 = vmatprep.subr.mxu0 0.0
  %4751 = vmatpush1.msra.mxu0 0.0
  %4752 = vmatprep.subr.mxu0 0.0
  %4753 = vmatpush1.msra.mxu0 0.0
  %4754 = vmatprep.subr.mxu0 0.0
  %4755 = vmatpush1.msra.mxu0 0.0
  %4756 = vmatprep.subr.mxu0 0.0
  %4757 = vmatpush1.msra.mxu0 0.0
  %4758 = vmatprep.subr.mxu0 0.0
  %4759 = vmatpush1.msra.mxu0 0.0
  %4760 = vmatprep.subr.mxu0 0.0
  %4761 = vmatpush1.msra.mxu0 0.0
  %4762 = vmatprep.subr.mxu0 0.0
  %4763 = vmatpush1.msra.mxu0 0.0
  %4764 = vmatprep.subr.mxu0 0.0
  %4765 = vmatpush1.msra.mxu0 0.0
  %4766 = vmatprep.subr.mxu0 0.0
  %4767 = vmatpush1.msra.mxu0 0.0
  %4768 = vmatprep.subr.mxu0 0.0
  %4769 = vmatpush1.msra.mxu0 0.0
  %4770 = vmatprep.subr.mxu0 0.0
  %4771 = vmatpush1.msra.mxu0 0.0
  %4772 = vmatprep.subr.mxu0 0.0
  %4773 = vmatpush1.msra.mxu0 0.0
  %4774 = vmatprep.subr.mxu0 0.0
  %4775 = vmatpush1.msra.mxu0 0.0
  %4776 = vmatprep.subr.mxu0 0.0
  %4777 = vmatpush1.msra.mxu0 0.0
  %4778 = vmatprep.mubr.f32.mxu0 0.0
  %4779 = vmatmul.mubr.f32.gmra.mrb[0].mxu0 %v4709
  %v4780 = vpop.f32.mrb[0].mxu0
  %v4781 = vadd.f32 0.0, %v4780
  %v4782 = vpop.f32.mrb[0].mxu0
  %4783 = vmatprep.mubr.f32.mxu0 0.0
  %4784 = vmatmul.mubr.f32.gmra.mrb[0].mxu0 %v4712
  %v4785 = vpop.f32.mrb[0].mxu0
  %v4786 = vadd.f32 0.0, %v4785
  %v4787 = vpop.f32.mrb[0].mxu0
  %4788 = vdwg.mxu0
  %v4789 = vadd.f32 %v4502, %v4781
  %v4790 = vadd.f32 %v4503, %v4786
  %v4791 = vld [vmem:[%s37] sm:$0x1]
  %v4793 = vlaneseq
  %v4794 = vshrl.u32 %v4793, 7
  %v4795 = vsub.s32 0, %v4794
  %v4796 = vrot.slane %v4791, %v4795
  %v4798 = vadd.f32 %v4789, %v4796
  %v4799 = vadd.f32 %v4790, %v4796
  %v4800 = vadd.f32 %v3551, %v4798
  %v4801 = vadd.f32 %v3552, %v4799
  %v4802 = vsel %vm188, %v4800, 0.0
  %4803 = vadd.xlane.f32.xlu0 %v4802
  %v4804 = vpop.xlane.xlu0 %4803
  %v4805 = vsel %vm188, %v4801, 0.0
  %4806 = vadd.xlane.f32.xlu0 %v4805
  %v4807 = vpop.xlane.xlu0 %4806
  %v4808 = vmul.f32 %v4804, %v1435
  %v4809 = vmul.f32 %v4807, %v1435
  %v4810 = vsub.f32 %v4800, %v4808
  %v4811 = vsub.f32 %v4801, %v4809
  %v4812 = vmul.f32 %v4810, %v4810
  %v4813 = vmul.f32 %v4811, %v4811
  %v4814 = vsel %vm188, %v4812, 0.0
  %4815 = vadd.xlane.f32.xlu0 %v4814
  %v4816 = vpop.xlane.xlu0 %4815
  %v4817 = vsel %vm188, %v4813, 0.0
  %4818 = vadd.xlane.f32.xlu0 %v4817
  %v4819 = vpop.xlane.xlu0 %4818
  %v4820 = vmul.f32 %v4816, %v1435
  %v4821 = vmul.f32 %v4819, %v1435
  %v4822 = vadd.f32 %v4820, 1e-05
  %v4823 = vadd.f32 %v4821, 1e-05
  %v4824 = vrsqrt.pop %v4822
  %v4825 = vrsqrt.pop %v4823
  %v4826 = vmul.f32 %v4810, %v4824
  %v4827 = vmul.f32 %v4811, %v4825
  %v4828 = vld [vmem:[%s39] sm:$0x1]
  %v4830 = vlaneseq
  %v4831 = vshrl.u32 %v4830, 7
  %v4832 = vsub.s32 0, %v4831
  %v4833 = vrot.slane %v4828, %v4832
  %v4835 = vmul.f32 %v4826, %v4833
  %v4836 = vmul.f32 %v4827, %v4833
  %v4837 = vld [vmem:[%s41] sm:$0x1]
  %v4839 = vlaneseq
  %v4840 = vshrl.u32 %v4839, 7
  %v4841 = vsub.s32 0, %v4840
  %v4842 = vrot.slane %v4837, %v4841
  %v4844 = vadd.f32 %v4835, %v4842
  %v4845 = vadd.f32 %v4836, %v4842
  %v4846 = vld [vmem:[%s43] sm:$0xff]
  %v4847 = vld [vmem:[%s43 + $0x8] sm:$0xff]
  %v4848 = vld [vmem:[%s43 + $0x10] sm:$0xff]
  %v4849 = vld [vmem:[%s43 + $0x18] sm:$0xff]
  %v4850 = vld [vmem:[%s45] sm:$0x1]
  %v4852 = vlaneseq
  %v4853 = vshrl.u32 %v4852, 7
  %v4854 = vsub.s32 0, %v4853
  %v4855 = vrot.slane %v4850, %v4854
  %v4858 = vsel %vm188, %v4844, 0
  %v4861 = vsel %vm188, %v4845, 0
  %4863 = vmatprep.subr.mxu0 0.0
  %4864 = vmatpush1.msra.mxu0 %v4846
  %4865 = vmatprep.subr.mxu0 0.0
  %4866 = vmatpush1.msra.mxu0 %v4847
  %4867 = vmatprep.subr.mxu0 0.0
  %4868 = vmatpush1.msra.mxu0 %v4848
  %4869 = vmatprep.subr.mxu0 0.0
  %4870 = vmatpush1.msra.mxu0 %v4849
  %4871 = vmatprep.subr.mxu0 0.0
  %4872 = vmatpush1.msra.mxu0 0.0
  %4873 = vmatprep.subr.mxu0 0.0
  %4874 = vmatpush1.msra.mxu0 0.0
  %4875 = vmatprep.subr.mxu0 0.0
  %4876 = vmatpush1.msra.mxu0 0.0
  %4877 = vmatprep.subr.mxu0 0.0
  %4878 = vmatpush1.msra.mxu0 0.0
  %4879 = vmatprep.subr.mxu0 0.0
  %4880 = vmatpush1.msra.mxu0 0.0
  %4881 = vmatprep.subr.mxu0 0.0
  %4882 = vmatpush1.msra.mxu0 0.0
  %4883 = vmatprep.subr.mxu0 0.0
  %4884 = vmatpush1.msra.mxu0 0.0
  %4885 = vmatprep.subr.mxu0 0.0
  %4886 = vmatpush1.msra.mxu0 0.0
  %4887 = vmatprep.subr.mxu0 0.0
  %4888 = vmatpush1.msra.mxu0 0.0
  %4889 = vmatprep.subr.mxu0 0.0
  %4890 = vmatpush1.msra.mxu0 0.0
  %4891 = vmatprep.subr.mxu0 0.0
  %4892 = vmatpush1.msra.mxu0 0.0
  %4893 = vmatprep.subr.mxu0 0.0
  %4894 = vmatpush1.msra.mxu0 0.0
  %4895 = vmatprep.subr.mxu0 0.0
  %4896 = vmatpush1.msra.mxu0 0.0
  %4897 = vmatprep.subr.mxu0 0.0
  %4898 = vmatpush1.msra.mxu0 0.0
  %4899 = vmatprep.subr.mxu0 0.0
  %4900 = vmatpush1.msra.mxu0 0.0
  %4901 = vmatprep.subr.mxu0 0.0
  %4902 = vmatpush1.msra.mxu0 0.0
  %4903 = vmatprep.subr.mxu0 0.0
  %4904 = vmatpush1.msra.mxu0 0.0
  %4905 = vmatprep.subr.mxu0 0.0
  %4906 = vmatpush1.msra.mxu0 0.0
  %4907 = vmatprep.subr.mxu0 0.0
  %4908 = vmatpush1.msra.mxu0 0.0
  %4909 = vmatprep.subr.mxu0 0.0
  %4910 = vmatpush1.msra.mxu0 0.0
  %4911 = vmatprep.subr.mxu0 0.0
  %4912 = vmatpush1.msra.mxu0 0.0
  %4913 = vmatprep.subr.mxu0 0.0
  %4914 = vmatpush1.msra.mxu0 0.0
  %4915 = vmatprep.subr.mxu0 0.0
  %4916 = vmatpush1.msra.mxu0 0.0
  %4917 = vmatprep.subr.mxu0 0.0
  %4918 = vmatpush1.msra.mxu0 0.0
  %4919 = vmatprep.subr.mxu0 0.0
  %4920 = vmatpush1.msra.mxu0 0.0
  %4921 = vmatprep.subr.mxu0 0.0
  %4922 = vmatpush1.msra.mxu0 0.0
  %4923 = vmatprep.subr.mxu0 0.0
  %4924 = vmatpush1.msra.mxu0 0.0
  %4925 = vmatprep.subr.mxu0 0.0
  %4926 = vmatpush1.msra.mxu0 0.0
  %4927 = vmatprep.mubr.f32.mxu0 0.0
  %4928 = vmatmul.mubr.f32.gmra.mrb[0].mxu0 %v4858
  %v4929 = vpop.f32.mrb[0].mxu0
  %v4930 = vadd.f32 %v4855, %v4929
  %v4931 = vpop.f32.mrb[0].mxu0
  %4932 = vmatprep.mubr.f32.mxu0 0.0
  %4933 = vmatmul.mubr.f32.gmra.mrb[0].mxu0 %v4861
  %v4934 = vpop.f32.mrb[0].mxu0
  %v4935 = vadd.f32 %v4855, %v4934
  %v4936 = vpop.f32.mrb[0].mxu0
  %4937 = vdwg.mxu0
  %4942 = vrot.lane.b32.xlu0 %v4846, 96
  %v4943 = vpop.permute.xlu0 %4942
  %4944 = vrot.lane.b32.xlu0 %v4847, 96
  %v4945 = vpop.permute.xlu0 %4944
  %4946 = vrot.lane.b32.xlu0 %v4848, 96
  %v4947 = vpop.permute.xlu0 %4946
  %4948 = vrot.lane.b32.xlu0 %v4849, 96
  %v4949 = vpop.permute.xlu0 %4948
  %4954 = vrot.lane.b32.xlu0 %v4855, 96
  %v4955 = vpop.permute.xlu0 %4954
  %v4958 = vsel %vm188, %v3549, 0
  %v4961 = vsel %vm188, %v3550, 0
  %4963 = vmatprep.subr.mxu0 0.0
  %4964 = vmatpush1.msra.mxu0 %v4943
  %4965 = vmatprep.subr.mxu0 0.0
  %4966 = vmatpush1.msra.mxu0 %v4945
  %4967 = vmatprep.subr.mxu0 0.0
  %4968 = vmatpush1.msra.mxu0 %v4947
  %4969 = vmatprep.subr.mxu0 0.0
  %4970 = vmatpush1.msra.mxu0 %v4949
  %4971 = vmatprep.subr.mxu0 0.0
  %4972 = vmatpush1.msra.mxu0 0.0
  %4973 = vmatprep.subr.mxu0 0.0
  %4974 = vmatpush1.msra.mxu0 0.0
  %4975 = vmatprep.subr.mxu0 0.0
  %4976 = vmatpush1.msra.mxu0 0.0
  %4977 = vmatprep.subr.mxu0 0.0
  %4978 = vmatpush1.msra.mxu0 0.0
  %4979 = vmatprep.subr.mxu0 0.0
  %4980 = vmatpush1.msra.mxu0 0.0
  %4981 = vmatprep.subr.mxu0 0.0
  %4982 = vmatpush1.msra.mxu0 0.0
  %4983 = vmatprep.subr.mxu0 0.0
  %4984 = vmatpush1.msra.mxu0 0.0
  %4985 = vmatprep.subr.mxu0 0.0
  %4986 = vmatpush1.msra.mxu0 0.0
  %4987 = vmatprep.subr.mxu0 0.0
  %4988 = vmatpush1.msra.mxu0 0.0
  %4989 = vmatprep.subr.mxu0 0.0
  %4990 = vmatpush1.msra.mxu0 0.0
  %4991 = vmatprep.subr.mxu0 0.0
  %4992 = vmatpush1.msra.mxu0 0.0
  %4993 = vmatprep.subr.mxu0 0.0
  %4994 = vmatpush1.msra.mxu0 0.0
  %4995 = vmatprep.subr.mxu0 0.0
  %4996 = vmatpush1.msra.mxu0 0.0
  %4997 = vmatprep.subr.mxu0 0.0
  %4998 = vmatpush1.msra.mxu0 0.0
  %4999 = vmatprep.subr.mxu0 0.0
  %5000 = vmatpush1.msra.mxu0 0.0
  %5001 = vmatprep.subr.mxu0 0.0
  %5002 = vmatpush1.msra.mxu0 0.0
  %5003 = vmatprep.subr.mxu0 0.0
  %5004 = vmatpush1.msra.mxu0 0.0
  %5005 = vmatprep.subr.mxu0 0.0
  %5006 = vmatpush1.msra.mxu0 0.0
  %5007 = vmatprep.subr.mxu0 0.0
  %5008 = vmatpush1.msra.mxu0 0.0
  %5009 = vmatprep.subr.mxu0 0.0
  %5010 = vmatpush1.msra.mxu0 0.0
  %5011 = vmatprep.subr.mxu0 0.0
  %5012 = vmatpush1.msra.mxu0 0.0
  %5013 = vmatprep.subr.mxu0 0.0
  %5014 = vmatpush1.msra.mxu0 0.0
  %5015 = vmatprep.subr.mxu0 0.0
  %5016 = vmatpush1.msra.mxu0 0.0
  %5017 = vmatprep.subr.mxu0 0.0
  %5018 = vmatpush1.msra.mxu0 0.0
  %5019 = vmatprep.subr.mxu0 0.0
  %5020 = vmatpush1.msra.mxu0 0.0
  %5021 = vmatprep.subr.mxu0 0.0
  %5022 = vmatpush1.msra.mxu0 0.0
  %5023 = vmatprep.subr.mxu0 0.0
  %5024 = vmatpush1.msra.mxu0 0.0
  %5025 = vmatprep.subr.mxu0 0.0
  %5026 = vmatpush1.msra.mxu0 0.0
  %5027 = vmatprep.mubr.f32.mxu0 0.0
  %5028 = vmatmul.mubr.f32.gmra.mrb[0].mxu0 %v4958
  %v5029 = vpop.f32.mrb[0].mxu0
  %v5030 = vadd.f32 %v4955, %v5029
  %v5031 = vpop.f32.mrb[0].mxu0
  %5032 = vmatprep.mubr.f32.mxu0 0.0
  %5033 = vmatmul.mubr.f32.gmra.mrb[0].mxu0 %v4961
  %v5034 = vpop.f32.mrb[0].mxu0
  %v5035 = vadd.f32 %v4955, %v5034
  %v5036 = vpop.f32.mrb[0].mxu0
  %5037 = vdwg.mxu0
  %v5038 = vld [vmem:[%s47] sm:$0xff]
  %v5039 = vld [vmem:[%s47 + $0x8] sm:$0xff]
  %v5040 = vld [vmem:[%s47 + $0x10] sm:$0xff]
  %v5041 = vld [vmem:[%s47 + $0x18] sm:$0xff]
  %v5043 = vsel %vm280, %v4930, 0
  %v5046 = vsel %vm280, %v4935, 0
  %v5049 = vsel %vm280, %v5030, 0
  %v5052 = vsel %vm280, %v5035, 0
  %5054 = vmatprep.subr.mxu0 0.0
  %5055 = vmatpush1.xpose.msra.mxu0 %v5049
  %5056 = vmatprep.subr.mxu0 0.0
  %5057 = vmatpush1.xpose.msra.mxu0 %v5052
  %5058 = vmatprep.subr.mxu0 0.0
  %5059 = vmatpush1.xpose.msra.mxu0 0.0
  %5060 = vmatprep.subr.mxu0 0.0
  %5061 = vmatpush1.xpose.msra.mxu0 0.0
  %5062 = vmatprep.subr.mxu0 0.0
  %5063 = vmatpush1.xpose.msra.mxu0 0.0
  %5064 = vmatprep.subr.mxu0 0.0
  %5065 = vmatpush1.xpose.msra.mxu0 0.0
  %5066 = vmatprep.subr.mxu0 0.0
  %5067 = vmatpush1.xpose.msra.mxu0 0.0
  %5068 = vmatprep.subr.mxu0 0.0
  %5069 = vmatpush1.xpose.msra.mxu0 0.0
  %5070 = vmatprep.subr.mxu0 0.0
  %5071 = vmatpush1.xpose.msra.mxu0 0.0
  %5072 = vmatprep.subr.mxu0 0.0
  %5073 = vmatpush1.xpose.msra.mxu0 0.0
  %5074 = vmatprep.subr.mxu0 0.0
  %5075 = vmatpush1.xpose.msra.mxu0 0.0
  %5076 = vmatprep.subr.mxu0 0.0
  %5077 = vmatpush1.xpose.msra.mxu0 0.0
  %5078 = vmatprep.subr.mxu0 0.0
  %5079 = vmatpush1.xpose.msra.mxu0 0.0
  %5080 = vmatprep.subr.mxu0 0.0
  %5081 = vmatpush1.xpose.msra.mxu0 0.0
  %5082 = vmatprep.subr.mxu0 0.0
  %5083 = vmatpush1.xpose.msra.mxu0 0.0
  %5084 = vmatprep.subr.mxu0 0.0
  %5085 = vmatpush1.xpose.msra.mxu0 0.0
  %5086 = vmatprep.subr.mxu0 0.0
  %5087 = vmatpush1.xpose.msra.mxu0 0.0
  %5088 = vmatprep.subr.mxu0 0.0
  %5089 = vmatpush1.xpose.msra.mxu0 0.0
  %5090 = vmatprep.subr.mxu0 0.0
  %5091 = vmatpush1.xpose.msra.mxu0 0.0
  %5092 = vmatprep.subr.mxu0 0.0
  %5093 = vmatpush1.xpose.msra.mxu0 0.0
  %5094 = vmatprep.subr.mxu0 0.0
  %5095 = vmatpush1.xpose.msra.mxu0 0.0
  %5096 = vmatprep.subr.mxu0 0.0
  %5097 = vmatpush1.xpose.msra.mxu0 0.0
  %5098 = vmatprep.subr.mxu0 0.0
  %5099 = vmatpush1.xpose.msra.mxu0 0.0
  %5100 = vmatprep.subr.mxu0 0.0
  %5101 = vmatpush1.xpose.msra.mxu0 0.0
  %5102 = vmatprep.subr.mxu0 0.0
  %5103 = vmatpush1.xpose.msra.mxu0 0.0
  %5104 = vmatprep.subr.mxu0 0.0
  %5105 = vmatpush1.xpose.msra.mxu0 0.0
  %5106 = vmatprep.subr.mxu0 0.0
  %5107 = vmatpush1.xpose.msra.mxu0 0.0
  %5108 = vmatprep.subr.mxu0 0.0
  %5109 = vmatpush1.xpose.msra.mxu0 0.0
  %5110 = vmatprep.subr.mxu0 0.0
  %5111 = vmatpush1.xpose.msra.mxu0 0.0
  %5112 = vmatprep.subr.mxu0 0.0
  %5113 = vmatpush1.xpose.msra.mxu0 0.0
  %5114 = vmatprep.subr.mxu0 0.0
  %5115 = vmatpush1.xpose.msra.mxu0 0.0
  %5116 = vmatprep.subr.mxu0 0.0
  %5117 = vmatpush1.xpose.msra.mxu0 0.0
  %5118 = vmatprep.mubr.f32.mxu0 0.0
  %5119 = vmatmul.mubr.f32.gmra.mrb[0].mxu0 %v5043
  %v5120 = vpop.f32.mrb[0].mxu0
  %v5121 = vadd.f32 0.0, %v5120
  %v5122 = vpop.f32.mrb[0].mxu0
  %5123 = vmatprep.mubr.f32.mxu0 0.0
  %5124 = vmatmul.mubr.f32.gmra.mrb[0].mxu0 %v5046
  %v5125 = vpop.f32.mrb[0].mxu0
  %v5126 = vadd.f32 0.0, %v5125
  %v5127 = vpop.f32.mrb[0].mxu0
  %5128 = vdwg.mxu0
  %v5129 = vmul.f32 %v5121, 0.35355338
  %v5130 = vmul.f32 %v5126, 0.35355338
  %v5131 = vadd.f32 %v5129, %v173
  %v5132 = vadd.f32 %v5130, %v174
  %v5133 = vsel %vm368, %v5131, -inf
  %5134 = vmax.xlane.f32.xlu0 %v5133
  %v5135 = vpop.xlane.xlu0 %5134
  %v5136 = vsel %vm368, %v5132, -inf
  %5137 = vmax.xlane.f32.xlu0 %v5136
  %v5138 = vpop.xlane.xlu0 %5137
  %v5139 = vsub.f32 %v5131, %v5135
  %v5140 = vsub.f32 %v5132, %v5138
  %v5141 = vmul.f32 %v5139, 1.442695
  %v5142 = vpow.pop %v5141
  %v5143 = vmul.f32 %v5140, 1.442695
  %v5144 = vpow.pop %v5143
  %v5145 = vsel %vm368, %v5142, 0.0
  %5146 = vadd.xlane.f32.xlu0 %v5145
  %v5147 = vpop.xlane.xlu0 %5146
  %v5148 = vsel %vm368, %v5144, 0.0
  %5149 = vadd.xlane.f32.xlu0 %v5148
  %v5150 = vpop.xlane.xlu0 %5149
  %v5151 = vrcp.pop %v5147
  %v5152 = vmul.f32 %v5142, %v5151
  %v5153 = vrcp.pop %v5150
  %v5154 = vmul.f32 %v5144, %v5153
  %5155 = vrot.lane.b32.xlu0 %v5030, 96
  %v5156 = vpop.permute.xlu0 %5155
  %5157 = vrot.lane.b32.xlu0 %v5035, 96
  %v5158 = vpop.permute.xlu0 %5157
  %v5162 = vsel %vm368, %v5152, 0
  %v5165 = vsel %vm368, %v5154, 0
  %5167 = vmatprep.subr.mxu0 0.0
  %5168 = vmatpush1.msra.mxu0 %v5156
  %5169 = vmatprep.subr.mxu0 0.0
  %5170 = vmatpush1.msra.mxu0 %v5158
  %5171 = vmatprep.subr.mxu0 0.0
  %5172 = vmatpush1.msra.mxu0 0.0
  %5173 = vmatprep.subr.mxu0 0.0
  %5174 = vmatpush1.msra.mxu0 0.0
  %5175 = vmatprep.subr.mxu0 0.0
  %5176 = vmatpush1.msra.mxu0 0.0
  %5177 = vmatprep.subr.mxu0 0.0
  %5178 = vmatpush1.msra.mxu0 0.0
  %5179 = vmatprep.subr.mxu0 0.0
  %5180 = vmatpush1.msra.mxu0 0.0
  %5181 = vmatprep.subr.mxu0 0.0
  %5182 = vmatpush1.msra.mxu0 0.0
  %5183 = vmatprep.subr.mxu0 0.0
  %5184 = vmatpush1.msra.mxu0 0.0
  %5185 = vmatprep.subr.mxu0 0.0
  %5186 = vmatpush1.msra.mxu0 0.0
  %5187 = vmatprep.subr.mxu0 0.0
  %5188 = vmatpush1.msra.mxu0 0.0
  %5189 = vmatprep.subr.mxu0 0.0
  %5190 = vmatpush1.msra.mxu0 0.0
  %5191 = vmatprep.subr.mxu0 0.0
  %5192 = vmatpush1.msra.mxu0 0.0
  %5193 = vmatprep.subr.mxu0 0.0
  %5194 = vmatpush1.msra.mxu0 0.0
  %5195 = vmatprep.subr.mxu0 0.0
  %5196 = vmatpush1.msra.mxu0 0.0
  %5197 = vmatprep.subr.mxu0 0.0
  %5198 = vmatpush1.msra.mxu0 0.0
  %5199 = vmatprep.subr.mxu0 0.0
  %5200 = vmatpush1.msra.mxu0 0.0
  %5201 = vmatprep.subr.mxu0 0.0
  %5202 = vmatpush1.msra.mxu0 0.0
  %5203 = vmatprep.subr.mxu0 0.0
  %5204 = vmatpush1.msra.mxu0 0.0
  %5205 = vmatprep.subr.mxu0 0.0
  %5206 = vmatpush1.msra.mxu0 0.0
  %5207 = vmatprep.subr.mxu0 0.0
  %5208 = vmatpush1.msra.mxu0 0.0
  %5209 = vmatprep.subr.mxu0 0.0
  %5210 = vmatpush1.msra.mxu0 0.0
  %5211 = vmatprep.subr.mxu0 0.0
  %5212 = vmatpush1.msra.mxu0 0.0
  %5213 = vmatprep.subr.mxu0 0.0
  %5214 = vmatpush1.msra.mxu0 0.0
  %5215 = vmatprep.subr.mxu0 0.0
  %5216 = vmatpush1.msra.mxu0 0.0
  %5217 = vmatprep.subr.mxu0 0.0
  %5218 = vmatpush1.msra.mxu0 0.0
  %5219 = vmatprep.subr.mxu0 0.0
  %5220 = vmatpush1.msra.mxu0 0.0
  %5221 = vmatprep.subr.mxu0 0.0
  %5222 = vmatpush1.msra.mxu0 0.0
  %5223 = vmatprep.subr.mxu0 0.0
  %5224 = vmatpush1.msra.mxu0 0.0
  %5225 = vmatprep.subr.mxu0 0.0
  %5226 = vmatpush1.msra.mxu0 0.0
  %5227 = vmatprep.subr.mxu0 0.0
  %5228 = vmatpush1.msra.mxu0 0.0
  %5229 = vmatprep.subr.mxu0 0.0
  %5230 = vmatpush1.msra.mxu0 0.0
  %5231 = vmatprep.mubr.f32.mxu0 0.0
  %5232 = vmatmul.mubr.f32.gmra.mrb[0].mxu0 %v5162
  %v5233 = vpop.f32.mrb[0].mxu0
  %v5234 = vadd.f32 0.0, %v5233
  %v5235 = vpop.f32.mrb[0].mxu0
  %5236 = vmatprep.mubr.f32.mxu0 0.0
  %5237 = vmatmul.mubr.f32.gmra.mrb[0].mxu0 %v5165
  %v5238 = vpop.f32.mrb[0].mxu0
  %v5239 = vadd.f32 0.0, %v5238
  %v5240 = vpop.f32.mrb[0].mxu0
  %5241 = vdwg.mxu0
  %5242 = vrot.lane.b32.xlu0 %v4930, 120
  %v5243 = vpop.permute.xlu0 %5242
  %5244 = vrot.lane.b32.xlu0 %v4935, 120
  %v5245 = vpop.permute.xlu0 %5244
  %5246 = vrot.lane.b32.xlu0 %v5030, 120
  %v5247 = vpop.permute.xlu0 %5246
  %5248 = vrot.lane.b32.xlu0 %v5035, 120
  %v5249 = vpop.permute.xlu0 %5248
  %v5250 = vsel %vm280, %v5243, 0
  %v5252 = vsel %vm280, %v5245, 0
  %v5254 = vsel %vm280, %v5247, 0
  %v5256 = vsel %vm280, %v5249, 0
  %5258 = vmatprep.subr.mxu0 0.0
  %5259 = vmatpush1.xpose.msra.mxu0 %v5254
  %5260 = vmatprep.subr.mxu0 0.0
  %5261 = vmatpush1.xpose.msra.mxu0 %v5256
  %5262 = vmatprep.subr.mxu0 0.0
  %5263 = vmatpush1.xpose.msra.mxu0 0.0
  %5264 = vmatprep.subr.mxu0 0.0
  %5265 = vmatpush1.xpose.msra.mxu0 0.0
  %5266 = vmatprep.subr.mxu0 0.0
  %5267 = vmatpush1.xpose.msra.mxu0 0.0
  %5268 = vmatprep.subr.mxu0 0.0
  %5269 = vmatpush1.xpose.msra.mxu0 0.0
  %5270 = vmatprep.subr.mxu0 0.0
  %5271 = vmatpush1.xpose.msra.mxu0 0.0
  %5272 = vmatprep.subr.mxu0 0.0
  %5273 = vmatpush1.xpose.msra.mxu0 0.0
  %5274 = vmatprep.subr.mxu0 0.0
  %5275 = vmatpush1.xpose.msra.mxu0 0.0
  %5276 = vmatprep.subr.mxu0 0.0
  %5277 = vmatpush1.xpose.msra.mxu0 0.0
  %5278 = vmatprep.subr.mxu0 0.0
  %5279 = vmatpush1.xpose.msra.mxu0 0.0
  %5280 = vmatprep.subr.mxu0 0.0
  %5281 = vmatpush1.xpose.msra.mxu0 0.0
  %5282 = vmatprep.subr.mxu0 0.0
  %5283 = vmatpush1.xpose.msra.mxu0 0.0
  %5284 = vmatprep.subr.mxu0 0.0
  %5285 = vmatpush1.xpose.msra.mxu0 0.0
  %5286 = vmatprep.subr.mxu0 0.0
  %5287 = vmatpush1.xpose.msra.mxu0 0.0
  %5288 = vmatprep.subr.mxu0 0.0
  %5289 = vmatpush1.xpose.msra.mxu0 0.0
  %5290 = vmatprep.subr.mxu0 0.0
  %5291 = vmatpush1.xpose.msra.mxu0 0.0
  %5292 = vmatprep.subr.mxu0 0.0
  %5293 = vmatpush1.xpose.msra.mxu0 0.0
  %5294 = vmatprep.subr.mxu0 0.0
  %5295 = vmatpush1.xpose.msra.mxu0 0.0
  %5296 = vmatprep.subr.mxu0 0.0
  %5297 = vmatpush1.xpose.msra.mxu0 0.0
  %5298 = vmatprep.subr.mxu0 0.0
  %5299 = vmatpush1.xpose.msra.mxu0 0.0
  %5300 = vmatprep.subr.mxu0 0.0
  %5301 = vmatpush1.xpose.msra.mxu0 0.0
  %5302 = vmatprep.subr.mxu0 0.0
  %5303 = vmatpush1.xpose.msra.mxu0 0.0
  %5304 = vmatprep.subr.mxu0 0.0
  %5305 = vmatpush1.xpose.msra.mxu0 0.0
  %5306 = vmatprep.subr.mxu0 0.0
  %5307 = vmatpush1.xpose.msra.mxu0 0.0
  %5308 = vmatprep.subr.mxu0 0.0
  %5309 = vmatpush1.xpose.msra.mxu0 0.0
  %5310 = vmatprep.subr.mxu0 0.0
  %5311 = vmatpush1.xpose.msra.mxu0 0.0
  %5312 = vmatprep.subr.mxu0 0.0
  %5313 = vmatpush1.xpose.msra.mxu0 0.0
  %5314 = vmatprep.subr.mxu0 0.0
  %5315 = vmatpush1.xpose.msra.mxu0 0.0
  %5316 = vmatprep.subr.mxu0 0.0
  %5317 = vmatpush1.xpose.msra.mxu0 0.0
  %5318 = vmatprep.subr.mxu0 0.0
  %5319 = vmatpush1.xpose.msra.mxu0 0.0
  %5320 = vmatprep.subr.mxu0 0.0
  %5321 = vmatpush1.xpose.msra.mxu0 0.0
  %5322 = vmatprep.mubr.f32.mxu0 0.0
  %5323 = vmatmul.mubr.f32.gmra.mrb[0].mxu0 %v5250
  %v5324 = vpop.f32.mrb[0].mxu0
  %v5325 = vadd.f32 0.0, %v5324
  %v5326 = vpop.f32.mrb[0].mxu0
  %5327 = vmatprep.mubr.f32.mxu0 0.0
  %5328 = vmatmul.mubr.f32.gmra.mrb[0].mxu0 %v5252
  %v5329 = vpop.f32.mrb[0].mxu0
  %v5330 = vadd.f32 0.0, %v5329
  %v5331 = vpop.f32.mrb[0].mxu0
  %5332 = vdwg.mxu0
  %v5333 = vmul.f32 %v5325, 0.35355338
  %v5334 = vmul.f32 %v5330, 0.35355338
  %v5335 = vadd.f32 %v5333, %v173
  %v5336 = vadd.f32 %v5334, %v174
  %v5337 = vsel %vm368, %v5335, -inf
  %5338 = vmax.xlane.f32.xlu0 %v5337
  %v5339 = vpop.xlane.xlu0 %5338
  %v5340 = vsel %vm368, %v5336, -inf
  %5341 = vmax.xlane.f32.xlu0 %v5340
  %v5342 = vpop.xlane.xlu0 %5341
  %v5343 = vsub.f32 %v5335, %v5339
  %v5344 = vsub.f32 %v5336, %v5342
  %v5345 = vmul.f32 %v5343, 1.442695
  %v5346 = vpow.pop %v5345
  %v5347 = vmul.f32 %v5344, 1.442695
  %v5348 = vpow.pop %v5347
  %v5349 = vsel %vm368, %v5346, 0.0
  %5350 = vadd.xlane.f32.xlu0 %v5349
  %v5351 = vpop.xlane.xlu0 %5350
  %v5352 = vsel %vm368, %v5348, 0.0
  %5353 = vadd.xlane.f32.xlu0 %v5352
  %v5354 = vpop.xlane.xlu0 %5353
  %v5355 = vrcp.pop %v5351
  %v5356 = vmul.f32 %v5346, %v5355
  %v5357 = vrcp.pop %v5354
  %v5358 = vmul.f32 %v5348, %v5357
  %5359 = vrot.lane.b32.xlu0 %v5030, 88
  %v5360 = vpop.permute.xlu0 %5359
  %5361 = vrot.lane.b32.xlu0 %v5035, 88
  %v5362 = vpop.permute.xlu0 %5361
  %v5366 = vsel %vm368, %v5356, 0
  %v5369 = vsel %vm368, %v5358, 0
  %5371 = vmatprep.subr.mxu0 0.0
  %5372 = vmatpush1.msra.mxu0 %v5360
  %5373 = vmatprep.subr.mxu0 0.0
  %5374 = vmatpush1.msra.mxu0 %v5362
  %5375 = vmatprep.subr.mxu0 0.0
  %5376 = vmatpush1.msra.mxu0 0.0
  %5377 = vmatprep.subr.mxu0 0.0
  %5378 = vmatpush1.msra.mxu0 0.0
  %5379 = vmatprep.subr.mxu0 0.0
  %5380 = vmatpush1.msra.mxu0 0.0
  %5381 = vmatprep.subr.mxu0 0.0
  %5382 = vmatpush1.msra.mxu0 0.0
  %5383 = vmatprep.subr.mxu0 0.0
  %5384 = vmatpush1.msra.mxu0 0.0
  %5385 = vmatprep.subr.mxu0 0.0
  %5386 = vmatpush1.msra.mxu0 0.0
  %5387 = vmatprep.subr.mxu0 0.0
  %5388 = vmatpush1.msra.mxu0 0.0
  %5389 = vmatprep.subr.mxu0 0.0
  %5390 = vmatpush1.msra.mxu0 0.0
  %5391 = vmatprep.subr.mxu0 0.0
  %5392 = vmatpush1.msra.mxu0 0.0
  %5393 = vmatprep.subr.mxu0 0.0
  %5394 = vmatpush1.msra.mxu0 0.0
  %5395 = vmatprep.subr.mxu0 0.0
  %5396 = vmatpush1.msra.mxu0 0.0
  %5397 = vmatprep.subr.mxu0 0.0
  %5398 = vmatpush1.msra.mxu0 0.0
  %5399 = vmatprep.subr.mxu0 0.0
  %5400 = vmatpush1.msra.mxu0 0.0
  %5401 = vmatprep.subr.mxu0 0.0
  %5402 = vmatpush1.msra.mxu0 0.0
  %5403 = vmatprep.subr.mxu0 0.0
  %5404 = vmatpush1.msra.mxu0 0.0
  %5405 = vmatprep.subr.mxu0 0.0
  %5406 = vmatpush1.msra.mxu0 0.0
  %5407 = vmatprep.subr.mxu0 0.0
  %5408 = vmatpush1.msra.mxu0 0.0
  %5409 = vmatprep.subr.mxu0 0.0
  %5410 = vmatpush1.msra.mxu0 0.0
  %5411 = vmatprep.subr.mxu0 0.0
  %5412 = vmatpush1.msra.mxu0 0.0
  %5413 = vmatprep.subr.mxu0 0.0
  %5414 = vmatpush1.msra.mxu0 0.0
  %5415 = vmatprep.subr.mxu0 0.0
  %5416 = vmatpush1.msra.mxu0 0.0
  %5417 = vmatprep.subr.mxu0 0.0
  %5418 = vmatpush1.msra.mxu0 0.0
  %5419 = vmatprep.subr.mxu0 0.0
  %5420 = vmatpush1.msra.mxu0 0.0
  %5421 = vmatprep.subr.mxu0 0.0
  %5422 = vmatpush1.msra.mxu0 0.0
  %5423 = vmatprep.subr.mxu0 0.0
  %5424 = vmatpush1.msra.mxu0 0.0
  %5425 = vmatprep.subr.mxu0 0.0
  %5426 = vmatpush1.msra.mxu0 0.0
  %5427 = vmatprep.subr.mxu0 0.0
  %5428 = vmatpush1.msra.mxu0 0.0
  %5429 = vmatprep.subr.mxu0 0.0
  %5430 = vmatpush1.msra.mxu0 0.0
  %5431 = vmatprep.subr.mxu0 0.0
  %5432 = vmatpush1.msra.mxu0 0.0
  %5433 = vmatprep.subr.mxu0 0.0
  %5434 = vmatpush1.msra.mxu0 0.0
  %5435 = vmatprep.mubr.f32.mxu0 0.0
  %5436 = vmatmul.mubr.f32.gmra.mrb[0].mxu0 %v5366
  %v5437 = vpop.f32.mrb[0].mxu0
  %v5438 = vadd.f32 0.0, %v5437
  %v5439 = vpop.f32.mrb[0].mxu0
  %5440 = vmatprep.mubr.f32.mxu0 0.0
  %5441 = vmatmul.mubr.f32.gmra.mrb[0].mxu0 %v5369
  %v5442 = vpop.f32.mrb[0].mxu0
  %v5443 = vadd.f32 0.0, %v5442
  %v5444 = vpop.f32.mrb[0].mxu0
  %5445 = vdwg.mxu0
  %v5447 = vsel %vm280, %v5438, 0
  %v5450 = vsel %vm280, %v5443, 0
  %5452 = vmatprep.subr.mxu0 0.0
  %5453 = vmatpush1.msra.mxu0 %v5039
  %5454 = vmatprep.subr.mxu0 0.0
  %5455 = vmatpush1.msra.mxu0 0.0
  %5456 = vmatprep.subr.mxu0 0.0
  %5457 = vmatpush1.msra.mxu0 0.0
  %5458 = vmatprep.subr.mxu0 0.0
  %5459 = vmatpush1.msra.mxu0 0.0
  %5460 = vmatprep.subr.mxu0 0.0
  %5461 = vmatpush1.msra.mxu0 0.0
  %5462 = vmatprep.subr.mxu0 0.0
  %5463 = vmatpush1.msra.mxu0 0.0
  %5464 = vmatprep.subr.mxu0 0.0
  %5465 = vmatpush1.msra.mxu0 0.0
  %5466 = vmatprep.subr.mxu0 0.0
  %5467 = vmatpush1.msra.mxu0 0.0
  %5468 = vmatprep.subr.mxu0 0.0
  %5469 = vmatpush1.msra.mxu0 0.0
  %5470 = vmatprep.subr.mxu0 0.0
  %5471 = vmatpush1.msra.mxu0 0.0
  %5472 = vmatprep.subr.mxu0 0.0
  %5473 = vmatpush1.msra.mxu0 0.0
  %5474 = vmatprep.subr.mxu0 0.0
  %5475 = vmatpush1.msra.mxu0 0.0
  %5476 = vmatprep.subr.mxu0 0.0
  %5477 = vmatpush1.msra.mxu0 0.0
  %5478 = vmatprep.subr.mxu0 0.0
  %5479 = vmatpush1.msra.mxu0 0.0
  %5480 = vmatprep.subr.mxu0 0.0
  %5481 = vmatpush1.msra.mxu0 0.0
  %5482 = vmatprep.subr.mxu0 0.0
  %5483 = vmatpush1.msra.mxu0 0.0
  %5484 = vmatprep.subr.mxu0 0.0
  %5485 = vmatpush1.msra.mxu0 0.0
  %5486 = vmatprep.subr.mxu0 0.0
  %5487 = vmatpush1.msra.mxu0 0.0
  %5488 = vmatprep.subr.mxu0 0.0
  %5489 = vmatpush1.msra.mxu0 0.0
  %5490 = vmatprep.subr.mxu0 0.0
  %5491 = vmatpush1.msra.mxu0 0.0
  %5492 = vmatprep.subr.mxu0 0.0
  %5493 = vmatpush1.msra.mxu0 0.0
  %5494 = vmatprep.subr.mxu0 0.0
  %5495 = vmatpush1.msra.mxu0 0.0
  %5496 = vmatprep.subr.mxu0 0.0
  %5497 = vmatpush1.msra.mxu0 0.0
  %5498 = vmatprep.subr.mxu0 0.0
  %5499 = vmatpush1.msra.mxu0 0.0
  %5500 = vmatprep.subr.mxu0 0.0
  %5501 = vmatpush1.msra.mxu0 0.0
  %5502 = vmatprep.subr.mxu0 0.0
  %5503 = vmatpush1.msra.mxu0 0.0
  %5504 = vmatprep.subr.mxu0 0.0
  %5505 = vmatpush1.msra.mxu0 0.0
  %5506 = vmatprep.subr.mxu0 0.0
  %5507 = vmatpush1.msra.mxu0 0.0
  %5508 = vmatprep.subr.mxu0 0.0
  %5509 = vmatpush1.msra.mxu0 0.0
  %5510 = vmatprep.subr.mxu0 0.0
  %5511 = vmatpush1.msra.mxu0 0.0
  %5512 = vmatprep.subr.mxu0 0.0
  %5513 = vmatpush1.msra.mxu0 0.0
  %5514 = vmatprep.subr.mxu0 0.0
  %5515 = vmatpush1.msra.mxu0 0.0
  %5516 = vmatprep.mubr.f32.mxu0 0.0
  %5517 = vmatmul.mubr.f32.gmra.mrb[0].mxu0 %v5447
  %v5518 = vpop.f32.mrb[0].mxu0
  %v5519 = vadd.f32 0.0, %v5518
  %v5520 = vpop.f32.mrb[0].mxu0
  %5521 = vmatprep.mubr.f32.mxu0 0.0
  %5522 = vmatmul.mubr.f32.gmra.mrb[0].mxu0 %v5450
  %v5523 = vpop.f32.mrb[0].mxu0
  %v5524 = vadd.f32 0.0, %v5523
  %v5525 = vpop.f32.mrb[0].mxu0
  %5526 = vdwg.mxu0
  %v5528 = vsel %vm280, %v5234, 0
  %v5531 = vsel %vm280, %v5239, 0
  %5533 = vmatprep.subr.mxu0 0.0
  %5534 = vmatpush1.msra.mxu0 %v5038
  %5535 = vmatprep.subr.mxu0 0.0
  %5536 = vmatpush1.msra.mxu0 0.0
  %5537 = vmatprep.subr.mxu0 0.0
  %5538 = vmatpush1.msra.mxu0 0.0
  %5539 = vmatprep.subr.mxu0 0.0
  %5540 = vmatpush1.msra.mxu0 0.0
  %5541 = vmatprep.subr.mxu0 0.0
  %5542 = vmatpush1.msra.mxu0 0.0
  %5543 = vmatprep.subr.mxu0 0.0
  %5544 = vmatpush1.msra.mxu0 0.0
  %5545 = vmatprep.subr.mxu0 0.0
  %5546 = vmatpush1.msra.mxu0 0.0
  %5547 = vmatprep.subr.mxu0 0.0
  %5548 = vmatpush1.msra.mxu0 0.0
  %5549 = vmatprep.subr.mxu0 0.0
  %5550 = vmatpush1.msra.mxu0 0.0
  %5551 = vmatprep.subr.mxu0 0.0
  %5552 = vmatpush1.msra.mxu0 0.0
  %5553 = vmatprep.subr.mxu0 0.0
  %5554 = vmatpush1.msra.mxu0 0.0
  %5555 = vmatprep.subr.mxu0 0.0
  %5556 = vmatpush1.msra.mxu0 0.0
  %5557 = vmatprep.subr.mxu0 0.0
  %5558 = vmatpush1.msra.mxu0 0.0
  %5559 = vmatprep.subr.mxu0 0.0
  %5560 = vmatpush1.msra.mxu0 0.0
  %5561 = vmatprep.subr.mxu0 0.0
  %5562 = vmatpush1.msra.mxu0 0.0
  %5563 = vmatprep.subr.mxu0 0.0
  %5564 = vmatpush1.msra.mxu0 0.0
  %5565 = vmatprep.subr.mxu0 0.0
  %5566 = vmatpush1.msra.mxu0 0.0
  %5567 = vmatprep.subr.mxu0 0.0
  %5568 = vmatpush1.msra.mxu0 0.0
  %5569 = vmatprep.subr.mxu0 0.0
  %5570 = vmatpush1.msra.mxu0 0.0
  %5571 = vmatprep.subr.mxu0 0.0
  %5572 = vmatpush1.msra.mxu0 0.0
  %5573 = vmatprep.subr.mxu0 0.0
  %5574 = vmatpush1.msra.mxu0 0.0
  %5575 = vmatprep.subr.mxu0 0.0
  %5576 = vmatpush1.msra.mxu0 0.0
  %5577 = vmatprep.subr.mxu0 0.0
  %5578 = vmatpush1.msra.mxu0 0.0
  %5579 = vmatprep.subr.mxu0 0.0
  %5580 = vmatpush1.msra.mxu0 0.0
  %5581 = vmatprep.subr.mxu0 0.0
  %5582 = vmatpush1.msra.mxu0 0.0
  %5583 = vmatprep.subr.mxu0 0.0
  %5584 = vmatpush1.msra.mxu0 0.0
  %5585 = vmatprep.subr.mxu0 0.0
  %5586 = vmatpush1.msra.mxu0 0.0
  %5587 = vmatprep.subr.mxu0 0.0
  %5588 = vmatpush1.msra.mxu0 0.0
  %5589 = vmatprep.subr.mxu0 0.0
  %5590 = vmatpush1.msra.mxu0 0.0
  %5591 = vmatprep.subr.mxu0 0.0
  %5592 = vmatpush1.msra.mxu0 0.0
  %5593 = vmatprep.subr.mxu0 0.0
  %5594 = vmatpush1.msra.mxu0 0.0
  %5595 = vmatprep.subr.mxu0 0.0
  %5596 = vmatpush1.msra.mxu0 0.0
  %5597 = vmatprep.mubr.f32.mxu0 0.0
  %5598 = vmatmul.mubr.f32.gmra.mrb[0].mxu0 %v5528
  %v5599 = vpop.f32.mrb[0].mxu0
  %v5600 = vadd.f32 %v5519, %v5599
  %v5601 = vpop.f32.mrb[0].mxu0
  %5602 = vmatprep.mubr.f32.mxu0 0.0
  %5603 = vmatmul.mubr.f32.gmra.mrb[0].mxu0 %v5531
  %v5604 = vpop.f32.mrb[0].mxu0
  %v5605 = vadd.f32 %v5524, %v5604
  %v5606 = vpop.f32.mrb[0].mxu0
  %5607 = vdwg.mxu0
  %5608 = vrot.lane.b32.xlu0 %v4930, 112
  %v5609 = vpop.permute.xlu0 %5608
  %5610 = vrot.lane.b32.xlu0 %v4935, 112
  %v5611 = vpop.permute.xlu0 %5610
  %5612 = vrot.lane.b32.xlu0 %v5030, 112
  %v5613 = vpop.permute.xlu0 %5612
  %5614 = vrot.lane.b32.xlu0 %v5035, 112
  %v5615 = vpop.permute.xlu0 %5614
  %v5616 = vsel %vm280, %v5609, 0
  %v5618 = vsel %vm280, %v5611, 0
  %v5620 = vsel %vm280, %v5613, 0
  %v5622 = vsel %vm280, %v5615, 0
  %5624 = vmatprep.subr.mxu0 0.0
  %5625 = vmatpush1.xpose.msra.mxu0 %v5620
  %5626 = vmatprep.subr.mxu0 0.0
  %5627 = vmatpush1.xpose.msra.mxu0 %v5622
  %5628 = vmatprep.subr.mxu0 0.0
  %5629 = vmatpush1.xpose.msra.mxu0 0.0
  %5630 = vmatprep.subr.mxu0 0.0
  %5631 = vmatpush1.xpose.msra.mxu0 0.0
  %5632 = vmatprep.subr.mxu0 0.0
  %5633 = vmatpush1.xpose.msra.mxu0 0.0
  %5634 = vmatprep.subr.mxu0 0.0
  %5635 = vmatpush1.xpose.msra.mxu0 0.0
  %5636 = vmatprep.subr.mxu0 0.0
  %5637 = vmatpush1.xpose.msra.mxu0 0.0
  %5638 = vmatprep.subr.mxu0 0.0
  %5639 = vmatpush1.xpose.msra.mxu0 0.0
  %5640 = vmatprep.subr.mxu0 0.0
  %5641 = vmatpush1.xpose.msra.mxu0 0.0
  %5642 = vmatprep.subr.mxu0 0.0
  %5643 = vmatpush1.xpose.msra.mxu0 0.0
  %5644 = vmatprep.subr.mxu0 0.0
  %5645 = vmatpush1.xpose.msra.mxu0 0.0
  %5646 = vmatprep.subr.mxu0 0.0
  %5647 = vmatpush1.xpose.msra.mxu0 0.0
  %5648 = vmatprep.subr.mxu0 0.0
  %5649 = vmatpush1.xpose.msra.mxu0 0.0
  %5650 = vmatprep.subr.mxu0 0.0
  %5651 = vmatpush1.xpose.msra.mxu0 0.0
  %5652 = vmatprep.subr.mxu0 0.0
  %5653 = vmatpush1.xpose.msra.mxu0 0.0
  %5654 = vmatprep.subr.mxu0 0.0
  %5655 = vmatpush1.xpose.msra.mxu0 0.0
  %5656 = vmatprep.subr.mxu0 0.0
  %5657 = vmatpush1.xpose.msra.mxu0 0.0
  %5658 = vmatprep.subr.mxu0 0.0
  %5659 = vmatpush1.xpose.msra.mxu0 0.0
  %5660 = vmatprep.subr.mxu0 0.0
  %5661 = vmatpush1.xpose.msra.mxu0 0.0
  %5662 = vmatprep.subr.mxu0 0.0
  %5663 = vmatpush1.xpose.msra.mxu0 0.0
  %5664 = vmatprep.subr.mxu0 0.0
  %5665 = vmatpush1.xpose.msra.mxu0 0.0
  %5666 = vmatprep.subr.mxu0 0.0
  %5667 = vmatpush1.xpose.msra.mxu0 0.0
  %5668 = vmatprep.subr.mxu0 0.0
  %5669 = vmatpush1.xpose.msra.mxu0 0.0
  %5670 = vmatprep.subr.mxu0 0.0
  %5671 = vmatpush1.xpose.msra.mxu0 0.0
  %5672 = vmatprep.subr.mxu0 0.0
  %5673 = vmatpush1.xpose.msra.mxu0 0.0
  %5674 = vmatprep.subr.mxu0 0.0
  %5675 = vmatpush1.xpose.msra.mxu0 0.0
  %5676 = vmatprep.subr.mxu0 0.0
  %5677 = vmatpush1.xpose.msra.mxu0 0.0
  %5678 = vmatprep.subr.mxu0 0.0
  %5679 = vmatpush1.xpose.msra.mxu0 0.0
  %5680 = vmatprep.subr.mxu0 0.0
  %5681 = vmatpush1.xpose.msra.mxu0 0.0
  %5682 = vmatprep.subr.mxu0 0.0
  %5683 = vmatpush1.xpose.msra.mxu0 0.0
  %5684 = vmatprep.subr.mxu0 0.0
  %5685 = vmatpush1.xpose.msra.mxu0 0.0
  %5686 = vmatprep.subr.mxu0 0.0
  %5687 = vmatpush1.xpose.msra.mxu0 0.0
  %5688 = vmatprep.mubr.f32.mxu0 0.0
  %5689 = vmatmul.mubr.f32.gmra.mrb[0].mxu0 %v5616
  %v5690 = vpop.f32.mrb[0].mxu0
  %v5691 = vadd.f32 0.0, %v5690
  %v5692 = vpop.f32.mrb[0].mxu0
  %5693 = vmatprep.mubr.f32.mxu0 0.0
  %5694 = vmatmul.mubr.f32.gmra.mrb[0].mxu0 %v5618
  %v5695 = vpop.f32.mrb[0].mxu0
  %v5696 = vadd.f32 0.0, %v5695
  %v5697 = vpop.f32.mrb[0].mxu0
  %5698 = vdwg.mxu0
  %v5699 = vmul.f32 %v5691, 0.35355338
  %v5700 = vmul.f32 %v5696, 0.35355338
  %v5701 = vadd.f32 %v5699, %v173
  %v5702 = vadd.f32 %v5700, %v174
  %v5703 = vsel %vm368, %v5701, -inf
  %5704 = vmax.xlane.f32.xlu0 %v5703
  %v5705 = vpop.xlane.xlu0 %5704
  %v5706 = vsel %vm368, %v5702, -inf
  %5707 = vmax.xlane.f32.xlu0 %v5706
  %v5708 = vpop.xlane.xlu0 %5707
  %v5709 = vsub.f32 %v5701, %v5705
  %v5710 = vsub.f32 %v5702, %v5708
  %v5711 = vmul.f32 %v5709, 1.442695
  %v5712 = vpow.pop %v5711
  %v5713 = vmul.f32 %v5710, 1.442695
  %v5714 = vpow.pop %v5713
  %v5715 = vsel %vm368, %v5712, 0.0
  %5716 = vadd.xlane.f32.xlu0 %v5715
  %v5717 = vpop.xlane.xlu0 %5716
  %v5718 = vsel %vm368, %v5714, 0.0
  %5719 = vadd.xlane.f32.xlu0 %v5718
  %v5720 = vpop.xlane.xlu0 %5719
  %v5721 = vrcp.pop %v5717
  %v5722 = vmul.f32 %v5712, %v5721
  %v5723 = vrcp.pop %v5720
  %v5724 = vmul.f32 %v5714, %v5723
  %5725 = vrot.lane.b32.xlu0 %v5030, 80
  %v5726 = vpop.permute.xlu0 %5725
  %5727 = vrot.lane.b32.xlu0 %v5035, 80
  %v5728 = vpop.permute.xlu0 %5727
  %v5732 = vsel %vm368, %v5722, 0
  %v5735 = vsel %vm368, %v5724, 0
  %5737 = vmatprep.subr.mxu0 0.0
  %5738 = vmatpush1.msra.mxu0 %v5726
  %5739 = vmatprep.subr.mxu0 0.0
  %5740 = vmatpush1.msra.mxu0 %v5728
  %5741 = vmatprep.subr.mxu0 0.0
  %5742 = vmatpush1.msra.mxu0 0.0
  %5743 = vmatprep.subr.mxu0 0.0
  %5744 = vmatpush1.msra.mxu0 0.0
  %5745 = vmatprep.subr.mxu0 0.0
  %5746 = vmatpush1.msra.mxu0 0.0
  %5747 = vmatprep.subr.mxu0 0.0
  %5748 = vmatpush1.msra.mxu0 0.0
  %5749 = vmatprep.subr.mxu0 0.0
  %5750 = vmatpush1.msra.mxu0 0.0
  %5751 = vmatprep.subr.mxu0 0.0
  %5752 = vmatpush1.msra.mxu0 0.0
  %5753 = vmatprep.subr.mxu0 0.0
  %5754 = vmatpush1.msra.mxu0 0.0
  %5755 = vmatprep.subr.mxu0 0.0
  %5756 = vmatpush1.msra.mxu0 0.0
  %5757 = vmatprep.subr.mxu0 0.0
  %5758 = vmatpush1.msra.mxu0 0.0
  %5759 = vmatprep.subr.mxu0 0.0
  %5760 = vmatpush1.msra.mxu0 0.0
  %5761 = vmatprep.subr.mxu0 0.0
  %5762 = vmatpush1.msra.mxu0 0.0
  %5763 = vmatprep.subr.mxu0 0.0
  %5764 = vmatpush1.msra.mxu0 0.0
  %5765 = vmatprep.subr.mxu0 0.0
  %5766 = vmatpush1.msra.mxu0 0.0
  %5767 = vmatprep.subr.mxu0 0.0
  %5768 = vmatpush1.msra.mxu0 0.0
  %5769 = vmatprep.subr.mxu0 0.0
  %5770 = vmatpush1.msra.mxu0 0.0
  %5771 = vmatprep.subr.mxu0 0.0
  %5772 = vmatpush1.msra.mxu0 0.0
  %5773 = vmatprep.subr.mxu0 0.0
  %5774 = vmatpush1.msra.mxu0 0.0
  %5775 = vmatprep.subr.mxu0 0.0
  %5776 = vmatpush1.msra.mxu0 0.0
  %5777 = vmatprep.subr.mxu0 0.0
  %5778 = vmatpush1.msra.mxu0 0.0
  %5779 = vmatprep.subr.mxu0 0.0
  %5780 = vmatpush1.msra.mxu0 0.0
  %5781 = vmatprep.subr.mxu0 0.0
  %5782 = vmatpush1.msra.mxu0 0.0
  %5783 = vmatprep.subr.mxu0 0.0
  %5784 = vmatpush1.msra.mxu0 0.0
  %5785 = vmatprep.subr.mxu0 0.0
  %5786 = vmatpush1.msra.mxu0 0.0
  %5787 = vmatprep.subr.mxu0 0.0
  %5788 = vmatpush1.msra.mxu0 0.0
  %5789 = vmatprep.subr.mxu0 0.0
  %5790 = vmatpush1.msra.mxu0 0.0
  %5791 = vmatprep.subr.mxu0 0.0
  %5792 = vmatpush1.msra.mxu0 0.0
  %5793 = vmatprep.subr.mxu0 0.0
  %5794 = vmatpush1.msra.mxu0 0.0
  %5795 = vmatprep.subr.mxu0 0.0
  %5796 = vmatpush1.msra.mxu0 0.0
  %5797 = vmatprep.subr.mxu0 0.0
  %5798 = vmatpush1.msra.mxu0 0.0
  %5799 = vmatprep.subr.mxu0 0.0
  %5800 = vmatpush1.msra.mxu0 0.0
  %5801 = vmatprep.mubr.f32.mxu0 0.0
  %5802 = vmatmul.mubr.f32.gmra.mrb[0].mxu0 %v5732
  %v5803 = vpop.f32.mrb[0].mxu0
  %v5804 = vadd.f32 0.0, %v5803
  %v5805 = vpop.f32.mrb[0].mxu0
  %5806 = vmatprep.mubr.f32.mxu0 0.0
  %5807 = vmatmul.mubr.f32.gmra.mrb[0].mxu0 %v5735
  %v5808 = vpop.f32.mrb[0].mxu0
  %v5809 = vadd.f32 0.0, %v5808
  %v5810 = vpop.f32.mrb[0].mxu0
  %5811 = vdwg.mxu0
  %v5813 = vsel %vm280, %v5804, 0
  %v5816 = vsel %vm280, %v5809, 0
  %5818 = vmatprep.subr.mxu0 0.0
  %5819 = vmatpush1.msra.mxu0 %v5040
  %5820 = vmatprep.subr.mxu0 0.0
  %5821 = vmatpush1.msra.mxu0 0.0
  %5822 = vmatprep.subr.mxu0 0.0
  %5823 = vmatpush1.msra.mxu0 0.0
  %5824 = vmatprep.subr.mxu0 0.0
  %5825 = vmatpush1.msra.mxu0 0.0
  %5826 = vmatprep.subr.mxu0 0.0
  %5827 = vmatpush1.msra.mxu0 0.0
  %5828 = vmatprep.subr.mxu0 0.0
  %5829 = vmatpush1.msra.mxu0 0.0
  %5830 = vmatprep.subr.mxu0 0.0
  %5831 = vmatpush1.msra.mxu0 0.0
  %5832 = vmatprep.subr.mxu0 0.0
  %5833 = vmatpush1.msra.mxu0 0.0
  %5834 = vmatprep.subr.mxu0 0.0
  %5835 = vmatpush1.msra.mxu0 0.0
  %5836 = vmatprep.subr.mxu0 0.0
  %5837 = vmatpush1.msra.mxu0 0.0
  %5838 = vmatprep.subr.mxu0 0.0
  %5839 = vmatpush1.msra.mxu0 0.0
  %5840 = vmatprep.subr.mxu0 0.0
  %5841 = vmatpush1.msra.mxu0 0.0
  %5842 = vmatprep.subr.mxu0 0.0
  %5843 = vmatpush1.msra.mxu0 0.0
  %5844 = vmatprep.subr.mxu0 0.0
  %5845 = vmatpush1.msra.mxu0 0.0
  %5846 = vmatprep.subr.mxu0 0.0
  %5847 = vmatpush1.msra.mxu0 0.0
  %5848 = vmatprep.subr.mxu0 0.0
  %5849 = vmatpush1.msra.mxu0 0.0
  %5850 = vmatprep.subr.mxu0 0.0
  %5851 = vmatpush1.msra.mxu0 0.0
  %5852 = vmatprep.subr.mxu0 0.0
  %5853 = vmatpush1.msra.mxu0 0.0
  %5854 = vmatprep.subr.mxu0 0.0
  %5855 = vmatpush1.msra.mxu0 0.0
  %5856 = vmatprep.subr.mxu0 0.0
  %5857 = vmatpush1.msra.mxu0 0.0
  %5858 = vmatprep.subr.mxu0 0.0
  %5859 = vmatpush1.msra.mxu0 0.0
  %5860 = vmatprep.subr.mxu0 0.0
  %5861 = vmatpush1.msra.mxu0 0.0
  %5862 = vmatprep.subr.mxu0 0.0
  %5863 = vmatpush1.msra.mxu0 0.0
  %5864 = vmatprep.subr.mxu0 0.0
  %5865 = vmatpush1.msra.mxu0 0.0
  %5866 = vmatprep.subr.mxu0 0.0
  %5867 = vmatpush1.msra.mxu0 0.0
  %5868 = vmatprep.subr.mxu0 0.0
  %5869 = vmatpush1.msra.mxu0 0.0
  %5870 = vmatprep.subr.mxu0 0.0
  %5871 = vmatpush1.msra.mxu0 0.0
  %5872 = vmatprep.subr.mxu0 0.0
  %5873 = vmatpush1.msra.mxu0 0.0
  %5874 = vmatprep.subr.mxu0 0.0
  %5875 = vmatpush1.msra.mxu0 0.0
  %5876 = vmatprep.subr.mxu0 0.0
  %5877 = vmatpush1.msra.mxu0 0.0
  %5878 = vmatprep.subr.mxu0 0.0
  %5879 = vmatpush1.msra.mxu0 0.0
  %5880 = vmatprep.subr.mxu0 0.0
  %5881 = vmatpush1.msra.mxu0 0.0
  %5882 = vmatprep.mubr.f32.mxu0 0.0
  %5883 = vmatmul.mubr.f32.gmra.mrb[0].mxu0 %v5813
  %v5884 = vpop.f32.mrb[0].mxu0
  %v5885 = vadd.f32 0.0, %v5884
  %v5886 = vpop.f32.mrb[0].mxu0
  %5887 = vmatprep.mubr.f32.mxu0 0.0
  %5888 = vmatmul.mubr.f32.gmra.mrb[0].mxu0 %v5816
  %v5889 = vpop.f32.mrb[0].mxu0
  %v5890 = vadd.f32 0.0, %v5889
  %v5891 = vpop.f32.mrb[0].mxu0
  %5892 = vdwg.mxu0
  %v5893 = vadd.f32 %v5600, %v5885
  %v5894 = vadd.f32 %v5605, %v5890
  %5895 = vrot.lane.b32.xlu0 %v4930, 104
  %v5896 = vpop.permute.xlu0 %5895
  %5897 = vrot.lane.b32.xlu0 %v4935, 104
  %v5898 = vpop.permute.xlu0 %5897
  %5899 = vrot.lane.b32.xlu0 %v5030, 104
  %v5900 = vpop.permute.xlu0 %5899
  %5901 = vrot.lane.b32.xlu0 %v5035, 104
  %v5902 = vpop.permute.xlu0 %5901
  %v5903 = vsel %vm280, %v5896, 0
  %v5905 = vsel %vm280, %v5898, 0
  %v5907 = vsel %vm280, %v5900, 0
  %v5909 = vsel %vm280, %v5902, 0
  %5911 = vmatprep.subr.mxu0 0.0
  %5912 = vmatpush1.xpose.msra.mxu0 %v5907
  %5913 = vmatprep.subr.mxu0 0.0
  %5914 = vmatpush1.xpose.msra.mxu0 %v5909
  %5915 = vmatprep.subr.mxu0 0.0
  %5916 = vmatpush1.xpose.msra.mxu0 0.0
  %5917 = vmatprep.subr.mxu0 0.0
  %5918 = vmatpush1.xpose.msra.mxu0 0.0
  %5919 = vmatprep.subr.mxu0 0.0
  %5920 = vmatpush1.xpose.msra.mxu0 0.0
  %5921 = vmatprep.subr.mxu0 0.0
  %5922 = vmatpush1.xpose.msra.mxu0 0.0
  %5923 = vmatprep.subr.mxu0 0.0
  %5924 = vmatpush1.xpose.msra.mxu0 0.0
  %5925 = vmatprep.subr.mxu0 0.0
  %5926 = vmatpush1.xpose.msra.mxu0 0.0
  %5927 = vmatprep.subr.mxu0 0.0
  %5928 = vmatpush1.xpose.msra.mxu0 0.0
  %5929 = vmatprep.subr.mxu0 0.0
  %5930 = vmatpush1.xpose.msra.mxu0 0.0
  %5931 = vmatprep.subr.mxu0 0.0
  %5932 = vmatpush1.xpose.msra.mxu0 0.0
  %5933 = vmatprep.subr.mxu0 0.0
  %5934 = vmatpush1.xpose.msra.mxu0 0.0
  %5935 = vmatprep.subr.mxu0 0.0
  %5936 = vmatpush1.xpose.msra.mxu0 0.0
  %5937 = vmatprep.subr.mxu0 0.0
  %5938 = vmatpush1.xpose.msra.mxu0 0.0
  %5939 = vmatprep.subr.mxu0 0.0
  %5940 = vmatpush1.xpose.msra.mxu0 0.0
  %5941 = vmatprep.subr.mxu0 0.0
  %5942 = vmatpush1.xpose.msra.mxu0 0.0
  %5943 = vmatprep.subr.mxu0 0.0
  %5944 = vmatpush1.xpose.msra.mxu0 0.0
  %5945 = vmatprep.subr.mxu0 0.0
  %5946 = vmatpush1.xpose.msra.mxu0 0.0
  %5947 = vmatprep.subr.mxu0 0.0
  %5948 = vmatpush1.xpose.msra.mxu0 0.0
  %5949 = vmatprep.subr.mxu0 0.0
  %5950 = vmatpush1.xpose.msra.mxu0 0.0
  %5951 = vmatprep.subr.mxu0 0.0
  %5952 = vmatpush1.xpose.msra.mxu0 0.0
  %5953 = vmatprep.subr.mxu0 0.0
  %5954 = vmatpush1.xpose.msra.mxu0 0.0
  %5955 = vmatprep.subr.mxu0 0.0
  %5956 = vmatpush1.xpose.msra.mxu0 0.0
  %5957 = vmatprep.subr.mxu0 0.0
  %5958 = vmatpush1.xpose.msra.mxu0 0.0
  %5959 = vmatprep.subr.mxu0 0.0
  %5960 = vmatpush1.xpose.msra.mxu0 0.0
  %5961 = vmatprep.subr.mxu0 0.0
  %5962 = vmatpush1.xpose.msra.mxu0 0.0
  %5963 = vmatprep.subr.mxu0 0.0
  %5964 = vmatpush1.xpose.msra.mxu0 0.0
  %5965 = vmatprep.subr.mxu0 0.0
  %5966 = vmatpush1.xpose.msra.mxu0 0.0
  %5967 = vmatprep.subr.mxu0 0.0
  %5968 = vmatpush1.xpose.msra.mxu0 0.0
  %5969 = vmatprep.subr.mxu0 0.0
  %5970 = vmatpush1.xpose.msra.mxu0 0.0
  %5971 = vmatprep.subr.mxu0 0.0
  %5972 = vmatpush1.xpose.msra.mxu0 0.0
  %5973 = vmatprep.subr.mxu0 0.0
  %5974 = vmatpush1.xpose.msra.mxu0 0.0
  %5975 = vmatprep.mubr.f32.mxu0 0.0
  %5976 = vmatmul.mubr.f32.gmra.mrb[0].mxu0 %v5903
  %v5977 = vpop.f32.mrb[0].mxu0
  %v5978 = vadd.f32 0.0, %v5977
  %v5979 = vpop.f32.mrb[0].mxu0
  %5980 = vmatprep.mubr.f32.mxu0 0.0
  %5981 = vmatmul.mubr.f32.gmra.mrb[0].mxu0 %v5905
  %v5982 = vpop.f32.mrb[0].mxu0
  %v5983 = vadd.f32 0.0, %v5982
  %v5984 = vpop.f32.mrb[0].mxu0
  %5985 = vdwg.mxu0
  %v5986 = vmul.f32 %v5978, 0.35355338
  %v5987 = vmul.f32 %v5983, 0.35355338
  %v5988 = vadd.f32 %v5986, %v173
  %v5989 = vadd.f32 %v5987, %v174
  %v5990 = vsel %vm368, %v5988, -inf
  %5991 = vmax.xlane.f32.xlu0 %v5990
  %v5992 = vpop.xlane.xlu0 %5991
  %v5993 = vsel %vm368, %v5989, -inf
  %5994 = vmax.xlane.f32.xlu0 %v5993
  %v5995 = vpop.xlane.xlu0 %5994
  %v5996 = vsub.f32 %v5988, %v5992
  %v5997 = vsub.f32 %v5989, %v5995
  %v5998 = vmul.f32 %v5996, 1.442695
  %v5999 = vpow.pop %v5998
  %v6000 = vmul.f32 %v5997, 1.442695
  %v6001 = vpow.pop %v6000
  %v6002 = vsel %vm368, %v5999, 0.0
  %6003 = vadd.xlane.f32.xlu0 %v6002
  %v6004 = vpop.xlane.xlu0 %6003
  %v6005 = vsel %vm368, %v6001, 0.0
  %6006 = vadd.xlane.f32.xlu0 %v6005
  %v6007 = vpop.xlane.xlu0 %6006
  %v6008 = vrcp.pop %v6004
  %v6009 = vmul.f32 %v5999, %v6008
  %v6010 = vrcp.pop %v6007
  %v6011 = vmul.f32 %v6001, %v6010
  %6012 = vrot.lane.b32.xlu0 %v5030, 72
  %v6013 = vpop.permute.xlu0 %6012
  %6014 = vrot.lane.b32.xlu0 %v5035, 72
  %v6015 = vpop.permute.xlu0 %6014
  %v6019 = vsel %vm368, %v6009, 0
  %v6022 = vsel %vm368, %v6011, 0
  %6024 = vmatprep.subr.mxu0 0.0
  %6025 = vmatpush1.msra.mxu0 %v6013
  %6026 = vmatprep.subr.mxu0 0.0
  %6027 = vmatpush1.msra.mxu0 %v6015
  %6028 = vmatprep.subr.mxu0 0.0
  %6029 = vmatpush1.msra.mxu0 0.0
  %6030 = vmatprep.subr.mxu0 0.0
  %6031 = vmatpush1.msra.mxu0 0.0
  %6032 = vmatprep.subr.mxu0 0.0
  %6033 = vmatpush1.msra.mxu0 0.0
  %6034 = vmatprep.subr.mxu0 0.0
  %6035 = vmatpush1.msra.mxu0 0.0
  %6036 = vmatprep.subr.mxu0 0.0
  %6037 = vmatpush1.msra.mxu0 0.0
  %6038 = vmatprep.subr.mxu0 0.0
  %6039 = vmatpush1.msra.mxu0 0.0
  %6040 = vmatprep.subr.mxu0 0.0
  %6041 = vmatpush1.msra.mxu0 0.0
  %6042 = vmatprep.subr.mxu0 0.0
  %6043 = vmatpush1.msra.mxu0 0.0
  %6044 = vmatprep.subr.mxu0 0.0
  %6045 = vmatpush1.msra.mxu0 0.0
  %6046 = vmatprep.subr.mxu0 0.0
  %6047 = vmatpush1.msra.mxu0 0.0
  %6048 = vmatprep.subr.mxu0 0.0
  %6049 = vmatpush1.msra.mxu0 0.0
  %6050 = vmatprep.subr.mxu0 0.0
  %6051 = vmatpush1.msra.mxu0 0.0
  %6052 = vmatprep.subr.mxu0 0.0
  %6053 = vmatpush1.msra.mxu0 0.0
  %6054 = vmatprep.subr.mxu0 0.0
  %6055 = vmatpush1.msra.mxu0 0.0
  %6056 = vmatprep.subr.mxu0 0.0
  %6057 = vmatpush1.msra.mxu0 0.0
  %6058 = vmatprep.subr.mxu0 0.0
  %6059 = vmatpush1.msra.mxu0 0.0
  %6060 = vmatprep.subr.mxu0 0.0
  %6061 = vmatpush1.msra.mxu0 0.0
  %6062 = vmatprep.subr.mxu0 0.0
  %6063 = vmatpush1.msra.mxu0 0.0
  %6064 = vmatprep.subr.mxu0 0.0
  %6065 = vmatpush1.msra.mxu0 0.0
  %6066 = vmatprep.subr.mxu0 0.0
  %6067 = vmatpush1.msra.mxu0 0.0
  %6068 = vmatprep.subr.mxu0 0.0
  %6069 = vmatpush1.msra.mxu0 0.0
  %6070 = vmatprep.subr.mxu0 0.0
  %6071 = vmatpush1.msra.mxu0 0.0
  %6072 = vmatprep.subr.mxu0 0.0
  %6073 = vmatpush1.msra.mxu0 0.0
  %6074 = vmatprep.subr.mxu0 0.0
  %6075 = vmatpush1.msra.mxu0 0.0
  %6076 = vmatprep.subr.mxu0 0.0
  %6077 = vmatpush1.msra.mxu0 0.0
  %6078 = vmatprep.subr.mxu0 0.0
  %6079 = vmatpush1.msra.mxu0 0.0
  %6080 = vmatprep.subr.mxu0 0.0
  %6081 = vmatpush1.msra.mxu0 0.0
  %6082 = vmatprep.subr.mxu0 0.0
  %6083 = vmatpush1.msra.mxu0 0.0
  %6084 = vmatprep.subr.mxu0 0.0
  %6085 = vmatpush1.msra.mxu0 0.0
  %6086 = vmatprep.subr.mxu0 0.0
  %6087 = vmatpush1.msra.mxu0 0.0
  %6088 = vmatprep.mubr.f32.mxu0 0.0
  %6089 = vmatmul.mubr.f32.gmra.mrb[0].mxu0 %v6019
  %v6090 = vpop.f32.mrb[0].mxu0
  %v6091 = vadd.f32 0.0, %v6090
  %v6092 = vpop.f32.mrb[0].mxu0
  %6093 = vmatprep.mubr.f32.mxu0 0.0
  %6094 = vmatmul.mubr.f32.gmra.mrb[0].mxu0 %v6022
  %v6095 = vpop.f32.mrb[0].mxu0
  %v6096 = vadd.f32 0.0, %v6095
  %v6097 = vpop.f32.mrb[0].mxu0
  %6098 = vdwg.mxu0
  %v6100 = vsel %vm280, %v6091, 0
  %v6103 = vsel %vm280, %v6096, 0
  %6105 = vmatprep.subr.mxu0 0.0
  %6106 = vmatpush1.msra.mxu0 %v5041
  %6107 = vmatprep.subr.mxu0 0.0
  %6108 = vmatpush1.msra.mxu0 0.0
  %6109 = vmatprep.subr.mxu0 0.0
  %6110 = vmatpush1.msra.mxu0 0.0
  %6111 = vmatprep.subr.mxu0 0.0
  %6112 = vmatpush1.msra.mxu0 0.0
  %6113 = vmatprep.subr.mxu0 0.0
  %6114 = vmatpush1.msra.mxu0 0.0
  %6115 = vmatprep.subr.mxu0 0.0
  %6116 = vmatpush1.msra.mxu0 0.0
  %6117 = vmatprep.subr.mxu0 0.0
  %6118 = vmatpush1.msra.mxu0 0.0
  %6119 = vmatprep.subr.mxu0 0.0
  %6120 = vmatpush1.msra.mxu0 0.0
  %6121 = vmatprep.subr.mxu0 0.0
  %6122 = vmatpush1.msra.mxu0 0.0
  %6123 = vmatprep.subr.mxu0 0.0
  %6124 = vmatpush1.msra.mxu0 0.0
  %6125 = vmatprep.subr.mxu0 0.0
  %6126 = vmatpush1.msra.mxu0 0.0
  %6127 = vmatprep.subr.mxu0 0.0
  %6128 = vmatpush1.msra.mxu0 0.0
  %6129 = vmatprep.subr.mxu0 0.0
  %6130 = vmatpush1.msra.mxu0 0.0
  %6131 = vmatprep.subr.mxu0 0.0
  %6132 = vmatpush1.msra.mxu0 0.0
  %6133 = vmatprep.subr.mxu0 0.0
  %6134 = vmatpush1.msra.mxu0 0.0
  %6135 = vmatprep.subr.mxu0 0.0
  %6136 = vmatpush1.msra.mxu0 0.0
  %6137 = vmatprep.subr.mxu0 0.0
  %6138 = vmatpush1.msra.mxu0 0.0
  %6139 = vmatprep.subr.mxu0 0.0
  %6140 = vmatpush1.msra.mxu0 0.0
  %6141 = vmatprep.subr.mxu0 0.0
  %6142 = vmatpush1.msra.mxu0 0.0
  %6143 = vmatprep.subr.mxu0 0.0
  %6144 = vmatpush1.msra.mxu0 0.0
  %6145 = vmatprep.subr.mxu0 0.0
  %6146 = vmatpush1.msra.mxu0 0.0
  %6147 = vmatprep.subr.mxu0 0.0
  %6148 = vmatpush1.msra.mxu0 0.0
  %6149 = vmatprep.subr.mxu0 0.0
  %6150 = vmatpush1.msra.mxu0 0.0
  %6151 = vmatprep.subr.mxu0 0.0
  %6152 = vmatpush1.msra.mxu0 0.0
  %6153 = vmatprep.subr.mxu0 0.0
  %6154 = vmatpush1.msra.mxu0 0.0
  %6155 = vmatprep.subr.mxu0 0.0
  %6156 = vmatpush1.msra.mxu0 0.0
  %6157 = vmatprep.subr.mxu0 0.0
  %6158 = vmatpush1.msra.mxu0 0.0
  %6159 = vmatprep.subr.mxu0 0.0
  %6160 = vmatpush1.msra.mxu0 0.0
  %6161 = vmatprep.subr.mxu0 0.0
  %6162 = vmatpush1.msra.mxu0 0.0
  %6163 = vmatprep.subr.mxu0 0.0
  %6164 = vmatpush1.msra.mxu0 0.0
  %6165 = vmatprep.subr.mxu0 0.0
  %6166 = vmatpush1.msra.mxu0 0.0
  %6167 = vmatprep.subr.mxu0 0.0
  %6168 = vmatpush1.msra.mxu0 0.0
  %6169 = vmatprep.mubr.f32.mxu0 0.0
  %6170 = vmatmul.mubr.f32.gmra.mrb[0].mxu0 %v6100
  %v6171 = vpop.f32.mrb[0].mxu0
  %v6172 = vadd.f32 0.0, %v6171
  %v6173 = vpop.f32.mrb[0].mxu0
  %6174 = vmatprep.mubr.f32.mxu0 0.0
  %6175 = vmatmul.mubr.f32.gmra.mrb[0].mxu0 %v6103
  %v6176 = vpop.f32.mrb[0].mxu0
  %v6177 = vadd.f32 0.0, %v6176
  %v6178 = vpop.f32.mrb[0].mxu0
  %6179 = vdwg.mxu0
  %v6180 = vadd.f32 %v5893, %v6172
  %v6181 = vadd.f32 %v5894, %v6177
  %v6182 = vld [vmem:[%s49] sm:$0x1]
  %v6184 = vlaneseq
  %v6185 = vshrl.u32 %v6184, 7
  %v6186 = vsub.s32 0, %v6185
  %v6187 = vrot.slane %v6182, %v6186
  %v6189 = vadd.f32 %v6180, %v6187
  %v6190 = vadd.f32 %v6181, %v6187
  %v6191 = vadd.f32 %v4844, %v6189
  %v6192 = vadd.f32 %v4845, %v6190
  %v6193 = vsel %vm188, %v6191, 0.0
  %6194 = vadd.xlane.f32.xlu0 %v6193
  %v6195 = vpop.xlane.xlu0 %6194
  %v6196 = vsel %vm188, %v6192, 0.0
  %6197 = vadd.xlane.f32.xlu0 %v6196
  %v6198 = vpop.xlane.xlu0 %6197
  %v6199 = vmul.f32 %v6195, %v1435
  %v6200 = vmul.f32 %v6198, %v1435
  %v6201 = vsub.f32 %v6191, %v6199
  %v6202 = vsub.f32 %v6192, %v6200
  %v6203 = vmul.f32 %v6201, %v6201
  %v6204 = vmul.f32 %v6202, %v6202
  %v6205 = vsel %vm188, %v6203, 0.0
  %6206 = vadd.xlane.f32.xlu0 %v6205
  %v6207 = vpop.xlane.xlu0 %6206
  %v6208 = vsel %vm188, %v6204, 0.0
  %6209 = vadd.xlane.f32.xlu0 %v6208
  %v6210 = vpop.xlane.xlu0 %6209
  %v6211 = vmul.f32 %v6207, %v1435
  %v6212 = vmul.f32 %v6210, %v1435
  %v6213 = vadd.f32 %v6211, 1e-05
  %v6214 = vadd.f32 %v6212, 1e-05
  %v6215 = vrsqrt.pop %v6213
  %v6216 = vrsqrt.pop %v6214
  %v6217 = vmul.f32 %v6201, %v6215
  %v6218 = vmul.f32 %v6202, %v6216
  %v6219 = vld [vmem:[%s51] sm:$0x1]
  %v6221 = vlaneseq
  %v6222 = vshrl.u32 %v6221, 7
  %v6223 = vsub.s32 0, %v6222
  %v6224 = vrot.slane %v6219, %v6223
  %v6226 = vmul.f32 %v6217, %v6224
  %v6227 = vmul.f32 %v6218, %v6224
  %v6228 = vld [vmem:[%s53] sm:$0x1]
  %v6230 = vlaneseq
  %v6231 = vshrl.u32 %v6230, 7
  %v6232 = vsub.s32 0, %v6231
  %v6233 = vrot.slane %v6228, %v6232
  %v6235 = vadd.f32 %v6226, %v6233
  %v6236 = vadd.f32 %v6227, %v6233
  %v6237 = vpack.c.bf16 %v6236, %v6235
  %v6238 = vld [vmem:[%s55] sm:$0xff]
  %v6239 = vld [vmem:[%s55 + $0x8] sm:$0xff]
  %v6240 = vld [vmem:[%s55 + $0x10] sm:$0xff]
  %v6241 = vld [vmem:[%s55 + $0x18] sm:$0xff]
  %v6242 = vld [vmem:[%s55 + $0x20] sm:$0xff]
  %v6243 = vld [vmem:[%s55 + $0x28] sm:$0xff]
  %v6244 = vld [vmem:[%s55 + $0x30] sm:$0xff]
  %v6245 = vld [vmem:[%s55 + $0x38] sm:$0xff]
  %v6246 = vld [vmem:[%s55 + $0x40] sm:$0xff]
  %v6247 = vld [vmem:[%s55 + $0x48] sm:$0xff]
  %v6248 = vld [vmem:[%s55 + $0x50] sm:$0xff]
  %v6249 = vld [vmem:[%s55 + $0x58] sm:$0xff]
  %v6250 = vld [vmem:[%s55 + $0x60] sm:$0xff]
  %v6251 = vld [vmem:[%s55 + $0x68] sm:$0xff]
  %v6252 = vld [vmem:[%s55 + $0x70] sm:$0xff]
  %v6253 = vld [vmem:[%s55 + $0x78] sm:$0xff]
  %v6254 = vld [vmem:[%s55 + $0x80] sm:$0xff]
  %v6255 = vld [vmem:[%s55 + $0x88] sm:$0xff]
  %v6256 = vld [vmem:[%s55 + $0x90] sm:$0xff]
  %v6257 = vld [vmem:[%s55 + $0x98] sm:$0xff]
  %v6258 = vld [vmem:[%s55 + $0xa0] sm:$0xff]
  %v6259 = vld [vmem:[%s55 + $0xa8] sm:$0xff]
  %v6260 = vld [vmem:[%s55 + $0xb0] sm:$0xff]
  %v6261 = vld [vmem:[%s55 + $0xb8] sm:$0xff]
  %v6262 = vld [vmem:[%s55 + $0xc0] sm:$0xff]
  %v6263 = vld [vmem:[%s55 + $0xc8] sm:$0xff]
  %v6264 = vld [vmem:[%s55 + $0xd0] sm:$0xff]
  %v6265 = vld [vmem:[%s55 + $0xd8] sm:$0xff]
  %v6266 = vld [vmem:[%s55 + $0xe0] sm:$0xff]
  %v6267 = vld [vmem:[%s55 + $0xe8] sm:$0xff]
  %v6268 = vld [vmem:[%s55 + $0xf0] sm:$0xff]
  %v6269 = vld [vmem:[%s55 + $0xf8] sm:$0xff]
  %v6270 = vld [vmem:[%s57] sm:$0xff]
  %v6271 = vld [vmem:[%s57 + $0x8] sm:$0xff]
  %v6274 = vlaneseq
  %v6275 = vshrl.u32 %v6274, 7
  %v6276 = vsub.s32 0, %v6275
  %v6277 = vrot.slane %v6270, %v6276
  %v6278 = vlaneseq
  %v6279 = vshrl.u32 %v6278, 7
  %v6280 = vsub.s32 1, %v6279
  %v6281 = vrot.slane %v6270, %v6280
  %v6282 = vlaneseq
  %v6283 = vshrl.u32 %v6282, 7
  %v6284 = vsub.s32 2, %v6283
  %v6285 = vrot.slane %v6270, %v6284
  %v6286 = vlaneseq
  %v6287 = vshrl.u32 %v6286, 7
  %v6288 = vsub.s32 3, %v6287
  %v6289 = vrot.slane %v6270, %v6288
  %v6290 = vlaneseq
  %v6291 = vshrl.u32 %v6290, 7
  %v6292 = vsub.s32 4, %v6291
  %v6293 = vrot.slane %v6270, %v6292
  %v6294 = vlaneseq
  %v6295 = vshrl.u32 %v6294, 7
  %v6296 = vsub.s32 5, %v6295
  %v6297 = vrot.slane %v6270, %v6296
  %v6298 = vlaneseq
  %v6299 = vshrl.u32 %v6298, 7
  %v6300 = vsub.s32 6, %v6299
  %v6301 = vrot.slane %v6270, %v6300
  %v6302 = vlaneseq
  %v6303 = vshrl.u32 %v6302, 7
  %v6304 = vsub.s32 7, %v6303
  %v6305 = vrot.slane %v6270, %v6304
  %v6306 = vlaneseq
  %v6307 = vshrl.u32 %v6306, 7
  %v6308 = vsub.s32 0, %v6307
  %v6309 = vrot.slane %v6271, %v6308
  %v6310 = vlaneseq
  %v6311 = vshrl.u32 %v6310, 7
  %v6312 = vsub.s32 1, %v6311
  %v6313 = vrot.slane %v6271, %v6312
  %v6314 = vlaneseq
  %v6315 = vshrl.u32 %v6314, 7
  %v6316 = vsub.s32 2, %v6315
  %v6317 = vrot.slane %v6271, %v6316
  %v6318 = vlaneseq
  %v6319 = vshrl.u32 %v6318, 7
  %v6320 = vsub.s32 3, %v6319
  %v6321 = vrot.slane %v6271, %v6320
  %v6322 = vlaneseq
  %v6323 = vshrl.u32 %v6322, 7
  %v6324 = vsub.s32 4, %v6323
  %v6325 = vrot.slane %v6271, %v6324
  %v6326 = vlaneseq
  %v6327 = vshrl.u32 %v6326, 7
  %v6328 = vsub.s32 5, %v6327
  %v6329 = vrot.slane %v6271, %v6328
  %v6330 = vlaneseq
  %v6331 = vshrl.u32 %v6330, 7
  %v6332 = vsub.s32 6, %v6331
  %v6333 = vrot.slane %v6271, %v6332
  %v6334 = vlaneseq
  %v6335 = vshrl.u32 %v6334, 7
  %v6336 = vsub.s32 7, %v6335
  %v6337 = vrot.slane %v6271, %v6336
  %v6386 = vunpack.c.l.b16 %v6238
  %v6387 = vunpack.c.h.b16 %v6238
  %v6388 = vunpack.c.l.b16 %v6239
  %v6389 = vunpack.c.h.b16 %v6239
  %v6390 = vunpack.c.l.b16 %v6240
  %v6391 = vunpack.c.h.b16 %v6240
  %v6392 = vunpack.c.l.b16 %v6241
  %v6393 = vunpack.c.h.b16 %v6241
  %v6394 = vunpack.c.l.b16 %v6242
  %v6395 = vunpack.c.h.b16 %v6242
  %v6396 = vunpack.c.l.b16 %v6243
  %v6397 = vunpack.c.h.b16 %v6243
  %v6398 = vunpack.c.l.b16 %v6244
  %v6399 = vunpack.c.h.b16 %v6244
  %v6400 = vunpack.c.l.b16 %v6245
  %v6401 = vunpack.c.h.b16 %v6245
  %v6402 = vunpack.c.l.b16 %v6246
  %v6403 = vunpack.c.h.b16 %v6246
  %v6404 = vunpack.c.l.b16 %v6247
  %v6405 = vunpack.c.h.b16 %v6247
  %v6406 = vunpack.c.l.b16 %v6248
  %v6407 = vunpack.c.h.b16 %v6248
  %v6408 = vunpack.c.l.b16 %v6249
  %v6409 = vunpack.c.h.b16 %v6249
  %v6410 = vunpack.c.l.b16 %v6250
  %v6411 = vunpack.c.h.b16 %v6250
  %v6412 = vunpack.c.l.b16 %v6251
  %v6413 = vunpack.c.h.b16 %v6251
  %v6414 = vunpack.c.l.b16 %v6252
  %v6415 = vunpack.c.h.b16 %v6252
  %v6416 = vunpack.c.l.b16 %v6253
  %v6417 = vunpack.c.h.b16 %v6253
  %v6418 = vunpack.c.l.b16 %v6254
  %v6419 = vunpack.c.h.b16 %v6254
  %v6420 = vunpack.c.l.b16 %v6255
  %v6421 = vunpack.c.h.b16 %v6255
  %v6422 = vunpack.c.l.b16 %v6256
  %v6423 = vunpack.c.h.b16 %v6256
  %v6424 = vunpack.c.l.b16 %v6257
  %v6425 = vunpack.c.h.b16 %v6257
  %v6426 = vunpack.c.l.b16 %v6258
  %v6427 = vunpack.c.h.b16 %v6258
  %v6428 = vunpack.c.l.b16 %v6259
  %v6429 = vunpack.c.h.b16 %v6259
  %v6430 = vunpack.c.l.b16 %v6260
  %v6431 = vunpack.c.h.b16 %v6260
  %v6432 = vunpack.c.l.b16 %v6261
  %v6433 = vunpack.c.h.b16 %v6261
  %v6434 = vunpack.c.l.b16 %v6262
  %v6435 = vunpack.c.h.b16 %v6262
  %v6436 = vunpack.c.l.b16 %v6263
  %v6437 = vunpack.c.h.b16 %v6263
  %v6438 = vunpack.c.l.b16 %v6264
  %v6439 = vunpack.c.h.b16 %v6264
  %v6440 = vunpack.c.l.b16 %v6265
  %v6441 = vunpack.c.h.b16 %v6265
  %v6442 = vunpack.c.l.b16 %v6266
  %v6443 = vunpack.c.h.b16 %v6266
  %v6444 = vunpack.c.l.b16 %v6267
  %v6445 = vunpack.c.h.b16 %v6267
  %v6446 = vunpack.c.l.b16 %v6268
  %v6447 = vunpack.c.h.b16 %v6268
  %v6448 = vunpack.c.l.b16 %v6269
  %v6449 = vunpack.c.h.b16 %v6269
  %v6450 = vpack.c.b16 %v6402, %v6386
  %v6451 = vpack.c.b16 %v6403, %v6387
  %v6452 = vpack.c.b16 %v6404, %v6388
  %v6453 = vpack.c.b16 %v6405, %v6389
  %v6454 = vpack.c.b16 %v6406, %v6390
  %v6455 = vpack.c.b16 %v6407, %v6391
  %v6456 = vpack.c.b16 %v6408, %v6392
  %v6457 = vpack.c.b16 %v6409, %v6393
  %v6458 = vpack.c.b16 %v6410, %v6394
  %v6459 = vpack.c.b16 %v6411, %v6395
  %v6460 = vpack.c.b16 %v6412, %v6396
  %v6461 = vpack.c.b16 %v6413, %v6397
  %v6462 = vpack.c.b16 %v6414, %v6398
  %v6463 = vpack.c.b16 %v6415, %v6399
  %v6464 = vpack.c.b16 %v6416, %v6400
  %v6465 = vpack.c.b16 %v6417, %v6401
  %v6466 = vpack.c.b16 %v6434, %v6418
  %v6467 = vpack.c.b16 %v6435, %v6419
  %v6468 = vpack.c.b16 %v6436, %v6420
  %v6469 = vpack.c.b16 %v6437, %v6421
  %v6470 = vpack.c.b16 %v6438, %v6422
  %v6471 = vpack.c.b16 %v6439, %v6423
  %v6472 = vpack.c.b16 %v6440, %v6424
  %v6473 = vpack.c.b16 %v6441, %v6425
  %v6474 = vpack.c.b16 %v6442, %v6426
  %v6475 = vpack.c.b16 %v6443, %v6427
  %v6476 = vpack.c.b16 %v6444, %v6428
  %v6477 = vpack.c.b16 %v6445, %v6429
  %v6478 = vpack.c.b16 %v6446, %v6430
  %v6479 = vpack.c.b16 %v6447, %v6431
  %v6480 = vpack.c.b16 %v6448, %v6432
  %v6481 = vpack.c.b16 %v6449, %v6433
  %v6515 = vsel %vm188, %v6237, 0
  %6517 = vmatprep.subr.bf16.mxu0 %v6451
  %6518 = vmatpush1.bf16.msra.mxu0 %v6450
  %6519 = vmatprep.subr.bf16.mxu0 %v6467
  %6520 = vmatpush1.bf16.msra.mxu0 %v6466
  %6521 = vmatprep.subr.bf16.mxu0 0
  %6522 = vmatpush1.bf16.msra.mxu0 0
  %6523 = vmatprep.subr.bf16.mxu0 0
  %6524 = vmatpush1.bf16.msra.mxu0 0
  %6525 = vmatprep.subr.bf16.mxu0 0
  %6526 = vmatpush1.bf16.msra.mxu0 0
  %6527 = vmatprep.subr.bf16.mxu0 0
  %6528 = vmatpush1.bf16.msra.mxu0 0
  %6529 = vmatprep.subr.bf16.mxu0 0
  %6530 = vmatpush1.bf16.msra.mxu0 0
  %6531 = vmatprep.subr.bf16.mxu0 0
  %6532 = vmatpush1.bf16.msra.mxu0 0
  %6533 = vmatprep.subr.bf16.mxu0 0
  %6534 = vmatpush1.bf16.msra.mxu0 0
  %6535 = vmatprep.subr.bf16.mxu0 0
  %6536 = vmatpush1.bf16.msra.mxu0 0
  %6537 = vmatprep.subr.bf16.mxu0 0
  %6538 = vmatpush1.bf16.msra.mxu0 0
  %6539 = vmatprep.subr.bf16.mxu0 0
  %6540 = vmatpush1.bf16.msra.mxu0 0
  %6541 = vmatprep.subr.bf16.mxu0 0
  %6542 = vmatpush1.bf16.msra.mxu0 0
  %6543 = vmatprep.subr.bf16.mxu0 0
  %6544 = vmatpush1.bf16.msra.mxu0 0
  %6545 = vmatprep.subr.bf16.mxu0 0
  %6546 = vmatpush1.bf16.msra.mxu0 0
  %6547 = vmatprep.subr.bf16.mxu0 0
  %6548 = vmatpush1.bf16.msra.mxu0 0
  %6549 = vmatprep.mubr.bf16.mxu0 0
  %6550 = vmatmul.mubr.bf16.gmra.mrb[0].mxu0 %v6515
  %v6551 = vpop.f32.mrb[0].mxu0
  %v6552 = vadd.f32 %v6277, %v6551
  %v6553 = vpop.f32.mrb[0].mxu0
  %v6554 = vadd.f32 %v6281, %v6553
  %v6555 = vpop.f32.mrb[0].mxu0
  %v6556 = vadd.f32 %v6277, %v6555
  %v6557 = vpop.f32.mrb[0].mxu0
  %v6558 = vadd.f32 %v6281, %v6557
  %6559 = vdwg.mxu0
  %6560 = vmatprep.subr.bf16.mxu0 %v6453
  %6561 = vmatpush1.bf16.msra.mxu0 %v6452
  %6562 = vmatprep.subr.bf16.mxu0 %v6469
  %6563 = vmatpush1.bf16.msra.mxu0 %v6468
  %6564 = vmatprep.subr.bf16.mxu0 0
  %6565 = vmatpush1.bf16.msra.mxu0 0
  %6566 = vmatprep.subr.bf16.mxu0 0
  %6567 = vmatpush1.bf16.msra.mxu0 0
  %6568 = vmatprep.subr.bf16.mxu0 0
  %6569 = vmatpush1.bf16.msra.mxu0 0
  %6570 = vmatprep.subr.bf16.mxu0 0
  %6571 = vmatpush1.bf16.msra.mxu0 0
  %6572 = vmatprep.subr.bf16.mxu0 0
  %6573 = vmatpush1.bf16.msra.mxu0 0
  %6574 = vmatprep.subr.bf16.mxu0 0
  %6575 = vmatpush1.bf16.msra.mxu0 0
  %6576 = vmatprep.subr.bf16.mxu0 0
  %6577 = vmatpush1.bf16.msra.mxu0 0
  %6578 = vmatprep.subr.bf16.mxu0 0
  %6579 = vmatpush1.bf16.msra.mxu0 0
  %6580 = vmatprep.subr.bf16.mxu0 0
  %6581 = vmatpush1.bf16.msra.mxu0 0
  %6582 = vmatprep.subr.bf16.mxu0 0
  %6583 = vmatpush1.bf16.msra.mxu0 0
  %6584 = vmatprep.subr.bf16.mxu0 0
  %6585 = vmatpush1.bf16.msra.mxu0 0
  %6586 = vmatprep.subr.bf16.mxu0 0
  %6587 = vmatpush1.bf16.msra.mxu0 0
  %6588 = vmatprep.subr.bf16.mxu0 0
  %6589 = vmatpush1.bf16.msra.mxu0 0
  %6590 = vmatprep.subr.bf16.mxu0 0
  %6591 = vmatpush1.bf16.msra.mxu0 0
  %6592 = vmatprep.mubr.bf16.mxu0 0
  %6593 = vmatmul.mubr.bf16.gmra.mrb[0].mxu0 %v6515
  %v6594 = vpop.f32.mrb[0].mxu0
  %v6595 = vadd.f32 %v6285, %v6594
  %v6596 = vpop.f32.mrb[0].mxu0
  %v6597 = vadd.f32 %v6289, %v6596
  %v6598 = vpop.f32.mrb[0].mxu0
  %v6599 = vadd.f32 %v6285, %v6598
  %v6600 = vpop.f32.mrb[0].mxu0
  %v6601 = vadd.f32 %v6289, %v6600
  %6602 = vdwg.mxu0
  %6603 = vmatprep.subr.bf16.mxu0 %v6455
  %6604 = vmatpush1.bf16.msra.mxu0 %v6454
  %6605 = vmatprep.subr.bf16.mxu0 %v6471
  %6606 = vmatpush1.bf16.msra.mxu0 %v6470
  %6607 = vmatprep.subr.bf16.mxu0 0
  %6608 = vmatpush1.bf16.msra.mxu0 0
  %6609 = vmatprep.subr.bf16.mxu0 0
  %6610 = vmatpush1.bf16.msra.mxu0 0
  %6611 = vmatprep.subr.bf16.mxu0 0
  %6612 = vmatpush1.bf16.msra.mxu0 0
  %6613 = vmatprep.subr.bf16.mxu0 0
  %6614 = vmatpush1.bf16.msra.mxu0 0
  %6615 = vmatprep.subr.bf16.mxu0 0
  %6616 = vmatpush1.bf16.msra.mxu0 0
  %6617 = vmatprep.subr.bf16.mxu0 0
  %6618 = vmatpush1.bf16.msra.mxu0 0
  %6619 = vmatprep.subr.bf16.mxu0 0
  %6620 = vmatpush1.bf16.msra.mxu0 0
  %6621 = vmatprep.subr.bf16.mxu0 0
  %6622 = vmatpush1.bf16.msra.mxu0 0
  %6623 = vmatprep.subr.bf16.mxu0 0
  %6624 = vmatpush1.bf16.msra.mxu0 0
  %6625 = vmatprep.subr.bf16.mxu0 0
  %6626 = vmatpush1.bf16.msra.mxu0 0
  %6627 = vmatprep.subr.bf16.mxu0 0
  %6628 = vmatpush1.bf16.msra.mxu0 0
  %6629 = vmatprep.subr.bf16.mxu0 0
  %6630 = vmatpush1.bf16.msra.mxu0 0
  %6631 = vmatprep.subr.bf16.mxu0 0
  %6632 = vmatpush1.bf16.msra.mxu0 0
  %6633 = vmatprep.subr.bf16.mxu0 0
  %6634 = vmatpush1.bf16.msra.mxu0 0
  %6635 = vmatprep.mubr.bf16.mxu0 0
  %6636 = vmatmul.mubr.bf16.gmra.mrb[0].mxu0 %v6515
  %v6637 = vpop.f32.mrb[0].mxu0
  %v6638 = vadd.f32 %v6293, %v6637
  %v6639 = vpop.f32.mrb[0].mxu0
  %v6640 = vadd.f32 %v6297, %v6639
  %v6641 = vpop.f32.mrb[0].mxu0
  %v6642 = vadd.f32 %v6293, %v6641
  %v6643 = vpop.f32.mrb[0].mxu0
  %v6644 = vadd.f32 %v6297, %v6643
  %6645 = vdwg.mxu0
  %6646 = vmatprep.subr.bf16.mxu0 %v6457
  %6647 = vmatpush1.bf16.msra.mxu0 %v6456
  %6648 = vmatprep.subr.bf16.mxu0 %v6473
  %6649 = vmatpush1.bf16.msra.mxu0 %v6472
  %6650 = vmatprep.subr.bf16.mxu0 0
  %6651 = vmatpush1.bf16.msra.mxu0 0
  %6652 = vmatprep.subr.bf16.mxu0 0
  %6653 = vmatpush1.bf16.msra.mxu0 0
  %6654 = vmatprep.subr.bf16.mxu0 0
  %6655 = vmatpush1.bf16.msra.mxu0 0
  %6656 = vmatprep.subr.bf16.mxu0 0
  %6657 = vmatpush1.bf16.msra.mxu0 0
  %6658 = vmatprep.subr.bf16.mxu0 0
  %6659 = vmatpush1.bf16.msra.mxu0 0
  %6660 = vmatprep.subr.bf16.mxu0 0
  %6661 = vmatpush1.bf16.msra.mxu0 0
  %6662 = vmatprep.subr.bf16.mxu0 0
  %6663 = vmatpush1.bf16.msra.mxu0 0
  %6664 = vmatprep.subr.bf16.mxu0 0
  %6665 = vmatpush1.bf16.msra.mxu0 0
  %6666 = vmatprep.subr.bf16.mxu0 0
  %6667 = vmatpush1.bf16.msra.mxu0 0
  %6668 = vmatprep.subr.bf16.mxu0 0
  %6669 = vmatpush1.bf16.msra.mxu0 0
  %6670 = vmatprep.subr.bf16.mxu0 0
  %6671 = vmatpush1.bf16.msra.mxu0 0
  %6672 = vmatprep.subr.bf16.mxu0 0
  %6673 = vmatpush1.bf16.msra.mxu0 0
  %6674 = vmatprep.subr.bf16.mxu0 0
  %6675 = vmatpush1.bf16.msra.mxu0 0
  %6676 = vmatprep.subr.bf16.mxu0 0
  %6677 = vmatpush1.bf16.msra.mxu0 0
  %6678 = vmatprep.mubr.bf16.mxu0 0
  %6679 = vmatmul.mubr.bf16.gmra.mrb[0].mxu0 %v6515
  %v6680 = vpop.f32.mrb[0].mxu0
  %v6681 = vadd.f32 %v6301, %v6680
  %v6682 = vpop.f32.mrb[0].mxu0
  %v6683 = vadd.f32 %v6305, %v6682
  %v6684 = vpop.f32.mrb[0].mxu0
  %v6685 = vadd.f32 %v6301, %v6684
  %v6686 = vpop.f32.mrb[0].mxu0
  %v6687 = vadd.f32 %v6305, %v6686
  %6688 = vdwg.mxu0
  %6689 = vmatprep.subr.bf16.mxu0 %v6459
  %6690 = vmatpush1.bf16.msra.mxu0 %v6458
  %6691 = vmatprep.subr.bf16.mxu0 %v6475
  %6692 = vmatpush1.bf16.msra.mxu0 %v6474
  %6693 = vmatprep.subr.bf16.mxu0 0
  %6694 = vmatpush1.bf16.msra.mxu0 0
  %6695 = vmatprep.subr.bf16.mxu0 0
  %6696 = vmatpush1.bf16.msra.mxu0 0
  %6697 = vmatprep.subr.bf16.mxu0 0
  %6698 = vmatpush1.bf16.msra.mxu0 0
  %6699 = vmatprep.subr.bf16.mxu0 0
  %6700 = vmatpush1.bf16.msra.mxu0 0
  %6701 = vmatprep.subr.bf16.mxu0 0
  %6702 = vmatpush1.bf16.msra.mxu0 0
  %6703 = vmatprep.subr.bf16.mxu0 0
  %6704 = vmatpush1.bf16.msra.mxu0 0
  %6705 = vmatprep.subr.bf16.mxu0 0
  %6706 = vmatpush1.bf16.msra.mxu0 0
  %6707 = vmatprep.subr.bf16.mxu0 0
  %6708 = vmatpush1.bf16.msra.mxu0 0
  %6709 = vmatprep.subr.bf16.mxu0 0
  %6710 = vmatpush1.bf16.msra.mxu0 0
  %6711 = vmatprep.subr.bf16.mxu0 0
  %6712 = vmatpush1.bf16.msra.mxu0 0
  %6713 = vmatprep.subr.bf16.mxu0 0
  %6714 = vmatpush1.bf16.msra.mxu0 0
  %6715 = vmatprep.subr.bf16.mxu0 0
  %6716 = vmatpush1.bf16.msra.mxu0 0
  %6717 = vmatprep.subr.bf16.mxu0 0
  %6718 = vmatpush1.bf16.msra.mxu0 0
  %6719 = vmatprep.subr.bf16.mxu0 0
  %6720 = vmatpush1.bf16.msra.mxu0 0
  %6721 = vmatprep.mubr.bf16.mxu0 0
  %6722 = vmatmul.mubr.bf16.gmra.mrb[0].mxu0 %v6515
  %v6723 = vpop.f32.mrb[0].mxu0
  %v6724 = vadd.f32 %v6309, %v6723
  %v6725 = vpop.f32.mrb[0].mxu0
  %v6726 = vadd.f32 %v6313, %v6725
  %v6727 = vpop.f32.mrb[0].mxu0
  %v6728 = vadd.f32 %v6309, %v6727
  %v6729 = vpop.f32.mrb[0].mxu0
  %v6730 = vadd.f32 %v6313, %v6729
  %6731 = vdwg.mxu0
  %6732 = vmatprep.subr.bf16.mxu0 %v6461
  %6733 = vmatpush1.bf16.msra.mxu0 %v6460
  %6734 = vmatprep.subr.bf16.mxu0 %v6477
  %6735 = vmatpush1.bf16.msra.mxu0 %v6476
  %6736 = vmatprep.subr.bf16.mxu0 0
  %6737 = vmatpush1.bf16.msra.mxu0 0
  %6738 = vmatprep.subr.bf16.mxu0 0
  %6739 = vmatpush1.bf16.msra.mxu0 0
  %6740 = vmatprep.subr.bf16.mxu0 0
  %6741 = vmatpush1.bf16.msra.mxu0 0
  %6742 = vmatprep.subr.bf16.mxu0 0
  %6743 = vmatpush1.bf16.msra.mxu0 0
  %6744 = vmatprep.subr.bf16.mxu0 0
  %6745 = vmatpush1.bf16.msra.mxu0 0
  %6746 = vmatprep.subr.bf16.mxu0 0
  %6747 = vmatpush1.bf16.msra.mxu0 0
  %6748 = vmatprep.subr.bf16.mxu0 0
  %6749 = vmatpush1.bf16.msra.mxu0 0
  %6750 = vmatprep.subr.bf16.mxu0 0
  %6751 = vmatpush1.bf16.msra.mxu0 0
  %6752 = vmatprep.subr.bf16.mxu0 0
  %6753 = vmatpush1.bf16.msra.mxu0 0
  %6754 = vmatprep.subr.bf16.mxu0 0
  %6755 = vmatpush1.bf16.msra.mxu0 0
  %6756 = vmatprep.subr.bf16.mxu0 0
  %6757 = vmatpush1.bf16.msra.mxu0 0
  %6758 = vmatprep.subr.bf16.mxu0 0
  %6759 = vmatpush1.bf16.msra.mxu0 0
  %6760 = vmatprep.subr.bf16.mxu0 0
  %6761 = vmatpush1.bf16.msra.mxu0 0
  %6762 = vmatprep.subr.bf16.mxu0 0
  %6763 = vmatpush1.bf16.msra.mxu0 0
  %6764 = vmatprep.mubr.bf16.mxu0 0
  %6765 = vmatmul.mubr.bf16.gmra.mrb[0].mxu0 %v6515
  %v6766 = vpop.f32.mrb[0].mxu0
  %v6767 = vadd.f32 %v6317, %v6766
  %v6768 = vpop.f32.mrb[0].mxu0
  %v6769 = vadd.f32 %v6321, %v6768
  %v6770 = vpop.f32.mrb[0].mxu0
  %v6771 = vadd.f32 %v6317, %v6770
  %v6772 = vpop.f32.mrb[0].mxu0
  %v6773 = vadd.f32 %v6321, %v6772
  %6774 = vdwg.mxu0
  %6775 = vmatprep.subr.bf16.mxu0 %v6463
  %6776 = vmatpush1.bf16.msra.mxu0 %v6462
  %6777 = vmatprep.subr.bf16.mxu0 %v6479
  %6778 = vmatpush1.bf16.msra.mxu0 %v6478
  %6779 = vmatprep.subr.bf16.mxu0 0
  %6780 = vmatpush1.bf16.msra.mxu0 0
  %6781 = vmatprep.subr.bf16.mxu0 0
  %6782 = vmatpush1.bf16.msra.mxu0 0
  %6783 = vmatprep.subr.bf16.mxu0 0
  %6784 = vmatpush1.bf16.msra.mxu0 0
  %6785 = vmatprep.subr.bf16.mxu0 0
  %6786 = vmatpush1.bf16.msra.mxu0 0
  %6787 = vmatprep.subr.bf16.mxu0 0
  %6788 = vmatpush1.bf16.msra.mxu0 0
  %6789 = vmatprep.subr.bf16.mxu0 0
  %6790 = vmatpush1.bf16.msra.mxu0 0
  %6791 = vmatprep.subr.bf16.mxu0 0
  %6792 = vmatpush1.bf16.msra.mxu0 0
  %6793 = vmatprep.subr.bf16.mxu0 0
  %6794 = vmatpush1.bf16.msra.mxu0 0
  %6795 = vmatprep.subr.bf16.mxu0 0
  %6796 = vmatpush1.bf16.msra.mxu0 0
  %6797 = vmatprep.subr.bf16.mxu0 0
  %6798 = vmatpush1.bf16.msra.mxu0 0
  %6799 = vmatprep.subr.bf16.mxu0 0
  %6800 = vmatpush1.bf16.msra.mxu0 0
  %6801 = vmatprep.subr.bf16.mxu0 0
  %6802 = vmatpush1.bf16.msra.mxu0 0
  %6803 = vmatprep.subr.bf16.mxu0 0
  %6804 = vmatpush1.bf16.msra.mxu0 0
  %6805 = vmatprep.subr.bf16.mxu0 0
  %6806 = vmatpush1.bf16.msra.mxu0 0
  %6807 = vmatprep.mubr.bf16.mxu0 0
  %6808 = vmatmul.mubr.bf16.gmra.mrb[0].mxu0 %v6515
  %v6809 = vpop.f32.mrb[0].mxu0
  %v6810 = vadd.f32 %v6325, %v6809
  %v6811 = vpop.f32.mrb[0].mxu0
  %v6812 = vadd.f32 %v6329, %v6811
  %v6813 = vpop.f32.mrb[0].mxu0
  %v6814 = vadd.f32 %v6325, %v6813
  %v6815 = vpop.f32.mrb[0].mxu0
  %v6816 = vadd.f32 %v6329, %v6815
  %6817 = vdwg.mxu0
  %6818 = vmatprep.subr.bf16.mxu0 %v6465
  %6819 = vmatpush1.bf16.msra.mxu0 %v6464
  %6820 = vmatprep.subr.bf16.mxu0 %v6481
  %6821 = vmatpush1.bf16.msra.mxu0 %v6480
  %6822 = vmatprep.subr.bf16.mxu0 0
  %6823 = vmatpush1.bf16.msra.mxu0 0
  %6824 = vmatprep.subr.bf16.mxu0 0
  %6825 = vmatpush1.bf16.msra.mxu0 0
  %6826 = vmatprep.subr.bf16.mxu0 0
  %6827 = vmatpush1.bf16.msra.mxu0 0
  %6828 = vmatprep.subr.bf16.mxu0 0
  %6829 = vmatpush1.bf16.msra.mxu0 0
  %6830 = vmatprep.subr.bf16.mxu0 0
  %6831 = vmatpush1.bf16.msra.mxu0 0
  %6832 = vmatprep.subr.bf16.mxu0 0
  %6833 = vmatpush1.bf16.msra.mxu0 0
  %6834 = vmatprep.subr.bf16.mxu0 0
  %6835 = vmatpush1.bf16.msra.mxu0 0
  %6836 = vmatprep.subr.bf16.mxu0 0
  %6837 = vmatpush1.bf16.msra.mxu0 0
  %6838 = vmatprep.subr.bf16.mxu0 0
  %6839 = vmatpush1.bf16.msra.mxu0 0
  %6840 = vmatprep.subr.bf16.mxu0 0
  %6841 = vmatpush1.bf16.msra.mxu0 0
  %6842 = vmatprep.subr.bf16.mxu0 0
  %6843 = vmatpush1.bf16.msra.mxu0 0
  %6844 = vmatprep.subr.bf16.mxu0 0
  %6845 = vmatpush1.bf16.msra.mxu0 0
  %6846 = vmatprep.subr.bf16.mxu0 0
  %6847 = vmatpush1.bf16.msra.mxu0 0
  %6848 = vmatprep.subr.bf16.mxu0 0
  %6849 = vmatpush1.bf16.msra.mxu0 0
  %6850 = vmatprep.mubr.bf16.mxu0 0
  %6851 = vmatmul.mubr.bf16.gmra.mrb[0].mxu0 %v6515
  %v6852 = vpop.f32.mrb[0].mxu0
  %v6853 = vadd.f32 %v6333, %v6852
  %v6854 = vpop.f32.mrb[0].mxu0
  %v6855 = vadd.f32 %v6337, %v6854
  %v6856 = vpop.f32.mrb[0].mxu0
  %v6857 = vadd.f32 %v6333, %v6856
  %v6858 = vpop.f32.mrb[0].mxu0
  %v6859 = vadd.f32 %v6337, %v6858
  %6860 = vdwg.mxu0
  %v6861 = vmax.f32 %v6552, 0.0
  %v6862 = vmax.f32 %v6554, 0.0
  %v6863 = vmax.f32 %v6595, 0.0
  %v6864 = vmax.f32 %v6597, 0.0
  %v6865 = vmax.f32 %v6638, 0.0
  %v6866 = vmax.f32 %v6640, 0.0
  %v6867 = vmax.f32 %v6681, 0.0
  %v6868 = vmax.f32 %v6683, 0.0
  %v6869 = vmax.f32 %v6724, 0.0
  %v6870 = vmax.f32 %v6726, 0.0
  %v6871 = vmax.f32 %v6767, 0.0
  %v6872 = vmax.f32 %v6769, 0.0
  %v6873 = vmax.f32 %v6810, 0.0
  %v6874 = vmax.f32 %v6812, 0.0
  %v6875 = vmax.f32 %v6853, 0.0
  %v6876 = vmax.f32 %v6855, 0.0
  %v6877 = vmax.f32 %v6556, 0.0
  %v6878 = vmax.f32 %v6558, 0.0
  %v6879 = vmax.f32 %v6599, 0.0
  %v6880 = vmax.f32 %v6601, 0.0
  %v6881 = vmax.f32 %v6642, 0.0
  %v6882 = vmax.f32 %v6644, 0.0
  %v6883 = vmax.f32 %v6685, 0.0
  %v6884 = vmax.f32 %v6687, 0.0
  %v6885 = vmax.f32 %v6728, 0.0
  %v6886 = vmax.f32 %v6730, 0.0
  %v6887 = vmax.f32 %v6771, 0.0
  %v6888 = vmax.f32 %v6773, 0.0
  %v6889 = vmax.f32 %v6814, 0.0
  %v6890 = vmax.f32 %v6816, 0.0
  %v6891 = vmax.f32 %v6857, 0.0
  %v6892 = vmax.f32 %v6859, 0.0
  %v6893 = vpack.c.bf16 %v6877, %v6861
  %v6894 = vpack.c.bf16 %v6878, %v6862
  %v6895 = vpack.c.bf16 %v6879, %v6863
  %v6896 = vpack.c.bf16 %v6880, %v6864
  %v6897 = vpack.c.bf16 %v6881, %v6865
  %v6898 = vpack.c.bf16 %v6882, %v6866
  %v6899 = vpack.c.bf16 %v6883, %v6867
  %v6900 = vpack.c.bf16 %v6884, %v6868
  %v6901 = vpack.c.bf16 %v6885, %v6869
  %v6902 = vpack.c.bf16 %v6886, %v6870
  %v6903 = vpack.c.bf16 %v6887, %v6871
  %v6904 = vpack.c.bf16 %v6888, %v6872
  %v6905 = vpack.c.bf16 %v6889, %v6873
  %v6906 = vpack.c.bf16 %v6890, %v6874
  %v6907 = vpack.c.bf16 %v6891, %v6875
  %v6908 = vpack.c.bf16 %v6892, %v6876
  %v6909 = vld [vmem:[%s59] sm:$0xf]
  %v6910 = vld [vmem:[%s59 + $0x4] sm:$0xf]
  %v6911 = vld [vmem:[%s59 + $0x8] sm:$0xf]
  %v6912 = vld [vmem:[%s59 + $0xc] sm:$0xf]
  %v6913 = vld [vmem:[%s59 + $0x10] sm:$0xf]
  %v6914 = vld [vmem:[%s59 + $0x14] sm:$0xf]
  %v6915 = vld [vmem:[%s59 + $0x18] sm:$0xf]
  %v6916 = vld [vmem:[%s59 + $0x1c] sm:$0xf]
  %v6917 = vld [vmem:[%s59 + $0x20] sm:$0xf]
  %v6918 = vld [vmem:[%s59 + $0x24] sm:$0xf]
  %v6919 = vld [vmem:[%s59 + $0x28] sm:$0xf]
  %v6920 = vld [vmem:[%s59 + $0x2c] sm:$0xf]
  %v6921 = vld [vmem:[%s59 + $0x30] sm:$0xf]
  %v6922 = vld [vmem:[%s59 + $0x34] sm:$0xf]
  %v6923 = vld [vmem:[%s59 + $0x38] sm:$0xf]
  %v6924 = vld [vmem:[%s59 + $0x3c] sm:$0xf]
  %v6925 = vld [vmem:[%s59 + $0x40] sm:$0xf]
  %v6926 = vld [vmem:[%s59 + $0x44] sm:$0xf]
  %v6927 = vld [vmem:[%s59 + $0x48] sm:$0xf]
  %v6928 = vld [vmem:[%s59 + $0x4c] sm:$0xf]
  %v6929 = vld [vmem:[%s59 + $0x50] sm:$0xf]
  %v6930 = vld [vmem:[%s59 + $0x54] sm:$0xf]
  %v6931 = vld [vmem:[%s59 + $0x58] sm:$0xf]
  %v6932 = vld [vmem:[%s59 + $0x5c] sm:$0xf]
  %v6933 = vld [vmem:[%s59 + $0x60] sm:$0xf]
  %v6934 = vld [vmem:[%s59 + $0x64] sm:$0xf]
  %v6935 = vld [vmem:[%s59 + $0x68] sm:$0xf]
  %v6936 = vld [vmem:[%s59 + $0x6c] sm:$0xf]
  %v6937 = vld [vmem:[%s59 + $0x70] sm:$0xf]
  %v6938 = vld [vmem:[%s59 + $0x74] sm:$0xf]
  %v6939 = vld [vmem:[%s59 + $0x78] sm:$0xf]
  %v6940 = vld [vmem:[%s59 + $0x7c] sm:$0xf]
  %v6941 = vld [vmem:[%s59 + $0x80] sm:$0xf]
  %v6942 = vld [vmem:[%s59 + $0x84] sm:$0xf]
  %v6943 = vld [vmem:[%s59 + $0x88] sm:$0xf]
  %v6944 = vld [vmem:[%s59 + $0x8c] sm:$0xf]
  %v6945 = vld [vmem:[%s59 + $0x90] sm:$0xf]
  %v6946 = vld [vmem:[%s59 + $0x94] sm:$0xf]
  %v6947 = vld [vmem:[%s59 + $0x98] sm:$0xf]
  %v6948 = vld [vmem:[%s59 + $0x9c] sm:$0xf]
  %v6949 = vld [vmem:[%s59 + $0xa0] sm:$0xf]
  %v6950 = vld [vmem:[%s59 + $0xa4] sm:$0xf]
  %v6951 = vld [vmem:[%s59 + $0xa8] sm:$0xf]
  %v6952 = vld [vmem:[%s59 + $0xac] sm:$0xf]
  %v6953 = vld [vmem:[%s59 + $0xb0] sm:$0xf]
  %v6954 = vld [vmem:[%s59 + $0xb4] sm:$0xf]
  %v6955 = vld [vmem:[%s59 + $0xb8] sm:$0xf]
  %v6956 = vld [vmem:[%s59 + $0xbc] sm:$0xf]
  %v6957 = vld [vmem:[%s59 + $0xc0] sm:$0xf]
  %v6958 = vld [vmem:[%s59 + $0xc4] sm:$0xf]
  %v6959 = vld [vmem:[%s59 + $0xc8] sm:$0xf]
  %v6960 = vld [vmem:[%s59 + $0xcc] sm:$0xf]
  %v6961 = vld [vmem:[%s59 + $0xd0] sm:$0xf]
  %v6962 = vld [vmem:[%s59 + $0xd4] sm:$0xf]
  %v6963 = vld [vmem:[%s59 + $0xd8] sm:$0xf]
  %v6964 = vld [vmem:[%s59 + $0xdc] sm:$0xf]
  %v6965 = vld [vmem:[%s59 + $0xe0] sm:$0xf]
  %v6966 = vld [vmem:[%s59 + $0xe4] sm:$0xf]
  %v6967 = vld [vmem:[%s59 + $0xe8] sm:$0xf]
  %v6968 = vld [vmem:[%s59 + $0xec] sm:$0xf]
  %v6969 = vld [vmem:[%s59 + $0xf0] sm:$0xf]
  %v6970 = vld [vmem:[%s59 + $0xf4] sm:$0xf]
  %v6971 = vld [vmem:[%s59 + $0xf8] sm:$0xf]
  %v6972 = vld [vmem:[%s59 + $0xfc] sm:$0xf]
  %v6973 = vld [vmem:[%s59 + $0x100] sm:$0xf]
  %v6974 = vld [vmem:[%s59 + $0x104] sm:$0xf]
  %v6975 = vld [vmem:[%s59 + $0x108] sm:$0xf]
  %v6976 = vld [vmem:[%s59 + $0x10c] sm:$0xf]
  %v6977 = vld [vmem:[%s59 + $0x110] sm:$0xf]
  %v6978 = vld [vmem:[%s59 + $0x114] sm:$0xf]
  %v6979 = vld [vmem:[%s59 + $0x118] sm:$0xf]
  %v6980 = vld [vmem:[%s59 + $0x11c] sm:$0xf]
  %v6981 = vld [vmem:[%s59 + $0x120] sm:$0xf]
  %v6982 = vld [vmem:[%s59 + $0x124] sm:$0xf]
  %v6983 = vld [vmem:[%s59 + $0x128] sm:$0xf]
  %v6984 = vld [vmem:[%s59 + $0x12c] sm:$0xf]
  %v6985 = vld [vmem:[%s59 + $0x130] sm:$0xf]
  %v6986 = vld [vmem:[%s59 + $0x134] sm:$0xf]
  %v6987 = vld [vmem:[%s59 + $0x138] sm:$0xf]
  %v6988 = vld [vmem:[%s59 + $0x13c] sm:$0xf]
  %v6989 = vld [vmem:[%s59 + $0x140] sm:$0xf]
  %v6990 = vld [vmem:[%s59 + $0x144] sm:$0xf]
  %v6991 = vld [vmem:[%s59 + $0x148] sm:$0xf]
  %v6992 = vld [vmem:[%s59 + $0x14c] sm:$0xf]
  %v6993 = vld [vmem:[%s59 + $0x150] sm:$0xf]
  %v6994 = vld [vmem:[%s59 + $0x154] sm:$0xf]
  %v6995 = vld [vmem:[%s59 + $0x158] sm:$0xf]
  %v6996 = vld [vmem:[%s59 + $0x15c] sm:$0xf]
  %v6997 = vld [vmem:[%s59 + $0x160] sm:$0xf]
  %v6998 = vld [vmem:[%s59 + $0x164] sm:$0xf]
  %v6999 = vld [vmem:[%s59 + $0x168] sm:$0xf]
  %v7000 = vld [vmem:[%s59 + $0x16c] sm:$0xf]
  %v7001 = vld [vmem:[%s59 + $0x170] sm:$0xf]
  %v7002 = vld [vmem:[%s59 + $0x174] sm:$0xf]
  %v7003 = vld [vmem:[%s59 + $0x178] sm:$0xf]
  %v7004 = vld [vmem:[%s59 + $0x17c] sm:$0xf]
  %v7005 = vld [vmem:[%s59 + $0x180] sm:$0xf]
  %v7006 = vld [vmem:[%s59 + $0x184] sm:$0xf]
  %v7007 = vld [vmem:[%s59 + $0x188] sm:$0xf]
  %v7008 = vld [vmem:[%s59 + $0x18c] sm:$0xf]
  %v7009 = vld [vmem:[%s59 + $0x190] sm:$0xf]
  %v7010 = vld [vmem:[%s59 + $0x194] sm:$0xf]
  %v7011 = vld [vmem:[%s59 + $0x198] sm:$0xf]
  %v7012 = vld [vmem:[%s59 + $0x19c] sm:$0xf]
  %v7013 = vld [vmem:[%s59 + $0x1a0] sm:$0xf]
  %v7014 = vld [vmem:[%s59 + $0x1a4] sm:$0xf]
  %v7015 = vld [vmem:[%s59 + $0x1a8] sm:$0xf]
  %v7016 = vld [vmem:[%s59 + $0x1ac] sm:$0xf]
  %v7017 = vld [vmem:[%s59 + $0x1b0] sm:$0xf]
  %v7018 = vld [vmem:[%s59 + $0x1b4] sm:$0xf]
  %v7019 = vld [vmem:[%s59 + $0x1b8] sm:$0xf]
  %v7020 = vld [vmem:[%s59 + $0x1bc] sm:$0xf]
  %v7021 = vld [vmem:[%s59 + $0x1c0] sm:$0xf]
  %v7022 = vld [vmem:[%s59 + $0x1c4] sm:$0xf]
  %v7023 = vld [vmem:[%s59 + $0x1c8] sm:$0xf]
  %v7024 = vld [vmem:[%s59 + $0x1cc] sm:$0xf]
  %v7025 = vld [vmem:[%s59 + $0x1d0] sm:$0xf]
  %v7026 = vld [vmem:[%s59 + $0x1d4] sm:$0xf]
  %v7027 = vld [vmem:[%s59 + $0x1d8] sm:$0xf]
  %v7028 = vld [vmem:[%s59 + $0x1dc] sm:$0xf]
  %v7029 = vld [vmem:[%s59 + $0x1e0] sm:$0xf]
  %v7030 = vld [vmem:[%s59 + $0x1e4] sm:$0xf]
  %v7031 = vld [vmem:[%s59 + $0x1e8] sm:$0xf]
  %v7032 = vld [vmem:[%s59 + $0x1ec] sm:$0xf]
  %v7033 = vld [vmem:[%s59 + $0x1f0] sm:$0xf]
  %v7034 = vld [vmem:[%s59 + $0x1f4] sm:$0xf]
  %v7035 = vld [vmem:[%s59 + $0x1f8] sm:$0xf]
  %v7036 = vld [vmem:[%s59 + $0x1fc] sm:$0xf]
  %v7037 = vld [vmem:[%s59 + $0x200] sm:$0xf]
  %v7038 = vld [vmem:[%s59 + $0x204] sm:$0xf]
  %v7039 = vld [vmem:[%s59 + $0x208] sm:$0xf]
  %v7040 = vld [vmem:[%s59 + $0x20c] sm:$0xf]
  %v7041 = vld [vmem:[%s59 + $0x210] sm:$0xf]
  %v7042 = vld [vmem:[%s59 + $0x214] sm:$0xf]
  %v7043 = vld [vmem:[%s59 + $0x218] sm:$0xf]
  %v7044 = vld [vmem:[%s59 + $0x21c] sm:$0xf]
  %v7045 = vld [vmem:[%s59 + $0x220] sm:$0xf]
  %v7046 = vld [vmem:[%s59 + $0x224] sm:$0xf]
  %v7047 = vld [vmem:[%s59 + $0x228] sm:$0xf]
  %v7048 = vld [vmem:[%s59 + $0x22c] sm:$0xf]
  %v7049 = vld [vmem:[%s59 + $0x230] sm:$0xf]
  %v7050 = vld [vmem:[%s59 + $0x234] sm:$0xf]
  %v7051 = vld [vmem:[%s59 + $0x238] sm:$0xf]
  %v7052 = vld [vmem:[%s59 + $0x23c] sm:$0xf]
  %v7053 = vld [vmem:[%s59 + $0x240] sm:$0xf]
  %v7054 = vld [vmem:[%s59 + $0x244] sm:$0xf]
  %v7055 = vld [vmem:[%s59 + $0x248] sm:$0xf]
  %v7056 = vld [vmem:[%s59 + $0x24c] sm:$0xf]
  %v7057 = vld [vmem:[%s59 + $0x250] sm:$0xf]
  %v7058 = vld [vmem:[%s59 + $0x254] sm:$0xf]
  %v7059 = vld [vmem:[%s59 + $0x258] sm:$0xf]
  %v7060 = vld [vmem:[%s59 + $0x25c] sm:$0xf]
  %v7061 = vld [vmem:[%s59 + $0x260] sm:$0xf]
  %v7062 = vld [vmem:[%s59 + $0x264] sm:$0xf]
  %v7063 = vld [vmem:[%s59 + $0x268] sm:$0xf]
  %v7064 = vld [vmem:[%s59 + $0x26c] sm:$0xf]
  %v7065 = vld [vmem:[%s59 + $0x270] sm:$0xf]
  %v7066 = vld [vmem:[%s59 + $0x274] sm:$0xf]
  %v7067 = vld [vmem:[%s59 + $0x278] sm:$0xf]
  %v7068 = vld [vmem:[%s59 + $0x27c] sm:$0xf]
  %v7069 = vld [vmem:[%s59 + $0x280] sm:$0xf]
  %v7070 = vld [vmem:[%s59 + $0x284] sm:$0xf]
  %v7071 = vld [vmem:[%s59 + $0x288] sm:$0xf]
  %v7072 = vld [vmem:[%s59 + $0x28c] sm:$0xf]
  %v7073 = vld [vmem:[%s59 + $0x290] sm:$0xf]
  %v7074 = vld [vmem:[%s59 + $0x294] sm:$0xf]
  %v7075 = vld [vmem:[%s59 + $0x298] sm:$0xf]
  %v7076 = vld [vmem:[%s59 + $0x29c] sm:$0xf]
  %v7077 = vld [vmem:[%s59 + $0x2a0] sm:$0xf]
  %v7078 = vld [vmem:[%s59 + $0x2a4] sm:$0xf]
  %v7079 = vld [vmem:[%s59 + $0x2a8] sm:$0xf]
  %v7080 = vld [vmem:[%s59 + $0x2ac] sm:$0xf]
  %v7081 = vld [vmem:[%s59 + $0x2b0] sm:$0xf]
  %v7082 = vld [vmem:[%s59 + $0x2b4] sm:$0xf]
  %v7083 = vld [vmem:[%s59 + $0x2b8] sm:$0xf]
  %v7084 = vld [vmem:[%s59 + $0x2bc] sm:$0xf]
  %v7085 = vld [vmem:[%s59 + $0x2c0] sm:$0xf]
  %v7086 = vld [vmem:[%s59 + $0x2c4] sm:$0xf]
  %v7087 = vld [vmem:[%s59 + $0x2c8] sm:$0xf]
  %v7088 = vld [vmem:[%s59 + $0x2cc] sm:$0xf]
  %v7089 = vld [vmem:[%s59 + $0x2d0] sm:$0xf]
  %v7090 = vld [vmem:[%s59 + $0x2d4] sm:$0xf]
  %v7091 = vld [vmem:[%s59 + $0x2d8] sm:$0xf]
  %v7092 = vld [vmem:[%s59 + $0x2dc] sm:$0xf]
  %v7093 = vld [vmem:[%s59 + $0x2e0] sm:$0xf]
  %v7094 = vld [vmem:[%s59 + $0x2e4] sm:$0xf]
  %v7095 = vld [vmem:[%s59 + $0x2e8] sm:$0xf]
  %v7096 = vld [vmem:[%s59 + $0x2ec] sm:$0xf]
  %v7097 = vld [vmem:[%s59 + $0x2f0] sm:$0xf]
  %v7098 = vld [vmem:[%s59 + $0x2f4] sm:$0xf]
  %v7099 = vld [vmem:[%s59 + $0x2f8] sm:$0xf]
  %v7100 = vld [vmem:[%s59 + $0x2fc] sm:$0xf]
  %v7101 = vld [vmem:[%s59 + $0x300] sm:$0xf]
  %v7102 = vld [vmem:[%s59 + $0x304] sm:$0xf]
  %v7103 = vld [vmem:[%s59 + $0x308] sm:$0xf]
  %v7104 = vld [vmem:[%s59 + $0x30c] sm:$0xf]
  %v7105 = vld [vmem:[%s59 + $0x310] sm:$0xf]
  %v7106 = vld [vmem:[%s59 + $0x314] sm:$0xf]
  %v7107 = vld [vmem:[%s59 + $0x318] sm:$0xf]
  %v7108 = vld [vmem:[%s59 + $0x31c] sm:$0xf]
  %v7109 = vld [vmem:[%s59 + $0x320] sm:$0xf]
  %v7110 = vld [vmem:[%s59 + $0x324] sm:$0xf]
  %v7111 = vld [vmem:[%s59 + $0x328] sm:$0xf]
  %v7112 = vld [vmem:[%s59 + $0x32c] sm:$0xf]
  %v7113 = vld [vmem:[%s59 + $0x330] sm:$0xf]
  %v7114 = vld [vmem:[%s59 + $0x334] sm:$0xf]
  %v7115 = vld [vmem:[%s59 + $0x338] sm:$0xf]
  %v7116 = vld [vmem:[%s59 + $0x33c] sm:$0xf]
  %v7117 = vld [vmem:[%s59 + $0x340] sm:$0xf]
  %v7118 = vld [vmem:[%s59 + $0x344] sm:$0xf]
  %v7119 = vld [vmem:[%s59 + $0x348] sm:$0xf]
  %v7120 = vld [vmem:[%s59 + $0x34c] sm:$0xf]
  %v7121 = vld [vmem:[%s59 + $0x350] sm:$0xf]
  %v7122 = vld [vmem:[%s59 + $0x354] sm:$0xf]
  %v7123 = vld [vmem:[%s59 + $0x358] sm:$0xf]
  %v7124 = vld [vmem:[%s59 + $0x35c] sm:$0xf]
  %v7125 = vld [vmem:[%s59 + $0x360] sm:$0xf]
  %v7126 = vld [vmem:[%s59 + $0x364] sm:$0xf]
  %v7127 = vld [vmem:[%s59 + $0x368] sm:$0xf]
  %v7128 = vld [vmem:[%s59 + $0x36c] sm:$0xf]
  %v7129 = vld [vmem:[%s59 + $0x370] sm:$0xf]
  %v7130 = vld [vmem:[%s59 + $0x374] sm:$0xf]
  %v7131 = vld [vmem:[%s59 + $0x378] sm:$0xf]
  %v7132 = vld [vmem:[%s59 + $0x37c] sm:$0xf]
  %v7133 = vld [vmem:[%s59 + $0x380] sm:$0xf]
  %v7134 = vld [vmem:[%s59 + $0x384] sm:$0xf]
  %v7135 = vld [vmem:[%s59 + $0x388] sm:$0xf]
  %v7136 = vld [vmem:[%s59 + $0x38c] sm:$0xf]
  %v7137 = vld [vmem:[%s59 + $0x390] sm:$0xf]
  %v7138 = vld [vmem:[%s59 + $0x394] sm:$0xf]
  %v7139 = vld [vmem:[%s59 + $0x398] sm:$0xf]
  %v7140 = vld [vmem:[%s59 + $0x39c] sm:$0xf]
  %v7141 = vld [vmem:[%s59 + $0x3a0] sm:$0xf]
  %v7142 = vld [vmem:[%s59 + $0x3a4] sm:$0xf]
  %v7143 = vld [vmem:[%s59 + $0x3a8] sm:$0xf]
  %v7144 = vld [vmem:[%s59 + $0x3ac] sm:$0xf]
  %v7145 = vld [vmem:[%s59 + $0x3b0] sm:$0xf]
  %v7146 = vld [vmem:[%s59 + $0x3b4] sm:$0xf]
  %v7147 = vld [vmem:[%s59 + $0x3b8] sm:$0xf]
  %v7148 = vld [vmem:[%s59 + $0x3bc] sm:$0xf]
  %v7149 = vld [vmem:[%s59 + $0x3c0] sm:$0xf]
  %v7150 = vld [vmem:[%s59 + $0x3c4] sm:$0xf]
  %v7151 = vld [vmem:[%s59 + $0x3c8] sm:$0xf]
  %v7152 = vld [vmem:[%s59 + $0x3cc] sm:$0xf]
  %v7153 = vld [vmem:[%s59 + $0x3d0] sm:$0xf]
  %v7154 = vld [vmem:[%s59 + $0x3d4] sm:$0xf]
  %v7155 = vld [vmem:[%s59 + $0x3d8] sm:$0xf]
  %v7156 = vld [vmem:[%s59 + $0x3dc] sm:$0xf]
  %v7157 = vld [vmem:[%s59 + $0x3e0] sm:$0xf]
  %v7158 = vld [vmem:[%s59 + $0x3e4] sm:$0xf]
  %v7159 = vld [vmem:[%s59 + $0x3e8] sm:$0xf]
  %v7160 = vld [vmem:[%s59 + $0x3ec] sm:$0xf]
  %v7161 = vld [vmem:[%s59 + $0x3f0] sm:$0xf]
  %v7162 = vld [vmem:[%s59 + $0x3f4] sm:$0xf]
  %v7163 = vld [vmem:[%s59 + $0x3f8] sm:$0xf]
  %v7164 = vld [vmem:[%s59 + $0x3fc] sm:$0xf]
  %v7165 = vld [vmem:[%s61] sm:$0x1]
  %v7167 = vlaneseq
  %v7168 = vshrl.u32 %v7167, 7
  %v7169 = vsub.s32 0, %v7168
  %v7170 = vrot.slane %v7165, %v7169
  %v7428 = vunpack.c.l.b16 %v6909
  %v7429 = vunpack.c.l.b16 %v6910
  %v7430 = vunpack.c.l.b16 %v6911
  %v7431 = vunpack.c.l.b16 %v6912
  %v7432 = vunpack.c.l.b16 %v6913
  %v7433 = vunpack.c.l.b16 %v6914
  %v7434 = vunpack.c.l.b16 %v6915
  %v7435 = vunpack.c.l.b16 %v6916
  %v7436 = vunpack.c.l.b16 %v6917
  %v7437 = vunpack.c.l.b16 %v6918
  %v7438 = vunpack.c.l.b16 %v6919
  %v7439 = vunpack.c.l.b16 %v6920
  %v7440 = vunpack.c.l.b16 %v6921
  %v7441 = vunpack.c.l.b16 %v6922
  %v7442 = vunpack.c.l.b16 %v6923
  %v7443 = vunpack.c.l.b16 %v6924
  %v7444 = vunpack.c.l.b16 %v6925
  %v7445 = vunpack.c.l.b16 %v6926
  %v7446 = vunpack.c.l.b16 %v6927
  %v7447 = vunpack.c.l.b16 %v6928
  %v7448 = vunpack.c.l.b16 %v6929
  %v7449 = vunpack.c.l.b16 %v6930
  %v7450 = vunpack.c.l.b16 %v6931
  %v7451 = vunpack.c.l.b16 %v6932
  %v7452 = vunpack.c.l.b16 %v6933
  %v7453 = vunpack.c.l.b16 %v6934
  %v7454 = vunpack.c.l.b16 %v6935
  %v7455 = vunpack.c.l.b16 %v6936
  %v7456 = vunpack.c.l.b16 %v6937
  %v7457 = vunpack.c.l.b16 %v6938
  %v7458 = vunpack.c.l.b16 %v6939
  %v7459 = vunpack.c.l.b16 %v6940
  %v7460 = vunpack.c.l.b16 %v6941
  %v7461 = vunpack.c.l.b16 %v6942
  %v7462 = vunpack.c.l.b16 %v6943
  %v7463 = vunpack.c.l.b16 %v6944
  %v7464 = vunpack.c.l.b16 %v6945
  %v7465 = vunpack.c.l.b16 %v6946
  %v7466 = vunpack.c.l.b16 %v6947
  %v7467 = vunpack.c.l.b16 %v6948
  %v7468 = vunpack.c.l.b16 %v6949
  %v7469 = vunpack.c.l.b16 %v6950
  %v7470 = vunpack.c.l.b16 %v6951
  %v7471 = vunpack.c.l.b16 %v6952
  %v7472 = vunpack.c.l.b16 %v6953
  %v7473 = vunpack.c.l.b16 %v6954
  %v7474 = vunpack.c.l.b16 %v6955
  %v7475 = vunpack.c.l.b16 %v6956
  %v7476 = vunpack.c.l.b16 %v6957
  %v7477 = vunpack.c.l.b16 %v6958
  %v7478 = vunpack.c.l.b16 %v6959
  %v7479 = vunpack.c.l.b16 %v6960
  %v7480 = vunpack.c.l.b16 %v6961
  %v7481 = vunpack.c.l.b16 %v6962
  %v7482 = vunpack.c.l.b16 %v6963
  %v7483 = vunpack.c.l.b16 %v6964
  %v7484 = vunpack.c.l.b16 %v6965
  %v7485 = vunpack.c.l.b16 %v6966
  %v7486 = vunpack.c.l.b16 %v6967
  %v7487 = vunpack.c.l.b16 %v6968
  %v7488 = vunpack.c.l.b16 %v6969
  %v7489 = vunpack.c.l.b16 %v6970
  %v7490 = vunpack.c.l.b16 %v6971
  %v7491 = vunpack.c.l.b16 %v6972
  %v7492 = vunpack.c.l.b16 %v6973
  %v7493 = vunpack.c.l.b16 %v6974
  %v7494 = vunpack.c.l.b16 %v6975
  %v7495 = vunpack.c.l.b16 %v6976
  %v7496 = vunpack.c.l.b16 %v6977
  %v7497 = vunpack.c.l.b16 %v6978
  %v7498 = vunpack.c.l.b16 %v6979
  %v7499 = vunpack.c.l.b16 %v6980
  %v7500 = vunpack.c.l.b16 %v6981
  %v7501 = vunpack.c.l.b16 %v6982
  %v7502 = vunpack.c.l.b16 %v6983
  %v7503 = vunpack.c.l.b16 %v6984
  %v7504 = vunpack.c.l.b16 %v6985
  %v7505 = vunpack.c.l.b16 %v6986
  %v7506 = vunpack.c.l.b16 %v6987
  %v7507 = vunpack.c.l.b16 %v6988
  %v7508 = vunpack.c.l.b16 %v6989
  %v7509 = vunpack.c.l.b16 %v6990
  %v7510 = vunpack.c.l.b16 %v6991
  %v7511 = vunpack.c.l.b16 %v6992
  %v7512 = vunpack.c.l.b16 %v6993
  %v7513 = vunpack.c.l.b16 %v6994
  %v7514 = vunpack.c.l.b16 %v6995
  %v7515 = vunpack.c.l.b16 %v6996
  %v7516 = vunpack.c.l.b16 %v6997
  %v7517 = vunpack.c.l.b16 %v6998
  %v7518 = vunpack.c.l.b16 %v6999
  %v7519 = vunpack.c.l.b16 %v7000
  %v7520 = vunpack.c.l.b16 %v7001
  %v7521 = vunpack.c.l.b16 %v7002
  %v7522 = vunpack.c.l.b16 %v7003
  %v7523 = vunpack.c.l.b16 %v7004
  %v7524 = vunpack.c.l.b16 %v7005
  %v7525 = vunpack.c.l.b16 %v7006
  %v7526 = vunpack.c.l.b16 %v7007
  %v7527 = vunpack.c.l.b16 %v7008
  %v7528 = vunpack.c.l.b16 %v7009
  %v7529 = vunpack.c.l.b16 %v7010
  %v7530 = vunpack.c.l.b16 %v7011
  %v7531 = vunpack.c.l.b16 %v7012
  %v7532 = vunpack.c.l.b16 %v7013
  %v7533 = vunpack.c.l.b16 %v7014
  %v7534 = vunpack.c.l.b16 %v7015
  %v7535 = vunpack.c.l.b16 %v7016
  %v7536 = vunpack.c.l.b16 %v7017
  %v7537 = vunpack.c.l.b16 %v7018
  %v7538 = vunpack.c.l.b16 %v7019
  %v7539 = vunpack.c.l.b16 %v7020
  %v7540 = vunpack.c.l.b16 %v7021
  %v7541 = vunpack.c.l.b16 %v7022
  %v7542 = vunpack.c.l.b16 %v7023
  %v7543 = vunpack.c.l.b16 %v7024
  %v7544 = vunpack.c.l.b16 %v7025
  %v7545 = vunpack.c.l.b16 %v7026
  %v7546 = vunpack.c.l.b16 %v7027
  %v7547 = vunpack.c.l.b16 %v7028
  %v7548 = vunpack.c.l.b16 %v7029
  %v7549 = vunpack.c.l.b16 %v7030
  %v7550 = vunpack.c.l.b16 %v7031
  %v7551 = vunpack.c.l.b16 %v7032
  %v7552 = vunpack.c.l.b16 %v7033
  %v7553 = vunpack.c.l.b16 %v7034
  %v7554 = vunpack.c.l.b16 %v7035
  %v7555 = vunpack.c.l.b16 %v7036
  %v7556 = vunpack.c.l.b16 %v7037
  %v7557 = vunpack.c.l.b16 %v7038
  %v7558 = vunpack.c.l.b16 %v7039
  %v7559 = vunpack.c.l.b16 %v7040
  %v7560 = vunpack.c.l.b16 %v7041
  %v7561 = vunpack.c.l.b16 %v7042
  %v7562 = vunpack.c.l.b16 %v7043
  %v7563 = vunpack.c.l.b16 %v7044
  %v7564 = vunpack.c.l.b16 %v7045
  %v7565 = vunpack.c.l.b16 %v7046
  %v7566 = vunpack.c.l.b16 %v7047
  %v7567 = vunpack.c.l.b16 %v7048
  %v7568 = vunpack.c.l.b16 %v7049
  %v7569 = vunpack.c.l.b16 %v7050
  %v7570 = vunpack.c.l.b16 %v7051
  %v7571 = vunpack.c.l.b16 %v7052
  %v7572 = vunpack.c.l.b16 %v7053
  %v7573 = vunpack.c.l.b16 %v7054
  %v7574 = vunpack.c.l.b16 %v7055
  %v7575 = vunpack.c.l.b16 %v7056
  %v7576 = vunpack.c.l.b16 %v7057
  %v7577 = vunpack.c.l.b16 %v7058
  %v7578 = vunpack.c.l.b16 %v7059
  %v7579 = vunpack.c.l.b16 %v7060
  %v7580 = vunpack.c.l.b16 %v7061
  %v7581 = vunpack.c.l.b16 %v7062
  %v7582 = vunpack.c.l.b16 %v7063
  %v7583 = vunpack.c.l.b16 %v7064
  %v7584 = vunpack.c.l.b16 %v7065
  %v7585 = vunpack.c.l.b16 %v7066
  %v7586 = vunpack.c.l.b16 %v7067
  %v7587 = vunpack.c.l.b16 %v7068
  %v7588 = vunpack.c.l.b16 %v7069
  %v7589 = vunpack.c.l.b16 %v7070
  %v7590 = vunpack.c.l.b16 %v7071
  %v7591 = vunpack.c.l.b16 %v7072
  %v7592 = vunpack.c.l.b16 %v7073
  %v7593 = vunpack.c.l.b16 %v7074
  %v7594 = vunpack.c.l.b16 %v7075
  %v7595 = vunpack.c.l.b16 %v7076
  %v7596 = vunpack.c.l.b16 %v7077
  %v7597 = vunpack.c.l.b16 %v7078
  %v7598 = vunpack.c.l.b16 %v7079
  %v7599 = vunpack.c.l.b16 %v7080
  %v7600 = vunpack.c.l.b16 %v7081
  %v7601 = vunpack.c.l.b16 %v7082
  %v7602 = vunpack.c.l.b16 %v7083
  %v7603 = vunpack.c.l.b16 %v7084
  %v7604 = vunpack.c.l.b16 %v7085
  %v7605 = vunpack.c.l.b16 %v7086
  %v7606 = vunpack.c.l.b16 %v7087
  %v7607 = vunpack.c.l.b16 %v7088
  %v7608 = vunpack.c.l.b16 %v7089
  %v7609 = vunpack.c.l.b16 %v7090
  %v7610 = vunpack.c.l.b16 %v7091
  %v7611 = vunpack.c.l.b16 %v7092
  %v7612 = vunpack.c.l.b16 %v7093
  %v7613 = vunpack.c.l.b16 %v7094
  %v7614 = vunpack.c.l.b16 %v7095
  %v7615 = vunpack.c.l.b16 %v7096
  %v7616 = vunpack.c.l.b16 %v7097
  %v7617 = vunpack.c.l.b16 %v7098
  %v7618 = vunpack.c.l.b16 %v7099
  %v7619 = vunpack.c.l.b16 %v7100
  %v7620 = vunpack.c.l.b16 %v7101
  %v7621 = vunpack.c.l.b16 %v7102
  %v7622 = vunpack.c.l.b16 %v7103
  %v7623 = vunpack.c.l.b16 %v7104
  %v7624 = vunpack.c.l.b16 %v7105
  %v7625 = vunpack.c.l.b16 %v7106
  %v7626 = vunpack.c.l.b16 %v7107
  %v7627 = vunpack.c.l.b16 %v7108
  %v7628 = vunpack.c.l.b16 %v7109
  %v7629 = vunpack.c.l.b16 %v7110
  %v7630 = vunpack.c.l.b16 %v7111
  %v7631 = vunpack.c.l.b16 %v7112
  %v7632 = vunpack.c.l.b16 %v7113
  %v7633 = vunpack.c.l.b16 %v7114
  %v7634 = vunpack.c.l.b16 %v7115
  %v7635 = vunpack.c.l.b16 %v7116
  %v7636 = vunpack.c.l.b16 %v7117
  %v7637 = vunpack.c.l.b16 %v7118
  %v7638 = vunpack.c.l.b16 %v7119
  %v7639 = vunpack.c.l.b16 %v7120
  %v7640 = vunpack.c.l.b16 %v7121
  %v7641 = vunpack.c.l.b16 %v7122
  %v7642 = vunpack.c.l.b16 %v7123
  %v7643 = vunpack.c.l.b16 %v7124
  %v7644 = vunpack.c.l.b16 %v7125
  %v7645 = vunpack.c.l.b16 %v7126
  %v7646 = vunpack.c.l.b16 %v7127
  %v7647 = vunpack.c.l.b16 %v7128
  %v7648 = vunpack.c.l.b16 %v7129
  %v7649 = vunpack.c.l.b16 %v7130
  %v7650 = vunpack.c.l.b16 %v7131
  %v7651 = vunpack.c.l.b16 %v7132
  %v7652 = vunpack.c.l.b16 %v7133
  %v7653 = vunpack.c.l.b16 %v7134
  %v7654 = vunpack.c.l.b16 %v7135
  %v7655 = vunpack.c.l.b16 %v7136
  %v7656 = vunpack.c.l.b16 %v7137
  %v7657 = vunpack.c.l.b16 %v7138
  %v7658 = vunpack.c.l.b16 %v7139
  %v7659 = vunpack.c.l.b16 %v7140
  %v7660 = vunpack.c.l.b16 %v7141
  %v7661 = vunpack.c.l.b16 %v7142
  %v7662 = vunpack.c.l.b16 %v7143
  %v7663 = vunpack.c.l.b16 %v7144
  %v7664 = vunpack.c.l.b16 %v7145
  %v7665 = vunpack.c.l.b16 %v7146
  %v7666 = vunpack.c.l.b16 %v7147
  %v7667 = vunpack.c.l.b16 %v7148
  %v7668 = vunpack.c.l.b16 %v7149
  %v7669 = vunpack.c.l.b16 %v7150
  %v7670 = vunpack.c.l.b16 %v7151
  %v7671 = vunpack.c.l.b16 %v7152
  %v7672 = vunpack.c.l.b16 %v7153
  %v7673 = vunpack.c.l.b16 %v7154
  %v7674 = vunpack.c.l.b16 %v7155
  %v7675 = vunpack.c.l.b16 %v7156
  %v7676 = vunpack.c.l.b16 %v7157
  %v7677 = vunpack.c.l.b16 %v7158
  %v7678 = vunpack.c.l.b16 %v7159
  %v7679 = vunpack.c.l.b16 %v7160
  %v7680 = vunpack.c.l.b16 %v7161
  %v7681 = vunpack.c.l.b16 %v7162
  %v7682 = vunpack.c.l.b16 %v7163
  %v7683 = vunpack.c.l.b16 %v7164
  %v7684 = vpack.c.b16 %v7429, %v7428
  %v7685 = vpack.c.b16 %v7431, %v7430
  %v7686 = vpack.c.b16 %v7433, %v7432
  %v7687 = vpack.c.b16 %v7435, %v7434
  %v7688 = vpack.c.b16 %v7437, %v7436
  %v7689 = vpack.c.b16 %v7439, %v7438
  %v7690 = vpack.c.b16 %v7441, %v7440
  %v7691 = vpack.c.b16 %v7443, %v7442
  %v7692 = vpack.c.b16 %v7445, %v7444
  %v7693 = vpack.c.b16 %v7447, %v7446
  %v7694 = vpack.c.b16 %v7449, %v7448
  %v7695 = vpack.c.b16 %v7451, %v7450
  %v7696 = vpack.c.b16 %v7453, %v7452
  %v7697 = vpack.c.b16 %v7455, %v7454
  %v7698 = vpack.c.b16 %v7457, %v7456
  %v7699 = vpack.c.b16 %v7459, %v7458
  %v7700 = vpack.c.b16 %v7461, %v7460
  %v7701 = vpack.c.b16 %v7463, %v7462
  %v7702 = vpack.c.b16 %v7465, %v7464
  %v7703 = vpack.c.b16 %v7467, %v7466
  %v7704 = vpack.c.b16 %v7469, %v7468
  %v7705 = vpack.c.b16 %v7471, %v7470
  %v7706 = vpack.c.b16 %v7473, %v7472
  %v7707 = vpack.c.b16 %v7475, %v7474
  %v7708 = vpack.c.b16 %v7477, %v7476
  %v7709 = vpack.c.b16 %v7479, %v7478
  %v7710 = vpack.c.b16 %v7481, %v7480
  %v7711 = vpack.c.b16 %v7483, %v7482
  %v7712 = vpack.c.b16 %v7485, %v7484
  %v7713 = vpack.c.b16 %v7487, %v7486
  %v7714 = vpack.c.b16 %v7489, %v7488
  %v7715 = vpack.c.b16 %v7491, %v7490
  %v7716 = vpack.c.b16 %v7493, %v7492
  %v7717 = vpack.c.b16 %v7495, %v7494
  %v7718 = vpack.c.b16 %v7497, %v7496
  %v7719 = vpack.c.b16 %v7499, %v7498
  %v7720 = vpack.c.b16 %v7501, %v7500
  %v7721 = vpack.c.b16 %v7503, %v7502
  %v7722 = vpack.c.b16 %v7505, %v7504
  %v7723 = vpack.c.b16 %v7507, %v7506
  %v7724 = vpack.c.b16 %v7509, %v7508
  %v7725 = vpack.c.b16 %v7511, %v7510
  %v7726 = vpack.c.b16 %v7513, %v7512
  %v7727 = vpack.c.b16 %v7515, %v7514
  %v7728 = vpack.c.b16 %v7517, %v7516
  %v7729 = vpack.c.b16 %v7519, %v7518
  %v7730 = vpack.c.b16 %v7521, %v7520
  %v7731 = vpack.c.b16 %v7523, %v7522
  %v7732 = vpack.c.b16 %v7525, %v7524
  %v7733 = vpack.c.b16 %v7527, %v7526
  %v7734 = vpack.c.b16 %v7529, %v7528
  %v7735 = vpack.c.b16 %v7531, %v7530
  %v7736 = vpack.c.b16 %v7533, %v7532
  %v7737 = vpack.c.b16 %v7535, %v7534
  %v7738 = vpack.c.b16 %v7537, %v7536
  %v7739 = vpack.c.b16 %v7539, %v7538
  %v7740 = vpack.c.b16 %v7541, %v7540
  %v7741 = vpack.c.b16 %v7543, %v7542
  %v7742 = vpack.c.b16 %v7545, %v7544
  %v7743 = vpack.c.b16 %v7547, %v7546
  %v7744 = vpack.c.b16 %v7549, %v7548
  %v7745 = vpack.c.b16 %v7551, %v7550
  %v7746 = vpack.c.b16 %v7553, %v7552
  %v7747 = vpack.c.b16 %v7555, %v7554
  %v7748 = vpack.c.b16 %v7557, %v7556
  %v7749 = vpack.c.b16 %v7559, %v7558
  %v7750 = vpack.c.b16 %v7561, %v7560
  %v7751 = vpack.c.b16 %v7563, %v7562
  %v7752 = vpack.c.b16 %v7565, %v7564
  %v7753 = vpack.c.b16 %v7567, %v7566
  %v7754 = vpack.c.b16 %v7569, %v7568
  %v7755 = vpack.c.b16 %v7571, %v7570
  %v7756 = vpack.c.b16 %v7573, %v7572
  %v7757 = vpack.c.b16 %v7575, %v7574
  %v7758 = vpack.c.b16 %v7577, %v7576
  %v7759 = vpack.c.b16 %v7579, %v7578
  %v7760 = vpack.c.b16 %v7581, %v7580
  %v7761 = vpack.c.b16 %v7583, %v7582
  %v7762 = vpack.c.b16 %v7585, %v7584
  %v7763 = vpack.c.b16 %v7587, %v7586
  %v7764 = vpack.c.b16 %v7589, %v7588
  %v7765 = vpack.c.b16 %v7591, %v7590
  %v7766 = vpack.c.b16 %v7593, %v7592
  %v7767 = vpack.c.b16 %v7595, %v7594
  %v7768 = vpack.c.b16 %v7597, %v7596
  %v7769 = vpack.c.b16 %v7599, %v7598
  %v7770 = vpack.c.b16 %v7601, %v7600
  %v7771 = vpack.c.b16 %v7603, %v7602
  %v7772 = vpack.c.b16 %v7605, %v7604
  %v7773 = vpack.c.b16 %v7607, %v7606
  %v7774 = vpack.c.b16 %v7609, %v7608
  %v7775 = vpack.c.b16 %v7611, %v7610
  %v7776 = vpack.c.b16 %v7613, %v7612
  %v7777 = vpack.c.b16 %v7615, %v7614
  %v7778 = vpack.c.b16 %v7617, %v7616
  %v7779 = vpack.c.b16 %v7619, %v7618
  %v7780 = vpack.c.b16 %v7621, %v7620
  %v7781 = vpack.c.b16 %v7623, %v7622
  %v7782 = vpack.c.b16 %v7625, %v7624
  %v7783 = vpack.c.b16 %v7627, %v7626
  %v7784 = vpack.c.b16 %v7629, %v7628
  %v7785 = vpack.c.b16 %v7631, %v7630
  %v7786 = vpack.c.b16 %v7633, %v7632
  %v7787 = vpack.c.b16 %v7635, %v7634
  %v7788 = vpack.c.b16 %v7637, %v7636
  %v7789 = vpack.c.b16 %v7639, %v7638
  %v7790 = vpack.c.b16 %v7641, %v7640
  %v7791 = vpack.c.b16 %v7643, %v7642
  %v7792 = vpack.c.b16 %v7645, %v7644
  %v7793 = vpack.c.b16 %v7647, %v7646
  %v7794 = vpack.c.b16 %v7649, %v7648
  %v7795 = vpack.c.b16 %v7651, %v7650
  %v7796 = vpack.c.b16 %v7653, %v7652
  %v7797 = vpack.c.b16 %v7655, %v7654
  %v7798 = vpack.c.b16 %v7657, %v7656
  %v7799 = vpack.c.b16 %v7659, %v7658
  %v7800 = vpack.c.b16 %v7661, %v7660
  %v7801 = vpack.c.b16 %v7663, %v7662
  %v7802 = vpack.c.b16 %v7665, %v7664
  %v7803 = vpack.c.b16 %v7667, %v7666
  %v7804 = vpack.c.b16 %v7669, %v7668
  %v7805 = vpack.c.b16 %v7671, %v7670
  %v7806 = vpack.c.b16 %v7673, %v7672
  %v7807 = vpack.c.b16 %v7675, %v7674
  %v7808 = vpack.c.b16 %v7677, %v7676
  %v7809 = vpack.c.b16 %v7679, %v7678
  %v7810 = vpack.c.b16 %v7681, %v7680
  %v7811 = vpack.c.b16 %v7683, %v7682
  %7940 = vmatprep.subr.bf16.mxu0 0
  %7941 = vmatpush1.bf16.msra.mxu0 %v7684
  %7942 = vmatprep.subr.bf16.mxu0 0
  %7943 = vmatpush1.bf16.msra.mxu0 %v7685
  %7944 = vmatprep.subr.bf16.mxu0 0
  %7945 = vmatpush1.bf16.msra.mxu0 %v7686
  %7946 = vmatprep.subr.bf16.mxu0 0
  %7947 = vmatpush1.bf16.msra.mxu0 %v7687
  %7948 = vmatprep.subr.bf16.mxu0 0
  %7949 = vmatpush1.bf16.msra.mxu0 %v7688
  %7950 = vmatprep.subr.bf16.mxu0 0
  %7951 = vmatpush1.bf16.msra.mxu0 %v7689
  %7952 = vmatprep.subr.bf16.mxu0 0
  %7953 = vmatpush1.bf16.msra.mxu0 %v7690
  %7954 = vmatprep.subr.bf16.mxu0 0
  %7955 = vmatpush1.bf16.msra.mxu0 %v7691
  %7956 = vmatprep.subr.bf16.mxu0 0
  %7957 = vmatpush1.bf16.msra.mxu0 %v7692
  %7958 = vmatprep.subr.bf16.mxu0 0
  %7959 = vmatpush1.bf16.msra.mxu0 %v7693
  %7960 = vmatprep.subr.bf16.mxu0 0
  %7961 = vmatpush1.bf16.msra.mxu0 %v7694
  %7962 = vmatprep.subr.bf16.mxu0 0
  %7963 = vmatpush1.bf16.msra.mxu0 %v7695
  %7964 = vmatprep.subr.bf16.mxu0 0
  %7965 = vmatpush1.bf16.msra.mxu0 %v7696
  %7966 = vmatprep.subr.bf16.mxu0 0
  %7967 = vmatpush1.bf16.msra.mxu0 %v7697
  %7968 = vmatprep.subr.bf16.mxu0 0
  %7969 = vmatpush1.bf16.msra.mxu0 %v7698
  %7970 = vmatprep.subr.bf16.mxu0 0
  %7971 = vmatpush1.bf16.msra.mxu0 %v7699
  %7972 = vmatprep.mubr.bf16.mxu0 %v6894
  %7973 = vmatmul.mubr.bf16.gmra.mrb[0].mxu0 %v6893
  %v7974 = vpop.f32.mrb[0].mxu0
  %v7975 = vadd.f32 %v7170, %v7974
  %v7976 = vpop.f32.mrb[0].mxu0
  %v7977 = vpop.f32.mrb[0].mxu0
  %v7978 = vadd.f32 %v7170, %v7977
  %v7979 = vpop.f32.mrb[0].mxu0
  %7980 = vdwg.mxu0
  %7981 = vmatprep.subr.bf16.mxu0 0
  %7982 = vmatpush1.bf16.msra.mxu0 %v7700
  %7983 = vmatprep.subr.bf16.mxu0 0
  %7984 = vmatpush1.bf16.msra.mxu0 %v7701
  %7985 = vmatprep.subr.bf16.mxu0 0
  %7986 = vmatpush1.bf16.msra.mxu0 %v7702
  %7987 = vmatprep.subr.bf16.mxu0 0
  %7988 = vmatpush1.bf16.msra.mxu0 %v7703
  %7989 = vmatprep.subr.bf16.mxu0 0
  %7990 = vmatpush1.bf16.msra.mxu0 %v7704
  %7991 = vmatprep.subr.bf16.mxu0 0
  %7992 = vmatpush1.bf16.msra.mxu0 %v7705
  %7993 = vmatprep.subr.bf16.mxu0 0
  %7994 = vmatpush1.bf16.msra.mxu0 %v7706
  %7995 = vmatprep.subr.bf16.mxu0 0
  %7996 = vmatpush1.bf16.msra.mxu0 %v7707
  %7997 = vmatprep.subr.bf16.mxu0 0
  %7998 = vmatpush1.bf16.msra.mxu0 %v7708
  %7999 = vmatprep.subr.bf16.mxu0 0
  %8000 = vmatpush1.bf16.msra.mxu0 %v7709
  %8001 = vmatprep.subr.bf16.mxu0 0
  %8002 = vmatpush1.bf16.msra.mxu0 %v7710
  %8003 = vmatprep.subr.bf16.mxu0 0
  %8004 = vmatpush1.bf16.msra.mxu0 %v7711
  %8005 = vmatprep.subr.bf16.mxu0 0
  %8006 = vmatpush1.bf16.msra.mxu0 %v7712
  %8007 = vmatprep.subr.bf16.mxu0 0
  %8008 = vmatpush1.bf16.msra.mxu0 %v7713
  %8009 = vmatprep.subr.bf16.mxu0 0
  %8010 = vmatpush1.bf16.msra.mxu0 %v7714
  %8011 = vmatprep.subr.bf16.mxu0 0
  %8012 = vmatpush1.bf16.msra.mxu0 %v7715
  %8013 = vmatprep.mubr.bf16.mxu0 %v6896
  %8014 = vmatmul.mubr.bf16.gmra.mrb[0].mxu0 %v6895
  %v8015 = vpop.f32.mrb[0].mxu0
  %v8016 = vadd.f32 %v7975, %v8015
  %v8017 = vpop.f32.mrb[0].mxu0
  %v8018 = vpop.f32.mrb[0].mxu0
  %v8019 = vadd.f32 %v7978, %v8018
  %v8020 = vpop.f32.mrb[0].mxu0
  %8021 = vdwg.mxu0
  %8022 = vmatprep.subr.bf16.mxu0 0
  %8023 = vmatpush1.bf16.msra.mxu0 %v7716
  %8024 = vmatprep.subr.bf16.mxu0 0
  %8025 = vmatpush1.bf16.msra.mxu0 %v7717
  %8026 = vmatprep.subr.bf16.mxu0 0
  %8027 = vmatpush1.bf16.msra.mxu0 %v7718
  %8028 = vmatprep.subr.bf16.mxu0 0
  %8029 = vmatpush1.bf16.msra.mxu0 %v7719
  %8030 = vmatprep.subr.bf16.mxu0 0
  %8031 = vmatpush1.bf16.msra.mxu0 %v7720
  %8032 = vmatprep.subr.bf16.mxu0 0
  %8033 = vmatpush1.bf16.msra.mxu0 %v7721
  %8034 = vmatprep.subr.bf16.mxu0 0
  %8035 = vmatpush1.bf16.msra.mxu0 %v7722
  %8036 = vmatprep.subr.bf16.mxu0 0
  %8037 = vmatpush1.bf16.msra.mxu0 %v7723
  %8038 = vmatprep.subr.bf16.mxu0 0
  %8039 = vmatpush1.bf16.msra.mxu0 %v7724
  %8040 = vmatprep.subr.bf16.mxu0 0
  %8041 = vmatpush1.bf16.msra.mxu0 %v7725
  %8042 = vmatprep.subr.bf16.mxu0 0
  %8043 = vmatpush1.bf16.msra.mxu0 %v7726
  %8044 = vmatprep.subr.bf16.mxu0 0
  %8045 = vmatpush1.bf16.msra.mxu0 %v7727
  %8046 = vmatprep.subr.bf16.mxu0 0
  %8047 = vmatpush1.bf16.msra.mxu0 %v7728
  %8048 = vmatprep.subr.bf16.mxu0 0
  %8049 = vmatpush1.bf16.msra.mxu0 %v7729
  %8050 = vmatprep.subr.bf16.mxu0 0
  %8051 = vmatpush1.bf16.msra.mxu0 %v7730
  %8052 = vmatprep.subr.bf16.mxu0 0
  %8053 = vmatpush1.bf16.msra.mxu0 %v7731
  %8054 = vmatprep.mubr.bf16.mxu0 %v6898
  %8055 = vmatmul.mubr.bf16.gmra.mrb[0].mxu0 %v6897
  %v8056 = vpop.f32.mrb[0].mxu0
  %v8057 = vadd.f32 %v8016, %v8056
  %v8058 = vpop.f32.mrb[0].mxu0
  %v8059 = vpop.f32.mrb[0].mxu0
  %v8060 = vadd.f32 %v8019, %v8059
  %v8061 = vpop.f32.mrb[0].mxu0
  %8062 = vdwg.mxu0
  %8063 = vmatprep.subr.bf16.mxu0 0
  %8064 = vmatpush1.bf16.msra.mxu0 %v7732
  %8065 = vmatprep.subr.bf16.mxu0 0
  %8066 = vmatpush1.bf16.msra.mxu0 %v7733
  %8067 = vmatprep.subr.bf16.mxu0 0
  %8068 = vmatpush1.bf16.msra.mxu0 %v7734
  %8069 = vmatprep.subr.bf16.mxu0 0
  %8070 = vmatpush1.bf16.msra.mxu0 %v7735
  %8071 = vmatprep.subr.bf16.mxu0 0
  %8072 = vmatpush1.bf16.msra.mxu0 %v7736
  %8073 = vmatprep.subr.bf16.mxu0 0
  %8074 = vmatpush1.bf16.msra.mxu0 %v7737
  %8075 = vmatprep.subr.bf16.mxu0 0
  %8076 = vmatpush1.bf16.msra.mxu0 %v7738
  %8077 = vmatprep.subr.bf16.mxu0 0
  %8078 = vmatpush1.bf16.msra.mxu0 %v7739
  %8079 = vmatprep.subr.bf16.mxu0 0
  %8080 = vmatpush1.bf16.msra.mxu0 %v7740
  %8081 = vmatprep.subr.bf16.mxu0 0
  %8082 = vmatpush1.bf16.msra.mxu0 %v7741
  %8083 = vmatprep.subr.bf16.mxu0 0
  %8084 = vmatpush1.bf16.msra.mxu0 %v7742
  %8085 = vmatprep.subr.bf16.mxu0 0
  %8086 = vmatpush1.bf16.msra.mxu0 %v7743
  %8087 = vmatprep.subr.bf16.mxu0 0
  %8088 = vmatpush1.bf16.msra.mxu0 %v7744
  %8089 = vmatprep.subr.bf16.mxu0 0
  %8090 = vmatpush1.bf16.msra.mxu0 %v7745
  %8091 = vmatprep.subr.bf16.mxu0 0
  %8092 = vmatpush1.bf16.msra.mxu0 %v7746
  %8093 = vmatprep.subr.bf16.mxu0 0
  %8094 = vmatpush1.bf16.msra.mxu0 %v7747
  %8095 = vmatprep.mubr.bf16.mxu0 %v6900
  %8096 = vmatmul.mubr.bf16.gmra.mrb[0].mxu0 %v6899
  %v8097 = vpop.f32.mrb[0].mxu0
  %v8098 = vadd.f32 %v8057, %v8097
  %v8099 = vpop.f32.mrb[0].mxu0
  %v8100 = vpop.f32.mrb[0].mxu0
  %v8101 = vadd.f32 %v8060, %v8100
  %v8102 = vpop.f32.mrb[0].mxu0
  %8103 = vdwg.mxu0
  %8104 = vmatprep.subr.bf16.mxu0 0
  %8105 = vmatpush1.bf16.msra.mxu0 %v7748
  %8106 = vmatprep.subr.bf16.mxu0 0
  %8107 = vmatpush1.bf16.msra.mxu0 %v7749
  %8108 = vmatprep.subr.bf16.mxu0 0
  %8109 = vmatpush1.bf16.msra.mxu0 %v7750
  %8110 = vmatprep.subr.bf16.mxu0 0
  %8111 = vmatpush1.bf16.msra.mxu0 %v7751
  %8112 = vmatprep.subr.bf16.mxu0 0
  %8113 = vmatpush1.bf16.msra.mxu0 %v7752
  %8114 = vmatprep.subr.bf16.mxu0 0
  %8115 = vmatpush1.bf16.msra.mxu0 %v7753
  %8116 = vmatprep.subr.bf16.mxu0 0
  %8117 = vmatpush1.bf16.msra.mxu0 %v7754
  %8118 = vmatprep.subr.bf16.mxu0 0
  %8119 = vmatpush1.bf16.msra.mxu0 %v7755
  %8120 = vmatprep.subr.bf16.mxu0 0
  %8121 = vmatpush1.bf16.msra.mxu0 %v7756
  %8122 = vmatprep.subr.bf16.mxu0 0
  %8123 = vmatpush1.bf16.msra.mxu0 %v7757
  %8124 = vmatprep.subr.bf16.mxu0 0
  %8125 = vmatpush1.bf16.msra.mxu0 %v7758
  %8126 = vmatprep.subr.bf16.mxu0 0
  %8127 = vmatpush1.bf16.msra.mxu0 %v7759
  %8128 = vmatprep.subr.bf16.mxu0 0
  %8129 = vmatpush1.bf16.msra.mxu0 %v7760
  %8130 = vmatprep.subr.bf16.mxu0 0
  %8131 = vmatpush1.bf16.msra.mxu0 %v7761
  %8132 = vmatprep.subr.bf16.mxu0 0
  %8133 = vmatpush1.bf16.msra.mxu0 %v7762
  %8134 = vmatprep.subr.bf16.mxu0 0
  %8135 = vmatpush1.bf16.msra.mxu0 %v7763
  %8136 = vmatprep.mubr.bf16.mxu0 %v6902
  %8137 = vmatmul.mubr.bf16.gmra.mrb[0].mxu0 %v6901
  %v8138 = vpop.f32.mrb[0].mxu0
  %v8139 = vadd.f32 %v8098, %v8138
  %v8140 = vpop.f32.mrb[0].mxu0
  %v8141 = vpop.f32.mrb[0].mxu0
  %v8142 = vadd.f32 %v8101, %v8141
  %v8143 = vpop.f32.mrb[0].mxu0
  %8144 = vdwg.mxu0
  %8145 = vmatprep.subr.bf16.mxu0 0
  %8146 = vmatpush1.bf16.msra.mxu0 %v7764
  %8147 = vmatprep.subr.bf16.mxu0 0
  %8148 = vmatpush1.bf16.msra.mxu0 %v7765
  %8149 = vmatprep.subr.bf16.mxu0 0
  %8150 = vmatpush1.bf16.msra.mxu0 %v7766
  %8151 = vmatprep.subr.bf16.mxu0 0
  %8152 = vmatpush1.bf16.msra.mxu0 %v7767
  %8153 = vmatprep.subr.bf16.mxu0 0
  %8154 = vmatpush1.bf16.msra.mxu0 %v7768
  %8155 = vmatprep.subr.bf16.mxu0 0
  %8156 = vmatpush1.bf16.msra.mxu0 %v7769
  %8157 = vmatprep.subr.bf16.mxu0 0
  %8158 = vmatpush1.bf16.msra.mxu0 %v7770
  %8159 = vmatprep.subr.bf16.mxu0 0
  %8160 = vmatpush1.bf16.msra.mxu0 %v7771
  %8161 = vmatprep.subr.bf16.mxu0 0
  %8162 = vmatpush1.bf16.msra.mxu0 %v7772
  %8163 = vmatprep.subr.bf16.mxu0 0
  %8164 = vmatpush1.bf16.msra.mxu0 %v7773
  %8165 = vmatprep.subr.bf16.mxu0 0
  %8166 = vmatpush1.bf16.msra.mxu0 %v7774
  %8167 = vmatprep.subr.bf16.mxu0 0
  %8168 = vmatpush1.bf16.msra.mxu0 %v7775
  %8169 = vmatprep.subr.bf16.mxu0 0
  %8170 = vmatpush1.bf16.msra.mxu0 %v7776
  %8171 = vmatprep.subr.bf16.mxu0 0
  %8172 = vmatpush1.bf16.msra.mxu0 %v7777
  %8173 = vmatprep.subr.bf16.mxu0 0
  %8174 = vmatpush1.bf16.msra.mxu0 %v7778
  %8175 = vmatprep.subr.bf16.mxu0 0
  %8176 = vmatpush1.bf16.msra.mxu0 %v7779
  %8177 = vmatprep.mubr.bf16.mxu0 %v6904
  %8178 = vmatmul.mubr.bf16.gmra.mrb[0].mxu0 %v6903
  %v8179 = vpop.f32.mrb[0].mxu0
  %v8180 = vadd.f32 %v8139, %v8179
  %v8181 = vpop.f32.mrb[0].mxu0
  %v8182 = vpop.f32.mrb[0].mxu0
  %v8183 = vadd.f32 %v8142, %v8182
  %v8184 = vpop.f32.mrb[0].mxu0
  %8185 = vdwg.mxu0
  %8186 = vmatprep.subr.bf16.mxu0 0
  %8187 = vmatpush1.bf16.msra.mxu0 %v7780
  %8188 = vmatprep.subr.bf16.mxu0 0
  %8189 = vmatpush1.bf16.msra.mxu0 %v7781
  %8190 = vmatprep.subr.bf16.mxu0 0
  %8191 = vmatpush1.bf16.msra.mxu0 %v7782
  %8192 = vmatprep.subr.bf16.mxu0 0
  %8193 = vmatpush1.bf16.msra.mxu0 %v7783
  %8194 = vmatprep.subr.bf16.mxu0 0
  %8195 = vmatpush1.bf16.msra.mxu0 %v7784
  %8196 = vmatprep.subr.bf16.mxu0 0
  %8197 = vmatpush1.bf16.msra.mxu0 %v7785
  %8198 = vmatprep.subr.bf16.mxu0 0
  %8199 = vmatpush1.bf16.msra.mxu0 %v7786
  %8200 = vmatprep.subr.bf16.mxu0 0
  %8201 = vmatpush1.bf16.msra.mxu0 %v7787
  %8202 = vmatprep.subr.bf16.mxu0 0
  %8203 = vmatpush1.bf16.msra.mxu0 %v7788
  %8204 = vmatprep.subr.bf16.mxu0 0
  %8205 = vmatpush1.bf16.msra.mxu0 %v7789
  %8206 = vmatprep.subr.bf16.mxu0 0
  %8207 = vmatpush1.bf16.msra.mxu0 %v7790
  %8208 = vmatprep.subr.bf16.mxu0 0
  %8209 = vmatpush1.bf16.msra.mxu0 %v7791
  %8210 = vmatprep.subr.bf16.mxu0 0
  %8211 = vmatpush1.bf16.msra.mxu0 %v7792
  %8212 = vmatprep.subr.bf16.mxu0 0
  %8213 = vmatpush1.bf16.msra.mxu0 %v7793
  %8214 = vmatprep.subr.bf16.mxu0 0
  %8215 = vmatpush1.bf16.msra.mxu0 %v7794
  %8216 = vmatprep.subr.bf16.mxu0 0
  %8217 = vmatpush1.bf16.msra.mxu0 %v7795
  %8218 = vmatprep.mubr.bf16.mxu0 %v6906
  %8219 = vmatmul.mubr.bf16.gmra.mrb[0].mxu0 %v6905
  %v8220 = vpop.f32.mrb[0].mxu0
  %v8221 = vadd.f32 %v8180, %v8220
  %v8222 = vpop.f32.mrb[0].mxu0
  %v8223 = vpop.f32.mrb[0].mxu0
  %v8224 = vadd.f32 %v8183, %v8223
  %v8225 = vpop.f32.mrb[0].mxu0
  %8226 = vdwg.mxu0
  %8227 = vmatprep.subr.bf16.mxu0 0
  %8228 = vmatpush1.bf16.msra.mxu0 %v7796
  %8229 = vmatprep.subr.bf16.mxu0 0
  %8230 = vmatpush1.bf16.msra.mxu0 %v7797
  %8231 = vmatprep.subr.bf16.mxu0 0
  %8232 = vmatpush1.bf16.msra.mxu0 %v7798
  %8233 = vmatprep.subr.bf16.mxu0 0
  %8234 = vmatpush1.bf16.msra.mxu0 %v7799
  %8235 = vmatprep.subr.bf16.mxu0 0
  %8236 = vmatpush1.bf16.msra.mxu0 %v7800
  %8237 = vmatprep.subr.bf16.mxu0 0
  %8238 = vmatpush1.bf16.msra.mxu0 %v7801
  %8239 = vmatprep.subr.bf16.mxu0 0
  %8240 = vmatpush1.bf16.msra.mxu0 %v7802
  %8241 = vmatprep.subr.bf16.mxu0 0
  %8242 = vmatpush1.bf16.msra.mxu0 %v7803
  %8243 = vmatprep.subr.bf16.mxu0 0
  %8244 = vmatpush1.bf16.msra.mxu0 %v7804
  %8245 = vmatprep.subr.bf16.mxu0 0
  %8246 = vmatpush1.bf16.msra.mxu0 %v7805
  %8247 = vmatprep.subr.bf16.mxu0 0
  %8248 = vmatpush1.bf16.msra.mxu0 %v7806
  %8249 = vmatprep.subr.bf16.mxu0 0
  %8250 = vmatpush1.bf16.msra.mxu0 %v7807
  %8251 = vmatprep.subr.bf16.mxu0 0
  %8252 = vmatpush1.bf16.msra.mxu0 %v7808
  %8253 = vmatprep.subr.bf16.mxu0 0
  %8254 = vmatpush1.bf16.msra.mxu0 %v7809
  %8255 = vmatprep.subr.bf16.mxu0 0
  %8256 = vmatpush1.bf16.msra.mxu0 %v7810
  %8257 = vmatprep.subr.bf16.mxu0 0
  %8258 = vmatpush1.bf16.msra.mxu0 %v7811
  %8259 = vmatprep.mubr.bf16.mxu0 %v6908
  %8260 = vmatmul.mubr.bf16.gmra.mrb[0].mxu0 %v6907
  %v8261 = vpop.f32.mrb[0].mxu0
  %v8262 = vadd.f32 %v8221, %v8261
  %v8263 = vpop.f32.mrb[0].mxu0
  %v8264 = vpop.f32.mrb[0].mxu0
  %v8265 = vadd.f32 %v8224, %v8264
  %v8266 = vpop.f32.mrb[0].mxu0
  %8267 = vdwg.mxu0
  %v8268 = vadd.f32 %v6235, %v8262
  %v8269 = vadd.f32 %v6236, %v8265
  %v8270 = vsel %vm188, %v8268, 0.0
  %8271 = vadd.xlane.f32.xlu0 %v8270
  %v8272 = vpop.xlane.xlu0 %8271
  %v8273 = vsel %vm188, %v8269, 0.0
  %8274 = vadd.xlane.f32.xlu0 %v8273
  %v8275 = vpop.xlane.xlu0 %8274
  %v8276 = vmul.f32 %v8272, %v1435
  %v8277 = vmul.f32 %v8275, %v1435
  %v8278 = vsub.f32 %v8268, %v8276
  %v8279 = vsub.f32 %v8269, %v8277
  %v8280 = vmul.f32 %v8278, %v8278
  %v8281 = vmul.f32 %v8279, %v8279
  %v8282 = vsel %vm188, %v8280, 0.0
  %8283 = vadd.xlane.f32.xlu0 %v8282
  %v8284 = vpop.xlane.xlu0 %8283
  %v8285 = vsel %vm188, %v8281, 0.0
  %8286 = vadd.xlane.f32.xlu0 %v8285
  %v8287 = vpop.xlane.xlu0 %8286
  %v8288 = vmul.f32 %v8284, %v1435
  %v8289 = vmul.f32 %v8287, %v1435
  %v8290 = vadd.f32 %v8288, 1e-05
  %v8291 = vadd.f32 %v8289, 1e-05
  %v8292 = vrsqrt.pop %v8290
  %v8293 = vrsqrt.pop %v8291
  %v8294 = vmul.f32 %v8278, %v8292
  %v8295 = vmul.f32 %v8279, %v8293
  %v8296 = vld [vmem:[%s63] sm:$0x1]
  %v8298 = vlaneseq
  %v8299 = vshrl.u32 %v8298, 7
  %v8300 = vsub.s32 0, %v8299
  %v8301 = vrot.slane %v8296, %v8300
  %v8303 = vmul.f32 %v8294, %v8301
  %v8304 = vmul.f32 %v8295, %v8301
  %v8305 = vld [vmem:[%s65] sm:$0x1]
  %v8307 = vlaneseq
  %v8308 = vshrl.u32 %v8307, 7
  %v8309 = vsub.s32 0, %v8308
  %v8310 = vrot.slane %v8305, %v8309
  %v8312 = vadd.f32 %v8303, %v8310
  %v8313 = vadd.f32 %v8304, %v8310
  %v8314 = vsel %vm188, %v8312, 0.0
  %8315 = vadd.xlane.f32.xlu0 %v8314
  %v8316 = vpop.xlane.xlu0 %8315
  %v8317 = vsel %vm188, %v8313, 0.0
  %8318 = vadd.xlane.f32.xlu0 %v8317
  %v8319 = vpop.xlane.xlu0 %8318
  %v8320 = vmul.f32 %v8316, %v1435
  %v8321 = vmul.f32 %v8319, %v1435
  %v8322 = vsub.f32 %v8312, %v8320
  %v8323 = vsub.f32 %v8313, %v8321
  %v8324 = vmul.f32 %v8322, %v8322
  %v8325 = vmul.f32 %v8323, %v8323
  %v8326 = vsel %vm188, %v8324, 0.0
  %8327 = vadd.xlane.f32.xlu0 %v8326
  %v8328 = vpop.xlane.xlu0 %8327
  %v8329 = vsel %vm188, %v8325, 0.0
  %8330 = vadd.xlane.f32.xlu0 %v8329
  %v8331 = vpop.xlane.xlu0 %8330
  %v8332 = vmul.f32 %v8328, %v1435
  %v8333 = vmul.f32 %v8331, %v1435
  %v8334 = vadd.f32 %v8332, 1e-05
  %v8335 = vadd.f32 %v8333, 1e-05
  %v8336 = vrsqrt.pop %v8334
  %v8337 = vrsqrt.pop %v8335
  %v8338 = vmul.f32 %v8322, %v8336
  %v8339 = vmul.f32 %v8323, %v8337
  %v8340 = vld [vmem:[%s67] sm:$0x1]
  %v8342 = vlaneseq
  %v8343 = vshrl.u32 %v8342, 7
  %v8344 = vsub.s32 0, %v8343
  %v8345 = vrot.slane %v8340, %v8344
  %v8347 = vmul.f32 %v8338, %v8345
  %v8348 = vmul.f32 %v8339, %v8345
  %v8349 = vld [vmem:[%s69] sm:$0x1]
  %v8351 = vlaneseq
  %v8352 = vshrl.u32 %v8351, 7
  %v8353 = vsub.s32 0, %v8352
  %v8354 = vrot.slane %v8349, %v8353
  %v8356 = vadd.f32 %v8347, %v8354
  %v8357 = vadd.f32 %v8348, %v8354
  %v8358 = vld [vmem:[%s71] sm:$0xff]
  %v8359 = vld [vmem:[%s71 + $0x8] sm:$0xff]
  %v8360 = vld [vmem:[%s71 + $0x10] sm:$0xff]
  %v8361 = vld [vmem:[%s71 + $0x18] sm:$0xff]
  %v8362 = vld [vmem:[%s73] sm:$0x1]
  %v8364 = vlaneseq
  %v8365 = vshrl.u32 %v8364, 7
  %v8366 = vsub.s32 0, %v8365
  %v8367 = vrot.slane %v8362, %v8366
  %v8370 = vsel %vm188, %v8356, 0
  %v8373 = vsel %vm188, %v8357, 0
  %8375 = vmatprep.subr.mxu0 0.0
  %8376 = vmatpush1.msra.mxu0 %v8358
  %8377 = vmatprep.subr.mxu0 0.0
  %8378 = vmatpush1.msra.mxu0 %v8359
  %8379 = vmatprep.subr.mxu0 0.0
  %8380 = vmatpush1.msra.mxu0 %v8360
  %8381 = vmatprep.subr.mxu0 0.0
  %8382 = vmatpush1.msra.mxu0 %v8361
  %8383 = vmatprep.subr.mxu0 0.0
  %8384 = vmatpush1.msra.mxu0 0.0
  %8385 = vmatprep.subr.mxu0 0.0
  %8386 = vmatpush1.msra.mxu0 0.0
  %8387 = vmatprep.subr.mxu0 0.0
  %8388 = vmatpush1.msra.mxu0 0.0
  %8389 = vmatprep.subr.mxu0 0.0
  %8390 = vmatpush1.msra.mxu0 0.0
  %8391 = vmatprep.subr.mxu0 0.0
  %8392 = vmatpush1.msra.mxu0 0.0
  %8393 = vmatprep.subr.mxu0 0.0
  %8394 = vmatpush1.msra.mxu0 0.0
  %8395 = vmatprep.subr.mxu0 0.0
  %8396 = vmatpush1.msra.mxu0 0.0
  %8397 = vmatprep.subr.mxu0 0.0
  %8398 = vmatpush1.msra.mxu0 0.0
  %8399 = vmatprep.subr.mxu0 0.0
  %8400 = vmatpush1.msra.mxu0 0.0
  %8401 = vmatprep.subr.mxu0 0.0
  %8402 = vmatpush1.msra.mxu0 0.0
  %8403 = vmatprep.subr.mxu0 0.0
  %8404 = vmatpush1.msra.mxu0 0.0
  %8405 = vmatprep.subr.mxu0 0.0
  %8406 = vmatpush1.msra.mxu0 0.0
  %8407 = vmatprep.subr.mxu0 0.0
  %8408 = vmatpush1.msra.mxu0 0.0
  %8409 = vmatprep.subr.mxu0 0.0
  %8410 = vmatpush1.msra.mxu0 0.0
  %8411 = vmatprep.subr.mxu0 0.0
  %8412 = vmatpush1.msra.mxu0 0.0
  %8413 = vmatprep.subr.mxu0 0.0
  %8414 = vmatpush1.msra.mxu0 0.0
  %8415 = vmatprep.subr.mxu0 0.0
  %8416 = vmatpush1.msra.mxu0 0.0
  %8417 = vmatprep.subr.mxu0 0.0
  %8418 = vmatpush1.msra.mxu0 0.0
  %8419 = vmatprep.subr.mxu0 0.0
  %8420 = vmatpush1.msra.mxu0 0.0
  %8421 = vmatprep.subr.mxu0 0.0
  %8422 = vmatpush1.msra.mxu0 0.0
  %8423 = vmatprep.subr.mxu0 0.0
  %8424 = vmatpush1.msra.mxu0 0.0
  %8425 = vmatprep.subr.mxu0 0.0
  %8426 = vmatpush1.msra.mxu0 0.0
  %8427 = vmatprep.subr.mxu0 0.0
  %8428 = vmatpush1.msra.mxu0 0.0
  %8429 = vmatprep.subr.mxu0 0.0
  %8430 = vmatpush1.msra.mxu0 0.0
  %8431 = vmatprep.subr.mxu0 0.0
  %8432 = vmatpush1.msra.mxu0 0.0
  %8433 = vmatprep.subr.mxu0 0.0
  %8434 = vmatpush1.msra.mxu0 0.0
  %8435 = vmatprep.subr.mxu0 0.0
  %8436 = vmatpush1.msra.mxu0 0.0
  %8437 = vmatprep.subr.mxu0 0.0
  %8438 = vmatpush1.msra.mxu0 0.0
  %8439 = vmatprep.mubr.f32.mxu0 0.0
  %8440 = vmatmul.mubr.f32.gmra.mrb[0].mxu0 %v8370
  %v8441 = vpop.f32.mrb[0].mxu0
  %v8442 = vadd.f32 %v8367, %v8441
  %v8443 = vpop.f32.mrb[0].mxu0
  %8444 = vmatprep.mubr.f32.mxu0 0.0
  %8445 = vmatmul.mubr.f32.gmra.mrb[0].mxu0 %v8373
  %v8446 = vpop.f32.mrb[0].mxu0
  %v8447 = vadd.f32 %v8367, %v8446
  %v8448 = vpop.f32.mrb[0].mxu0
  %8449 = vdwg.mxu0
  %v8450 = vmax.f32 %v8442, 0.0
  %v8451 = vmax.f32 %v8447, 0.0
  %v8452 = vld [vmem:[%s75] sm:$0xff]
  %v8453 = vld [vmem:[%s75 + $0x8] sm:$0xff]
  %v8454 = vld [vmem:[%s75 + $0x10] sm:$0xff]
  %v8455 = vld [vmem:[%s75 + $0x18] sm:$0xff]
  %v8456 = vld [vmem:[%s77] sm:$0x1]
  %v8458 = vlaneseq
  %v8459 = vshrl.u32 %v8458, 7
  %v8460 = vsub.s32 0, %v8459
  %v8461 = vrot.slane %v8456, %v8460
  %v8464 = vsel %vm188, %v8450, 0
  %v8467 = vsel %vm188, %v8451, 0
  %8469 = vmatprep.subr.mxu0 0.0
  %8470 = vmatpush1.msra.mxu0 %v8452
  %8471 = vmatprep.subr.mxu0 0.0
  %8472 = vmatpush1.msra.mxu0 %v8453
  %8473 = vmatprep.subr.mxu0 0.0
  %8474 = vmatpush1.msra.mxu0 %v8454
  %8475 = vmatprep.subr.mxu0 0.0
  %8476 = vmatpush1.msra.mxu0 %v8455
  %8477 = vmatprep.subr.mxu0 0.0
  %8478 = vmatpush1.msra.mxu0 0.0
  %8479 = vmatprep.subr.mxu0 0.0
  %8480 = vmatpush1.msra.mxu0 0.0
  %8481 = vmatprep.subr.mxu0 0.0
  %8482 = vmatpush1.msra.mxu0 0.0
  %8483 = vmatprep.subr.mxu0 0.0
  %8484 = vmatpush1.msra.mxu0 0.0
  %8485 = vmatprep.subr.mxu0 0.0
  %8486 = vmatpush1.msra.mxu0 0.0
  %8487 = vmatprep.subr.mxu0 0.0
  %8488 = vmatpush1.msra.mxu0 0.0
  %8489 = vmatprep.subr.mxu0 0.0
  %8490 = vmatpush1.msra.mxu0 0.0
  %8491 = vmatprep.subr.mxu0 0.0
  %8492 = vmatpush1.msra.mxu0 0.0
  %8493 = vmatprep.subr.mxu0 0.0
  %8494 = vmatpush1.msra.mxu0 0.0
  %8495 = vmatprep.subr.mxu0 0.0
  %8496 = vmatpush1.msra.mxu0 0.0
  %8497 = vmatprep.subr.mxu0 0.0
  %8498 = vmatpush1.msra.mxu0 0.0
  %8499 = vmatprep.subr.mxu0 0.0
  %8500 = vmatpush1.msra.mxu0 0.0
  %8501 = vmatprep.subr.mxu0 0.0
  %8502 = vmatpush1.msra.mxu0 0.0
  %8503 = vmatprep.subr.mxu0 0.0
  %8504 = vmatpush1.msra.mxu0 0.0
  %8505 = vmatprep.subr.mxu0 0.0
  %8506 = vmatpush1.msra.mxu0 0.0
  %8507 = vmatprep.subr.mxu0 0.0
  %8508 = vmatpush1.msra.mxu0 0.0
  %8509 = vmatprep.subr.mxu0 0.0
  %8510 = vmatpush1.msra.mxu0 0.0
  %8511 = vmatprep.subr.mxu0 0.0
  %8512 = vmatpush1.msra.mxu0 0.0
  %8513 = vmatprep.subr.mxu0 0.0
  %8514 = vmatpush1.msra.mxu0 0.0
  %8515 = vmatprep.subr.mxu0 0.0
  %8516 = vmatpush1.msra.mxu0 0.0
  %8517 = vmatprep.subr.mxu0 0.0
  %8518 = vmatpush1.msra.mxu0 0.0
  %8519 = vmatprep.subr.mxu0 0.0
  %8520 = vmatpush1.msra.mxu0 0.0
  %8521 = vmatprep.subr.mxu0 0.0
  %8522 = vmatpush1.msra.mxu0 0.0
  %8523 = vmatprep.subr.mxu0 0.0
  %8524 = vmatpush1.msra.mxu0 0.0
  %8525 = vmatprep.subr.mxu0 0.0
  %8526 = vmatpush1.msra.mxu0 0.0
  %8527 = vmatprep.subr.mxu0 0.0
  %8528 = vmatpush1.msra.mxu0 0.0
  %8529 = vmatprep.subr.mxu0 0.0
  %8530 = vmatpush1.msra.mxu0 0.0
  %8531 = vmatprep.subr.mxu0 0.0
  %8532 = vmatpush1.msra.mxu0 0.0
  %8533 = vmatprep.mubr.f32.mxu0 0.0
  %8534 = vmatmul.mubr.f32.gmra.mrb[0].mxu0 %v8464
  %v8535 = vpop.f32.mrb[0].mxu0
  %v8536 = vadd.f32 %v8461, %v8535
  %v8537 = vpop.f32.mrb[0].mxu0
  %8538 = vmatprep.mubr.f32.mxu0 0.0
  %8539 = vmatmul.mubr.f32.gmra.mrb[0].mxu0 %v8467
  %v8540 = vpop.f32.mrb[0].mxu0
  %v8541 = vadd.f32 %v8461, %v8540
  %v8542 = vpop.f32.mrb[0].mxu0
  %8543 = vdwg.mxu0
  %v8544 = vadd.f32 %v8536, %v8312
  %v8545 = vadd.f32 %v8541, %v8313
  %v8546 = vld [vmem:[%s79] sm:$0xff]
  %v8547 = vld [vmem:[%s79 + $0x8] sm:$0xff]
  %v8548 = vld [vmem:[%s79 + $0x10] sm:$0xff]
  %v8549 = vld [vmem:[%s79 + $0x18] sm:$0xff]
  %v8550 = vld [vmem:[#allocation2] sm:$0x1]
  %v8552 = vlaneseq
  %v8553 = vshrl.u32 %v8552, 7
  %v8554 = vsub.s32 0, %v8553
  %v8555 = vrot.slane %v8550, %v8554
  %v8558 = vsel %vm188, %v8544, 0
  %v8561 = vsel %vm188, %v8545, 0
  %8563 = vmatprep.subr.mxu0 0.0
  %8564 = vmatpush1.msra.mxu0 %v8546
  %8565 = vmatprep.subr.mxu0 0.0
  %8566 = vmatpush1.msra.mxu0 %v8547
  %8567 = vmatprep.subr.mxu0 0.0
  %8568 = vmatpush1.msra.mxu0 %v8548
  %8569 = vmatprep.subr.mxu0 0.0
  %8570 = vmatpush1.msra.mxu0 %v8549
  %8571 = vmatprep.subr.mxu0 0.0
  %8572 = vmatpush1.msra.mxu0 0.0
  %8573 = vmatprep.subr.mxu0 0.0
  %8574 = vmatpush1.msra.mxu0 0.0
  %8575 = vmatprep.subr.mxu0 0.0
  %8576 = vmatpush1.msra.mxu0 0.0
  %8577 = vmatprep.subr.mxu0 0.0
  %8578 = vmatpush1.msra.mxu0 0.0
  %8579 = vmatprep.subr.mxu0 0.0
  %8580 = vmatpush1.msra.mxu0 0.0
  %8581 = vmatprep.subr.mxu0 0.0
  %8582 = vmatpush1.msra.mxu0 0.0
  %8583 = vmatprep.subr.mxu0 0.0
  %8584 = vmatpush1.msra.mxu0 0.0
  %8585 = vmatprep.subr.mxu0 0.0
  %8586 = vmatpush1.msra.mxu0 0.0
  %8587 = vmatprep.subr.mxu0 0.0
  %8588 = vmatpush1.msra.mxu0 0.0
  %8589 = vmatprep.subr.mxu0 0.0
  %8590 = vmatpush1.msra.mxu0 0.0
  %8591 = vmatprep.subr.mxu0 0.0
  %8592 = vmatpush1.msra.mxu0 0.0
  %8593 = vmatprep.subr.mxu0 0.0
  %8594 = vmatpush1.msra.mxu0 0.0
  %8595 = vmatprep.subr.mxu0 0.0
  %8596 = vmatpush1.msra.mxu0 0.0
  %8597 = vmatprep.subr.mxu0 0.0
  %8598 = vmatpush1.msra.mxu0 0.0
  %8599 = vmatprep.subr.mxu0 0.0
  %8600 = vmatpush1.msra.mxu0 0.0
  %8601 = vmatprep.subr.mxu0 0.0
  %8602 = vmatpush1.msra.mxu0 0.0
  %8603 = vmatprep.subr.mxu0 0.0
  %8604 = vmatpush1.msra.mxu0 0.0
  %8605 = vmatprep.subr.mxu0 0.0
  %8606 = vmatpush1.msra.mxu0 0.0
  %8607 = vmatprep.subr.mxu0 0.0
  %8608 = vmatpush1.msra.mxu0 0.0
  %8609 = vmatprep.subr.mxu0 0.0
  %8610 = vmatpush1.msra.mxu0 0.0
  %8611 = vmatprep.subr.mxu0 0.0
  %8612 = vmatpush1.msra.mxu0 0.0
  %8613 = vmatprep.subr.mxu0 0.0
  %8614 = vmatpush1.msra.mxu0 0.0
  %8615 = vmatprep.subr.mxu0 0.0
  %8616 = vmatpush1.msra.mxu0 0.0
  %8617 = vmatprep.subr.mxu0 0.0
  %8618 = vmatpush1.msra.mxu0 0.0
  %8619 = vmatprep.subr.mxu0 0.0
  %8620 = vmatpush1.msra.mxu0 0.0
  %8621 = vmatprep.subr.mxu0 0.0
  %8622 = vmatpush1.msra.mxu0 0.0
  %8623 = vmatprep.subr.mxu0 0.0
  %8624 = vmatpush1.msra.mxu0 0.0
  %8625 = vmatprep.subr.mxu0 0.0
  %8626 = vmatpush1.msra.mxu0 0.0
  %8627 = vmatprep.mubr.f32.mxu0 0.0
  %8628 = vmatmul.mubr.f32.gmra.mrb[0].mxu0 %v8558
  %v8629 = vpop.f32.mrb[0].mxu0
  %v8630 = vadd.f32 %v8555, %v8629
  %v8631 = vpop.f32.mrb[0].mxu0
  %8632 = vmatprep.mubr.f32.mxu0 0.0
  %8633 = vmatmul.mubr.f32.gmra.mrb[0].mxu0 %v8561
  %v8634 = vpop.f32.mrb[0].mxu0
  %v8635 = vadd.f32 %v8555, %v8634
  %v8636 = vpop.f32.mrb[0].mxu0
  %8637 = vdwg.mxu0
  %8639 = vset.pattern.permute.xlu0 0
  %8640 = vperm.xlu0 %8639, %v8630
  %v8641 = vpop.permute.xlu0 %8640
  %8644 = vset.pattern.permute.xlu0 0
  %8645 = vperm.xlu0 %8644, %v8635
  %v8646 = vpop.permute.xlu0 %8645
  %8648 = vst [vmem:[%s83] sm:$0xff] %v8641
  %8649 = vst [vmem:[%s83 + $0x8] sm:$0xff] %v8646
  // Predicated region
  $region166: #{sakt_forward.1} parent=0 // pred_check
    _
  $region167: #{sakt_forward.1} parent=0 // pred_check_branch
    %8651 = sbr.rel (0) target = $region169
  $region168: #{sakt_forward.1} parent=0 // pred_region
    _
  $region169: #{sakt_forward.1} parent=0 // pred_fallthru
    _
  // Predicated region
  $region170: #{sakt_forward.1} parent=0 // pred_check
    _
  $region171: #{sakt_forward.1} parent=0 // pred_check_branch
    %8653 = sbr.rel (0) target = $region173
  $region172: #{sakt_forward.1} parent=0 // pred_region
    _
  $region173: #{sakt_forward.1} parent=0 // pred_fallthru
    _

</llo_original>
